<compile_context>
chip_gen: v7x
topology: tpu7x:2x2x1
jax: 0.10.0
libtpu: 0.0.40
codegen_flags: <defaults>
</compile_context>

<pallas_src>
import jax
import jax.numpy as jnp
from jax import lax
from jax.experimental import pallas as pl
from jax.experimental.pallas import tpu as pltpu

BN_EPS = 1e-5


# ---------------------------------------------------------------------------
# Fused Conv2d(stride 1, SAME) + ReLU + eval-BatchNorm + MaxPool Pallas kernel
# Activation layout: (H, C, W) per image, W on the lane axis.
# ---------------------------------------------------------------------------
def _make_conv_kernel(K, pool, H, W, Cin, Cout):
    Ho, Wo = H // pool, W // pool

    def kernel(x_ref, w_ref, scale_ref, shift_ref, sel_ref, o_ref):
        # x_ref   : (H + 2p, Cin, W + 2p) zero-padded image
        # w_ref   : (K, Cout, K*Cin)      w[kh, co, kw*Cin + ci]
        # scale   : (Cout, 1), shift: (Cout, 1) fused eval-mode BatchNorm affine
        # sel_ref : (W, pool*Wo) 0/1 column-permutation matrix for width pooling
        # o_ref   : (Ho, Cout, Wo)
        # Hoist loop-invariant broadcasts (JAX does not CSE broadcast_in_dim).
        scale_b = jnp.broadcast_to(scale_ref[...], (Cout, W))
        shift_b = jnp.broadcast_to(shift_ref[...], (Cout, W))

        def row_body(ho, carry):
            base = ho * pool
            # One accumulator per conv row inside this pooling window.
            accs = [jnp.zeros((Cout, W), jnp.float32) for _ in range(pool)]
            # Each padded input row `base + t` feeds conv row `base + r`
            # through weight row kh = t - r.  Build its (K*Cin, W) patch once.
            for t in range(pool + K - 1):
                xrow = x_ref[base + t]                                # (Cin, W+2p)
                patch = jnp.concatenate(
                    [xrow[:, kw:kw + W] for kw in range(K)], axis=0)  # (K*Cin, W)
                for r in range(pool):
                    kh = t - r
                    if 0 <= kh < K:
                        accs[r] = accs[r] + jnp.dot(
                            w_ref[kh], patch,
                            preferred_element_type=jnp.float32)
            # ReLU -> BatchNorm(eval) -> max over the `pool` conv rows.
            rowmax = None
            for r in range(pool):
                y = jnp.maximum(accs[r], 0.0) * scale_b + shift_b
                rowmax = y if rowmax is None else jnp.maximum(rowmax, y)
            # Width pooling: permutation matmul groups columns by phase, then
            # elementwise max over the `pool` phase blocks (all lane-dense).
            pc = jnp.dot(rowmax, sel_ref[...],
                         preferred_element_type=jnp.float32)          # (Cout, pool*Wo)
            pooled = pc[:, 0:Wo]
            for j in range(1, pool):
                pooled = jnp.maximum(pooled, pc[:, j * Wo:(j + 1) * Wo])
            o_ref[ho] = pooled.astype(o_ref.dtype)
            return carry

        lax.fori_loop(0, Ho, row_body, 0)

    return kernel


def conv_relu_bn_pool(x, w_hwio, scale, shift, *, K, pool):
    """x: (N, H, Cin, W) float32 -> (N, H//pool, Cout, W//pool)."""
    N, H, Cin, W = x.shape
    assert w_hwio.shape[0] == K and w_hwio.shape[1] == K and w_hwio.shape[2] == Cin
    Cout = w_hwio.shape[3]
    assert H % pool == 0 and W % pool == 0
    p = K // 2

    # Pad channels to a multiple of 8 (sublane tile) with zeros; zero weights
    # make the extra channels inert.  Only layer 1 (Cin=3) triggers this.
    cpad = (-Cin) % 8
    if cpad:
        x = jnp.pad(x, ((0, 0), (0, 0), (0, cpad), (0, 0)))
        w_hwio = jnp.pad(w_hwio, ((0, 0), (0, 0), (0, cpad), (0, 0)))
        Cin += cpad

    # Spatial zero padding for SAME, stride-1 convolution.
    xp = jnp.pad(x, ((0, 0), (p, p), (0, 0), (p, p)))
    Hp, Wp = H + 2 * p, W + 2 * p
    Ho, Wo = H // pool, W // pool

    # Weights: (K, Cout, K*Cin) with w_r[kh, co, kw*Cin + ci] = w[kh, kw, ci, co].
    w_r = jnp.transpose(w_hwio, (0, 3, 1, 2)).reshape(K, Cout, K * Cin)
    scale2 = scale.reshape(Cout, 1).astype(jnp.float32)
    shift2 = shift.reshape(Cout, 1).astype(jnp.float32)

    # Width-pool selection matrix: source lane w = wo*pool + j maps to
    # column j*Wo + wo, so phase blocks become contiguous lane ranges.
    widx = jnp.arange(W)
    sel = jax.nn.one_hot((widx % pool) * Wo + widx // pool,
                         pool * Wo, dtype=jnp.float32)                 # (W, pool*Wo)

    kernel = _make_conv_kernel(K, pool, H, W, Cin, Cout)
    return pl.pallas_call(
        kernel,
        out_shape=jax.ShapeDtypeStruct((N, Ho, Cout, Wo), jnp.float32),
        grid=(N,),
        in_specs=[
            pl.BlockSpec((None, Hp, Cin, Wp), lambda n: (n, 0, 0, 0)),
            pl.BlockSpec((K, Cout, K * Cin), lambda n: (0, 0, 0)),
            pl.BlockSpec((Cout, 1), lambda n: (0, 0)),
            pl.BlockSpec((Cout, 1), lambda n: (0, 0)),
            pl.BlockSpec((W, pool * Wo), lambda n: (0, 0)),
        ],
        out_specs=pl.BlockSpec((None, Ho, Cout, Wo), lambda n: (n, 0, 0, 0)),
        compiler_params=pltpu.CompilerParams(
            dimension_semantics=("parallel",)),
    )(xp, w_r, scale2, shift2, sel)


# ---------------------------------------------------------------------------
# Fused FC head: Linear(1024->16) + LeakyReLU(0.1) + Linear(16->num_classes)
# ---------------------------------------------------------------------------
def fc_head(feat, w1, b1, w2, b2):
    N, F = feat.shape
    nc = w2.shape[1]

    def kernel(x_ref, w1_ref, b1_ref, w2_ref, b2_ref, o_ref):
        h = jnp.dot(x_ref[...], w1_ref[...],
                    preferred_element_type=jnp.float32) + b1_ref[...]
        h = jnp.where(h >= 0.0, h, 0.1 * h)          # LeakyReLU(0.1)
        o_ref[...] = jnp.dot(h, w2_ref[...],
                             preferred_element_type=jnp.float32) + b2_ref[...]

    return pl.pallas_call(
        kernel,
        out_shape=jax.ShapeDtypeStruct((N, nc), jnp.float32),
        grid=(1,),
        in_specs=[
            pl.BlockSpec((N, F), lambda i: (0, 0)),
            pl.BlockSpec(w1.shape, lambda i: (0, 0)),
            pl.BlockSpec(b1.shape, lambda i: (0, 0)),
            pl.BlockSpec(w2.shape, lambda i: (0, 0)),
            pl.BlockSpec(b2.shape, lambda i: (0, 0)),
        ],
        out_specs=pl.BlockSpec((N, nc), lambda i: (0, 0)),
    )(feat, w1, b1, w2, b2)


# ---------------------------------------------------------------------------
# Meso4 forward (Pallas pipeline) and pure-JAX reference
# ---------------------------------------------------------------------------
def meso4_forward(x_nchw, params):
    # NCHW -> (N, H, C, W): width on the lane axis for the whole conv stack.
    x = jnp.transpose(x_nchw, (0, 2, 1, 3)).astype(jnp.float32)
    x = conv_relu_bn_pool(x, params["w1"], params["bn1_scale"], params["bn1_shift"],
                          K=3, pool=2)                                 # (N,128,  8,128)
    x = conv_relu_bn_pool(x, params["w2"], params["bn1_scale"], params["bn1_shift"],
                          K=5, pool=2)                                 # (N, 64,  8, 64)
    x = conv_relu_bn_pool(x, params["w3"], params["bn2_scale"], params["bn2_shift"],
                          K=5, pool=2)                                 # (N, 32, 16, 32)
    x = conv_relu_bn_pool(x, params["w4"], params["bn2_scale"], params["bn2_shift"],
                          K=5, pool=4)                                 # (N,  8, 16,  8)
    N, Ho, C, Wo = x.shape
    feat = x.reshape(N, Ho * C * Wo)                 # contiguous -> free reshape
    # PyTorch flattens NCHW as (c, h, w); our features are (h, c, w): permute
    # fc1's rows once instead of transposing the activations.
    w1 = jnp.transpose(params["fc1_w"].reshape(C, Ho, Wo, -1),
                       (1, 0, 2, 3)).reshape(Ho * C * Wo, -1)
    # Dropout2d(0.5) is the identity in eval mode (applied twice in the head).
    return fc_head(feat, w1, params["fc1_b"], params["fc2_w"], params["fc2_b"])


def ref_forward(x_nchw, params):
    x = jnp.transpose(x_nchw, (0, 2, 3, 1)).astype(jnp.float32)        # NHWC

    def block(x, w, scale, shift, pool):
        y = lax.conv_general_dilated(
            x, w, window_strides=(1, 1), padding="SAME",
            dimension_numbers=("NHWC", "HWIO", "NHWC"),
            precision=lax.Precision.HIGHEST)
        y = jnp.maximum(y, 0.0) * scale.reshape(1, 1, 1, -1) + shift.reshape(1, 1, 1, -1)
        return lax.reduce_window(y, -jnp.inf, lax.max,
                                 (1, pool, pool, 1), (1, pool, pool, 1), "VALID")

    x = block(x, params["w1"], params["bn1_scale"], params["bn1_shift"], 2)
    x = block(x, params["w2"], params["bn1_scale"], params["bn1_shift"], 2)
    x = block(x, params["w3"], params["bn2_scale"], params["bn2_shift"], 2)
    x = block(x, params["w4"], params["bn2_scale"], params["bn2_shift"], 4)
    feat = jnp.transpose(x, (0, 3, 1, 2)).reshape(x.shape[0], -1)      # NCHW flatten
    h = jnp.dot(feat, params["fc1_w"], precision=lax.Precision.HIGHEST) + params["fc1_b"]
    h = jnp.where(h >= 0.0, h, 0.1 * h)
    return jnp.dot(h, params["fc2_w"], precision=lax.Precision.HIGHEST) + params["fc2_b"]


# ---------------------------------------------------------------------------
# Deterministic synthetic parameters (shapes from Meso4.__init__)
# ---------------------------------------------------------------------------
def init_params(key, num_classes=2):
    ks = jax.random.split(key, 10)

    def conv_w(k, ksize, cin, cout):
        # HWIO layout (PyTorch Conv2d weight (cout, cin, kh, kw) transposed)
        return 0.1 * jax.random.normal(k, (ksize, ksize, cin, cout), jnp.float32)

    def bn_affine(k, c):
        kg, kb, km, kv = jax.random.split(k, 4)
        gamma = 1.0 + 0.1 * jax.random.normal(kg, (c,), jnp.float32)
        beta = 0.1 * jax.random.normal(kb, (c,), jnp.float32)
        mean = 0.1 * jax.random.normal(km, (c,), jnp.float32)
        var = jax.random.uniform(kv, (c,), jnp.float32, minval=0.5, maxval=1.5)
        scale = gamma * lax.rsqrt(var + BN_EPS)
        shift = beta - mean * scale
        return scale.reshape(1, c), shift.reshape(1, c)

    # The PyTorch forward reuses bn1 (8 ch) after conv1 & conv2 and bn2 (16 ch)
    # after conv3 & conv4 — mirrored here.
    bn1_scale, bn1_shift = bn_affine(ks[4], 8)
    bn2_scale, bn2_shift = bn_affine(ks[5], 16)
    return dict(
        w1=conv_w(ks[0], 3, 3, 8),
        w2=conv_w(ks[1], 5, 8, 8),
        w3=conv_w(ks[2], 5, 8, 16),
        w4=conv_w(ks[3], 5, 16, 16),
        bn1_scale=bn1_scale, bn1_shift=bn1_shift,
        bn2_scale=bn2_scale, bn2_shift=bn2_shift,
        fc1_w=(1.0 / 32.0) * jax.random.normal(ks[6], (16 * 8 * 8, 16), jnp.float32),
        fc1_b=0.05 * jax.random.normal(ks[7], (1, 16), jnp.float32),
        fc2_w=0.25 * jax.random.normal(ks[8], (16, num_classes), jnp.float32),
        fc2_b=0.05 * jax.random.normal(ks[9], (1, num_classes), jnp.float32),
    )


if __name__ == "__main__":
    key = jax.random.PRNGKey(0)
    pkey, xkey = jax.random.split(key)
    params = init_params(pkey, num_classes=2)
    # Meso4's fc1 (16*8*8 -> 16) pins the input to 3x256x256; batch kept small.
    x = jax.random.normal(xkey, (2, 3, 256, 256), dtype=jnp.float32)

    out = jax.jit(meso4_forward)(x, params)
    out = jax.block_until_ready(out)

    ref = jax.jit(ref_forward)(x, params)
    ref = jax.block_until_ready(ref)

    assert out.shape == (2, 2), out.shape
    assert bool(jnp.all(jnp.isfinite(out)))
    assert bool(jnp.allclose(out, ref, atol=5e-3, rtol=5e-2)), (out, ref)
    print("KERNEL_OK")
</pallas_src>

<mosaic_0001>
module attributes {stable_mosaic.version = 11 : i64} {
  func.func @kernel(%arg0: i32, %arg1: memref<1x258x8x258xf32, #tpu.memory_space<vmem>>, %arg2: memref<3x8x24xf32, #tpu.memory_space<vmem>>, %arg3: memref<8x1xf32, #tpu.memory_space<vmem>>, %arg4: memref<8x1xf32, #tpu.memory_space<vmem>>, %arg5: memref<256x256xf32, #tpu.memory_space<vmem>>, %arg6: memref<1x128x8x128xf32, #tpu.memory_space<vmem>>) attributes {dimension_semantics = [#tpu.dimension_semantics<parallel>], iteration_bounds = array<i64: 2>, scalar_prefetch = 0 : i64, scratch_operands = 0 : i64, tpu.core_type = #tpu.core_type<tc>, window_params = [{transform_indices = @transform_0, window_bounds = array<i64: 1, 258, 8, 258>}, {pipeline_mode = #tpu.pipeline_mode<synchronous>, transform_indices = @transform_1, window_bounds = array<i64: 3, 8, 24>}, {pipeline_mode = #tpu.pipeline_mode<synchronous>, transform_indices = @transform_2, window_bounds = array<i64: 8, 1>}, {pipeline_mode = #tpu.pipeline_mode<synchronous>, transform_indices = @transform_3, window_bounds = array<i64: 8, 1>}, {pipeline_mode = #tpu.pipeline_mode<synchronous>, transform_indices = @transform_4, window_bounds = array<i64: 256, 256>}, {transform_indices = @transform_5, window_bounds = array<i64: 1, 128, 8, 128>}]} {
    %c0 = arith.constant 0 : index
    %c0_0 = arith.constant 0 : index
    %0 = vector.load %arg3[%c0, %c0_0] : memref<8x1xf32, #tpu.memory_space<vmem>>, vector<8x1xf32>
    %1 = vector.shape_cast %0 : vector<8x1xf32> to vector<8x1xf32>
    %2 = vector.broadcast %1 : vector<8x1xf32> to vector<8x256xf32>
    %c0_1 = arith.constant 0 : index
    %c0_2 = arith.constant 0 : index
    %3 = vector.load %arg4[%c0_1, %c0_2] : memref<8x1xf32, #tpu.memory_space<vmem>>, vector<8x1xf32>
    %4 = vector.shape_cast %3 : vector<8x1xf32> to vector<8x1xf32>
    %5 = vector.broadcast %4 : vector<8x1xf32> to vector<8x256xf32>
    %c0_i32 = arith.constant 0 : i32
    %c128_i32 = arith.constant 128 : i32
    %6 = arith.addi %c0_i32, %c128_i32 : i32
    %c1_i32 = arith.constant 1 : i32
    scf.for %arg7 = %c0_i32 to %6 step %c1_i32  : i32 {
      %c2_i32 = arith.constant 2 : i32
      %7 = arith.muli %arg7, %c2_i32 : i32
      %cst = arith.constant 0.000000e+00 : f32
      %8 = vector.broadcast %cst : f32 to vector<8x256xf32>
      %cst_4 = arith.constant 0.000000e+00 : f32
      %9 = vector.broadcast %cst_4 : f32 to vector<8x256xf32>
      %c0_i32_5 = arith.constant 0 : i32
      %10 = arith.addi %7, %c0_i32_5 : i32
      %c0_6 = arith.constant 0 : index
      %11 = arith.index_cast %10 : i32 to index
      %c0_7 = arith.constant 0 : index
      %c0_8 = arith.constant 0 : index
      %12 = vector.load %arg1[%c0_6, %11, %c0_7, %c0_8] : memref<1x258x8x258xf32, #tpu.memory_space<vmem>>, vector<1x1x8x258xf32>
      %13 = vector.shape_cast %12 : vector<1x1x8x258xf32> to vector<8x258xf32>
      %14 = vector.extract_strided_slice %13 {offsets = [0, 0], sizes = [8, 256], strides = [1, 1]} : vector<8x258xf32> to vector<8x256xf32>
      %15 = vector.extract_strided_slice %13 {offsets = [0, 1], sizes = [8, 256], strides = [1, 1]} : vector<8x258xf32> to vector<8x256xf32>
      %16 = vector.extract_strided_slice %13 {offsets = [0, 2], sizes = [8, 256], strides = [1, 1]} : vector<8x258xf32> to vector<8x256xf32>
      %17 = tpu.concatenate %14, %15, %16 in 0 : vector<8x256xf32>, vector<8x256xf32>, vector<8x256xf32> -> vector<24x256xf32>
      %c0_9 = arith.constant 0 : index
      %c0_10 = arith.constant 0 : index
      %c0_11 = arith.constant 0 : index
      %18 = vector.load %arg2[%c0_9, %c0_10, %c0_11] : memref<3x8x24xf32, #tpu.memory_space<vmem>>, vector<1x8x24xf32>
      %19 = vector.shape_cast %18 : vector<1x8x24xf32> to vector<8x24xf32>
      %cst_12 = arith.constant dense<0.000000e+00> : vector<8x256xf32>
      %20 = tpu.matmul %19, %17, %cst_12 {dimension_numbers = #tpu.dot_dimension_numbers<[1], [0], [0], [1], [0, 0, 1, 1], [], []>} : vector<8x24xf32>, vector<24x256xf32>, vector<8x256xf32> -> vector<8x256xf32>
      %21 = arith.addf %8, %20 : vector<8x256xf32>
      %c1_i32_13 = arith.constant 1 : i32
      %22 = arith.addi %7, %c1_i32_13 : i32
      %c0_14 = arith.constant 0 : index
      %23 = arith.index_cast %22 : i32 to index
      %c0_15 = arith.constant 0 : index
      %c0_16 = arith.constant 0 : index
      %24 = vector.load %arg1[%c0_14, %23, %c0_15, %c0_16] : memref<1x258x8x258xf32, #tpu.memory_space<vmem>>, vector<1x1x8x258xf32>
      %25 = vector.shape_cast %24 : vector<1x1x8x258xf32> to vector<8x258xf32>
      %26 = vector.extract_strided_slice %25 {offsets = [0, 0], sizes = [8, 256], strides = [1, 1]} : vector<8x258xf32> to vector<8x256xf32>
      %27 = vector.extract_strided_slice %25 {offsets = [0, 1], sizes = [8, 256], strides = [1, 1]} : vector<8x258xf32> to vector<8x256xf32>
      %28 = vector.extract_strided_slice %25 {offsets = [0, 2], sizes = [8, 256], strides = [1, 1]} : vector<8x258xf32> to vector<8x256xf32>
      %29 = tpu.concatenate %26, %27, %28 in 0 : vector<8x256xf32>, vector<8x256xf32>, vector<8x256xf32> -> vector<24x256xf32>
      %c1 = arith.constant 1 : index
      %c0_17 = arith.constant 0 : index
      %c0_18 = arith.constant 0 : index
      %30 = vector.load %arg2[%c1, %c0_17, %c0_18] : memref<3x8x24xf32, #tpu.memory_space<vmem>>, vector<1x8x24xf32>
      %31 = vector.shape_cast %30 : vector<1x8x24xf32> to vector<8x24xf32>
      %cst_19 = arith.constant dense<0.000000e+00> : vector<8x256xf32>
      %32 = tpu.matmul %31, %29, %cst_19 {dimension_numbers = #tpu.dot_dimension_numbers<[1], [0], [0], [1], [0, 0, 1, 1], [], []>} : vector<8x24xf32>, vector<24x256xf32>, vector<8x256xf32> -> vector<8x256xf32>
      %33 = arith.addf %21, %32 : vector<8x256xf32>
      %c0_20 = arith.constant 0 : index
      %c0_21 = arith.constant 0 : index
      %c0_22 = arith.constant 0 : index
      %34 = vector.load %arg2[%c0_20, %c0_21, %c0_22] : memref<3x8x24xf32, #tpu.memory_space<vmem>>, vector<1x8x24xf32>
      %35 = vector.shape_cast %34 : vector<1x8x24xf32> to vector<8x24xf32>
      %cst_23 = arith.constant dense<0.000000e+00> : vector<8x256xf32>
      %36 = tpu.matmul %35, %29, %cst_23 {dimension_numbers = #tpu.dot_dimension_numbers<[1], [0], [0], [1], [0, 0, 1, 1], [], []>} : vector<8x24xf32>, vector<24x256xf32>, vector<8x256xf32> -> vector<8x256xf32>
      %37 = arith.addf %9, %36 : vector<8x256xf32>
      %c2_i32_24 = arith.constant 2 : i32
      %38 = arith.addi %7, %c2_i32_24 : i32
      %c0_25 = arith.constant 0 : index
      %39 = arith.index_cast %38 : i32 to index
      %c0_26 = arith.constant 0 : index
      %c0_27 = arith.constant 0 : index
      %40 = vector.load %arg1[%c0_25, %39, %c0_26, %c0_27] : memref<1x258x8x258xf32, #tpu.memory_space<vmem>>, vector<1x1x8x258xf32>
      %41 = vector.shape_cast %40 : vector<1x1x8x258xf32> to vector<8x258xf32>
      %42 = vector.extract_strided_slice %41 {offsets = [0, 0], sizes = [8, 256], strides = [1, 1]} : vector<8x258xf32> to vector<8x256xf32>
      %43 = vector.extract_strided_slice %41 {offsets = [0, 1], sizes = [8, 256], strides = [1, 1]} : vector<8x258xf32> to vector<8x256xf32>
      %44 = vector.extract_strided_slice %41 {offsets = [0, 2], sizes = [8, 256], strides = [1, 1]} : vector<8x258xf32> to vector<8x256xf32>
      %45 = tpu.concatenate %42, %43, %44 in 0 : vector<8x256xf32>, vector<8x256xf32>, vector<8x256xf32> -> vector<24x256xf32>
      %c2 = arith.constant 2 : index
      %c0_28 = arith.constant 0 : index
      %c0_29 = arith.constant 0 : index
      %46 = vector.load %arg2[%c2, %c0_28, %c0_29] : memref<3x8x24xf32, #tpu.memory_space<vmem>>, vector<1x8x24xf32>
      %47 = vector.shape_cast %46 : vector<1x8x24xf32> to vector<8x24xf32>
      %cst_30 = arith.constant dense<0.000000e+00> : vector<8x256xf32>
      %48 = tpu.matmul %47, %45, %cst_30 {dimension_numbers = #tpu.dot_dimension_numbers<[1], [0], [0], [1], [0, 0, 1, 1], [], []>} : vector<8x24xf32>, vector<24x256xf32>, vector<8x256xf32> -> vector<8x256xf32>
      %49 = arith.addf %33, %48 : vector<8x256xf32>
      %c1_31 = arith.constant 1 : index
      %c0_32 = arith.constant 0 : index
      %c0_33 = arith.constant 0 : index
      %50 = vector.load %arg2[%c1_31, %c0_32, %c0_33] : memref<3x8x24xf32, #tpu.memory_space<vmem>>, vector<1x8x24xf32>
      %51 = vector.shape_cast %50 : vector<1x8x24xf32> to vector<8x24xf32>
      %cst_34 = arith.constant dense<0.000000e+00> : vector<8x256xf32>
      %52 = tpu.matmul %51, %45, %cst_34 {dimension_numbers = #tpu.dot_dimension_numbers<[1], [0], [0], [1], [0, 0, 1, 1], [], []>} : vector<8x24xf32>, vector<24x256xf32>, vector<8x256xf32> -> vector<8x256xf32>
      %53 = arith.addf %37, %52 : vector<8x256xf32>
      %c3_i32 = arith.constant 3 : i32
      %54 = arith.addi %7, %c3_i32 : i32
      %c0_35 = arith.constant 0 : index
      %55 = arith.index_cast %54 : i32 to index
      %c0_36 = arith.constant 0 : index
      %c0_37 = arith.constant 0 : index
      %56 = vector.load %arg1[%c0_35, %55, %c0_36, %c0_37] : memref<1x258x8x258xf32, #tpu.memory_space<vmem>>, vector<1x1x8x258xf32>
      %57 = vector.shape_cast %56 : vector<1x1x8x258xf32> to vector<8x258xf32>
      %58 = vector.extract_strided_slice %57 {offsets = [0, 0], sizes = [8, 256], strides = [1, 1]} : vector<8x258xf32> to vector<8x256xf32>
      %59 = vector.extract_strided_slice %57 {offsets = [0, 1], sizes = [8, 256], strides = [1, 1]} : vector<8x258xf32> to vector<8x256xf32>
      %60 = vector.extract_strided_slice %57 {offsets = [0, 2], sizes = [8, 256], strides = [1, 1]} : vector<8x258xf32> to vector<8x256xf32>
      %61 = tpu.concatenate %58, %59, %60 in 0 : vector<8x256xf32>, vector<8x256xf32>, vector<8x256xf32> -> vector<24x256xf32>
      %c2_38 = arith.constant 2 : index
      %c0_39 = arith.constant 0 : index
      %c0_40 = arith.constant 0 : index
      %62 = vector.load %arg2[%c2_38, %c0_39, %c0_40] : memref<3x8x24xf32, #tpu.memory_space<vmem>>, vector<1x8x24xf32>
      %63 = vector.shape_cast %62 : vector<1x8x24xf32> to vector<8x24xf32>
      %cst_41 = arith.constant dense<0.000000e+00> : vector<8x256xf32>
      %64 = tpu.matmul %63, %61, %cst_41 {dimension_numbers = #tpu.dot_dimension_numbers<[1], [0], [0], [1], [0, 0, 1, 1], [], []>} : vector<8x24xf32>, vector<24x256xf32>, vector<8x256xf32> -> vector<8x256xf32>
      %65 = arith.addf %53, %64 : vector<8x256xf32>
      %cst_42 = arith.constant 0.000000e+00 : f32
      %66 = vector.broadcast %cst_42 : f32 to vector<8x256xf32>
      %67 = arith.maximumf %49, %66 : vector<8x256xf32>
      %68 = arith.mulf %67, %2 : vector<8x256xf32>
      %69 = arith.addf %68, %5 : vector<8x256xf32>
      %cst_43 = arith.constant 0.000000e+00 : f32
      %70 = vector.broadcast %cst_43 : f32 to vector<8x256xf32>
      %71 = arith.maximumf %65, %70 : vector<8x256xf32>
      %72 = arith.mulf %71, %2 : vector<8x256xf32>
      %73 = arith.addf %72, %5 : vector<8x256xf32>
      %74 = arith.maximumf %69, %73 : vector<8x256xf32>
      %c0_44 = arith.constant 0 : index
      %c0_45 = arith.constant 0 : index
      %75 = vector.load %arg5[%c0_44, %c0_45] : memref<256x256xf32, #tpu.memory_space<vmem>>, vector<256x256xf32>
      %cst_46 = arith.constant dense<0.000000e+00> : vector<8x256xf32>
      %76 = tpu.matmul %74, %75, %cst_46 {dimension_numbers = #tpu.dot_dimension_numbers<[1], [0], [0], [1], [0, 0, 1, 1], [], []>} : vector<8x256xf32>, vector<256x256xf32>, vector<8x256xf32> -> vector<8x256xf32>
      %77 = vector.extract_strided_slice %76 {offsets = [0, 0], sizes = [8, 128], strides = [1, 1]} : vector<8x256xf32> to vector<8x128xf32>
      %78 = vector.extract_strided_slice %76 {offsets = [0, 128], sizes = [8, 128], strides = [1, 1]} : vector<8x256xf32> to vector<8x128xf32>
      %79 = arith.maximumf %77, %78 : vector<8x128xf32>
      %c0_47 = arith.constant 0 : index
      %80 = arith.index_cast %arg7 : i32 to index
      %c0_48 = arith.constant 0 : index
      %c0_49 = arith.constant 0 : index
      %81 = vector.load %arg6[%c0_47, %80, %c0_48, %c0_49] : memref<1x128x8x128xf32, #tpu.memory_space<vmem>>, vector<1x1x8x128xf32>
      %82 = vector.shape_cast %81 : vector<1x1x8x128xf32> to vector<8x128xf32>
      %83 = vector.shape_cast %79 : vector<8x128xf32> to vector<1x1x8x128xf32>
      tpu.vector_store %arg6[%c0_47, %80, %c0_48, %c0_49], %83 {strides = array<i32>} : memref<1x128x8x128xf32, #tpu.memory_space<vmem>>, vector<1x1x8x128xf32>,
    }
    %c128_i32_3 = arith.constant 128 : i32
    return
  }
  func.func @transform_0(%arg0: i32) -> (i32, i32, i32, i32) {
    %c0_i32 = arith.constant 0 : i32
    %c0_i32_0 = arith.constant 0 : i32
    %c0_i32_1 = arith.constant 0 : i32
    %c0_i32_2 = arith.constant 0 : i32
    return %arg0, %c0_i32, %c0_i32_0, %c0_i32_1 : i32, i32, i32, i32
  }
  func.func @transform_1(%arg0: i32) -> (i32, i32, i32) {
    %c0_i32 = arith.constant 0 : i32
    %c0_i32_0 = arith.constant 0 : i32
    %c0_i32_1 = arith.constant 0 : i32
    %c0_i32_2 = arith.constant 0 : i32
    return %c0_i32, %c0_i32_0, %c0_i32_1 : i32, i32, i32
  }
  func.func @transform_2(%arg0: i32) -> (i32, i32) {
    %c0_i32 = arith.constant 0 : i32
    %c0_i32_0 = arith.constant 0 : i32
    %c0_i32_1 = arith.constant 0 : i32
    return %c0_i32, %c0_i32_0 : i32, i32
  }
  func.func @transform_3(%arg0: i32) -> (i32, i32) {
    %c0_i32 = arith.constant 0 : i32
    %c0_i32_0 = arith.constant 0 : i32
    %c0_i32_1 = arith.constant 0 : i32
    return %c0_i32, %c0_i32_0 : i32, i32
  }
  func.func @transform_4(%arg0: i32) -> (i32, i32) {
    %c0_i32 = arith.constant 0 : i32
    %c0_i32_0 = arith.constant 0 : i32
    %c0_i32_1 = arith.constant 0 : i32
    return %c0_i32, %c0_i32_0 : i32, i32
  }
  func.func @transform_5(%arg0: i32) -> (i32, i32, i32, i32) {
    %c0_i32 = arith.constant 0 : i32
    %c0_i32_0 = arith.constant 0 : i32
    %c0_i32_1 = arith.constant 0 : i32
    %c0_i32_2 = arith.constant 0 : i32
    return %arg0, %c0_i32, %c0_i32_0, %c0_i32_1 : i32, i32, i32, i32
  }
}

module attributes {stable_mosaic.version = 11 : i64} {
  func.func @kernel(%arg0: i32, %arg1: memref<1x132x8x132xf32, #tpu.memory_space<vmem>>, %arg2: memref<5x8x40xf32, #tpu.memory_space<vmem>>, %arg3: memref<8x1xf32, #tpu.memory_space<vmem>>, %arg4: memref<8x1xf32, #tpu.memory_space<vmem>>, %arg5: memref<128x128xf32, #tpu.memory_space<vmem>>, %arg6: memref<1x64x8x64xf32, #tpu.memory_space<vmem>>) attributes {dimension_semantics = [#tpu.dimension_semantics<parallel>], iteration_bounds = array<i64: 2>, scalar_prefetch = 0 : i64, scratch_operands = 0 : i64, tpu.core_type = #tpu.core_type<tc>, window_params = [{transform_indices = @transform_0, window_bounds = array<i64: 1, 132, 8, 132>}, {pipeline_mode = #tpu.pipeline_mode<synchronous>, transform_indices = @transform_1, window_bounds = array<i64: 5, 8, 40>}, {pipeline_mode = #tpu.pipeline_mode<synchronous>, transform_indices = @transform_2, window_bounds = array<i64: 8, 1>}, {pipeline_mode = #tpu.pipeline_mode<synchronous>, transform_indices = @transform_3, window_bounds = array<i64: 8, 1>}, {pipeline_mode = #tpu.pipeline_mode<synchronous>, transform_indices = @transform_4, window_bounds = array<i64: 128, 128>}, {transform_indices = @transform_5, window_bounds = array<i64: 1, 64, 8, 64>}]} {
    %c0 = arith.constant 0 : index
    %c0_0 = arith.constant 0 : index
    %0 = vector.load %arg3[%c0, %c0_0] : memref<8x1xf32, #tpu.memory_space<vmem>>, vector<8x1xf32>
    %1 = vector.shape_cast %0 : vector<8x1xf32> to vector<8x1xf32>
    %2 = vector.broadcast %1 : vector<8x1xf32> to vector<8x128xf32>
    %c0_1 = arith.constant 0 : index
    %c0_2 = arith.constant 0 : index
    %3 = vector.load %arg4[%c0_1, %c0_2] : memref<8x1xf32, #tpu.memory_space<vmem>>, vector<8x1xf32>
    %4 = vector.shape_cast %3 : vector<8x1xf32> to vector<8x1xf32>
    %5 = vector.broadcast %4 : vector<8x1xf32> to vector<8x128xf32>
    %c0_i32 = arith.constant 0 : i32
    %c64_i32 = arith.constant 64 : i32
    %6 = arith.addi %c0_i32, %c64_i32 : i32
    %c1_i32 = arith.constant 1 : i32
    scf.for %arg7 = %c0_i32 to %6 step %c1_i32  : i32 {
      %c2_i32 = arith.constant 2 : i32
      %7 = arith.muli %arg7, %c2_i32 : i32
      %cst = arith.constant 0.000000e+00 : f32
      %8 = vector.broadcast %cst : f32 to vector<8x128xf32>
      %cst_4 = arith.constant 0.000000e+00 : f32
      %9 = vector.broadcast %cst_4 : f32 to vector<8x128xf32>
      %c0_i32_5 = arith.constant 0 : i32
      %10 = arith.addi %7, %c0_i32_5 : i32
      %c0_6 = arith.constant 0 : index
      %11 = arith.index_cast %10 : i32 to index
      %c0_7 = arith.constant 0 : index
      %c0_8 = arith.constant 0 : index
      %12 = vector.load %arg1[%c0_6, %11, %c0_7, %c0_8] : memref<1x132x8x132xf32, #tpu.memory_space<vmem>>, vector<1x1x8x132xf32>
      %13 = vector.shape_cast %12 : vector<1x1x8x132xf32> to vector<8x132xf32>
      %14 = vector.extract_strided_slice %13 {offsets = [0, 0], sizes = [8, 128], strides = [1, 1]} : vector<8x132xf32> to vector<8x128xf32>
      %15 = vector.extract_strided_slice %13 {offsets = [0, 1], sizes = [8, 128], strides = [1, 1]} : vector<8x132xf32> to vector<8x128xf32>
      %16 = vector.extract_strided_slice %13 {offsets = [0, 2], sizes = [8, 128], strides = [1, 1]} : vector<8x132xf32> to vector<8x128xf32>
      %17 = vector.extract_strided_slice %13 {offsets = [0, 3], sizes = [8, 128], strides = [1, 1]} : vector<8x132xf32> to vector<8x128xf32>
      %18 = vector.extract_strided_slice %13 {offsets = [0, 4], sizes = [8, 128], strides = [1, 1]} : vector<8x132xf32> to vector<8x128xf32>
      %19 = tpu.concatenate %14, %15, %16, %17, %18 in 0 : vector<8x128xf32>, vector<8x128xf32>, vector<8x128xf32>, vector<8x128xf32>, vector<8x128xf32> -> vector<40x128xf32>
      %c0_9 = arith.constant 0 : index
      %c0_10 = arith.constant 0 : index
      %c0_11 = arith.constant 0 : index
      %20 = vector.load %arg2[%c0_9, %c0_10, %c0_11] : memref<5x8x40xf32, #tpu.memory_space<vmem>>, vector<1x8x40xf32>
      %21 = vector.shape_cast %20 : vector<1x8x40xf32> to vector<8x40xf32>
      %cst_12 = arith.constant dense<0.000000e+00> : vector<8x128xf32>
      %22 = tpu.matmul %21, %19, %cst_12 {dimension_numbers = #tpu.dot_dimension_numbers<[1], [0], [0], [1], [0, 0, 1, 1], [], []>} : vector<8x40xf32>, vector<40x128xf32>, vector<8x128xf32> -> vector<8x128xf32>
      %23 = arith.addf %8, %22 : vector<8x128xf32>
      %c1_i32_13 = arith.constant 1 : i32
      %24 = arith.addi %7, %c1_i32_13 : i32
      %c0_14 = arith.constant 0 : index
      %25 = arith.index_cast %24 : i32 to index
      %c0_15 = arith.constant 0 : index
      %c0_16 = arith.constant 0 : index
      %26 = vector.load %arg1[%c0_14, %25, %c0_15, %c0_16] : memref<1x132x8x132xf32, #tpu.memory_space<vmem>>, vector<1x1x8x132xf32>
      %27 = vector.shape_cast %26 : vector<1x1x8x132xf32> to vector<8x132xf32>
      %28 = vector.extract_strided_slice %27 {offsets = [0, 0], sizes = [8, 128], strides = [1, 1]} : vector<8x132xf32> to vector<8x128xf32>
      %29 = vector.extract_strided_slice %27 {offsets = [0, 1], sizes = [8, 128], strides = [1, 1]} : vector<8x132xf32> to vector<8x128xf32>
      %30 = vector.extract_strided_slice %27 {offsets = [0, 2], sizes = [8, 128], strides = [1, 1]} : vector<8x132xf32> to vector<8x128xf32>
      %31 = vector.extract_strided_slice %27 {offsets = [0, 3], sizes = [8, 128], strides = [1, 1]} : vector<8x132xf32> to vector<8x128xf32>
      %32 = vector.extract_strided_slice %27 {offsets = [0, 4], sizes = [8, 128], strides = [1, 1]} : vector<8x132xf32> to vector<8x128xf32>
      %33 = tpu.concatenate %28, %29, %30, %31, %32 in 0 : vector<8x128xf32>, vector<8x128xf32>, vector<8x128xf32>, vector<8x128xf32>, vector<8x128xf32> -> vector<40x128xf32>
      %c1 = arith.constant 1 : index
      %c0_17 = arith.constant 0 : index
      %c0_18 = arith.constant 0 : index
      %34 = vector.load %arg2[%c1, %c0_17, %c0_18] : memref<5x8x40xf32, #tpu.memory_space<vmem>>, vector<1x8x40xf32>
      %35 = vector.shape_cast %34 : vector<1x8x40xf32> to vector<8x40xf32>
      %cst_19 = arith.constant dense<0.000000e+00> : vector<8x128xf32>
      %36 = tpu.matmul %35, %33, %cst_19 {dimension_numbers = #tpu.dot_dimension_numbers<[1], [0], [0], [1], [0, 0, 1, 1], [], []>} : vector<8x40xf32>, vector<40x128xf32>, vector<8x128xf32> -> vector<8x128xf32>
      %37 = arith.addf %23, %36 : vector<8x128xf32>
      %c0_20 = arith.constant 0 : index
      %c0_21 = arith.constant 0 : index
      %c0_22 = arith.constant 0 : index
      %38 = vector.load %arg2[%c0_20, %c0_21, %c0_22] : memref<5x8x40xf32, #tpu.memory_space<vmem>>, vector<1x8x40xf32>
      %39 = vector.shape_cast %38 : vector<1x8x40xf32> to vector<8x40xf32>
      %cst_23 = arith.constant dense<0.000000e+00> : vector<8x128xf32>
      %40 = tpu.matmul %39, %33, %cst_23 {dimension_numbers = #tpu.dot_dimension_numbers<[1], [0], [0], [1], [0, 0, 1, 1], [], []>} : vector<8x40xf32>, vector<40x128xf32>, vector<8x128xf32> -> vector<8x128xf32>
      %41 = arith.addf %9, %40 : vector<8x128xf32>
      %c2_i32_24 = arith.constant 2 : i32
      %42 = arith.addi %7, %c2_i32_24 : i32
      %c0_25 = arith.constant 0 : index
      %43 = arith.index_cast %42 : i32 to index
      %c0_26 = arith.constant 0 : index
      %c0_27 = arith.constant 0 : index
      %44 = vector.load %arg1[%c0_25, %43, %c0_26, %c0_27] : memref<1x132x8x132xf32, #tpu.memory_space<vmem>>, vector<1x1x8x132xf32>
      %45 = vector.shape_cast %44 : vector<1x1x8x132xf32> to vector<8x132xf32>
      %46 = vector.extract_strided_slice %45 {offsets = [0, 0], sizes = [8, 128], strides = [1, 1]} : vector<8x132xf32> to vector<8x128xf32>
      %47 = vector.extract_strided_slice %45 {offsets = [0, 1], sizes = [8, 128], strides = [1, 1]} : vector<8x132xf32> to vector<8x128xf32>
      %48 = vector.extract_strided_slice %45 {offsets = [0, 2], sizes = [8, 128], strides = [1, 1]} : vector<8x132xf32> to vector<8x128xf32>
      %49 = vector.extract_strided_slice %45 {offsets = [0, 3], sizes = [8, 128], strides = [1, 1]} : vector<8x132xf32> to vector<8x128xf32>
      %50 = vector.extract_strided_slice %45 {offsets = [0, 4], sizes = [8, 128], strides = [1, 1]} : vector<8x132xf32> to vector<8x128xf32>
      %51 = tpu.concatenate %46, %47, %48, %49, %50 in 0 : vector<8x128xf32>, vector<8x128xf32>, vector<8x128xf32>, vector<8x128xf32>, vector<8x128xf32> -> vector<40x128xf32>
      %c2 = arith.constant 2 : index
      %c0_28 = arith.constant 0 : index
      %c0_29 = arith.constant 0 : index
      %52 = vector.load %arg2[%c2, %c0_28, %c0_29] : memref<5x8x40xf32, #tpu.memory_space<vmem>>, vector<1x8x40xf32>
      %53 = vector.shape_cast %52 : vector<1x8x40xf32> to vector<8x40xf32>
      %cst_30 = arith.constant dense<0.000000e+00> : vector<8x128xf32>
      %54 = tpu.matmul %53, %51, %cst_30 {dimension_numbers = #tpu.dot_dimension_numbers<[1], [0], [0], [1], [0, 0, 1, 1], [], []>} : vector<8x40xf32>, vector<40x128xf32>, vector<8x128xf32> -> vector<8x128xf32>
      %55 = arith.addf %37, %54 : vector<8x128xf32>
      %c1_31 = arith.constant 1 : index
      %c0_32 = arith.constant 0 : index
      %c0_33 = arith.constant 0 : index
      %56 = vector.load %arg2[%c1_31, %c0_32, %c0_33] : memref<5x8x40xf32, #tpu.memory_space<vmem>>, vector<1x8x40xf32>
      %57 = vector.shape_cast %56 : vector<1x8x40xf32> to vector<8x40xf32>
      %cst_34 = arith.constant dense<0.000000e+00> : vector<8x128xf32>
      %58 = tpu.matmul %57, %51, %cst_34 {dimension_numbers = #tpu.dot_dimension_numbers<[1], [0], [0], [1], [0, 0, 1, 1], [], []>} : vector<8x40xf32>, vector<40x128xf32>, vector<8x128xf32> -> vector<8x128xf32>
      %59 = arith.addf %41, %58 : vector<8x128xf32>
      %c3_i32 = arith.constant 3 : i32
      %60 = arith.addi %7, %c3_i32 : i32
      %c0_35 = arith.constant 0 : index
      %61 = arith.index_cast %60 : i32 to index
      %c0_36 = arith.constant 0 : index
      %c0_37 = arith.constant 0 : index
      %62 = vector.load %arg1[%c0_35, %61, %c0_36, %c0_37] : memref<1x132x8x132xf32, #tpu.memory_space<vmem>>, vector<1x1x8x132xf32>
      %63 = vector.shape_cast %62 : vector<1x1x8x132xf32> to vector<8x132xf32>
      %64 = vector.extract_strided_slice %63 {offsets = [0, 0], sizes = [8, 128], strides = [1, 1]} : vector<8x132xf32> to vector<8x128xf32>
      %65 = vector.extract_strided_slice %63 {offsets = [0, 1], sizes = [8, 128], strides = [1, 1]} : vector<8x132xf32> to vector<8x128xf32>
      %66 = vector.extract_strided_slice %63 {offsets = [0, 2], sizes = [8, 128], strides = [1, 1]} : vector<8x132xf32> to vector<8x128xf32>
      %67 = vector.extract_strided_slice %63 {offsets = [0, 3], sizes = [8, 128], strides = [1, 1]} : vector<8x132xf32> to vector<8x128xf32>
      %68 = vector.extract_strided_slice %63 {offsets = [0, 4], sizes = [8, 128], strides = [1, 1]} : vector<8x132xf32> to vector<8x128xf32>
      %69 = tpu.concatenate %64, %65, %66, %67, %68 in 0 : vector<8x128xf32>, vector<8x128xf32>, vector<8x128xf32>, vector<8x128xf32>, vector<8x128xf32> -> vector<40x128xf32>
      %c3 = arith.constant 3 : index
      %c0_38 = arith.constant 0 : index
      %c0_39 = arith.constant 0 : index
      %70 = vector.load %arg2[%c3, %c0_38, %c0_39] : memref<5x8x40xf32, #tpu.memory_space<vmem>>, vector<1x8x40xf32>
      %71 = vector.shape_cast %70 : vector<1x8x40xf32> to vector<8x40xf32>
      %cst_40 = arith.constant dense<0.000000e+00> : vector<8x128xf32>
      %72 = tpu.matmul %71, %69, %cst_40 {dimension_numbers = #tpu.dot_dimension_numbers<[1], [0], [0], [1], [0, 0, 1, 1], [], []>} : vector<8x40xf32>, vector<40x128xf32>, vector<8x128xf32> -> vector<8x128xf32>
      %73 = arith.addf %55, %72 : vector<8x128xf32>
      %c2_41 = arith.constant 2 : index
      %c0_42 = arith.constant 0 : index
      %c0_43 = arith.constant 0 : index
      %74 = vector.load %arg2[%c2_41, %c0_42, %c0_43] : memref<5x8x40xf32, #tpu.memory_space<vmem>>, vector<1x8x40xf32>
      %75 = vector.shape_cast %74 : vector<1x8x40xf32> to vector<8x40xf32>
      %cst_44 = arith.constant dense<0.000000e+00> : vector<8x128xf32>
      %76 = tpu.matmul %75, %69, %cst_44 {dimension_numbers = #tpu.dot_dimension_numbers<[1], [0], [0], [1], [0, 0, 1, 1], [], []>} : vector<8x40xf32>, vector<40x128xf32>, vector<8x128xf32> -> vector<8x128xf32>
      %77 = arith.addf %59, %76 : vector<8x128xf32>
      %c4_i32 = arith.constant 4 : i32
      %78 = arith.addi %7, %c4_i32 : i32
      %c0_45 = arith.constant 0 : index
      %79 = arith.index_cast %78 : i32 to index
      %c0_46 = arith.constant 0 : index
      %c0_47 = arith.constant 0 : index
      %80 = vector.load %arg1[%c0_45, %79, %c0_46, %c0_47] : memref<1x132x8x132xf32, #tpu.memory_space<vmem>>, vector<1x1x8x132xf32>
      %81 = vector.shape_cast %80 : vector<1x1x8x132xf32> to vector<8x132xf32>
      %82 = vector.extract_strided_slice %81 {offsets = [0, 0], sizes = [8, 128], strides = [1, 1]} : vector<8x132xf32> to vector<8x128xf32>
      %83 = vector.extract_strided_slice %81 {offsets = [0, 1], sizes = [8, 128], strides = [1, 1]} : vector<8x132xf32> to vector<8x128xf32>
      %84 = vector.extract_strided_slice %81 {offsets = [0, 2], sizes = [8, 128], strides = [1, 1]} : vector<8x132xf32> to vector<8x128xf32>
      %85 = vector.extract_strided_slice %81 {offsets = [0, 3], sizes = [8, 128], strides = [1, 1]} : vector<8x132xf32> to vector<8x128xf32>
      %86 = vector.extract_strided_slice %81 {offsets = [0, 4], sizes = [8, 128], strides = [1, 1]} : vector<8x132xf32> to vector<8x128xf32>
      %87 = tpu.concatenate %82, %83, %84, %85, %86 in 0 : vector<8x128xf32>, vector<8x128xf32>, vector<8x128xf32>, vector<8x128xf32>, vector<8x128xf32> -> vector<40x128xf32>
      %c4 = arith.constant 4 : index
      %c0_48 = arith.constant 0 : index
      %c0_49 = arith.constant 0 : index
      %88 = vector.load %arg2[%c4, %c0_48, %c0_49] : memref<5x8x40xf32, #tpu.memory_space<vmem>>, vector<1x8x40xf32>
      %89 = vector.shape_cast %88 : vector<1x8x40xf32> to vector<8x40xf32>
      %cst_50 = arith.constant dense<0.000000e+00> : vector<8x128xf32>
      %90 = tpu.matmul %89, %87, %cst_50 {dimension_numbers = #tpu.dot_dimension_numbers<[1], [0], [0], [1], [0, 0, 1, 1], [], []>} : vector<8x40xf32>, vector<40x128xf32>, vector<8x128xf32> -> vector<8x128xf32>
      %91 = arith.addf %73, %90 : vector<8x128xf32>
      %c3_51 = arith.constant 3 : index
      %c0_52 = arith.constant 0 : index
      %c0_53 = arith.constant 0 : index
      %92 = vector.load %arg2[%c3_51, %c0_52, %c0_53] : memref<5x8x40xf32, #tpu.memory_space<vmem>>, vector<1x8x40xf32>
      %93 = vector.shape_cast %92 : vector<1x8x40xf32> to vector<8x40xf32>
      %cst_54 = arith.constant dense<0.000000e+00> : vector<8x128xf32>
      %94 = tpu.matmul %93, %87, %cst_54 {dimension_numbers = #tpu.dot_dimension_numbers<[1], [0], [0], [1], [0, 0, 1, 1], [], []>} : vector<8x40xf32>, vector<40x128xf32>, vector<8x128xf32> -> vector<8x128xf32>
      %95 = arith.addf %77, %94 : vector<8x128xf32>
      %c5_i32 = arith.constant 5 : i32
      %96 = arith.addi %7, %c5_i32 : i32
      %c0_55 = arith.constant 0 : index
      %97 = arith.index_cast %96 : i32 to index
      %c0_56 = arith.constant 0 : index
      %c0_57 = arith.constant 0 : index
      %98 = vector.load %arg1[%c0_55, %97, %c0_56, %c0_57] : memref<1x132x8x132xf32, #tpu.memory_space<vmem>>, vector<1x1x8x132xf32>
      %99 = vector.shape_cast %98 : vector<1x1x8x132xf32> to vector<8x132xf32>
      %100 = vector.extract_strided_slice %99 {offsets = [0, 0], sizes = [8, 128], strides = [1, 1]} : vector<8x132xf32> to vector<8x128xf32>
      %101 = vector.extract_strided_slice %99 {offsets = [0, 1], sizes = [8, 128], strides = [1, 1]} : vector<8x132xf32> to vector<8x128xf32>
      %102 = vector.extract_strided_slice %99 {offsets = [0, 2], sizes = [8, 128], strides = [1, 1]} : vector<8x132xf32> to vector<8x128xf32>
      %103 = vector.extract_strided_slice %99 {offsets = [0, 3], sizes = [8, 128], strides = [1, 1]} : vector<8x132xf32> to vector<8x128xf32>
      %104 = vector.extract_strided_slice %99 {offsets = [0, 4], sizes = [8, 128], strides = [1, 1]} : vector<8x132xf32> to vector<8x128xf32>
      %105 = tpu.concatenate %100, %101, %102, %103, %104 in 0 : vector<8x128xf32>, vector<8x128xf32>, vector<8x128xf32>, vector<8x128xf32>, vector<8x128xf32> -> vector<40x128xf32>
      %c4_58 = arith.constant 4 : index
      %c0_59 = arith.constant 0 : index
      %c0_60 = arith.constant 0 : index
      %106 = vector.load %arg2[%c4_58, %c0_59, %c0_60] : memref<5x8x40xf32, #tpu.memory_space<vmem>>, vector<1x8x40xf32>
      %107 = vector.shape_cast %106 : vector<1x8x40xf32> to vector<8x40xf32>
      %cst_61 = arith.constant dense<0.000000e+00> : vector<8x128xf32>
      %108 = tpu.matmul %107, %105, %cst_61 {dimension_numbers = #tpu.dot_dimension_numbers<[1], [0], [0], [1], [0, 0, 1, 1], [], []>} : vector<8x40xf32>, vector<40x128xf32>, vector<8x128xf32> -> vector<8x128xf32>
      %109 = arith.addf %95, %108 : vector<8x128xf32>
      %cst_62 = arith.constant 0.000000e+00 : f32
      %110 = vector.broadcast %cst_62 : f32 to vector<8x128xf32>
      %111 = arith.maximumf %91, %110 : vector<8x128xf32>
      %112 = arith.mulf %111, %2 : vector<8x128xf32>
      %113 = arith.addf %112, %5 : vector<8x128xf32>
      %cst_63 = arith.constant 0.000000e+00 : f32
      %114 = vector.broadcast %cst_63 : f32 to vector<8x128xf32>
      %115 = arith.maximumf %109, %114 : vector<8x128xf32>
      %116 = arith.mulf %115, %2 : vector<8x128xf32>
      %117 = arith.addf %116, %5 : vector<8x128xf32>
      %118 = arith.maximumf %113, %117 : vector<8x128xf32>
      %c0_64 = arith.constant 0 : index
      %c0_65 = arith.constant 0 : index
      %119 = vector.load %arg5[%c0_64, %c0_65] : memref<128x128xf32, #tpu.memory_space<vmem>>, vector<128x128xf32>
      %cst_66 = arith.constant dense<0.000000e+00> : vector<8x128xf32>
      %120 = tpu.matmul %118, %119, %cst_66 {dimension_numbers = #tpu.dot_dimension_numbers<[1], [0], [0], [1], [0, 0, 1, 1], [], []>} : vector<8x128xf32>, vector<128x128xf32>, vector<8x128xf32> -> vector<8x128xf32>
      %121 = vector.extract_strided_slice %120 {offsets = [0, 0], sizes = [8, 64], strides = [1, 1]} : vector<8x128xf32> to vector<8x64xf32>
      %122 = vector.extract_strided_slice %120 {offsets = [0, 64], sizes = [8, 64], strides = [1, 1]} : vector<8x128xf32> to vector<8x64xf32>
      %123 = arith.maximumf %121, %122 : vector<8x64xf32>
      %c0_67 = arith.constant 0 : index
      %124 = arith.index_cast %arg7 : i32 to index
      %c0_68 = arith.constant 0 : index
      %c0_69 = arith.constant 0 : index
      %125 = vector.load %arg6[%c0_67, %124, %c0_68, %c0_69] : memref<1x64x8x64xf32, #tpu.memory_space<vmem>>, vector<1x1x8x64xf32>
      %126 = vector.shape_cast %125 : vector<1x1x8x64xf32> to vector<8x64xf32>
      %127 = vector.shape_cast %123 : vector<8x64xf32> to vector<1x1x8x64xf32>
      tpu.vector_store %arg6[%c0_67, %124, %c0_68, %c0_69], %127 {strides = array<i32>} : memref<1x64x8x64xf32, #tpu.memory_space<vmem>>, vector<1x1x8x64xf32>,
    }
    %c64_i32_3 = arith.constant 64 : i32
    return
  }
  func.func @transform_0(%arg0: i32) -> (i32, i32, i32, i32) {
    %c0_i32 = arith.constant 0 : i32
    %c0_i32_0 = arith.constant 0 : i32
    %c0_i32_1 = arith.constant 0 : i32
    %c0_i32_2 = arith.constant 0 : i32
    return %arg0, %c0_i32, %c0_i32_0, %c0_i32_1 : i32, i32, i32, i32
  }
  func.func @transform_1(%arg0: i32) -> (i32, i32, i32) {
    %c0_i32 = arith.constant 0 : i32
    %c0_i32_0 = arith.constant 0 : i32
    %c0_i32_1 = arith.constant 0 : i32
    %c0_i32_2 = arith.constant 0 : i32
    return %c0_i32, %c0_i32_0, %c0_i32_1 : i32, i32, i32
  }
  func.func @transform_2(%arg0: i32) -> (i32, i32) {
    %c0_i32 = arith.constant 0 : i32
    %c0_i32_0 = arith.constant 0 : i32
    %c0_i32_1 = arith.constant 0 : i32
    return %c0_i32, %c0_i32_0 : i32, i32
  }
  func.func @transform_3(%arg0: i32) -> (i32, i32) {
    %c0_i32 = arith.constant 0 : i32
    %c0_i32_0 = arith.constant 0 : i32
    %c0_i32_1 = arith.constant 0 : i32
    return %c0_i32, %c0_i32_0 : i32, i32
  }
  func.func @transform_4(%arg0: i32) -> (i32, i32) {
    %c0_i32 = arith.constant 0 : i32
    %c0_i32_0 = arith.constant 0 : i32
    %c0_i32_1 = arith.constant 0 : i32
    return %c0_i32, %c0_i32_0 : i32, i32
  }
  func.func @transform_5(%arg0: i32) -> (i32, i32, i32, i32) {
    %c0_i32 = arith.constant 0 : i32
    %c0_i32_0 = arith.constant 0 : i32
    %c0_i32_1 = arith.constant 0 : i32
    %c0_i32_2 = arith.constant 0 : i32
    return %arg0, %c0_i32, %c0_i32_0, %c0_i32_1 : i32, i32, i32, i32
  }
}

module attributes {stable_mosaic.version = 11 : i64} {
  func.func @kernel(%arg0: i32, %arg1: memref<1x68x8x68xf32, #tpu.memory_space<vmem>>, %arg2: memref<5x16x40xf32, #tpu.memory_space<vmem>>, %arg3: memref<16x1xf32, #tpu.memory_space<vmem>>, %arg4: memref<16x1xf32, #tpu.memory_space<vmem>>, %arg5: memref<64x64xf32, #tpu.memory_space<vmem>>, %arg6: memref<1x32x16x32xf32, #tpu.memory_space<vmem>>) attributes {dimension_semantics = [#tpu.dimension_semantics<parallel>], iteration_bounds = array<i64: 2>, scalar_prefetch = 0 : i64, scratch_operands = 0 : i64, tpu.core_type = #tpu.core_type<tc>, window_params = [{transform_indices = @transform_0, window_bounds = array<i64: 1, 68, 8, 68>}, {pipeline_mode = #tpu.pipeline_mode<synchronous>, transform_indices = @transform_1, window_bounds = array<i64: 5, 16, 40>}, {pipeline_mode = #tpu.pipeline_mode<synchronous>, transform_indices = @transform_2, window_bounds = array<i64: 16, 1>}, {pipeline_mode = #tpu.pipeline_mode<synchronous>, transform_indices = @transform_3, window_bounds = array<i64: 16, 1>}, {pipeline_mode = #tpu.pipeline_mode<synchronous>, transform_indices = @transform_4, window_bounds = array<i64: 64, 64>}, {transform_indices = @transform_5, window_bounds = array<i64: 1, 32, 16, 32>}]} {
    %c0 = arith.constant 0 : index
    %c0_0 = arith.constant 0 : index
    %0 = vector.load %arg3[%c0, %c0_0] : memref<16x1xf32, #tpu.memory_space<vmem>>, vector<16x1xf32>
    %1 = vector.shape_cast %0 : vector<16x1xf32> to vector<16x1xf32>
    %2 = vector.broadcast %1 : vector<16x1xf32> to vector<16x64xf32>
    %c0_1 = arith.constant 0 : index
    %c0_2 = arith.constant 0 : index
    %3 = vector.load %arg4[%c0_1, %c0_2] : memref<16x1xf32, #tpu.memory_space<vmem>>, vector<16x1xf32>
    %4 = vector.shape_cast %3 : vector<16x1xf32> to vector<16x1xf32>
    %5 = vector.broadcast %4 : vector<16x1xf32> to vector<16x64xf32>
    %c0_i32 = arith.constant 0 : i32
    %c32_i32 = arith.constant 32 : i32
    %6 = arith.addi %c0_i32, %c32_i32 : i32
    %c1_i32 = arith.constant 1 : i32
    scf.for %arg7 = %c0_i32 to %6 step %c1_i32  : i32 {
      %c2_i32 = arith.constant 2 : i32
      %7 = arith.muli %arg7, %c2_i32 : i32
      %cst = arith.constant 0.000000e+00 : f32
      %8 = vector.broadcast %cst : f32 to vector<16x64xf32>
      %cst_4 = arith.constant 0.000000e+00 : f32
      %9 = vector.broadcast %cst_4 : f32 to vector<16x64xf32>
      %c0_i32_5 = arith.constant 0 : i32
      %10 = arith.addi %7, %c0_i32_5 : i32
      %c0_6 = arith.constant 0 : index
      %11 = arith.index_cast %10 : i32 to index
      %c0_7 = arith.constant 0 : index
      %c0_8 = arith.constant 0 : index
      %12 = vector.load %arg1[%c0_6, %11, %c0_7, %c0_8] : memref<1x68x8x68xf32, #tpu.memory_space<vmem>>, vector<1x1x8x68xf32>
      %13 = vector.shape_cast %12 : vector<1x1x8x68xf32> to vector<8x68xf32>
      %14 = vector.extract_strided_slice %13 {offsets = [0, 0], sizes = [8, 64], strides = [1, 1]} : vector<8x68xf32> to vector<8x64xf32>
      %15 = vector.extract_strided_slice %13 {offsets = [0, 1], sizes = [8, 64], strides = [1, 1]} : vector<8x68xf32> to vector<8x64xf32>
      %16 = vector.extract_strided_slice %13 {offsets = [0, 2], sizes = [8, 64], strides = [1, 1]} : vector<8x68xf32> to vector<8x64xf32>
      %17 = vector.extract_strided_slice %13 {offsets = [0, 3], sizes = [8, 64], strides = [1, 1]} : vector<8x68xf32> to vector<8x64xf32>
      %18 = vector.extract_strided_slice %13 {offsets = [0, 4], sizes = [8, 64], strides = [1, 1]} : vector<8x68xf32> to vector<8x64xf32>
      %19 = tpu.concatenate %14, %15, %16, %17, %18 in 0 : vector<8x64xf32>, vector<8x64xf32>, vector<8x64xf32>, vector<8x64xf32>, vector<8x64xf32> -> vector<40x64xf32>
      %c0_9 = arith.constant 0 : index
      %c0_10 = arith.constant 0 : index
      %c0_11 = arith.constant 0 : index
      %20 = vector.load %arg2[%c0_9, %c0_10, %c0_11] : memref<5x16x40xf32, #tpu.memory_space<vmem>>, vector<1x16x40xf32>
      %21 = vector.shape_cast %20 : vector<1x16x40xf32> to vector<16x40xf32>
      %cst_12 = arith.constant dense<0.000000e+00> : vector<16x64xf32>
      %22 = tpu.matmul %21, %19, %cst_12 {dimension_numbers = #tpu.dot_dimension_numbers<[1], [0], [0], [1], [0, 0, 1, 1], [], []>} : vector<16x40xf32>, vector<40x64xf32>, vector<16x64xf32> -> vector<16x64xf32>
      %23 = arith.addf %8, %22 : vector<16x64xf32>
      %c1_i32_13 = arith.constant 1 : i32
      %24 = arith.addi %7, %c1_i32_13 : i32
      %c0_14 = arith.constant 0 : index
      %25 = arith.index_cast %24 : i32 to index
      %c0_15 = arith.constant 0 : index
      %c0_16 = arith.constant 0 : index
      %26 = vector.load %arg1[%c0_14, %25, %c0_15, %c0_16] : memref<1x68x8x68xf32, #tpu.memory_space<vmem>>, vector<1x1x8x68xf32>
      %27 = vector.shape_cast %26 : vector<1x1x8x68xf32> to vector<8x68xf32>
      %28 = vector.extract_strided_slice %27 {offsets = [0, 0], sizes = [8, 64], strides = [1, 1]} : vector<8x68xf32> to vector<8x64xf32>
      %29 = vector.extract_strided_slice %27 {offsets = [0, 1], sizes = [8, 64], strides = [1, 1]} : vector<8x68xf32> to vector<8x64xf32>
      %30 = vector.extract_strided_slice %27 {offsets = [0, 2], sizes = [8, 64], strides = [1, 1]} : vector<8x68xf32> to vector<8x64xf32>
      %31 = vector.extract_strided_slice %27 {offsets = [0, 3], sizes = [8, 64], strides = [1, 1]} : vector<8x68xf32> to vector<8x64xf32>
      %32 = vector.extract_strided_slice %27 {offsets = [0, 4], sizes = [8, 64], strides = [1, 1]} : vector<8x68xf32> to vector<8x64xf32>
      %33 = tpu.concatenate %28, %29, %30, %31, %32 in 0 : vector<8x64xf32>, vector<8x64xf32>, vector<8x64xf32>, vector<8x64xf32>, vector<8x64xf32> -> vector<40x64xf32>
      %c1 = arith.constant 1 : index
      %c0_17 = arith.constant 0 : index
      %c0_18 = arith.constant 0 : index
      %34 = vector.load %arg2[%c1, %c0_17, %c0_18] : memref<5x16x40xf32, #tpu.memory_space<vmem>>, vector<1x16x40xf32>
      %35 = vector.shape_cast %34 : vector<1x16x40xf32> to vector<16x40xf32>
      %cst_19 = arith.constant dense<0.000000e+00> : vector<16x64xf32>
      %36 = tpu.matmul %35, %33, %cst_19 {dimension_numbers = #tpu.dot_dimension_numbers<[1], [0], [0], [1], [0, 0, 1, 1], [], []>} : vector<16x40xf32>, vector<40x64xf32>, vector<16x64xf32> -> vector<16x64xf32>
      %37 = arith.addf %23, %36 : vector<16x64xf32>
      %c0_20 = arith.constant 0 : index
      %c0_21 = arith.constant 0 : index
      %c0_22 = arith.constant 0 : index
      %38 = vector.load %arg2[%c0_20, %c0_21, %c0_22] : memref<5x16x40xf32, #tpu.memory_space<vmem>>, vector<1x16x40xf32>
      %39 = vector.shape_cast %38 : vector<1x16x40xf32> to vector<16x40xf32>
      %cst_23 = arith.constant dense<0.000000e+00> : vector<16x64xf32>
      %40 = tpu.matmul %39, %33, %cst_23 {dimension_numbers = #tpu.dot_dimension_numbers<[1], [0], [0], [1], [0, 0, 1, 1], [], []>} : vector<16x40xf32>, vector<40x64xf32>, vector<16x64xf32> -> vector<16x64xf32>
      %41 = arith.addf %9, %40 : vector<16x64xf32>
      %c2_i32_24 = arith.constant 2 : i32
      %42 = arith.addi %7, %c2_i32_24 : i32
      %c0_25 = arith.constant 0 : index
      %43 = arith.index_cast %42 : i32 to index
      %c0_26 = arith.constant 0 : index
      %c0_27 = arith.constant 0 : index
      %44 = vector.load %arg1[%c0_25, %43, %c0_26, %c0_27] : memref<1x68x8x68xf32, #tpu.memory_space<vmem>>, vector<1x1x8x68xf32>
      %45 = vector.shape_cast %44 : vector<1x1x8x68xf32> to vector<8x68xf32>
      %46 = vector.extract_strided_slice %45 {offsets = [0, 0], sizes = [8, 64], strides = [1, 1]} : vector<8x68xf32> to vector<8x64xf32>
      %47 = vector.extract_strided_slice %45 {offsets = [0, 1], sizes = [8, 64], strides = [1, 1]} : vector<8x68xf32> to vector<8x64xf32>
      %48 = vector.extract_strided_slice %45 {offsets = [0, 2], sizes = [8, 64], strides = [1, 1]} : vector<8x68xf32> to vector<8x64xf32>
      %49 = vector.extract_strided_slice %45 {offsets = [0, 3], sizes = [8, 64], strides = [1, 1]} : vector<8x68xf32> to vector<8x64xf32>
      %50 = vector.extract_strided_slice %45 {offsets = [0, 4], sizes = [8, 64], strides = [1, 1]} : vector<8x68xf32> to vector<8x64xf32>
      %51 = tpu.concatenate %46, %47, %48, %49, %50 in 0 : vector<8x64xf32>, vector<8x64xf32>, vector<8x64xf32>, vector<8x64xf32>, vector<8x64xf32> -> vector<40x64xf32>
      %c2 = arith.constant 2 : index
      %c0_28 = arith.constant 0 : index
      %c0_29 = arith.constant 0 : index
      %52 = vector.load %arg2[%c2, %c0_28, %c0_29] : memref<5x16x40xf32, #tpu.memory_space<vmem>>, vector<1x16x40xf32>
      %53 = vector.shape_cast %52 : vector<1x16x40xf32> to vector<16x40xf32>
      %cst_30 = arith.constant dense<0.000000e+00> : vector<16x64xf32>
      %54 = tpu.matmul %53, %51, %cst_30 {dimension_numbers = #tpu.dot_dimension_numbers<[1], [0], [0], [1], [0, 0, 1, 1], [], []>} : vector<16x40xf32>, vector<40x64xf32>, vector<16x64xf32> -> vector<16x64xf32>
      %55 = arith.addf %37, %54 : vector<16x64xf32>
      %c1_31 = arith.constant 1 : index
      %c0_32 = arith.constant 0 : index
      %c0_33 = arith.constant 0 : index
      %56 = vector.load %arg2[%c1_31, %c0_32, %c0_33] : memref<5x16x40xf32, #tpu.memory_space<vmem>>, vector<1x16x40xf32>
      %57 = vector.shape_cast %56 : vector<1x16x40xf32> to vector<16x40xf32>
      %cst_34 = arith.constant dense<0.000000e+00> : vector<16x64xf32>
      %58 = tpu.matmul %57, %51, %cst_34 {dimension_numbers = #tpu.dot_dimension_numbers<[1], [0], [0], [1], [0, 0, 1, 1], [], []>} : vector<16x40xf32>, vector<40x64xf32>, vector<16x64xf32> -> vector<16x64xf32>
      %59 = arith.addf %41, %58 : vector<16x64xf32>
      %c3_i32 = arith.constant 3 : i32
      %60 = arith.addi %7, %c3_i32 : i32
      %c0_35 = arith.constant 0 : index
      %61 = arith.index_cast %60 : i32 to index
      %c0_36 = arith.constant 0 : index
      %c0_37 = arith.constant 0 : index
      %62 = vector.load %arg1[%c0_35, %61, %c0_36, %c0_37] : memref<1x68x8x68xf32, #tpu.memory_space<vmem>>, vector<1x1x8x68xf32>
      %63 = vector.shape_cast %62 : vector<1x1x8x68xf32> to vector<8x68xf32>
      %64 = vector.extract_strided_slice %63 {offsets = [0, 0], sizes = [8, 64], strides = [1, 1]} : vector<8x68xf32> to vector<8x64xf32>
      %65 = vector.extract_strided_slice %63 {offsets = [0, 1], sizes = [8, 64], strides = [1, 1]} : vector<8x68xf32> to vector<8x64xf32>
      %66 = vector.extract_strided_slice %63 {offsets = [0, 2], sizes = [8, 64], strides = [1, 1]} : vector<8x68xf32> to vector<8x64xf32>
      %67 = vector.extract_strided_slice %63 {offsets = [0, 3], sizes = [8, 64], strides = [1, 1]} : vector<8x68xf32> to vector<8x64xf32>
      %68 = vector.extract_strided_slice %63 {offsets = [0, 4], sizes = [8, 64], strides = [1, 1]} : vector<8x68xf32> to vector<8x64xf32>
      %69 = tpu.concatenate %64, %65, %66, %67, %68 in 0 : vector<8x64xf32>, vector<8x64xf32>, vector<8x64xf32>, vector<8x64xf32>, vector<8x64xf32> -> vector<40x64xf32>
      %c3 = arith.constant 3 : index
      %c0_38 = arith.constant 0 : index
      %c0_39 = arith.constant 0 : index
      %70 = vector.load %arg2[%c3, %c0_38, %c0_39] : memref<5x16x40xf32, #tpu.memory_space<vmem>>, vector<1x16x40xf32>
      %71 = vector.shape_cast %70 : vector<1x16x40xf32> to vector<16x40xf32>
      %cst_40 = arith.constant dense<0.000000e+00> : vector<16x64xf32>
      %72 = tpu.matmul %71, %69, %cst_40 {dimension_numbers = #tpu.dot_dimension_numbers<[1], [0], [0], [1], [0, 0, 1, 1], [], []>} : vector<16x40xf32>, vector<40x64xf32>, vector<16x64xf32> -> vector<16x64xf32>
      %73 = arith.addf %55, %72 : vector<16x64xf32>
      %c2_41 = arith.constant 2 : index
      %c0_42 = arith.constant 0 : index
      %c0_43 = arith.constant 0 : index
      %74 = vector.load %arg2[%c2_41, %c0_42, %c0_43] : memref<5x16x40xf32, #tpu.memory_space<vmem>>, vector<1x16x40xf32>
      %75 = vector.shape_cast %74 : vector<1x16x40xf32> to vector<16x40xf32>
      %cst_44 = arith.constant dense<0.000000e+00> : vector<16x64xf32>
      %76 = tpu.matmul %75, %69, %cst_44 {dimension_numbers = #tpu.dot_dimension_numbers<[1], [0], [0], [1], [0, 0, 1, 1], [], []>} : vector<16x40xf32>, vector<40x64xf32>, vector<16x64xf32> -> vector<16x64xf32>
      %77 = arith.addf %59, %76 : vector<16x64xf32>
      %c4_i32 = arith.constant 4 : i32
      %78 = arith.addi %7, %c4_i32 : i32
      %c0_45 = arith.constant 0 : index
      %79 = arith.index_cast %78 : i32 to index
      %c0_46 = arith.constant 0 : index
      %c0_47 = arith.constant 0 : index
      %80 = vector.load %arg1[%c0_45, %79, %c0_46, %c0_47] : memref<1x68x8x68xf32, #tpu.memory_space<vmem>>, vector<1x1x8x68xf32>
      %81 = vector.shape_cast %80 : vector<1x1x8x68xf32> to vector<8x68xf32>
      %82 = vector.extract_strided_slice %81 {offsets = [0, 0], sizes = [8, 64], strides = [1, 1]} : vector<8x68xf32> to vector<8x64xf32>
      %83 = vector.extract_strided_slice %81 {offsets = [0, 1], sizes = [8, 64], strides = [1, 1]} : vector<8x68xf32> to vector<8x64xf32>
      %84 = vector.extract_strided_slice %81 {offsets = [0, 2], sizes = [8, 64], strides = [1, 1]} : vector<8x68xf32> to vector<8x64xf32>
      %85 = vector.extract_strided_slice %81 {offsets = [0, 3], sizes = [8, 64], strides = [1, 1]} : vector<8x68xf32> to vector<8x64xf32>
      %86 = vector.extract_strided_slice %81 {offsets = [0, 4], sizes = [8, 64], strides = [1, 1]} : vector<8x68xf32> to vector<8x64xf32>
      %87 = tpu.concatenate %82, %83, %84, %85, %86 in 0 : vector<8x64xf32>, vector<8x64xf32>, vector<8x64xf32>, vector<8x64xf32>, vector<8x64xf32> -> vector<40x64xf32>
      %c4 = arith.constant 4 : index
      %c0_48 = arith.constant 0 : index
      %c0_49 = arith.constant 0 : index
      %88 = vector.load %arg2[%c4, %c0_48, %c0_49] : memref<5x16x40xf32, #tpu.memory_space<vmem>>, vector<1x16x40xf32>
      %89 = vector.shape_cast %88 : vector<1x16x40xf32> to vector<16x40xf32>
      %cst_50 = arith.constant dense<0.000000e+00> : vector<16x64xf32>
      %90 = tpu.matmul %89, %87, %cst_50 {dimension_numbers = #tpu.dot_dimension_numbers<[1], [0], [0], [1], [0, 0, 1, 1], [], []>} : vector<16x40xf32>, vector<40x64xf32>, vector<16x64xf32> -> vector<16x64xf32>
      %91 = arith.addf %73, %90 : vector<16x64xf32>
      %c3_51 = arith.constant 3 : index
      %c0_52 = arith.constant 0 : index
      %c0_53 = arith.constant 0 : index
      %92 = vector.load %arg2[%c3_51, %c0_52, %c0_53] : memref<5x16x40xf32, #tpu.memory_space<vmem>>, vector<1x16x40xf32>
      %93 = vector.shape_cast %92 : vector<1x16x40xf32> to vector<16x40xf32>
      %cst_54 = arith.constant dense<0.000000e+00> : vector<16x64xf32>
      %94 = tpu.matmul %93, %87, %cst_54 {dimension_numbers = #tpu.dot_dimension_numbers<[1], [0], [0], [1], [0, 0, 1, 1], [], []>} : vector<16x40xf32>, vector<40x64xf32>, vector<16x64xf32> -> vector<16x64xf32>
      %95 = arith.addf %77, %94 : vector<16x64xf32>
      %c5_i32 = arith.constant 5 : i32
      %96 = arith.addi %7, %c5_i32 : i32
      %c0_55 = arith.constant 0 : index
      %97 = arith.index_cast %96 : i32 to index
      %c0_56 = arith.constant 0 : index
      %c0_57 = arith.constant 0 : index
      %98 = vector.load %arg1[%c0_55, %97, %c0_56, %c0_57] : memref<1x68x8x68xf32, #tpu.memory_space<vmem>>, vector<1x1x8x68xf32>
      %99 = vector.shape_cast %98 : vector<1x1x8x68xf32> to vector<8x68xf32>
      %100 = vector.extract_strided_slice %99 {offsets = [0, 0], sizes = [8, 64], strides = [1, 1]} : vector<8x68xf32> to vector<8x64xf32>
      %101 = vector.extract_strided_slice %99 {offsets = [0, 1], sizes = [8, 64], strides = [1, 1]} : vector<8x68xf32> to vector<8x64xf32>
      %102 = vector.extract_strided_slice %99 {offsets = [0, 2], sizes = [8, 64], strides = [1, 1]} : vector<8x68xf32> to vector<8x64xf32>
      %103 = vector.extract_strided_slice %99 {offsets = [0, 3], sizes = [8, 64], strides = [1, 1]} : vector<8x68xf32> to vector<8x64xf32>
      %104 = vector.extract_strided_slice %99 {offsets = [0, 4], sizes = [8, 64], strides = [1, 1]} : vector<8x68xf32> to vector<8x64xf32>
      %105 = tpu.concatenate %100, %101, %102, %103, %104 in 0 : vector<8x64xf32>, vector<8x64xf32>, vector<8x64xf32>, vector<8x64xf32>, vector<8x64xf32> -> vector<40x64xf32>
      %c4_58 = arith.constant 4 : index
      %c0_59 = arith.constant 0 : index
      %c0_60 = arith.constant 0 : index
      %106 = vector.load %arg2[%c4_58, %c0_59, %c0_60] : memref<5x16x40xf32, #tpu.memory_space<vmem>>, vector<1x16x40xf32>
      %107 = vector.shape_cast %106 : vector<1x16x40xf32> to vector<16x40xf32>
      %cst_61 = arith.constant dense<0.000000e+00> : vector<16x64xf32>
      %108 = tpu.matmul %107, %105, %cst_61 {dimension_numbers = #tpu.dot_dimension_numbers<[1], [0], [0], [1], [0, 0, 1, 1], [], []>} : vector<16x40xf32>, vector<40x64xf32>, vector<16x64xf32> -> vector<16x64xf32>
      %109 = arith.addf %95, %108 : vector<16x64xf32>
      %cst_62 = arith.constant 0.000000e+00 : f32
      %110 = vector.broadcast %cst_62 : f32 to vector<16x64xf32>
      %111 = arith.maximumf %91, %110 : vector<16x64xf32>
      %112 = arith.mulf %111, %2 : vector<16x64xf32>
      %113 = arith.addf %112, %5 : vector<16x64xf32>
      %cst_63 = arith.constant 0.000000e+00 : f32
      %114 = vector.broadcast %cst_63 : f32 to vector<16x64xf32>
      %115 = arith.maximumf %109, %114 : vector<16x64xf32>
      %116 = arith.mulf %115, %2 : vector<16x64xf32>
      %117 = arith.addf %116, %5 : vector<16x64xf32>
      %118 = arith.maximumf %113, %117 : vector<16x64xf32>
      %c0_64 = arith.constant 0 : index
      %c0_65 = arith.constant 0 : index
      %119 = vector.load %arg5[%c0_64, %c0_65] : memref<64x64xf32, #tpu.memory_space<vmem>>, vector<64x64xf32>
      %cst_66 = arith.constant dense<0.000000e+00> : vector<16x64xf32>
      %120 = tpu.matmul %118, %119, %cst_66 {dimension_numbers = #tpu.dot_dimension_numbers<[1], [0], [0], [1], [0, 0, 1, 1], [], []>} : vector<16x64xf32>, vector<64x64xf32>, vector<16x64xf32> -> vector<16x64xf32>
      %121 = vector.extract_strided_slice %120 {offsets = [0, 0], sizes = [16, 32], strides = [1, 1]} : vector<16x64xf32> to vector<16x32xf32>
      %122 = vector.extract_strided_slice %120 {offsets = [0, 32], sizes = [16, 32], strides = [1, 1]} : vector<16x64xf32> to vector<16x32xf32>
      %123 = arith.maximumf %121, %122 : vector<16x32xf32>
      %c0_67 = arith.constant 0 : index
      %124 = arith.index_cast %arg7 : i32 to index
      %c0_68 = arith.constant 0 : index
      %c0_69 = arith.constant 0 : index
      %125 = vector.load %arg6[%c0_67, %124, %c0_68, %c0_69] : memref<1x32x16x32xf32, #tpu.memory_space<vmem>>, vector<1x1x16x32xf32>
      %126 = vector.shape_cast %125 : vector<1x1x16x32xf32> to vector<16x32xf32>
      %127 = vector.shape_cast %123 : vector<16x32xf32> to vector<1x1x16x32xf32>
      tpu.vector_store %arg6[%c0_67, %124, %c0_68, %c0_69], %127 {strides = array<i32>} : memref<1x32x16x32xf32, #tpu.memory_space<vmem>>, vector<1x1x16x32xf32>,
    }
    %c32_i32_3 = arith.constant 32 : i32
    return
  }
  func.func @transform_0(%arg0: i32) -> (i32, i32, i32, i32) {
    %c0_i32 = arith.constant 0 : i32
    %c0_i32_0 = arith.constant 0 : i32
    %c0_i32_1 = arith.constant 0 : i32
    %c0_i32_2 = arith.constant 0 : i32
    return %arg0, %c0_i32, %c0_i32_0, %c0_i32_1 : i32, i32, i32, i32
  }
  func.func @transform_1(%arg0: i32) -> (i32, i32, i32) {
    %c0_i32 = arith.constant 0 : i32
    %c0_i32_0 = arith.constant 0 : i32
    %c0_i32_1 = arith.constant 0 : i32
    %c0_i32_2 = arith.constant 0 : i32
    return %c0_i32, %c0_i32_0, %c0_i32_1 : i32, i32, i32
  }
  func.func @transform_2(%arg0: i32) -> (i32, i32) {
    %c0_i32 = arith.constant 0 : i32
    %c0_i32_0 = arith.constant 0 : i32
    %c0_i32_1 = arith.constant 0 : i32
    return %c0_i32, %c0_i32_0 : i32, i32
  }
  func.func @transform_3(%arg0: i32) -> (i32, i32) {
    %c0_i32 = arith.constant 0 : i32
    %c0_i32_0 = arith.constant 0 : i32
    %c0_i32_1 = arith.constant 0 : i32
    return %c0_i32, %c0_i32_0 : i32, i32
  }
  func.func @transform_4(%arg0: i32) -> (i32, i32) {
    %c0_i32 = arith.constant 0 : i32
    %c0_i32_0 = arith.constant 0 : i32
    %c0_i32_1 = arith.constant 0 : i32
    return %c0_i32, %c0_i32_0 : i32, i32
  }
  func.func @transform_5(%arg0: i32) -> (i32, i32, i32, i32) {
    %c0_i32 = arith.constant 0 : i32
    %c0_i32_0 = arith.constant 0 : i32
    %c0_i32_1 = arith.constant 0 : i32
    %c0_i32_2 = arith.constant 0 : i32
    return %arg0, %c0_i32, %c0_i32_0, %c0_i32_1 : i32, i32, i32, i32
  }
}

module attributes {stable_mosaic.version = 11 : i64} {
  func.func @kernel(%arg0: i32, %arg1: memref<1x36x16x36xf32, #tpu.memory_space<vmem>>, %arg2: memref<5x16x80xf32, #tpu.memory_space<vmem>>, %arg3: memref<16x1xf32, #tpu.memory_space<vmem>>, %arg4: memref<16x1xf32, #tpu.memory_space<vmem>>, %arg5: memref<32x32xf32, #tpu.memory_space<vmem>>, %arg6: memref<1x8x16x8xf32, #tpu.memory_space<vmem>>) attributes {dimension_semantics = [#tpu.dimension_semantics<parallel>], iteration_bounds = array<i64: 2>, scalar_prefetch = 0 : i64, scratch_operands = 0 : i64, tpu.core_type = #tpu.core_type<tc>, window_params = [{transform_indices = @transform_0, window_bounds = array<i64: 1, 36, 16, 36>}, {pipeline_mode = #tpu.pipeline_mode<synchronous>, transform_indices = @transform_1, window_bounds = array<i64: 5, 16, 80>}, {pipeline_mode = #tpu.pipeline_mode<synchronous>, transform_indices = @transform_2, window_bounds = array<i64: 16, 1>}, {pipeline_mode = #tpu.pipeline_mode<synchronous>, transform_indices = @transform_3, window_bounds = array<i64: 16, 1>}, {pipeline_mode = #tpu.pipeline_mode<synchronous>, transform_indices = @transform_4, window_bounds = array<i64: 32, 32>}, {transform_indices = @transform_5, window_bounds = array<i64: 1, 8, 16, 8>}]} {
    %c0 = arith.constant 0 : index
    %c0_0 = arith.constant 0 : index
    %0 = vector.load %arg3[%c0, %c0_0] : memref<16x1xf32, #tpu.memory_space<vmem>>, vector<16x1xf32>
    %1 = vector.shape_cast %0 : vector<16x1xf32> to vector<16x1xf32>
    %2 = vector.broadcast %1 : vector<16x1xf32> to vector<16x32xf32>
    %c0_1 = arith.constant 0 : index
    %c0_2 = arith.constant 0 : index
    %3 = vector.load %arg4[%c0_1, %c0_2] : memref<16x1xf32, #tpu.memory_space<vmem>>, vector<16x1xf32>
    %4 = vector.shape_cast %3 : vector<16x1xf32> to vector<16x1xf32>
    %5 = vector.broadcast %4 : vector<16x1xf32> to vector<16x32xf32>
    %c0_i32 = arith.constant 0 : i32
    %c8_i32 = arith.constant 8 : i32
    %6 = arith.addi %c0_i32, %c8_i32 : i32
    %c1_i32 = arith.constant 1 : i32
    scf.for %arg7 = %c0_i32 to %6 step %c1_i32  : i32 {
      %c4_i32 = arith.constant 4 : i32
      %7 = arith.muli %arg7, %c4_i32 : i32
      %cst = arith.constant 0.000000e+00 : f32
      %8 = vector.broadcast %cst : f32 to vector<16x32xf32>
      %cst_4 = arith.constant 0.000000e+00 : f32
      %9 = vector.broadcast %cst_4 : f32 to vector<16x32xf32>
      %cst_5 = arith.constant 0.000000e+00 : f32
      %10 = vector.broadcast %cst_5 : f32 to vector<16x32xf32>
      %cst_6 = arith.constant 0.000000e+00 : f32
      %11 = vector.broadcast %cst_6 : f32 to vector<16x32xf32>
      %c0_i32_7 = arith.constant 0 : i32
      %12 = arith.addi %7, %c0_i32_7 : i32
      %c0_8 = arith.constant 0 : index
      %13 = arith.index_cast %12 : i32 to index
      %c0_9 = arith.constant 0 : index
      %c0_10 = arith.constant 0 : index
      %14 = vector.load %arg1[%c0_8, %13, %c0_9, %c0_10] : memref<1x36x16x36xf32, #tpu.memory_space<vmem>>, vector<1x1x16x36xf32>
      %15 = vector.shape_cast %14 : vector<1x1x16x36xf32> to vector<16x36xf32>
      %16 = vector.extract_strided_slice %15 {offsets = [0, 0], sizes = [16, 32], strides = [1, 1]} : vector<16x36xf32> to vector<16x32xf32>
      %17 = vector.extract_strided_slice %15 {offsets = [0, 1], sizes = [16, 32], strides = [1, 1]} : vector<16x36xf32> to vector<16x32xf32>
      %18 = vector.extract_strided_slice %15 {offsets = [0, 2], sizes = [16, 32], strides = [1, 1]} : vector<16x36xf32> to vector<16x32xf32>
      %19 = vector.extract_strided_slice %15 {offsets = [0, 3], sizes = [16, 32], strides = [1, 1]} : vector<16x36xf32> to vector<16x32xf32>
      %20 = vector.extract_strided_slice %15 {offsets = [0, 4], sizes = [16, 32], strides = [1, 1]} : vector<16x36xf32> to vector<16x32xf32>
      %21 = tpu.concatenate %16, %17, %18, %19, %20 in 0 : vector<16x32xf32>, vector<16x32xf32>, vector<16x32xf32>, vector<16x32xf32>, vector<16x32xf32> -> vector<80x32xf32>
      %c0_11 = arith.constant 0 : index
      %c0_12 = arith.constant 0 : index
      %c0_13 = arith.constant 0 : index
      %22 = vector.load %arg2[%c0_11, %c0_12, %c0_13] : memref<5x16x80xf32, #tpu.memory_space<vmem>>, vector<1x16x80xf32>
      %23 = vector.shape_cast %22 : vector<1x16x80xf32> to vector<16x80xf32>
      %cst_14 = arith.constant dense<0.000000e+00> : vector<16x32xf32>
      %24 = tpu.matmul %23, %21, %cst_14 {dimension_numbers = #tpu.dot_dimension_numbers<[1], [0], [0], [1], [0, 0, 1, 1], [], []>} : vector<16x80xf32>, vector<80x32xf32>, vector<16x32xf32> -> vector<16x32xf32>
      %25 = arith.addf %8, %24 : vector<16x32xf32>
      %c1_i32_15 = arith.constant 1 : i32
      %26 = arith.addi %7, %c1_i32_15 : i32
      %c0_16 = arith.constant 0 : index
      %27 = arith.index_cast %26 : i32 to index
      %c0_17 = arith.constant 0 : index
      %c0_18 = arith.constant 0 : index
      %28 = vector.load %arg1[%c0_16, %27, %c0_17, %c0_18] : memref<1x36x16x36xf32, #tpu.memory_space<vmem>>, vector<1x1x16x36xf32>
      %29 = vector.shape_cast %28 : vector<1x1x16x36xf32> to vector<16x36xf32>
      %30 = vector.extract_strided_slice %29 {offsets = [0, 0], sizes = [16, 32], strides = [1, 1]} : vector<16x36xf32> to vector<16x32xf32>
      %31 = vector.extract_strided_slice %29 {offsets = [0, 1], sizes = [16, 32], strides = [1, 1]} : vector<16x36xf32> to vector<16x32xf32>
      %32 = vector.extract_strided_slice %29 {offsets = [0, 2], sizes = [16, 32], strides = [1, 1]} : vector<16x36xf32> to vector<16x32xf32>
      %33 = vector.extract_strided_slice %29 {offsets = [0, 3], sizes = [16, 32], strides = [1, 1]} : vector<16x36xf32> to vector<16x32xf32>
      %34 = vector.extract_strided_slice %29 {offsets = [0, 4], sizes = [16, 32], strides = [1, 1]} : vector<16x36xf32> to vector<16x32xf32>
      %35 = tpu.concatenate %30, %31, %32, %33, %34 in 0 : vector<16x32xf32>, vector<16x32xf32>, vector<16x32xf32>, vector<16x32xf32>, vector<16x32xf32> -> vector<80x32xf32>
      %c1 = arith.constant 1 : index
      %c0_19 = arith.constant 0 : index
      %c0_20 = arith.constant 0 : index
      %36 = vector.load %arg2[%c1, %c0_19, %c0_20] : memref<5x16x80xf32, #tpu.memory_space<vmem>>, vector<1x16x80xf32>
      %37 = vector.shape_cast %36 : vector<1x16x80xf32> to vector<16x80xf32>
      %cst_21 = arith.constant dense<0.000000e+00> : vector<16x32xf32>
      %38 = tpu.matmul %37, %35, %cst_21 {dimension_numbers = #tpu.dot_dimension_numbers<[1], [0], [0], [1], [0, 0, 1, 1], [], []>} : vector<16x80xf32>, vector<80x32xf32>, vector<16x32xf32> -> vector<16x32xf32>
      %39 = arith.addf %25, %38 : vector<16x32xf32>
      %c0_22 = arith.constant 0 : index
      %c0_23 = arith.constant 0 : index
      %c0_24 = arith.constant 0 : index
      %40 = vector.load %arg2[%c0_22, %c0_23, %c0_24] : memref<5x16x80xf32, #tpu.memory_space<vmem>>, vector<1x16x80xf32>
      %41 = vector.shape_cast %40 : vector<1x16x80xf32> to vector<16x80xf32>
      %cst_25 = arith.constant dense<0.000000e+00> : vector<16x32xf32>
      %42 = tpu.matmul %41, %35, %cst_25 {dimension_numbers = #tpu.dot_dimension_numbers<[1], [0], [0], [1], [0, 0, 1, 1], [], []>} : vector<16x80xf32>, vector<80x32xf32>, vector<16x32xf32> -> vector<16x32xf32>
      %43 = arith.addf %9, %42 : vector<16x32xf32>
      %c2_i32 = arith.constant 2 : i32
      %44 = arith.addi %7, %c2_i32 : i32
      %c0_26 = arith.constant 0 : index
      %45 = arith.index_cast %44 : i32 to index
      %c0_27 = arith.constant 0 : index
      %c0_28 = arith.constant 0 : index
      %46 = vector.load %arg1[%c0_26, %45, %c0_27, %c0_28] : memref<1x36x16x36xf32, #tpu.memory_space<vmem>>, vector<1x1x16x36xf32>
      %47 = vector.shape_cast %46 : vector<1x1x16x36xf32> to vector<16x36xf32>
      %48 = vector.extract_strided_slice %47 {offsets = [0, 0], sizes = [16, 32], strides = [1, 1]} : vector<16x36xf32> to vector<16x32xf32>
      %49 = vector.extract_strided_slice %47 {offsets = [0, 1], sizes = [16, 32], strides = [1, 1]} : vector<16x36xf32> to vector<16x32xf32>
      %50 = vector.extract_strided_slice %47 {offsets = [0, 2], sizes = [16, 32], strides = [1, 1]} : vector<16x36xf32> to vector<16x32xf32>
      %51 = vector.extract_strided_slice %47 {offsets = [0, 3], sizes = [16, 32], strides = [1, 1]} : vector<16x36xf32> to vector<16x32xf32>
      %52 = vector.extract_strided_slice %47 {offsets = [0, 4], sizes = [16, 32], strides = [1, 1]} : vector<16x36xf32> to vector<16x32xf32>
      %53 = tpu.concatenate %48, %49, %50, %51, %52 in 0 : vector<16x32xf32>, vector<16x32xf32>, vector<16x32xf32>, vector<16x32xf32>, vector<16x32xf32> -> vector<80x32xf32>
      %c2 = arith.constant 2 : index
      %c0_29 = arith.constant 0 : index
      %c0_30 = arith.constant 0 : index
      %54 = vector.load %arg2[%c2, %c0_29, %c0_30] : memref<5x16x80xf32, #tpu.memory_space<vmem>>, vector<1x16x80xf32>
      %55 = vector.shape_cast %54 : vector<1x16x80xf32> to vector<16x80xf32>
      %cst_31 = arith.constant dense<0.000000e+00> : vector<16x32xf32>
      %56 = tpu.matmul %55, %53, %cst_31 {dimension_numbers = #tpu.dot_dimension_numbers<[1], [0], [0], [1], [0, 0, 1, 1], [], []>} : vector<16x80xf32>, vector<80x32xf32>, vector<16x32xf32> -> vector<16x32xf32>
      %57 = arith.addf %39, %56 : vector<16x32xf32>
      %c1_32 = arith.constant 1 : index
      %c0_33 = arith.constant 0 : index
      %c0_34 = arith.constant 0 : index
      %58 = vector.load %arg2[%c1_32, %c0_33, %c0_34] : memref<5x16x80xf32, #tpu.memory_space<vmem>>, vector<1x16x80xf32>
      %59 = vector.shape_cast %58 : vector<1x16x80xf32> to vector<16x80xf32>
      %cst_35 = arith.constant dense<0.000000e+00> : vector<16x32xf32>
      %60 = tpu.matmul %59, %53, %cst_35 {dimension_numbers = #tpu.dot_dimension_numbers<[1], [0], [0], [1], [0, 0, 1, 1], [], []>} : vector<16x80xf32>, vector<80x32xf32>, vector<16x32xf32> -> vector<16x32xf32>
      %61 = arith.addf %43, %60 : vector<16x32xf32>
      %c0_36 = arith.constant 0 : index
      %c0_37 = arith.constant 0 : index
      %c0_38 = arith.constant 0 : index
      %62 = vector.load %arg2[%c0_36, %c0_37, %c0_38] : memref<5x16x80xf32, #tpu.memory_space<vmem>>, vector<1x16x80xf32>
      %63 = vector.shape_cast %62 : vector<1x16x80xf32> to vector<16x80xf32>
      %cst_39 = arith.constant dense<0.000000e+00> : vector<16x32xf32>
      %64 = tpu.matmul %63, %53, %cst_39 {dimension_numbers = #tpu.dot_dimension_numbers<[1], [0], [0], [1], [0, 0, 1, 1], [], []>} : vector<16x80xf32>, vector<80x32xf32>, vector<16x32xf32> -> vector<16x32xf32>
      %65 = arith.addf %10, %64 : vector<16x32xf32>
      %c3_i32 = arith.constant 3 : i32
      %66 = arith.addi %7, %c3_i32 : i32
      %c0_40 = arith.constant 0 : index
      %67 = arith.index_cast %66 : i32 to index
      %c0_41 = arith.constant 0 : index
      %c0_42 = arith.constant 0 : index
      %68 = vector.load %arg1[%c0_40, %67, %c0_41, %c0_42] : memref<1x36x16x36xf32, #tpu.memory_space<vmem>>, vector<1x1x16x36xf32>
      %69 = vector.shape_cast %68 : vector<1x1x16x36xf32> to vector<16x36xf32>
      %70 = vector.extract_strided_slice %69 {offsets = [0, 0], sizes = [16, 32], strides = [1, 1]} : vector<16x36xf32> to vector<16x32xf32>
      %71 = vector.extract_strided_slice %69 {offsets = [0, 1], sizes = [16, 32], strides = [1, 1]} : vector<16x36xf32> to vector<16x32xf32>
      %72 = vector.extract_strided_slice %69 {offsets = [0, 2], sizes = [16, 32], strides = [1, 1]} : vector<16x36xf32> to vector<16x32xf32>
      %73 = vector.extract_strided_slice %69 {offsets = [0, 3], sizes = [16, 32], strides = [1, 1]} : vector<16x36xf32> to vector<16x32xf32>
      %74 = vector.extract_strided_slice %69 {offsets = [0, 4], sizes = [16, 32], strides = [1, 1]} : vector<16x36xf32> to vector<16x32xf32>
      %75 = tpu.concatenate %70, %71, %72, %73, %74 in 0 : vector<16x32xf32>, vector<16x32xf32>, vector<16x32xf32>, vector<16x32xf32>, vector<16x32xf32> -> vector<80x32xf32>
      %c3 = arith.constant 3 : index
      %c0_43 = arith.constant 0 : index
      %c0_44 = arith.constant 0 : index
      %76 = vector.load %arg2[%c3, %c0_43, %c0_44] : memref<5x16x80xf32, #tpu.memory_space<vmem>>, vector<1x16x80xf32>
      %77 = vector.shape_cast %76 : vector<1x16x80xf32> to vector<16x80xf32>
      %cst_45 = arith.constant dense<0.000000e+00> : vector<16x32xf32>
      %78 = tpu.matmul %77, %75, %cst_45 {dimension_numbers = #tpu.dot_dimension_numbers<[1], [0], [0], [1], [0, 0, 1, 1], [], []>} : vector<16x80xf32>, vector<80x32xf32>, vector<16x32xf32> -> vector<16x32xf32>
      %79 = arith.addf %57, %78 : vector<16x32xf32>
      %c2_46 = arith.constant 2 : index
      %c0_47 = arith.constant 0 : index
      %c0_48 = arith.constant 0 : index
      %80 = vector.load %arg2[%c2_46, %c0_47, %c0_48] : memref<5x16x80xf32, #tpu.memory_space<vmem>>, vector<1x16x80xf32>
      %81 = vector.shape_cast %80 : vector<1x16x80xf32> to vector<16x80xf32>
      %cst_49 = arith.constant dense<0.000000e+00> : vector<16x32xf32>
      %82 = tpu.matmul %81, %75, %cst_49 {dimension_numbers = #tpu.dot_dimension_numbers<[1], [0], [0], [1], [0, 0, 1, 1], [], []>} : vector<16x80xf32>, vector<80x32xf32>, vector<16x32xf32> -> vector<16x32xf32>
      %83 = arith.addf %61, %82 : vector<16x32xf32>
      %c1_50 = arith.constant 1 : index
      %c0_51 = arith.constant 0 : index
      %c0_52 = arith.constant 0 : index
      %84 = vector.load %arg2[%c1_50, %c0_51, %c0_52] : memref<5x16x80xf32, #tpu.memory_space<vmem>>, vector<1x16x80xf32>
      %85 = vector.shape_cast %84 : vector<1x16x80xf32> to vector<16x80xf32>
      %cst_53 = arith.constant dense<0.000000e+00> : vector<16x32xf32>
      %86 = tpu.matmul %85, %75, %cst_53 {dimension_numbers = #tpu.dot_dimension_numbers<[1], [0], [0], [1], [0, 0, 1, 1], [], []>} : vector<16x80xf32>, vector<80x32xf32>, vector<16x32xf32> -> vector<16x32xf32>
      %87 = arith.addf %65, %86 : vector<16x32xf32>
      %c0_54 = arith.constant 0 : index
      %c0_55 = arith.constant 0 : index
      %c0_56 = arith.constant 0 : index
      %88 = vector.load %arg2[%c0_54, %c0_55, %c0_56] : memref<5x16x80xf32, #tpu.memory_space<vmem>>, vector<1x16x80xf32>
      %89 = vector.shape_cast %88 : vector<1x16x80xf32> to vector<16x80xf32>
      %cst_57 = arith.constant dense<0.000000e+00> : vector<16x32xf32>
      %90 = tpu.matmul %89, %75, %cst_57 {dimension_numbers = #tpu.dot_dimension_numbers<[1], [0], [0], [1], [0, 0, 1, 1], [], []>} : vector<16x80xf32>, vector<80x32xf32>, vector<16x32xf32> -> vector<16x32xf32>
      %91 = arith.addf %11, %90 : vector<16x32xf32>
      %c4_i32_58 = arith.constant 4 : i32
      %92 = arith.addi %7, %c4_i32_58 : i32
      %c0_59 = arith.constant 0 : index
      %93 = arith.index_cast %92 : i32 to index
      %c0_60 = arith.constant 0 : index
      %c0_61 = arith.constant 0 : index
      %94 = vector.load %arg1[%c0_59, %93, %c0_60, %c0_61] : memref<1x36x16x36xf32, #tpu.memory_space<vmem>>, vector<1x1x16x36xf32>
      %95 = vector.shape_cast %94 : vector<1x1x16x36xf32> to vector<16x36xf32>
      %96 = vector.extract_strided_slice %95 {offsets = [0, 0], sizes = [16, 32], strides = [1, 1]} : vector<16x36xf32> to vector<16x32xf32>
      %97 = vector.extract_strided_slice %95 {offsets = [0, 1], sizes = [16, 32], strides = [1, 1]} : vector<16x36xf32> to vector<16x32xf32>
      %98 = vector.extract_strided_slice %95 {offsets = [0, 2], sizes = [16, 32], strides = [1, 1]} : vector<16x36xf32> to vector<16x32xf32>
      %99 = vector.extract_strided_slice %95 {offsets = [0, 3], sizes = [16, 32], strides = [1, 1]} : vector<16x36xf32> to vector<16x32xf32>
      %100 = vector.extract_strided_slice %95 {offsets = [0, 4], sizes = [16, 32], strides = [1, 1]} : vector<16x36xf32> to vector<16x32xf32>
      %101 = tpu.concatenate %96, %97, %98, %99, %100 in 0 : vector<16x32xf32>, vector<16x32xf32>, vector<16x32xf32>, vector<16x32xf32>, vector<16x32xf32> -> vector<80x32xf32>
      %c4 = arith.constant 4 : index
      %c0_62 = arith.constant 0 : index
      %c0_63 = arith.constant 0 : index
      %102 = vector.load %arg2[%c4, %c0_62, %c0_63] : memref<5x16x80xf32, #tpu.memory_space<vmem>>, vector<1x16x80xf32>
      %103 = vector.shape_cast %102 : vector<1x16x80xf32> to vector<16x80xf32>
      %cst_64 = arith.constant dense<0.000000e+00> : vector<16x32xf32>
      %104 = tpu.matmul %103, %101, %cst_64 {dimension_numbers = #tpu.dot_dimension_numbers<[1], [0], [0], [1], [0, 0, 1, 1], [], []>} : vector<16x80xf32>, vector<80x32xf32>, vector<16x32xf32> -> vector<16x32xf32>
      %105 = arith.addf %79, %104 : vector<16x32xf32>
      %c3_65 = arith.constant 3 : index
      %c0_66 = arith.constant 0 : index
      %c0_67 = arith.constant 0 : index
      %106 = vector.load %arg2[%c3_65, %c0_66, %c0_67] : memref<5x16x80xf32, #tpu.memory_space<vmem>>, vector<1x16x80xf32>
      %107 = vector.shape_cast %106 : vector<1x16x80xf32> to vector<16x80xf32>
      %cst_68 = arith.constant dense<0.000000e+00> : vector<16x32xf32>
      %108 = tpu.matmul %107, %101, %cst_68 {dimension_numbers = #tpu.dot_dimension_numbers<[1], [0], [0], [1], [0, 0, 1, 1], [], []>} : vector<16x80xf32>, vector<80x32xf32>, vector<16x32xf32> -> vector<16x32xf32>
      %109 = arith.addf %83, %108 : vector<16x32xf32>
      %c2_69 = arith.constant 2 : index
      %c0_70 = arith.constant 0 : index
      %c0_71 = arith.constant 0 : index
      %110 = vector.load %arg2[%c2_69, %c0_70, %c0_71] : memref<5x16x80xf32, #tpu.memory_space<vmem>>, vector<1x16x80xf32>
      %111 = vector.shape_cast %110 : vector<1x16x80xf32> to vector<16x80xf32>
      %cst_72 = arith.constant dense<0.000000e+00> : vector<16x32xf32>
      %112 = tpu.matmul %111, %101, %cst_72 {dimension_numbers = #tpu.dot_dimension_numbers<[1], [0], [0], [1], [0, 0, 1, 1], [], []>} : vector<16x80xf32>, vector<80x32xf32>, vector<16x32xf32> -> vector<16x32xf32>
      %113 = arith.addf %87, %112 : vector<16x32xf32>
      %c1_73 = arith.constant 1 : index
      %c0_74 = arith.constant 0 : index
      %c0_75 = arith.constant 0 : index
      %114 = vector.load %arg2[%c1_73, %c0_74, %c0_75] : memref<5x16x80xf32, #tpu.memory_space<vmem>>, vector<1x16x80xf32>
      %115 = vector.shape_cast %114 : vector<1x16x80xf32> to vector<16x80xf32>
      %cst_76 = arith.constant dense<0.000000e+00> : vector<16x32xf32>
      %116 = tpu.matmul %115, %101, %cst_76 {dimension_numbers = #tpu.dot_dimension_numbers<[1], [0], [0], [1], [0, 0, 1, 1], [], []>} : vector<16x80xf32>, vector<80x32xf32>, vector<16x32xf32> -> vector<16x32xf32>
      %117 = arith.addf %91, %116 : vector<16x32xf32>
      %c5_i32 = arith.constant 5 : i32
      %118 = arith.addi %7, %c5_i32 : i32
      %c0_77 = arith.constant 0 : index
      %119 = arith.index_cast %118 : i32 to index
      %c0_78 = arith.constant 0 : index
      %c0_79 = arith.constant 0 : index
      %120 = vector.load %arg1[%c0_77, %119, %c0_78, %c0_79] : memref<1x36x16x36xf32, #tpu.memory_space<vmem>>, vector<1x1x16x36xf32>
      %121 = vector.shape_cast %120 : vector<1x1x16x36xf32> to vector<16x36xf32>
      %122 = vector.extract_strided_slice %121 {offsets = [0, 0], sizes = [16, 32], strides = [1, 1]} : vector<16x36xf32> to vector<16x32xf32>
      %123 = vector.extract_strided_slice %121 {offsets = [0, 1], sizes = [16, 32], strides = [1, 1]} : vector<16x36xf32> to vector<16x32xf32>
      %124 = vector.extract_strided_slice %121 {offsets = [0, 2], sizes = [16, 32], strides = [1, 1]} : vector<16x36xf32> to vector<16x32xf32>
      %125 = vector.extract_strided_slice %121 {offsets = [0, 3], sizes = [16, 32], strides = [1, 1]} : vector<16x36xf32> to vector<16x32xf32>
      %126 = vector.extract_strided_slice %121 {offsets = [0, 4], sizes = [16, 32], strides = [1, 1]} : vector<16x36xf32> to vector<16x32xf32>
      %127 = tpu.concatenate %122, %123, %124, %125, %126 in 0 : vector<16x32xf32>, vector<16x32xf32>, vector<16x32xf32>, vector<16x32xf32>, vector<16x32xf32> -> vector<80x32xf32>
      %c4_80 = arith.constant 4 : index
      %c0_81 = arith.constant 0 : index
      %c0_82 = arith.constant 0 : index
      %128 = vector.load %arg2[%c4_80, %c0_81, %c0_82] : memref<5x16x80xf32, #tpu.memory_space<vmem>>, vector<1x16x80xf32>
      %129 = vector.shape_cast %128 : vector<1x16x80xf32> to vector<16x80xf32>
      %cst_83 = arith.constant dense<0.000000e+00> : vector<16x32xf32>
      %130 = tpu.matmul %129, %127, %cst_83 {dimension_numbers = #tpu.dot_dimension_numbers<[1], [0], [0], [1], [0, 0, 1, 1], [], []>} : vector<16x80xf32>, vector<80x32xf32>, vector<16x32xf32> -> vector<16x32xf32>
      %131 = arith.addf %109, %130 : vector<16x32xf32>
      %c3_84 = arith.constant 3 : index
      %c0_85 = arith.constant 0 : index
      %c0_86 = arith.constant 0 : index
      %132 = vector.load %arg2[%c3_84, %c0_85, %c0_86] : memref<5x16x80xf32, #tpu.memory_space<vmem>>, vector<1x16x80xf32>
      %133 = vector.shape_cast %132 : vector<1x16x80xf32> to vector<16x80xf32>
      %cst_87 = arith.constant dense<0.000000e+00> : vector<16x32xf32>
      %134 = tpu.matmul %133, %127, %cst_87 {dimension_numbers = #tpu.dot_dimension_numbers<[1], [0], [0], [1], [0, 0, 1, 1], [], []>} : vector<16x80xf32>, vector<80x32xf32>, vector<16x32xf32> -> vector<16x32xf32>
      %135 = arith.addf %113, %134 : vector<16x32xf32>
      %c2_88 = arith.constant 2 : index
      %c0_89 = arith.constant 0 : index
      %c0_90 = arith.constant 0 : index
      %136 = vector.load %arg2[%c2_88, %c0_89, %c0_90] : memref<5x16x80xf32, #tpu.memory_space<vmem>>, vector<1x16x80xf32>
      %137 = vector.shape_cast %136 : vector<1x16x80xf32> to vector<16x80xf32>
      %cst_91 = arith.constant dense<0.000000e+00> : vector<16x32xf32>
      %138 = tpu.matmul %137, %127, %cst_91 {dimension_numbers = #tpu.dot_dimension_numbers<[1], [0], [0], [1], [0, 0, 1, 1], [], []>} : vector<16x80xf32>, vector<80x32xf32>, vector<16x32xf32> -> vector<16x32xf32>
      %139 = arith.addf %117, %138 : vector<16x32xf32>
      %c6_i32 = arith.constant 6 : i32
      %140 = arith.addi %7, %c6_i32 : i32
      %c0_92 = arith.constant 0 : index
      %141 = arith.index_cast %140 : i32 to index
      %c0_93 = arith.constant 0 : index
      %c0_94 = arith.constant 0 : index
      %142 = vector.load %arg1[%c0_92, %141, %c0_93, %c0_94] : memref<1x36x16x36xf32, #tpu.memory_space<vmem>>, vector<1x1x16x36xf32>
      %143 = vector.shape_cast %142 : vector<1x1x16x36xf32> to vector<16x36xf32>
      %144 = vector.extract_strided_slice %143 {offsets = [0, 0], sizes = [16, 32], strides = [1, 1]} : vector<16x36xf32> to vector<16x32xf32>
      %145 = vector.extract_strided_slice %143 {offsets = [0, 1], sizes = [16, 32], strides = [1, 1]} : vector<16x36xf32> to vector<16x32xf32>
      %146 = vector.extract_strided_slice %143 {offsets = [0, 2], sizes = [16, 32], strides = [1, 1]} : vector<16x36xf32> to vector<16x32xf32>
      %147 = vector.extract_strided_slice %143 {offsets = [0, 3], sizes = [16, 32], strides = [1, 1]} : vector<16x36xf32> to vector<16x32xf32>
      %148 = vector.extract_strided_slice %143 {offsets = [0, 4], sizes = [16, 32], strides = [1, 1]} : vector<16x36xf32> to vector<16x32xf32>
      %149 = tpu.concatenate %144, %145, %146, %147, %148 in 0 : vector<16x32xf32>, vector<16x32xf32>, vector<16x32xf32>, vector<16x32xf32>, vector<16x32xf32> -> vector<80x32xf32>
      %c4_95 = arith.constant 4 : index
      %c0_96 = arith.constant 0 : index
      %c0_97 = arith.constant 0 : index
      %150 = vector.load %arg2[%c4_95, %c0_96, %c0_97] : memref<5x16x80xf32, #tpu.memory_space<vmem>>, vector<1x16x80xf32>
      %151 = vector.shape_cast %150 : vector<1x16x80xf32> to vector<16x80xf32>
      %cst_98 = arith.constant dense<0.000000e+00> : vector<16x32xf32>
      %152 = tpu.matmul %151, %149, %cst_98 {dimension_numbers = #tpu.dot_dimension_numbers<[1], [0], [0], [1], [0, 0, 1, 1], [], []>} : vector<16x80xf32>, vector<80x32xf32>, vector<16x32xf32> -> vector<16x32xf32>
      %153 = arith.addf %135, %152 : vector<16x32xf32>
      %c3_99 = arith.constant 3 : index
      %c0_100 = arith.constant 0 : index
      %c0_101 = arith.constant 0 : index
      %154 = vector.load %arg2[%c3_99, %c0_100, %c0_101] : memref<5x16x80xf32, #tpu.memory_space<vmem>>, vector<1x16x80xf32>
      %155 = vector.shape_cast %154 : vector<1x16x80xf32> to vector<16x80xf32>
      %cst_102 = arith.constant dense<0.000000e+00> : vector<16x32xf32>
      %156 = tpu.matmul %155, %149, %cst_102 {dimension_numbers = #tpu.dot_dimension_numbers<[1], [0], [0], [1], [0, 0, 1, 1], [], []>} : vector<16x80xf32>, vector<80x32xf32>, vector<16x32xf32> -> vector<16x32xf32>
      %157 = arith.addf %139, %156 : vector<16x32xf32>
      %c7_i32 = arith.constant 7 : i32
      %158 = arith.addi %7, %c7_i32 : i32
      %c0_103 = arith.constant 0 : index
      %159 = arith.index_cast %158 : i32 to index
      %c0_104 = arith.constant 0 : index
      %c0_105 = arith.constant 0 : index
      %160 = vector.load %arg1[%c0_103, %159, %c0_104, %c0_105] : memref<1x36x16x36xf32, #tpu.memory_space<vmem>>, vector<1x1x16x36xf32>
      %161 = vector.shape_cast %160 : vector<1x1x16x36xf32> to vector<16x36xf32>
      %162 = vector.extract_strided_slice %161 {offsets = [0, 0], sizes = [16, 32], strides = [1, 1]} : vector<16x36xf32> to vector<16x32xf32>
      %163 = vector.extract_strided_slice %161 {offsets = [0, 1], sizes = [16, 32], strides = [1, 1]} : vector<16x36xf32> to vector<16x32xf32>
      %164 = vector.extract_strided_slice %161 {offsets = [0, 2], sizes = [16, 32], strides = [1, 1]} : vector<16x36xf32> to vector<16x32xf32>
      %165 = vector.extract_strided_slice %161 {offsets = [0, 3], sizes = [16, 32], strides = [1, 1]} : vector<16x36xf32> to vector<16x32xf32>
      %166 = vector.extract_strided_slice %161 {offsets = [0, 4], sizes = [16, 32], strides = [1, 1]} : vector<16x36xf32> to vector<16x32xf32>
      %167 = tpu.concatenate %162, %163, %164, %165, %166 in 0 : vector<16x32xf32>, vector<16x32xf32>, vector<16x32xf32>, vector<16x32xf32>, vector<16x32xf32> -> vector<80x32xf32>
      %c4_106 = arith.constant 4 : index
      %c0_107 = arith.constant 0 : index
      %c0_108 = arith.constant 0 : index
      %168 = vector.load %arg2[%c4_106, %c0_107, %c0_108] : memref<5x16x80xf32, #tpu.memory_space<vmem>>, vector<1x16x80xf32>
      %169 = vector.shape_cast %168 : vector<1x16x80xf32> to vector<16x80xf32>
      %cst_109 = arith.constant dense<0.000000e+00> : vector<16x32xf32>
      %170 = tpu.matmul %169, %167, %cst_109 {dimension_numbers = #tpu.dot_dimension_numbers<[1], [0], [0], [1], [0, 0, 1, 1], [], []>} : vector<16x80xf32>, vector<80x32xf32>, vector<16x32xf32> -> vector<16x32xf32>
      %171 = arith.addf %157, %170 : vector<16x32xf32>
      %cst_110 = arith.constant 0.000000e+00 : f32
      %172 = vector.broadcast %cst_110 : f32 to vector<16x32xf32>
      %173 = arith.maximumf %105, %172 : vector<16x32xf32>
      %174 = arith.mulf %173, %2 : vector<16x32xf32>
      %175 = arith.addf %174, %5 : vector<16x32xf32>
      %cst_111 = arith.constant 0.000000e+00 : f32
      %176 = vector.broadcast %cst_111 : f32 to vector<16x32xf32>
      %177 = arith.maximumf %131, %176 : vector<16x32xf32>
      %178 = arith.mulf %177, %2 : vector<16x32xf32>
      %179 = arith.addf %178, %5 : vector<16x32xf32>
      %180 = arith.maximumf %175, %179 : vector<16x32xf32>
      %cst_112 = arith.constant 0.000000e+00 : f32
      %181 = vector.broadcast %cst_112 : f32 to vector<16x32xf32>
      %182 = arith.maximumf %153, %181 : vector<16x32xf32>
      %183 = arith.mulf %182, %2 : vector<16x32xf32>
      %184 = arith.addf %183, %5 : vector<16x32xf32>
      %185 = arith.maximumf %180, %184 : vector<16x32xf32>
      %cst_113 = arith.constant 0.000000e+00 : f32
      %186 = vector.broadcast %cst_113 : f32 to vector<16x32xf32>
      %187 = arith.maximumf %171, %186 : vector<16x32xf32>
      %188 = arith.mulf %187, %2 : vector<16x32xf32>
      %189 = arith.addf %188, %5 : vector<16x32xf32>
      %190 = arith.maximumf %185, %189 : vector<16x32xf32>
      %c0_114 = arith.constant 0 : index
      %c0_115 = arith.constant 0 : index
      %191 = vector.load %arg5[%c0_114, %c0_115] : memref<32x32xf32, #tpu.memory_space<vmem>>, vector<32x32xf32>
      %cst_116 = arith.constant dense<0.000000e+00> : vector<16x32xf32>
      %192 = tpu.matmul %190, %191, %cst_116 {dimension_numbers = #tpu.dot_dimension_numbers<[1], [0], [0], [1], [0, 0, 1, 1], [], []>} : vector<16x32xf32>, vector<32x32xf32>, vector<16x32xf32> -> vector<16x32xf32>
      %193 = vector.extract_strided_slice %192 {offsets = [0, 0], sizes = [16, 8], strides = [1, 1]} : vector<16x32xf32> to vector<16x8xf32>
      %194 = vector.extract_strided_slice %192 {offsets = [0, 8], sizes = [16, 8], strides = [1, 1]} : vector<16x32xf32> to vector<16x8xf32>
      %195 = arith.maximumf %193, %194 : vector<16x8xf32>
      %196 = vector.extract_strided_slice %192 {offsets = [0, 16], sizes = [16, 8], strides = [1, 1]} : vector<16x32xf32> to vector<16x8xf32>
      %197 = arith.maximumf %195, %196 : vector<16x8xf32>
      %198 = vector.extract_strided_slice %192 {offsets = [0, 24], sizes = [16, 8], strides = [1, 1]} : vector<16x32xf32> to vector<16x8xf32>
      %199 = arith.maximumf %197, %198 : vector<16x8xf32>
      %c0_117 = arith.constant 0 : index
      %200 = arith.index_cast %arg7 : i32 to index
      %c0_118 = arith.constant 0 : index
      %c0_119 = arith.constant 0 : index
      %201 = vector.load %arg6[%c0_117, %200, %c0_118, %c0_119] : memref<1x8x16x8xf32, #tpu.memory_space<vmem>>, vector<1x1x16x8xf32>
      %202 = vector.shape_cast %201 : vector<1x1x16x8xf32> to vector<16x8xf32>
      %203 = vector.shape_cast %199 : vector<16x8xf32> to vector<1x1x16x8xf32>
      tpu.vector_store %arg6[%c0_117, %200, %c0_118, %c0_119], %203 {strides = array<i32>} : memref<1x8x16x8xf32, #tpu.memory_space<vmem>>, vector<1x1x16x8xf32>,
    }
    %c8_i32_3 = arith.constant 8 : i32
    return
  }
  func.func @transform_0(%arg0: i32) -> (i32, i32, i32, i32) {
    %c0_i32 = arith.constant 0 : i32
    %c0_i32_0 = arith.constant 0 : i32
    %c0_i32_1 = arith.constant 0 : i32
    %c0_i32_2 = arith.constant 0 : i32
    return %arg0, %c0_i32, %c0_i32_0, %c0_i32_1 : i32, i32, i32, i32
  }
  func.func @transform_1(%arg0: i32) -> (i32, i32, i32) {
    %c0_i32 = arith.constant 0 : i32
    %c0_i32_0 = arith.constant 0 : i32
    %c0_i32_1 = arith.constant 0 : i32
    %c0_i32_2 = arith.constant 0 : i32
    return %c0_i32, %c0_i32_0, %c0_i32_1 : i32, i32, i32
  }
  func.func @transform_2(%arg0: i32) -> (i32, i32) {
    %c0_i32 = arith.constant 0 : i32
    %c0_i32_0 = arith.constant 0 : i32
    %c0_i32_1 = arith.constant 0 : i32
    return %c0_i32, %c0_i32_0 : i32, i32
  }
  func.func @transform_3(%arg0: i32) -> (i32, i32) {
    %c0_i32 = arith.constant 0 : i32
    %c0_i32_0 = arith.constant 0 : i32
    %c0_i32_1 = arith.constant 0 : i32
    return %c0_i32, %c0_i32_0 : i32, i32
  }
  func.func @transform_4(%arg0: i32) -> (i32, i32) {
    %c0_i32 = arith.constant 0 : i32
    %c0_i32_0 = arith.constant 0 : i32
    %c0_i32_1 = arith.constant 0 : i32
    return %c0_i32, %c0_i32_0 : i32, i32
  }
  func.func @transform_5(%arg0: i32) -> (i32, i32, i32, i32) {
    %c0_i32 = arith.constant 0 : i32
    %c0_i32_0 = arith.constant 0 : i32
    %c0_i32_1 = arith.constant 0 : i32
    %c0_i32_2 = arith.constant 0 : i32
    return %arg0, %c0_i32, %c0_i32_0, %c0_i32_1 : i32, i32, i32, i32
  }
}

module attributes {stable_mosaic.version = 11 : i64} {
  func.func @kernel(%arg0: i32, %arg1: memref<2x1024xf32, #tpu.memory_space<vmem>>, %arg2: memref<1024x16xf32, #tpu.memory_space<vmem>>, %arg3: memref<1x16xf32, #tpu.memory_space<vmem>>, %arg4: memref<16x2xf32, #tpu.memory_space<vmem>>, %arg5: memref<1x2xf32, #tpu.memory_space<vmem>>, %arg6: memref<2x2xf32, #tpu.memory_space<vmem>>) attributes {dimension_semantics = [#tpu.dimension_semantics<arbitrary>], iteration_bounds = array<i64: 1>, scalar_prefetch = 0 : i64, scratch_operands = 0 : i64, tpu.core_type = #tpu.core_type<tc>, window_params = [{pipeline_mode = #tpu.pipeline_mode<synchronous>, transform_indices = @transform_0, window_bounds = array<i64: 2, 1024>}, {pipeline_mode = #tpu.pipeline_mode<synchronous>, transform_indices = @transform_1, window_bounds = array<i64: 1024, 16>}, {pipeline_mode = #tpu.pipeline_mode<synchronous>, transform_indices = @transform_2, window_bounds = array<i64: 1, 16>}, {pipeline_mode = #tpu.pipeline_mode<synchronous>, transform_indices = @transform_3, window_bounds = array<i64: 16, 2>}, {pipeline_mode = #tpu.pipeline_mode<synchronous>, transform_indices = @transform_4, window_bounds = array<i64: 1, 2>}, {pipeline_mode = #tpu.pipeline_mode<synchronous>, transform_indices = @transform_5, window_bounds = array<i64: 2, 2>}]} {
    %c0 = arith.constant 0 : index
    %c0_0 = arith.constant 0 : index
    %0 = vector.load %arg1[%c0, %c0_0] : memref<2x1024xf32, #tpu.memory_space<vmem>>, vector<2x1024xf32>
    %c0_1 = arith.constant 0 : index
    %c0_2 = arith.constant 0 : index
    %1 = vector.load %arg2[%c0_1, %c0_2] : memref<1024x16xf32, #tpu.memory_space<vmem>>, vector<1024x16xf32>
    %cst = arith.constant dense<0.000000e+00> : vector<2x16xf32>
    %2 = tpu.matmul %0, %1, %cst {dimension_numbers = #tpu.dot_dimension_numbers<[1], [0], [0], [1], [0, 0, 1, 1], [], []>} : vector<2x1024xf32>, vector<1024x16xf32>, vector<2x16xf32> -> vector<2x16xf32>
    %c0_3 = arith.constant 0 : index
    %c0_4 = arith.constant 0 : index
    %3 = vector.load %arg3[%c0_3, %c0_4] : memref<1x16xf32, #tpu.memory_space<vmem>>, vector<1x16xf32>
    %4 = vector.broadcast %3 : vector<1x16xf32> to vector<2x16xf32>
    %5 = arith.addf %2, %4 : vector<2x16xf32>
    %cst_5 = arith.constant 0.000000e+00 : f32
    %6 = vector.broadcast %cst_5 : f32 to vector<2x16xf32>
    %7 = arith.cmpf oge, %5, %6 : vector<2x16xf32>
    %cst_6 = arith.constant 1.000000e-01 : f32
    %8 = vector.broadcast %cst_6 : f32 to vector<2x16xf32>
    %9 = arith.mulf %8, %5 : vector<2x16xf32>
    %10 = arith.select %7, %5, %9 : vector<2x16xi1>, vector<2x16xf32>
    %c0_7 = arith.constant 0 : index
    %c0_8 = arith.constant 0 : index
    %11 = vector.load %arg4[%c0_7, %c0_8] : memref<16x2xf32, #tpu.memory_space<vmem>>, vector<16x2xf32>
    %cst_9 = arith.constant dense<0.000000e+00> : vector<2x2xf32>
    %12 = tpu.matmul %10, %11, %cst_9 {dimension_numbers = #tpu.dot_dimension_numbers<[1], [0], [0], [1], [0, 0, 1, 1], [], []>} : vector<2x16xf32>, vector<16x2xf32>, vector<2x2xf32> -> vector<2x2xf32>
    %c0_10 = arith.constant 0 : index
    %c0_11 = arith.constant 0 : index
    %13 = vector.load %arg5[%c0_10, %c0_11] : memref<1x2xf32, #tpu.memory_space<vmem>>, vector<1x2xf32>
    %14 = vector.broadcast %13 : vector<1x2xf32> to vector<2x2xf32>
    %15 = arith.addf %12, %14 : vector<2x2xf32>
    %c0_12 = arith.constant 0 : index
    %c0_13 = arith.constant 0 : index
    %16 = vector.load %arg6[%c0_12, %c0_13] : memref<2x2xf32, #tpu.memory_space<vmem>>, vector<2x2xf32>
    tpu.vector_store %arg6[%c0_12, %c0_13], %15 {strides = array<i32>} : memref<2x2xf32, #tpu.memory_space<vmem>>, vector<2x2xf32>,
    return
  }
  func.func @transform_0(%arg0: i32) -> (i32, i32) {
    %c0_i32 = arith.constant 0 : i32
    %c0_i32_0 = arith.constant 0 : i32
    %c0_i32_1 = arith.constant 0 : i32
    return %c0_i32, %c0_i32_0 : i32, i32
  }
  func.func @transform_1(%arg0: i32) -> (i32, i32) {
    %c0_i32 = arith.constant 0 : i32
    %c0_i32_0 = arith.constant 0 : i32
    %c0_i32_1 = arith.constant 0 : i32
    return %c0_i32, %c0_i32_0 : i32, i32
  }
  func.func @transform_2(%arg0: i32) -> (i32, i32) {
    %c0_i32 = arith.constant 0 : i32
    %c0_i32_0 = arith.constant 0 : i32
    %c0_i32_1 = arith.constant 0 : i32
    return %c0_i32, %c0_i32_0 : i32, i32
  }
  func.func @transform_3(%arg0: i32) -> (i32, i32) {
    %c0_i32 = arith.constant 0 : i32
    %c0_i32_0 = arith.constant 0 : i32
    %c0_i32_1 = arith.constant 0 : i32
    return %c0_i32, %c0_i32_0 : i32, i32
  }
  func.func @transform_4(%arg0: i32) -> (i32, i32) {
    %c0_i32 = arith.constant 0 : i32
    %c0_i32_0 = arith.constant 0 : i32
    %c0_i32_1 = arith.constant 0 : i32
    return %c0_i32, %c0_i32_0 : i32, i32
  }
  func.func @transform_5(%arg0: i32) -> (i32, i32) {
    %c0_i32 = arith.constant 0 : i32
    %c0_i32_0 = arith.constant 0 : i32
    %c0_i32_1 = arith.constant 0 : i32
    return %c0_i32, %c0_i32_0 : i32, i32
  }
}

</mosaic_0001>

<llo_original>
// kernel: meso4_forward.5
$region0: #{meso4_forward.5}
  #allocation0 [shape = 'u32[]', space=smem, size = 0x4, offset = 0x4, fixed_abs, tag = 'smem constant byte address 0x4 - core index']
  #allocation1 [shape = 'u32[144,128]{1,0:T(1,128)}', space=vmem, size = 0x12000, scoped, tag = 'internal scratch']
  %s0 = inlined_call_operand.vmem [shape: f32[2,258,8,258], index: 0, kind: input, shape index: {}]
  %s1 = inlined_call_operand.vmem [shape: f32[3,8,24], index: 1, kind: input, shape index: {}]
  %s2 = inlined_call_operand.vmem [shape: f32[8,1], index: 2, kind: input, shape index: {}]
  %s3 = inlined_call_operand.vmem [shape: f32[8,1], index: 3, kind: input, shape index: {}]
  %s4 = inlined_call_operand.vmem [shape: f32[256,256], index: 4, kind: input, shape index: {}]
  %s5 = inlined_call_operand.vmem [shape: f32[2,128,8,128], index: 5, kind: output, shape index: {}]
  %s6 = sld [smem:[#allocation0]]
  $region60: #{meso4_forward.5} parent=0
    _
  %s8 = ssub.s32 1, %s6
  %s9 = scalar_select 0, %s8, %s6
  loop: start=0, step=1, limit=4
  $region2: #{meso4_forward.5} parent=0 // loop_pre_header
    _
  $region3: #{meso4_forward.5} parent=0 // loop_header
    %s11 = sphi 0, %s15
    %p12 = scmp.ge.s32.totalorder %s11, 4
    %s21 = sphi 0, %s23
    %s24 = sphi 0, %s21
    %s25 = sphi 0, %s24
    %s41 = sphi 0, %s25
    %s45 = sphi 0, %s45
    %s47 = sphi 0, %s45
    %s48 = sphi 0, %s47
    %s62 = sphi 0, %s48
    %s66 = sphi 0, %s66
    %s68 = sphi 0, %s66
    %s69 = sphi 0, %s68
    %s83 = sphi 0, %s69
    %s87 = sphi 0, %s87
    %s89 = sphi 0, %s87
    %s90 = sphi 0, %s89
    %s104 = sphi 0, %s90
    %s108 = sphi 0, %s108
    %s110 = sphi 0, %s108
    %s111 = sphi 0, %s110
    %s125 = sphi 0, %s111
    %s131 = sphi 0, %s133
    %s134 = sphi 0, %s131
    %s135 = sphi 0, %s134
    %s151 = sphi 0, %s135
  $region4: #{meso4_forward.5} parent=0 // loop_header_branch
    %14 = sbr.rel (%p12) target = $region8
  $region5: #{meso4_forward.5} parent=0 // loop_body
    %s16 = ssub.s32 %s11, 1
    %s17 = ssub.s32 %s11, 2
    %s18 = sadd.s32 %s11, 1
    %s19 = ssub.s32 %s11, %s18
    %p20 = scmp.eq.s32.totalorder %s19, 0
    %s22 = sadd.s32 %s21, 1
    %s23 = scalar_select %p20, %s21, %s22
    %p26 = pneg %p20
    %p27 = scmp.eq.s32.totalorder %s11, 1
    %p28 = por %p26, %p27
    %p29 = scmp.ne.s32.totalorder %s21, %s24
    %p30 = scmp.eq.s32.totalorder %s11, 0
    %p31 = por %p29, %p30
    %p32 = scmp.ne.s32.totalorder %s21, %s24
    %p33 = scmp.eq.s32.totalorder %s16, 1
    %p34 = por %p32, %p33
    %p35 = scmp.ne.s32.totalorder %s24, %s25
    %p36 = scmp.eq.s32.totalorder %s16, 0
    %p37 = por %p35, %p36
    %p38 = scmp.ne.s32.totalorder %s24, %s25
    %p39 = scmp.eq.s32.totalorder %s17, 1
    %p40 = por %p38, %p39
    %p42 = scmp.ne.s32.totalorder %s25, %s41
    %p43 = scmp.eq.s32.totalorder %s17, 0
    %p44 = por %p42, %p43
    %s46 = sadd.s32 %s45, 1
    %p49 = scmp.eq.s32.totalorder %s11, 1
    %p50 = scmp.ne.s32.totalorder %s45, %s47
    %p51 = scmp.eq.s32.totalorder %s11, 0
    %p52 = por %p50, %p51
    %p53 = scmp.ne.s32.totalorder %s45, %s47
    %p54 = scmp.eq.s32.totalorder %s16, 1
    %p55 = por %p53, %p54
    %p56 = scmp.ne.s32.totalorder %s47, %s48
    %p57 = scmp.eq.s32.totalorder %s16, 0
    %p58 = por %p56, %p57
    %p59 = scmp.ne.s32.totalorder %s47, %s48
    %p60 = scmp.eq.s32.totalorder %s17, 1
    %p61 = por %p59, %p60
    %p63 = scmp.ne.s32.totalorder %s48, %s62
    %p64 = scmp.eq.s32.totalorder %s17, 0
    %p65 = por %p63, %p64
    %s67 = sadd.s32 %s66, 1
    %p70 = scmp.eq.s32.totalorder %s11, 1
    %p71 = scmp.ne.s32.totalorder %s66, %s68
    %p72 = scmp.eq.s32.totalorder %s11, 0
    %p73 = por %p71, %p72
    %p74 = scmp.ne.s32.totalorder %s66, %s68
    %p75 = scmp.eq.s32.totalorder %s16, 1
    %p76 = por %p74, %p75
    %p77 = scmp.ne.s32.totalorder %s68, %s69
    %p78 = scmp.eq.s32.totalorder %s16, 0
    %p79 = por %p77, %p78
    %p80 = scmp.ne.s32.totalorder %s68, %s69
    %p81 = scmp.eq.s32.totalorder %s17, 1
    %p82 = por %p80, %p81
    %p84 = scmp.ne.s32.totalorder %s69, %s83
    %p85 = scmp.eq.s32.totalorder %s17, 0
    %p86 = por %p84, %p85
    %s88 = sadd.s32 %s87, 1
    %p91 = scmp.eq.s32.totalorder %s11, 1
    %p92 = scmp.ne.s32.totalorder %s87, %s89
    %p93 = scmp.eq.s32.totalorder %s11, 0
    %p94 = por %p92, %p93
    %p95 = scmp.ne.s32.totalorder %s87, %s89
    %p96 = scmp.eq.s32.totalorder %s16, 1
    %p97 = por %p95, %p96
    %p98 = scmp.ne.s32.totalorder %s89, %s90
    %p99 = scmp.eq.s32.totalorder %s16, 0
    %p100 = por %p98, %p99
    %p101 = scmp.ne.s32.totalorder %s89, %s90
    %p102 = scmp.eq.s32.totalorder %s17, 1
    %p103 = por %p101, %p102
    %p105 = scmp.ne.s32.totalorder %s90, %s104
    %p106 = scmp.eq.s32.totalorder %s17, 0
    %p107 = por %p105, %p106
    %s109 = sadd.s32 %s108, 1
    %p112 = scmp.eq.s32.totalorder %s11, 1
    %p113 = scmp.ne.s32.totalorder %s108, %s110
    %p114 = scmp.eq.s32.totalorder %s11, 0
    %p115 = por %p113, %p114
    %p116 = scmp.ne.s32.totalorder %s108, %s110
    %p117 = scmp.eq.s32.totalorder %s16, 1
    %p118 = por %p116, %p117
    %p119 = scmp.ne.s32.totalorder %s110, %s111
    %p120 = scmp.eq.s32.totalorder %s16, 0
    %p121 = por %p119, %p120
    %p122 = scmp.ne.s32.totalorder %s110, %s111
    %p123 = scmp.eq.s32.totalorder %s17, 1
    %p124 = por %p122, %p123
    %p126 = scmp.ne.s32.totalorder %s111, %s125
    %p127 = scmp.eq.s32.totalorder %s17, 0
    %p128 = por %p126, %p127
    %s129 = ssub.s32 %s11, %s18
    %p130 = scmp.eq.s32.totalorder %s129, 0
    %s132 = sadd.s32 %s131, 1
    %s133 = scalar_select %p130, %s131, %s132
    %p136 = pneg %p130
    %p137 = scmp.eq.s32.totalorder %s11, 1
    %p138 = por %p136, %p137
    %p139 = scmp.ne.s32.totalorder %s131, %s134
    %p140 = scmp.eq.s32.totalorder %s11, 0
    %p141 = por %p139, %p140
    %p142 = scmp.ne.s32.totalorder %s131, %s134
    %p143 = scmp.eq.s32.totalorder %s16, 1
    %p144 = por %p142, %p143
    %p145 = scmp.ne.s32.totalorder %s134, %s135
    %p146 = scmp.eq.s32.totalorder %s16, 0
    %p147 = por %p145, %p146
    %p148 = scmp.ne.s32.totalorder %s134, %s135
    %p149 = scmp.eq.s32.totalorder %s17, 1
    %p150 = por %p148, %p149
    %p152 = scmp.ne.s32.totalorder %s135, %s151
    %p153 = scmp.eq.s32.totalorder %s17, 0
    %p154 = por %p152, %p153
    %p155 = scmp.le.s32.totalorder 1, %s11
    %p156 = scmp.lt.s32.totalorder %s11, 3
    %p157 = pnand %p155, %p156
    %p158 = pneg %p157
    // Predicated region
    $region9: #{meso4_forward.5} parent=5 // pred_check
      _
    $region10: #{meso4_forward.5} parent=5 // pred_check_branch
      %160 = sbr.rel (%p157) target = $region12
    $region11: #{meso4_forward.5} parent=5 // pred_region
      %s161 = ssub.s32 %s11, 1
      // Predicated region
      $region13: #{meso4_forward.5} parent=11 // pred_check
        %p162 = pneg %p58
      $region14: #{meso4_forward.5} parent=11 // pred_check_branch
        %164 = sbr.rel (%p162) target = $region16
      $region15: #{meso4_forward.5} parent=11 // pred_region
        _
      $region16: #{meso4_forward.5} parent=11 // pred_fallthru
        _
      // Predicated region
      $region17: #{meso4_forward.5} parent=11 // pred_check
        %p165 = pneg %p79
      $region18: #{meso4_forward.5} parent=11 // pred_check_branch
        %167 = sbr.rel (%p165) target = $region20
      $region19: #{meso4_forward.5} parent=11 // pred_region
        _
      $region20: #{meso4_forward.5} parent=11 // pred_fallthru
        _
      // Predicated region
      $region21: #{meso4_forward.5} parent=11 // pred_check
        %p168 = pneg %p100
      $region22: #{meso4_forward.5} parent=11 // pred_check_branch
        %170 = sbr.rel (%p168) target = $region24
      $region23: #{meso4_forward.5} parent=11 // pred_region
        _
      $region24: #{meso4_forward.5} parent=11 // pred_fallthru
        _
      // Predicated region
      $region25: #{meso4_forward.5} parent=11 // pred_check
        %p171 = pneg %p121
      $region26: #{meso4_forward.5} parent=11 // pred_check_branch
        %173 = sbr.rel (%p171) target = $region28
      $region27: #{meso4_forward.5} parent=11 // pred_region
        _
      $region28: #{meso4_forward.5} parent=11 // pred_fallthru
        _
    $region12: #{meso4_forward.5} parent=5 // pred_fallthru
      _
    %p174 = scmp.lt.s32.totalorder %s11, 2
    // Predicated region
    $region29: #{meso4_forward.5} parent=5 // pred_check
      %p175 = pneg %p174
    $region30: #{meso4_forward.5} parent=5 // pred_check_branch
      %177 = sbr.rel (%p175) target = $region32
    $region31: #{meso4_forward.5} parent=5 // pred_region
      // Predicated region
      $region33: #{meso4_forward.5} parent=31 // pred_check
        %p178 = pneg %p31
      $region34: #{meso4_forward.5} parent=31 // pred_check_branch
        %180 = sbr.rel (%p178) target = $region36
      $region35: #{meso4_forward.5} parent=31 // pred_region
        %p181 = scmp.lt.s32.totalorder %s11, 1
        %s182 = scalar_select %p181, %s11, 1
        %s183 = smul.addr %s182, 774
        %s184 = smul.addr %s183, 8
        %s185 = scalar_lea.vmem %s0, %s184
      $region36: #{meso4_forward.5} parent=31 // pred_fallthru
        _
    $region32: #{meso4_forward.5} parent=5 // pred_fallthru
      _
    %p186 = scmp.le.s32.totalorder 1, %s11
    %p187 = scmp.lt.s32.totalorder %s11, 3
    %p188 = pnand %p186, %p187
    %p189 = pneg %p188
    // Predicated region
    $region37: #{meso4_forward.5} parent=5 // pred_check
      _
    $region38: #{meso4_forward.5} parent=5 // pred_check_branch
      %191 = sbr.rel (%p188) target = $region40
    $region39: #{meso4_forward.5} parent=5 // pred_region
      %s192 = ssub.s32 %s11, 1
      %p193 = scmp.lt.s32.totalorder %s16, 1
      %s194 = scalar_select %p193, %s16, 1
      %s195 = smul.addr %s194, 774
      %s196 = smul.addr %s195, 8
      %s197 = scalar_lea.vmem %s0, %s196
      %p198 = pneg %p37
      %p199 = pneg %p34
      %p200 = pneg %p58
      %p201 = pneg %p55
      %p202 = pneg %p79
      %p203 = pneg %p76
      %p204 = pneg %p100
      %p205 = pneg %p97
      %p206 = pneg %p121
      %p207 = pneg %p118
      %p208 = pneg %p147
      %p209 = pneg %p144
      %p210 = scmp.lt.s32.totalorder %s16, 1
      %s211 = scalar_select %p210, %s16, 1
      %s212 = smul.addr %s211, 128
      %s213 = smul.addr %s212, 8
      %s214 = scalar_lea.vmem %s5, %s213
      %p215 = scmp.lt.s32.totalorder %s16, 1
      %s216 = scalar_select %p215, %s16, 1
      %s217 = smul.addr %s216, 774
      %s218 = smul.addr %s217, 8
      %s219 = scalar_lea.vmem %s0, %s218
      %p220 = scmp.lt.s32.totalorder %s16, 1
      %s221 = scalar_select %p220, %s16, 1
      %s222 = smul.addr %s221, 128
      %s223 = smul.addr %s222, 8
      %s224 = scalar_lea.vmem %s5, %s223
      %v225 = vld [vmem:[%s2] sm:$0xff]
      %227 = vset.pattern.permute.xlu0 0
      %228 = vperm.xlu0 %227, %v225
      %v229 = vpop.permute.xlu0 %228
      %v231 = vld [vmem:[%s3] sm:$0xff]
      %233 = vset.pattern.permute.xlu0 0
      %234 = vperm.xlu0 %233, %v231
      %v235 = vpop.permute.xlu0 %234
      loop: start=0, step=1, limit=128
      $region41: #{meso4_forward.5} parent=39 // loop_pre_header
        _
      $region42: #{meso4_forward.5} parent=39 // loop_header
        %s238 = sphi 0, %s242
        %p239 = scmp.ge.s32.totalorder %s238, 128
      $region43: #{meso4_forward.5} parent=39 // loop_header_branch
        %241 = sbr.rel (%p239) target = $region47
      $region44: #{meso4_forward.5} parent=39 // loop_body
        %s243 = smul.u32 %s238, 2
        %s244 = smul.u32 %s243, 3
        %s245 = smul.addr %s244, 8
        %s246 = scalar_lea.vmem %s219, %s245
        %v247 = vld [vmem:[%s246] sm:$0xff]
        %v248 = vld [vmem:[%s246 + $0x8] sm:$0xff]
        %v249 = vld [vmem:[%s246 + $0x10] sm:$0xff]
        %253 = vrot.lane.b32.xlu0 %v247, 127
        %v254 = vpop.permute.xlu0 %253
        %255 = vrot.lane.b32.xlu0 %v248, 127
        %v256 = vpop.permute.xlu0 %255
        %257 = vrot.lane.b32.xlu0 %v249, 127
        %v258 = vpop.permute.xlu0 %257
        %vm259 = vcmask 1039360
        %v260 = vsel %vm259, %v254, %v256
        %v261 = vsel %vm259, %v256, %v258
        %264 = vrot.lane.b32.xlu0 %v247, 126
        %v265 = vpop.permute.xlu0 %264
        %266 = vrot.lane.b32.xlu0 %v248, 126
        %v267 = vpop.permute.xlu0 %266
        %268 = vrot.lane.b32.xlu0 %v249, 126
        %v269 = vpop.permute.xlu0 %268
        %vm270 = vcmask 1031168
        %v271 = vsel %vm270, %v265, %v267
        %v272 = vsel %vm270, %v267, %v269
        %v275 = vld [vmem:[%s1] sm:$0xff]
        %s276 = sadd.s32 %s243, 1
        %s277 = smul.u32 %s276, 3
        %s278 = smul.addr %s277, 8
        %s279 = scalar_lea.vmem %s219, %s278
        %v280 = vld [vmem:[%s279] sm:$0xff]
        %v281 = vld [vmem:[%s279 + $0x8] sm:$0xff]
        %v282 = vld [vmem:[%s279 + $0x10] sm:$0xff]
        %286 = vrot.lane.b32.xlu0 %v280, 127
        %v287 = vpop.permute.xlu0 %286
        %288 = vrot.lane.b32.xlu0 %v281, 127
        %v289 = vpop.permute.xlu0 %288
        %290 = vrot.lane.b32.xlu0 %v282, 127
        %v291 = vpop.permute.xlu0 %290
        %v292 = vsel %vm259, %v287, %v289
        %v293 = vsel %vm259, %v289, %v291
        %296 = vrot.lane.b32.xlu0 %v280, 126
        %v297 = vpop.permute.xlu0 %296
        %298 = vrot.lane.b32.xlu0 %v281, 126
        %v299 = vpop.permute.xlu0 %298
        %300 = vrot.lane.b32.xlu0 %v282, 126
        %v301 = vpop.permute.xlu0 %300
        %v302 = vsel %vm270, %v297, %v299
        %v303 = vsel %vm270, %v299, %v301
        %s306 = scalar_lea.vmem %s1, 8
        %v307 = vld [vmem:[%s306] sm:$0xff]
        %vm308 = vcmask 195584
        %v310 = vsel %vm308, %v307, 0
        %312 = vmatprep.subr.mxu0 %v281
        %313 = vmatpush1.msra.mxu0 %v280
        %314 = vmatprep.subr.mxu0 %v293
        %315 = vmatpush1.msra.mxu0 %v292
        %316 = vmatprep.subr.mxu0 %v303
        %317 = vmatpush1.msra.mxu0 %v302
        %318 = vmatprep.subr.mxu0 0.0
        %319 = vmatpush1.msra.mxu0 0.0
        %320 = vmatprep.subr.mxu0 0.0
        %321 = vmatpush1.msra.mxu0 0.0
        %322 = vmatprep.subr.mxu0 0.0
        %323 = vmatpush1.msra.mxu0 0.0
        %324 = vmatprep.subr.mxu0 0.0
        %325 = vmatpush1.msra.mxu0 0.0
        %326 = vmatprep.subr.mxu0 0.0
        %327 = vmatpush1.msra.mxu0 0.0
        %328 = vmatprep.subr.mxu0 0.0
        %329 = vmatpush1.msra.mxu0 0.0
        %330 = vmatprep.subr.mxu0 0.0
        %331 = vmatpush1.msra.mxu0 0.0
        %332 = vmatprep.subr.mxu0 0.0
        %333 = vmatpush1.msra.mxu0 0.0
        %334 = vmatprep.subr.mxu0 0.0
        %335 = vmatpush1.msra.mxu0 0.0
        %336 = vmatprep.subr.mxu0 0.0
        %337 = vmatpush1.msra.mxu0 0.0
        %338 = vmatprep.subr.mxu0 0.0
        %339 = vmatpush1.msra.mxu0 0.0
        %340 = vmatprep.subr.mxu0 0.0
        %341 = vmatpush1.msra.mxu0 0.0
        %342 = vmatprep.subr.mxu0 0.0
        %343 = vmatpush1.msra.mxu0 0.0
        %344 = vmatprep.subr.mxu0 0.0
        %345 = vmatpush1.msra.mxu0 0.0
        %346 = vmatprep.subr.mxu0 0.0
        %347 = vmatpush1.msra.mxu0 0.0
        %348 = vmatprep.subr.mxu0 0.0
        %349 = vmatpush1.msra.mxu0 0.0
        %350 = vmatprep.subr.mxu0 0.0
        %351 = vmatpush1.msra.mxu0 0.0
        %352 = vmatprep.subr.mxu0 0.0
        %353 = vmatpush1.msra.mxu0 0.0
        %354 = vmatprep.subr.mxu0 0.0
        %355 = vmatpush1.msra.mxu0 0.0
        %356 = vmatprep.subr.mxu0 0.0
        %357 = vmatpush1.msra.mxu0 0.0
        %358 = vmatprep.subr.mxu0 0.0
        %359 = vmatpush1.msra.mxu0 0.0
        %360 = vmatprep.subr.mxu0 0.0
        %361 = vmatpush1.msra.mxu0 0.0
        %362 = vmatprep.subr.mxu0 0.0
        %363 = vmatpush1.msra.mxu0 0.0
        %364 = vmatprep.subr.mxu0 0.0
        %365 = vmatpush1.msra.mxu0 0.0
        %366 = vmatprep.subr.mxu0 0.0
        %367 = vmatpush1.msra.mxu0 0.0
        %368 = vmatprep.subr.mxu0 0.0
        %369 = vmatpush1.msra.mxu0 0.0
        %370 = vmatprep.subr.mxu0 0.0
        %371 = vmatpush1.msra.mxu0 0.0
        %372 = vmatprep.subr.mxu0 0.0
        %373 = vmatpush1.msra.mxu0 0.0
        %374 = vmatprep.subr.mxu0 0.0
        %375 = vmatpush1.msra.mxu0 0.0
        %376 = vmatprep.mubr.f32.mxu0 0.0
        %377 = vmatmul.mubr.f32.gmra.mrb[0].mxu0 %v310
        %v378 = vpop.f32.mrb[0].mxu0
        %v379 = vadd.f32 0.0, %v378
        %v380 = vpop.f32.mrb[0].mxu0
        %v381 = vadd.f32 0.0, %v380
        %382 = vdwg.mxu0
        %v384 = vsel %vm308, %v275, 0
        %386 = vmatprep.subr.mxu0 %v248
        %387 = vmatpush1.msra.mxu0 %v247
        %388 = vmatprep.subr.mxu0 %v261
        %389 = vmatpush1.msra.mxu0 %v260
        %390 = vmatprep.subr.mxu0 %v272
        %391 = vmatpush1.msra.mxu0 %v271
        %392 = vmatprep.subr.mxu0 0.0
        %393 = vmatpush1.msra.mxu0 0.0
        %394 = vmatprep.subr.mxu0 0.0
        %395 = vmatpush1.msra.mxu0 0.0
        %396 = vmatprep.subr.mxu0 0.0
        %397 = vmatpush1.msra.mxu0 0.0
        %398 = vmatprep.subr.mxu0 0.0
        %399 = vmatpush1.msra.mxu0 0.0
        %400 = vmatprep.subr.mxu0 0.0
        %401 = vmatpush1.msra.mxu0 0.0
        %402 = vmatprep.subr.mxu0 0.0
        %403 = vmatpush1.msra.mxu0 0.0
        %404 = vmatprep.subr.mxu0 0.0
        %405 = vmatpush1.msra.mxu0 0.0
        %406 = vmatprep.subr.mxu0 0.0
        %407 = vmatpush1.msra.mxu0 0.0
        %408 = vmatprep.subr.mxu0 0.0
        %409 = vmatpush1.msra.mxu0 0.0
        %410 = vmatprep.subr.mxu0 0.0
        %411 = vmatpush1.msra.mxu0 0.0
        %412 = vmatprep.subr.mxu0 0.0
        %413 = vmatpush1.msra.mxu0 0.0
        %414 = vmatprep.subr.mxu0 0.0
        %415 = vmatpush1.msra.mxu0 0.0
        %416 = vmatprep.subr.mxu0 0.0
        %417 = vmatpush1.msra.mxu0 0.0
        %418 = vmatprep.subr.mxu0 0.0
        %419 = vmatpush1.msra.mxu0 0.0
        %420 = vmatprep.subr.mxu0 0.0
        %421 = vmatpush1.msra.mxu0 0.0
        %422 = vmatprep.subr.mxu0 0.0
        %423 = vmatpush1.msra.mxu0 0.0
        %424 = vmatprep.subr.mxu0 0.0
        %425 = vmatpush1.msra.mxu0 0.0
        %426 = vmatprep.subr.mxu0 0.0
        %427 = vmatpush1.msra.mxu0 0.0
        %428 = vmatprep.subr.mxu0 0.0
        %429 = vmatpush1.msra.mxu0 0.0
        %430 = vmatprep.subr.mxu0 0.0
        %431 = vmatpush1.msra.mxu0 0.0
        %432 = vmatprep.subr.mxu0 0.0
        %433 = vmatpush1.msra.mxu0 0.0
        %434 = vmatprep.subr.mxu0 0.0
        %435 = vmatpush1.msra.mxu0 0.0
        %436 = vmatprep.subr.mxu0 0.0
        %437 = vmatpush1.msra.mxu0 0.0
        %438 = vmatprep.subr.mxu0 0.0
        %439 = vmatpush1.msra.mxu0 0.0
        %440 = vmatprep.subr.mxu0 0.0
        %441 = vmatpush1.msra.mxu0 0.0
        %442 = vmatprep.subr.mxu0 0.0
        %443 = vmatpush1.msra.mxu0 0.0
        %444 = vmatprep.subr.mxu0 0.0
        %445 = vmatpush1.msra.mxu0 0.0
        %446 = vmatprep.subr.mxu0 0.0
        %447 = vmatpush1.msra.mxu0 0.0
        %448 = vmatprep.subr.mxu0 0.0
        %449 = vmatpush1.msra.mxu0 0.0
        %450 = vmatprep.mubr.f32.mxu0 0.0
        %451 = vmatmul.mubr.f32.gmra.mrb[0].mxu0 %v384
        %v452 = vpop.f32.mrb[0].mxu0
        %v453 = vadd.f32 %v379, %v452
        %v454 = vpop.f32.mrb[0].mxu0
        %v455 = vadd.f32 %v381, %v454
        %456 = vdwg.mxu0
        %s457 = sadd.s32 %s243, 2
        %s458 = smul.u32 %s457, 3
        %s459 = smul.addr %s458, 8
        %s460 = scalar_lea.vmem %s219, %s459
        %v461 = vld [vmem:[%s460] sm:$0xff]
        %v462 = vld [vmem:[%s460 + $0x8] sm:$0xff]
        %v463 = vld [vmem:[%s460 + $0x10] sm:$0xff]
        %467 = vrot.lane.b32.xlu0 %v461, 127
        %v468 = vpop.permute.xlu0 %467
        %469 = vrot.lane.b32.xlu0 %v462, 127
        %v470 = vpop.permute.xlu0 %469
        %471 = vrot.lane.b32.xlu0 %v463, 127
        %v472 = vpop.permute.xlu0 %471
        %v473 = vsel %vm259, %v468, %v470
        %v474 = vsel %vm259, %v470, %v472
        %477 = vrot.lane.b32.xlu0 %v461, 126
        %v478 = vpop.permute.xlu0 %477
        %479 = vrot.lane.b32.xlu0 %v462, 126
        %v480 = vpop.permute.xlu0 %479
        %481 = vrot.lane.b32.xlu0 %v463, 126
        %v482 = vpop.permute.xlu0 %481
        %v483 = vsel %vm270, %v478, %v480
        %v484 = vsel %vm270, %v480, %v482
        %s487 = scalar_lea.vmem %s1, 16
        %v488 = vld [vmem:[%s487] sm:$0xff]
        %v490 = vsel %vm308, %v488, 0
        %492 = vmatprep.subr.mxu0 %v462
        %493 = vmatpush1.msra.mxu0 %v461
        %494 = vmatprep.subr.mxu0 %v474
        %495 = vmatpush1.msra.mxu0 %v473
        %496 = vmatprep.subr.mxu0 %v484
        %497 = vmatpush1.msra.mxu0 %v483
        %498 = vmatprep.subr.mxu0 0.0
        %499 = vmatpush1.msra.mxu0 0.0
        %500 = vmatprep.subr.mxu0 0.0
        %501 = vmatpush1.msra.mxu0 0.0
        %502 = vmatprep.subr.mxu0 0.0
        %503 = vmatpush1.msra.mxu0 0.0
        %504 = vmatprep.subr.mxu0 0.0
        %505 = vmatpush1.msra.mxu0 0.0
        %506 = vmatprep.subr.mxu0 0.0
        %507 = vmatpush1.msra.mxu0 0.0
        %508 = vmatprep.subr.mxu0 0.0
        %509 = vmatpush1.msra.mxu0 0.0
        %510 = vmatprep.subr.mxu0 0.0
        %511 = vmatpush1.msra.mxu0 0.0
        %512 = vmatprep.subr.mxu0 0.0
        %513 = vmatpush1.msra.mxu0 0.0
        %514 = vmatprep.subr.mxu0 0.0
        %515 = vmatpush1.msra.mxu0 0.0
        %516 = vmatprep.subr.mxu0 0.0
        %517 = vmatpush1.msra.mxu0 0.0
        %518 = vmatprep.subr.mxu0 0.0
        %519 = vmatpush1.msra.mxu0 0.0
        %520 = vmatprep.subr.mxu0 0.0
        %521 = vmatpush1.msra.mxu0 0.0
        %522 = vmatprep.subr.mxu0 0.0
        %523 = vmatpush1.msra.mxu0 0.0
        %524 = vmatprep.subr.mxu0 0.0
        %525 = vmatpush1.msra.mxu0 0.0
        %526 = vmatprep.subr.mxu0 0.0
        %527 = vmatpush1.msra.mxu0 0.0
        %528 = vmatprep.subr.mxu0 0.0
        %529 = vmatpush1.msra.mxu0 0.0
        %530 = vmatprep.subr.mxu0 0.0
        %531 = vmatpush1.msra.mxu0 0.0
        %532 = vmatprep.subr.mxu0 0.0
        %533 = vmatpush1.msra.mxu0 0.0
        %534 = vmatprep.subr.mxu0 0.0
        %535 = vmatpush1.msra.mxu0 0.0
        %536 = vmatprep.subr.mxu0 0.0
        %537 = vmatpush1.msra.mxu0 0.0
        %538 = vmatprep.subr.mxu0 0.0
        %539 = vmatpush1.msra.mxu0 0.0
        %540 = vmatprep.subr.mxu0 0.0
        %541 = vmatpush1.msra.mxu0 0.0
        %542 = vmatprep.subr.mxu0 0.0
        %543 = vmatpush1.msra.mxu0 0.0
        %544 = vmatprep.subr.mxu0 0.0
        %545 = vmatpush1.msra.mxu0 0.0
        %546 = vmatprep.subr.mxu0 0.0
        %547 = vmatpush1.msra.mxu0 0.0
        %548 = vmatprep.subr.mxu0 0.0
        %549 = vmatpush1.msra.mxu0 0.0
        %550 = vmatprep.subr.mxu0 0.0
        %551 = vmatpush1.msra.mxu0 0.0
        %552 = vmatprep.subr.mxu0 0.0
        %553 = vmatpush1.msra.mxu0 0.0
        %554 = vmatprep.subr.mxu0 0.0
        %555 = vmatpush1.msra.mxu0 0.0
        %556 = vmatprep.mubr.f32.mxu0 0.0
        %557 = vmatmul.mubr.f32.gmra.mrb[0].mxu0 %v490
        %v558 = vpop.f32.mrb[0].mxu0
        %v559 = vadd.f32 0.0, %v558
        %v560 = vpop.f32.mrb[0].mxu0
        %v561 = vadd.f32 0.0, %v560
        %562 = vdwg.mxu0
        %v563 = vadd.f32 %v453, %v559
        %v564 = vadd.f32 %v455, %v561
        %565 = vmatprep.subr.mxu0 %v462
        %566 = vmatpush1.msra.mxu0 %v461
        %567 = vmatprep.subr.mxu0 %v474
        %568 = vmatpush1.msra.mxu0 %v473
        %569 = vmatprep.subr.mxu0 %v484
        %570 = vmatpush1.msra.mxu0 %v483
        %571 = vmatprep.subr.mxu0 0.0
        %572 = vmatpush1.msra.mxu0 0.0
        %573 = vmatprep.subr.mxu0 0.0
        %574 = vmatpush1.msra.mxu0 0.0
        %575 = vmatprep.subr.mxu0 0.0
        %576 = vmatpush1.msra.mxu0 0.0
        %577 = vmatprep.subr.mxu0 0.0
        %578 = vmatpush1.msra.mxu0 0.0
        %579 = vmatprep.subr.mxu0 0.0
        %580 = vmatpush1.msra.mxu0 0.0
        %581 = vmatprep.subr.mxu0 0.0
        %582 = vmatpush1.msra.mxu0 0.0
        %583 = vmatprep.subr.mxu0 0.0
        %584 = vmatpush1.msra.mxu0 0.0
        %585 = vmatprep.subr.mxu0 0.0
        %586 = vmatpush1.msra.mxu0 0.0
        %587 = vmatprep.subr.mxu0 0.0
        %588 = vmatpush1.msra.mxu0 0.0
        %589 = vmatprep.subr.mxu0 0.0
        %590 = vmatpush1.msra.mxu0 0.0
        %591 = vmatprep.subr.mxu0 0.0
        %592 = vmatpush1.msra.mxu0 0.0
        %593 = vmatprep.subr.mxu0 0.0
        %594 = vmatpush1.msra.mxu0 0.0
        %595 = vmatprep.subr.mxu0 0.0
        %596 = vmatpush1.msra.mxu0 0.0
        %597 = vmatprep.subr.mxu0 0.0
        %598 = vmatpush1.msra.mxu0 0.0
        %599 = vmatprep.subr.mxu0 0.0
        %600 = vmatpush1.msra.mxu0 0.0
        %601 = vmatprep.subr.mxu0 0.0
        %602 = vmatpush1.msra.mxu0 0.0
        %603 = vmatprep.subr.mxu0 0.0
        %604 = vmatpush1.msra.mxu0 0.0
        %605 = vmatprep.subr.mxu0 0.0
        %606 = vmatpush1.msra.mxu0 0.0
        %607 = vmatprep.subr.mxu0 0.0
        %608 = vmatpush1.msra.mxu0 0.0
        %609 = vmatprep.subr.mxu0 0.0
        %610 = vmatpush1.msra.mxu0 0.0
        %611 = vmatprep.subr.mxu0 0.0
        %612 = vmatpush1.msra.mxu0 0.0
        %613 = vmatprep.subr.mxu0 0.0
        %614 = vmatpush1.msra.mxu0 0.0
        %615 = vmatprep.subr.mxu0 0.0
        %616 = vmatpush1.msra.mxu0 0.0
        %617 = vmatprep.subr.mxu0 0.0
        %618 = vmatpush1.msra.mxu0 0.0
        %619 = vmatprep.subr.mxu0 0.0
        %620 = vmatpush1.msra.mxu0 0.0
        %621 = vmatprep.subr.mxu0 0.0
        %622 = vmatpush1.msra.mxu0 0.0
        %623 = vmatprep.subr.mxu0 0.0
        %624 = vmatpush1.msra.mxu0 0.0
        %625 = vmatprep.subr.mxu0 0.0
        %626 = vmatpush1.msra.mxu0 0.0
        %627 = vmatprep.subr.mxu0 0.0
        %628 = vmatpush1.msra.mxu0 0.0
        %629 = vmatprep.mubr.f32.mxu0 0.0
        %630 = vmatmul.mubr.f32.gmra.mrb[0].mxu0 %v310
        %v631 = vpop.f32.mrb[0].mxu0
        %v632 = vadd.f32 0.0, %v631
        %v633 = vpop.f32.mrb[0].mxu0
        %v634 = vadd.f32 0.0, %v633
        %635 = vdwg.mxu0
        %636 = vmatprep.subr.mxu0 %v281
        %637 = vmatpush1.msra.mxu0 %v280
        %638 = vmatprep.subr.mxu0 %v293
        %639 = vmatpush1.msra.mxu0 %v292
        %640 = vmatprep.subr.mxu0 %v303
        %641 = vmatpush1.msra.mxu0 %v302
        %642 = vmatprep.subr.mxu0 0.0
        %643 = vmatpush1.msra.mxu0 0.0
        %644 = vmatprep.subr.mxu0 0.0
        %645 = vmatpush1.msra.mxu0 0.0
        %646 = vmatprep.subr.mxu0 0.0
        %647 = vmatpush1.msra.mxu0 0.0
        %648 = vmatprep.subr.mxu0 0.0
        %649 = vmatpush1.msra.mxu0 0.0
        %650 = vmatprep.subr.mxu0 0.0
        %651 = vmatpush1.msra.mxu0 0.0
        %652 = vmatprep.subr.mxu0 0.0
        %653 = vmatpush1.msra.mxu0 0.0
        %654 = vmatprep.subr.mxu0 0.0
        %655 = vmatpush1.msra.mxu0 0.0
        %656 = vmatprep.subr.mxu0 0.0
        %657 = vmatpush1.msra.mxu0 0.0
        %658 = vmatprep.subr.mxu0 0.0
        %659 = vmatpush1.msra.mxu0 0.0
        %660 = vmatprep.subr.mxu0 0.0
        %661 = vmatpush1.msra.mxu0 0.0
        %662 = vmatprep.subr.mxu0 0.0
        %663 = vmatpush1.msra.mxu0 0.0
        %664 = vmatprep.subr.mxu0 0.0
        %665 = vmatpush1.msra.mxu0 0.0
        %666 = vmatprep.subr.mxu0 0.0
        %667 = vmatpush1.msra.mxu0 0.0
        %668 = vmatprep.subr.mxu0 0.0
        %669 = vmatpush1.msra.mxu0 0.0
        %670 = vmatprep.subr.mxu0 0.0
        %671 = vmatpush1.msra.mxu0 0.0
        %672 = vmatprep.subr.mxu0 0.0
        %673 = vmatpush1.msra.mxu0 0.0
        %674 = vmatprep.subr.mxu0 0.0
        %675 = vmatpush1.msra.mxu0 0.0
        %676 = vmatprep.subr.mxu0 0.0
        %677 = vmatpush1.msra.mxu0 0.0
        %678 = vmatprep.subr.mxu0 0.0
        %679 = vmatpush1.msra.mxu0 0.0
        %680 = vmatprep.subr.mxu0 0.0
        %681 = vmatpush1.msra.mxu0 0.0
        %682 = vmatprep.subr.mxu0 0.0
        %683 = vmatpush1.msra.mxu0 0.0
        %684 = vmatprep.subr.mxu0 0.0
        %685 = vmatpush1.msra.mxu0 0.0
        %686 = vmatprep.subr.mxu0 0.0
        %687 = vmatpush1.msra.mxu0 0.0
        %688 = vmatprep.subr.mxu0 0.0
        %689 = vmatpush1.msra.mxu0 0.0
        %690 = vmatprep.subr.mxu0 0.0
        %691 = vmatpush1.msra.mxu0 0.0
        %692 = vmatprep.subr.mxu0 0.0
        %693 = vmatpush1.msra.mxu0 0.0
        %694 = vmatprep.subr.mxu0 0.0
        %695 = vmatpush1.msra.mxu0 0.0
        %696 = vmatprep.subr.mxu0 0.0
        %697 = vmatpush1.msra.mxu0 0.0
        %698 = vmatprep.subr.mxu0 0.0
        %699 = vmatpush1.msra.mxu0 0.0
        %700 = vmatprep.mubr.f32.mxu0 0.0
        %701 = vmatmul.mubr.f32.gmra.mrb[0].mxu0 %v384
        %v702 = vpop.f32.mrb[0].mxu0
        %v703 = vadd.f32 %v632, %v702
        %v704 = vpop.f32.mrb[0].mxu0
        %v705 = vadd.f32 %v634, %v704
        %706 = vdwg.mxu0
        %s707 = sadd.s32 %s243, 3
        %s708 = smul.u32 %s707, 3
        %s709 = smul.addr %s708, 8
        %s710 = scalar_lea.vmem %s219, %s709
        %v711 = vld [vmem:[%s710] sm:$0xff]
        %v712 = vld [vmem:[%s710 + $0x8] sm:$0xff]
        %v713 = vld [vmem:[%s710 + $0x10] sm:$0xff]
        %717 = vrot.lane.b32.xlu0 %v711, 127
        %v718 = vpop.permute.xlu0 %717
        %719 = vrot.lane.b32.xlu0 %v712, 127
        %v720 = vpop.permute.xlu0 %719
        %721 = vrot.lane.b32.xlu0 %v713, 127
        %v722 = vpop.permute.xlu0 %721
        %v723 = vsel %vm259, %v718, %v720
        %v724 = vsel %vm259, %v720, %v722
        %727 = vrot.lane.b32.xlu0 %v711, 126
        %v728 = vpop.permute.xlu0 %727
        %729 = vrot.lane.b32.xlu0 %v712, 126
        %v730 = vpop.permute.xlu0 %729
        %731 = vrot.lane.b32.xlu0 %v713, 126
        %v732 = vpop.permute.xlu0 %731
        %v733 = vsel %vm270, %v728, %v730
        %v734 = vsel %vm270, %v730, %v732
        %737 = vmatprep.subr.mxu0 %v712
        %738 = vmatpush1.msra.mxu0 %v711
        %739 = vmatprep.subr.mxu0 %v724
        %740 = vmatpush1.msra.mxu0 %v723
        %741 = vmatprep.subr.mxu0 %v734
        %742 = vmatpush1.msra.mxu0 %v733
        %743 = vmatprep.subr.mxu0 0.0
        %744 = vmatpush1.msra.mxu0 0.0
        %745 = vmatprep.subr.mxu0 0.0
        %746 = vmatpush1.msra.mxu0 0.0
        %747 = vmatprep.subr.mxu0 0.0
        %748 = vmatpush1.msra.mxu0 0.0
        %749 = vmatprep.subr.mxu0 0.0
        %750 = vmatpush1.msra.mxu0 0.0
        %751 = vmatprep.subr.mxu0 0.0
        %752 = vmatpush1.msra.mxu0 0.0
        %753 = vmatprep.subr.mxu0 0.0
        %754 = vmatpush1.msra.mxu0 0.0
        %755 = vmatprep.subr.mxu0 0.0
        %756 = vmatpush1.msra.mxu0 0.0
        %757 = vmatprep.subr.mxu0 0.0
        %758 = vmatpush1.msra.mxu0 0.0
        %759 = vmatprep.subr.mxu0 0.0
        %760 = vmatpush1.msra.mxu0 0.0
        %761 = vmatprep.subr.mxu0 0.0
        %762 = vmatpush1.msra.mxu0 0.0
        %763 = vmatprep.subr.mxu0 0.0
        %764 = vmatpush1.msra.mxu0 0.0
        %765 = vmatprep.subr.mxu0 0.0
        %766 = vmatpush1.msra.mxu0 0.0
        %767 = vmatprep.subr.mxu0 0.0
        %768 = vmatpush1.msra.mxu0 0.0
        %769 = vmatprep.subr.mxu0 0.0
        %770 = vmatpush1.msra.mxu0 0.0
        %771 = vmatprep.subr.mxu0 0.0
        %772 = vmatpush1.msra.mxu0 0.0
        %773 = vmatprep.subr.mxu0 0.0
        %774 = vmatpush1.msra.mxu0 0.0
        %775 = vmatprep.subr.mxu0 0.0
        %776 = vmatpush1.msra.mxu0 0.0
        %777 = vmatprep.subr.mxu0 0.0
        %778 = vmatpush1.msra.mxu0 0.0
        %779 = vmatprep.subr.mxu0 0.0
        %780 = vmatpush1.msra.mxu0 0.0
        %781 = vmatprep.subr.mxu0 0.0
        %782 = vmatpush1.msra.mxu0 0.0
        %783 = vmatprep.subr.mxu0 0.0
        %784 = vmatpush1.msra.mxu0 0.0
        %785 = vmatprep.subr.mxu0 0.0
        %786 = vmatpush1.msra.mxu0 0.0
        %787 = vmatprep.subr.mxu0 0.0
        %788 = vmatpush1.msra.mxu0 0.0
        %789 = vmatprep.subr.mxu0 0.0
        %790 = vmatpush1.msra.mxu0 0.0
        %791 = vmatprep.subr.mxu0 0.0
        %792 = vmatpush1.msra.mxu0 0.0
        %793 = vmatprep.subr.mxu0 0.0
        %794 = vmatpush1.msra.mxu0 0.0
        %795 = vmatprep.subr.mxu0 0.0
        %796 = vmatpush1.msra.mxu0 0.0
        %797 = vmatprep.subr.mxu0 0.0
        %798 = vmatpush1.msra.mxu0 0.0
        %799 = vmatprep.subr.mxu0 0.0
        %800 = vmatpush1.msra.mxu0 0.0
        %801 = vmatprep.mubr.f32.mxu0 0.0
        %802 = vmatmul.mubr.f32.gmra.mrb[0].mxu0 %v490
        %v803 = vpop.f32.mrb[0].mxu0
        %v804 = vadd.f32 0.0, %v803
        %v805 = vpop.f32.mrb[0].mxu0
        %v806 = vadd.f32 0.0, %v805
        %807 = vdwg.mxu0
        %v808 = vadd.f32 %v703, %v804
        %v809 = vadd.f32 %v705, %v806
        %v810 = vmax.f32 %v563, 0.0
        %v811 = vmax.f32 %v564, 0.0
        %v812 = vmul.f32 %v810, %v229
        %v813 = vmul.f32 %v811, %v229
        %v814 = vadd.f32 %v812, %v235
        %v815 = vadd.f32 %v813, %v235
        %v816 = vmax.f32 %v808, 0.0
        %v817 = vmax.f32 %v809, 0.0
        %v818 = vmul.f32 %v816, %v229
        %v819 = vmul.f32 %v817, %v229
        %v820 = vadd.f32 %v818, %v235
        %v821 = vadd.f32 %v819, %v235
        %v822 = vmax.f32 %v814, %v820
        %v823 = vmax.f32 %v815, %v821
        %v824 = vld [vmem:[%s4] sm:$0xff]
        %v825 = vld [vmem:[%s4 + $0x8] sm:$0xff]
        %v826 = vld [vmem:[%s4 + $0x10] sm:$0xff]
        %v827 = vld [vmem:[%s4 + $0x18] sm:$0xff]
        %v828 = vld [vmem:[%s4 + $0x20] sm:$0xff]
        %v829 = vld [vmem:[%s4 + $0x28] sm:$0xff]
        %v830 = vld [vmem:[%s4 + $0x30] sm:$0xff]
        %v831 = vld [vmem:[%s4 + $0x38] sm:$0xff]
        %v832 = vld [vmem:[%s4 + $0x40] sm:$0xff]
        %v833 = vld [vmem:[%s4 + $0x48] sm:$0xff]
        %v834 = vld [vmem:[%s4 + $0x50] sm:$0xff]
        %v835 = vld [vmem:[%s4 + $0x58] sm:$0xff]
        %v836 = vld [vmem:[%s4 + $0x60] sm:$0xff]
        %v837 = vld [vmem:[%s4 + $0x68] sm:$0xff]
        %v838 = vld [vmem:[%s4 + $0x70] sm:$0xff]
        %v839 = vld [vmem:[%s4 + $0x78] sm:$0xff]
        %v840 = vld [vmem:[%s4 + $0x80] sm:$0xff]
        %v841 = vld [vmem:[%s4 + $0x88] sm:$0xff]
        %v842 = vld [vmem:[%s4 + $0x90] sm:$0xff]
        %v843 = vld [vmem:[%s4 + $0x98] sm:$0xff]
        %v844 = vld [vmem:[%s4 + $0xa0] sm:$0xff]
        %v845 = vld [vmem:[%s4 + $0xa8] sm:$0xff]
        %v846 = vld [vmem:[%s4 + $0xb0] sm:$0xff]
        %v847 = vld [vmem:[%s4 + $0xb8] sm:$0xff]
        %v848 = vld [vmem:[%s4 + $0xc0] sm:$0xff]
        %v849 = vld [vmem:[%s4 + $0xc8] sm:$0xff]
        %v850 = vld [vmem:[%s4 + $0xd0] sm:$0xff]
        %v851 = vld [vmem:[%s4 + $0xd8] sm:$0xff]
        %v852 = vld [vmem:[%s4 + $0xe0] sm:$0xff]
        %v853 = vld [vmem:[%s4 + $0xe8] sm:$0xff]
        %v854 = vld [vmem:[%s4 + $0xf0] sm:$0xff]
        %v855 = vld [vmem:[%s4 + $0xf8] sm:$0xff]
        %v856 = vld [vmem:[%s4 + $0x100] sm:$0xff]
        %v857 = vld [vmem:[%s4 + $0x108] sm:$0xff]
        %v858 = vld [vmem:[%s4 + $0x110] sm:$0xff]
        %v859 = vld [vmem:[%s4 + $0x118] sm:$0xff]
        %v860 = vld [vmem:[%s4 + $0x120] sm:$0xff]
        %v861 = vld [vmem:[%s4 + $0x128] sm:$0xff]
        %v862 = vld [vmem:[%s4 + $0x130] sm:$0xff]
        %v863 = vld [vmem:[%s4 + $0x138] sm:$0xff]
        %v864 = vld [vmem:[%s4 + $0x140] sm:$0xff]
        %v865 = vld [vmem:[%s4 + $0x148] sm:$0xff]
        %v866 = vld [vmem:[%s4 + $0x150] sm:$0xff]
        %v867 = vld [vmem:[%s4 + $0x158] sm:$0xff]
        %v868 = vld [vmem:[%s4 + $0x160] sm:$0xff]
        %v869 = vld [vmem:[%s4 + $0x168] sm:$0xff]
        %v870 = vld [vmem:[%s4 + $0x170] sm:$0xff]
        %v871 = vld [vmem:[%s4 + $0x178] sm:$0xff]
        %v872 = vld [vmem:[%s4 + $0x180] sm:$0xff]
        %v873 = vld [vmem:[%s4 + $0x188] sm:$0xff]
        %v874 = vld [vmem:[%s4 + $0x190] sm:$0xff]
        %v875 = vld [vmem:[%s4 + $0x198] sm:$0xff]
        %v876 = vld [vmem:[%s4 + $0x1a0] sm:$0xff]
        %v877 = vld [vmem:[%s4 + $0x1a8] sm:$0xff]
        %v878 = vld [vmem:[%s4 + $0x1b0] sm:$0xff]
        %v879 = vld [vmem:[%s4 + $0x1b8] sm:$0xff]
        %v880 = vld [vmem:[%s4 + $0x1c0] sm:$0xff]
        %v881 = vld [vmem:[%s4 + $0x1c8] sm:$0xff]
        %v882 = vld [vmem:[%s4 + $0x1d0] sm:$0xff]
        %v883 = vld [vmem:[%s4 + $0x1d8] sm:$0xff]
        %v884 = vld [vmem:[%s4 + $0x1e0] sm:$0xff]
        %v885 = vld [vmem:[%s4 + $0x1e8] sm:$0xff]
        %v886 = vld [vmem:[%s4 + $0x1f0] sm:$0xff]
        %v887 = vld [vmem:[%s4 + $0x1f8] sm:$0xff]
        %888 = vmatprep.subr.mxu0 %v825
        %889 = vmatpush1.msra.mxu0 %v824
        %890 = vmatprep.subr.mxu0 %v827
        %891 = vmatpush1.msra.mxu0 %v826
        %892 = vmatprep.subr.mxu0 %v829
        %893 = vmatpush1.msra.mxu0 %v828
        %894 = vmatprep.subr.mxu0 %v831
        %895 = vmatpush1.msra.mxu0 %v830
        %896 = vmatprep.subr.mxu0 %v833
        %897 = vmatpush1.msra.mxu0 %v832
        %898 = vmatprep.subr.mxu0 %v835
        %899 = vmatpush1.msra.mxu0 %v834
        %900 = vmatprep.subr.mxu0 %v837
        %901 = vmatpush1.msra.mxu0 %v836
        %902 = vmatprep.subr.mxu0 %v839
        %903 = vmatpush1.msra.mxu0 %v838
        %904 = vmatprep.subr.mxu0 %v841
        %905 = vmatpush1.msra.mxu0 %v840
        %906 = vmatprep.subr.mxu0 %v843
        %907 = vmatpush1.msra.mxu0 %v842
        %908 = vmatprep.subr.mxu0 %v845
        %909 = vmatpush1.msra.mxu0 %v844
        %910 = vmatprep.subr.mxu0 %v847
        %911 = vmatpush1.msra.mxu0 %v846
        %912 = vmatprep.subr.mxu0 %v849
        %913 = vmatpush1.msra.mxu0 %v848
        %914 = vmatprep.subr.mxu0 %v851
        %915 = vmatpush1.msra.mxu0 %v850
        %916 = vmatprep.subr.mxu0 %v853
        %917 = vmatpush1.msra.mxu0 %v852
        %918 = vmatprep.subr.mxu0 %v855
        %919 = vmatpush1.msra.mxu0 %v854
        %920 = vmatprep.subr.mxu0 %v857
        %921 = vmatpush1.msra.mxu0 %v856
        %922 = vmatprep.subr.mxu0 %v859
        %923 = vmatpush1.msra.mxu0 %v858
        %924 = vmatprep.subr.mxu0 %v861
        %925 = vmatpush1.msra.mxu0 %v860
        %926 = vmatprep.subr.mxu0 %v863
        %927 = vmatpush1.msra.mxu0 %v862
        %928 = vmatprep.subr.mxu0 %v865
        %929 = vmatpush1.msra.mxu0 %v864
        %930 = vmatprep.subr.mxu0 %v867
        %931 = vmatpush1.msra.mxu0 %v866
        %932 = vmatprep.subr.mxu0 %v869
        %933 = vmatpush1.msra.mxu0 %v868
        %934 = vmatprep.subr.mxu0 %v871
        %935 = vmatpush1.msra.mxu0 %v870
        %936 = vmatprep.subr.mxu0 %v873
        %937 = vmatpush1.msra.mxu0 %v872
        %938 = vmatprep.subr.mxu0 %v875
        %939 = vmatpush1.msra.mxu0 %v874
        %940 = vmatprep.subr.mxu0 %v877
        %941 = vmatpush1.msra.mxu0 %v876
        %942 = vmatprep.subr.mxu0 %v879
        %943 = vmatpush1.msra.mxu0 %v878
        %944 = vmatprep.subr.mxu0 %v881
        %945 = vmatpush1.msra.mxu0 %v880
        %946 = vmatprep.subr.mxu0 %v883
        %947 = vmatpush1.msra.mxu0 %v882
        %948 = vmatprep.subr.mxu0 %v885
        %949 = vmatpush1.msra.mxu0 %v884
        %950 = vmatprep.subr.mxu0 %v887
        %951 = vmatpush1.msra.mxu0 %v886
        %952 = vmatprep.mubr.f32.mxu0 %v823
        %953 = vmatmul.mubr.f32.gmra.mrb[0].mxu0 %v822
        %v954 = vpop.f32.mrb[0].mxu0
        %v955 = vadd.f32 0.0, %v954
        %v956 = vpop.f32.mrb[0].mxu0
        %v957 = vadd.f32 0.0, %v956
        %958 = vdwg.mxu0
        %v959 = vmax.f32 %v955, %v957
        %s960 = smul.u32 %s238, 8
        %s961 = scalar_lea.vmem %s224, %s960
        %962 = vst [vmem:[%s961] sm:$0xff] %v959
      $region45: #{meso4_forward.5} parent=39 // loop_footer
        %s242 = sadd.s32 1, %s238
      $region46: #{meso4_forward.5} parent=39 // loop_footer_branch
        %237 = sbr.rel target = $region42
      $region47: #{meso4_forward.5} parent=39 // loop_exit
        _
      %p963 = scmp.lt.s32.totalorder %s16, 1
      %s964 = scalar_select %p963, %s16, 1
      %s965 = smul.addr %s964, 128
      %s966 = smul.addr %s965, 8
      %s967 = scalar_lea.vmem %s5, %s966
      // Predicated region
      $region48: #{meso4_forward.5} parent=39 // pred_check
        %p968 = pneg %p144
      $region49: #{meso4_forward.5} parent=39 // pred_check_branch
        %970 = sbr.rel (%p968) target = $region51
      $region50: #{meso4_forward.5} parent=39 // pred_region
        _
      $region51: #{meso4_forward.5} parent=39 // pred_fallthru
        _
    $region40: #{meso4_forward.5} parent=5 // pred_fallthru
      _
    %p971 = scmp.le.s32.totalorder 2, %s11
    // Predicated region
    $region52: #{meso4_forward.5} parent=5 // pred_check
      %p972 = pneg %p971
    $region53: #{meso4_forward.5} parent=5 // pred_check_branch
      %974 = sbr.rel (%p972) target = $region55
    $region54: #{meso4_forward.5} parent=5 // pred_region
      %s975 = ssub.s32 %s11, 2
      // Predicated region
      $region56: #{meso4_forward.5} parent=54 // pred_check
        %p976 = pneg %p150
      $region57: #{meso4_forward.5} parent=54 // pred_check_branch
        %978 = sbr.rel (%p976) target = $region59
      $region58: #{meso4_forward.5} parent=54 // pred_region
        %p979 = scmp.lt.s32.totalorder %s17, 1
        %s980 = scalar_select %p979, %s17, 1
        %s981 = smul.addr %s980, 128
        %s982 = smul.addr %s981, 8
        %s983 = scalar_lea.vmem %s5, %s982
      $region59: #{meso4_forward.5} parent=54 // pred_fallthru
        _
    $region55: #{meso4_forward.5} parent=5 // pred_fallthru
      _
  $region6: #{meso4_forward.5} parent=0 // loop_footer
    %s15 = sadd.s32 1, %s11
  $region7: #{meso4_forward.5} parent=0 // loop_footer_branch
    %10 = sbr.rel target = $region3
  $region8: #{meso4_forward.5} parent=0 // loop_exit
    _

// kernel: meso4_forward.6
$region0: #{meso4_forward.6}
  #allocation0 [shape = 'u32[]', space=smem, size = 0x4, offset = 0x4, fixed_abs, tag = 'smem constant byte address 0x4 - core index']
  #allocation1 [shape = 'u32[144,128]{1,0:T(1,128)}', space=vmem, size = 0x12000, scoped, tag = 'internal scratch']
  %s0 = inlined_call_operand.vmem [shape: f32[2,132,8,132], index: 0, kind: input, shape index: {}]
  %s1 = inlined_call_operand.vmem [shape: f32[5,8,40], index: 1, kind: input, shape index: {}]
  %s2 = inlined_call_operand.vmem [shape: f32[8,1], index: 2, kind: input, shape index: {}]
  %s3 = inlined_call_operand.vmem [shape: f32[8,1], index: 3, kind: input, shape index: {}]
  %s4 = inlined_call_operand.vmem [shape: f32[128,128], index: 4, kind: input, shape index: {}]
  %s5 = inlined_call_operand.vmem [shape: f32[2,64,8,64], index: 5, kind: output, shape index: {}]
  %s6 = sld [smem:[#allocation0]]
  $region60: #{meso4_forward.6} parent=0
    _
  %s8 = ssub.s32 1, %s6
  %s9 = scalar_select 0, %s8, %s6
  loop: start=0, step=1, limit=4
  $region2: #{meso4_forward.6} parent=0 // loop_pre_header
    _
  $region3: #{meso4_forward.6} parent=0 // loop_header
    %s11 = sphi 0, %s15
    %p12 = scmp.ge.s32.totalorder %s11, 4
    %s21 = sphi 0, %s23
    %s24 = sphi 0, %s21
    %s25 = sphi 0, %s24
    %s41 = sphi 0, %s25
    %s45 = sphi 0, %s45
    %s47 = sphi 0, %s45
    %s48 = sphi 0, %s47
    %s62 = sphi 0, %s48
    %s66 = sphi 0, %s66
    %s68 = sphi 0, %s66
    %s69 = sphi 0, %s68
    %s83 = sphi 0, %s69
    %s87 = sphi 0, %s87
    %s89 = sphi 0, %s87
    %s90 = sphi 0, %s89
    %s104 = sphi 0, %s90
    %s108 = sphi 0, %s108
    %s110 = sphi 0, %s108
    %s111 = sphi 0, %s110
    %s125 = sphi 0, %s111
    %s131 = sphi 0, %s133
    %s134 = sphi 0, %s131
    %s135 = sphi 0, %s134
    %s151 = sphi 0, %s135
  $region4: #{meso4_forward.6} parent=0 // loop_header_branch
    %14 = sbr.rel (%p12) target = $region8
  $region5: #{meso4_forward.6} parent=0 // loop_body
    %s16 = ssub.s32 %s11, 1
    %s17 = ssub.s32 %s11, 2
    %s18 = sadd.s32 %s11, 1
    %s19 = ssub.s32 %s11, %s18
    %p20 = scmp.eq.s32.totalorder %s19, 0
    %s22 = sadd.s32 %s21, 1
    %s23 = scalar_select %p20, %s21, %s22
    %p26 = pneg %p20
    %p27 = scmp.eq.s32.totalorder %s11, 1
    %p28 = por %p26, %p27
    %p29 = scmp.ne.s32.totalorder %s21, %s24
    %p30 = scmp.eq.s32.totalorder %s11, 0
    %p31 = por %p29, %p30
    %p32 = scmp.ne.s32.totalorder %s21, %s24
    %p33 = scmp.eq.s32.totalorder %s16, 1
    %p34 = por %p32, %p33
    %p35 = scmp.ne.s32.totalorder %s24, %s25
    %p36 = scmp.eq.s32.totalorder %s16, 0
    %p37 = por %p35, %p36
    %p38 = scmp.ne.s32.totalorder %s24, %s25
    %p39 = scmp.eq.s32.totalorder %s17, 1
    %p40 = por %p38, %p39
    %p42 = scmp.ne.s32.totalorder %s25, %s41
    %p43 = scmp.eq.s32.totalorder %s17, 0
    %p44 = por %p42, %p43
    %s46 = sadd.s32 %s45, 1
    %p49 = scmp.eq.s32.totalorder %s11, 1
    %p50 = scmp.ne.s32.totalorder %s45, %s47
    %p51 = scmp.eq.s32.totalorder %s11, 0
    %p52 = por %p50, %p51
    %p53 = scmp.ne.s32.totalorder %s45, %s47
    %p54 = scmp.eq.s32.totalorder %s16, 1
    %p55 = por %p53, %p54
    %p56 = scmp.ne.s32.totalorder %s47, %s48
    %p57 = scmp.eq.s32.totalorder %s16, 0
    %p58 = por %p56, %p57
    %p59 = scmp.ne.s32.totalorder %s47, %s48
    %p60 = scmp.eq.s32.totalorder %s17, 1
    %p61 = por %p59, %p60
    %p63 = scmp.ne.s32.totalorder %s48, %s62
    %p64 = scmp.eq.s32.totalorder %s17, 0
    %p65 = por %p63, %p64
    %s67 = sadd.s32 %s66, 1
    %p70 = scmp.eq.s32.totalorder %s11, 1
    %p71 = scmp.ne.s32.totalorder %s66, %s68
    %p72 = scmp.eq.s32.totalorder %s11, 0
    %p73 = por %p71, %p72
    %p74 = scmp.ne.s32.totalorder %s66, %s68
    %p75 = scmp.eq.s32.totalorder %s16, 1
    %p76 = por %p74, %p75
    %p77 = scmp.ne.s32.totalorder %s68, %s69
    %p78 = scmp.eq.s32.totalorder %s16, 0
    %p79 = por %p77, %p78
    %p80 = scmp.ne.s32.totalorder %s68, %s69
    %p81 = scmp.eq.s32.totalorder %s17, 1
    %p82 = por %p80, %p81
    %p84 = scmp.ne.s32.totalorder %s69, %s83
    %p85 = scmp.eq.s32.totalorder %s17, 0
    %p86 = por %p84, %p85
    %s88 = sadd.s32 %s87, 1
    %p91 = scmp.eq.s32.totalorder %s11, 1
    %p92 = scmp.ne.s32.totalorder %s87, %s89
    %p93 = scmp.eq.s32.totalorder %s11, 0
    %p94 = por %p92, %p93
    %p95 = scmp.ne.s32.totalorder %s87, %s89
    %p96 = scmp.eq.s32.totalorder %s16, 1
    %p97 = por %p95, %p96
    %p98 = scmp.ne.s32.totalorder %s89, %s90
    %p99 = scmp.eq.s32.totalorder %s16, 0
    %p100 = por %p98, %p99
    %p101 = scmp.ne.s32.totalorder %s89, %s90
    %p102 = scmp.eq.s32.totalorder %s17, 1
    %p103 = por %p101, %p102
    %p105 = scmp.ne.s32.totalorder %s90, %s104
    %p106 = scmp.eq.s32.totalorder %s17, 0
    %p107 = por %p105, %p106
    %s109 = sadd.s32 %s108, 1
    %p112 = scmp.eq.s32.totalorder %s11, 1
    %p113 = scmp.ne.s32.totalorder %s108, %s110
    %p114 = scmp.eq.s32.totalorder %s11, 0
    %p115 = por %p113, %p114
    %p116 = scmp.ne.s32.totalorder %s108, %s110
    %p117 = scmp.eq.s32.totalorder %s16, 1
    %p118 = por %p116, %p117
    %p119 = scmp.ne.s32.totalorder %s110, %s111
    %p120 = scmp.eq.s32.totalorder %s16, 0
    %p121 = por %p119, %p120
    %p122 = scmp.ne.s32.totalorder %s110, %s111
    %p123 = scmp.eq.s32.totalorder %s17, 1
    %p124 = por %p122, %p123
    %p126 = scmp.ne.s32.totalorder %s111, %s125
    %p127 = scmp.eq.s32.totalorder %s17, 0
    %p128 = por %p126, %p127
    %s129 = ssub.s32 %s11, %s18
    %p130 = scmp.eq.s32.totalorder %s129, 0
    %s132 = sadd.s32 %s131, 1
    %s133 = scalar_select %p130, %s131, %s132
    %p136 = pneg %p130
    %p137 = scmp.eq.s32.totalorder %s11, 1
    %p138 = por %p136, %p137
    %p139 = scmp.ne.s32.totalorder %s131, %s134
    %p140 = scmp.eq.s32.totalorder %s11, 0
    %p141 = por %p139, %p140
    %p142 = scmp.ne.s32.totalorder %s131, %s134
    %p143 = scmp.eq.s32.totalorder %s16, 1
    %p144 = por %p142, %p143
    %p145 = scmp.ne.s32.totalorder %s134, %s135
    %p146 = scmp.eq.s32.totalorder %s16, 0
    %p147 = por %p145, %p146
    %p148 = scmp.ne.s32.totalorder %s134, %s135
    %p149 = scmp.eq.s32.totalorder %s17, 1
    %p150 = por %p148, %p149
    %p152 = scmp.ne.s32.totalorder %s135, %s151
    %p153 = scmp.eq.s32.totalorder %s17, 0
    %p154 = por %p152, %p153
    %p155 = scmp.le.s32.totalorder 1, %s11
    %p156 = scmp.lt.s32.totalorder %s11, 3
    %p157 = pnand %p155, %p156
    %p158 = pneg %p157
    // Predicated region
    $region9: #{meso4_forward.6} parent=5 // pred_check
      _
    $region10: #{meso4_forward.6} parent=5 // pred_check_branch
      %160 = sbr.rel (%p157) target = $region12
    $region11: #{meso4_forward.6} parent=5 // pred_region
      %s161 = ssub.s32 %s11, 1
      // Predicated region
      $region13: #{meso4_forward.6} parent=11 // pred_check
        %p162 = pneg %p58
      $region14: #{meso4_forward.6} parent=11 // pred_check_branch
        %164 = sbr.rel (%p162) target = $region16
      $region15: #{meso4_forward.6} parent=11 // pred_region
        _
      $region16: #{meso4_forward.6} parent=11 // pred_fallthru
        _
      // Predicated region
      $region17: #{meso4_forward.6} parent=11 // pred_check
        %p165 = pneg %p79
      $region18: #{meso4_forward.6} parent=11 // pred_check_branch
        %167 = sbr.rel (%p165) target = $region20
      $region19: #{meso4_forward.6} parent=11 // pred_region
        _
      $region20: #{meso4_forward.6} parent=11 // pred_fallthru
        _
      // Predicated region
      $region21: #{meso4_forward.6} parent=11 // pred_check
        %p168 = pneg %p100
      $region22: #{meso4_forward.6} parent=11 // pred_check_branch
        %170 = sbr.rel (%p168) target = $region24
      $region23: #{meso4_forward.6} parent=11 // pred_region
        _
      $region24: #{meso4_forward.6} parent=11 // pred_fallthru
        _
      // Predicated region
      $region25: #{meso4_forward.6} parent=11 // pred_check
        %p171 = pneg %p121
      $region26: #{meso4_forward.6} parent=11 // pred_check_branch
        %173 = sbr.rel (%p171) target = $region28
      $region27: #{meso4_forward.6} parent=11 // pred_region
        _
      $region28: #{meso4_forward.6} parent=11 // pred_fallthru
        _
    $region12: #{meso4_forward.6} parent=5 // pred_fallthru
      _
    %p174 = scmp.lt.s32.totalorder %s11, 2
    // Predicated region
    $region29: #{meso4_forward.6} parent=5 // pred_check
      %p175 = pneg %p174
    $region30: #{meso4_forward.6} parent=5 // pred_check_branch
      %177 = sbr.rel (%p175) target = $region32
    $region31: #{meso4_forward.6} parent=5 // pred_region
      // Predicated region
      $region33: #{meso4_forward.6} parent=31 // pred_check
        %p178 = pneg %p31
      $region34: #{meso4_forward.6} parent=31 // pred_check_branch
        %180 = sbr.rel (%p178) target = $region36
      $region35: #{meso4_forward.6} parent=31 // pred_region
        %p181 = scmp.lt.s32.totalorder %s11, 1
        %s182 = scalar_select %p181, %s11, 1
        %s183 = smul.addr %s182, 264
        %s184 = smul.addr %s183, 8
        %s185 = scalar_lea.vmem %s0, %s184
      $region36: #{meso4_forward.6} parent=31 // pred_fallthru
        _
    $region32: #{meso4_forward.6} parent=5 // pred_fallthru
      _
    %p186 = scmp.le.s32.totalorder 1, %s11
    %p187 = scmp.lt.s32.totalorder %s11, 3
    %p188 = pnand %p186, %p187
    %p189 = pneg %p188
    // Predicated region
    $region37: #{meso4_forward.6} parent=5 // pred_check
      _
    $region38: #{meso4_forward.6} parent=5 // pred_check_branch
      %191 = sbr.rel (%p188) target = $region40
    $region39: #{meso4_forward.6} parent=5 // pred_region
      %s192 = ssub.s32 %s11, 1
      %p193 = scmp.lt.s32.totalorder %s16, 1
      %s194 = scalar_select %p193, %s16, 1
      %s195 = smul.addr %s194, 264
      %s196 = smul.addr %s195, 8
      %s197 = scalar_lea.vmem %s0, %s196
      %p198 = pneg %p37
      %p199 = pneg %p34
      %p200 = pneg %p58
      %p201 = pneg %p55
      %p202 = pneg %p79
      %p203 = pneg %p76
      %p204 = pneg %p100
      %p205 = pneg %p97
      %p206 = pneg %p121
      %p207 = pneg %p118
      %p208 = pneg %p147
      %p209 = pneg %p144
      %p210 = scmp.lt.s32.totalorder %s16, 1
      %s211 = scalar_select %p210, %s16, 1
      %s212 = smul.addr %s211, 64
      %s213 = smul.addr %s212, 8
      %s214 = scalar_lea.vmem %s5, %s213
      %p215 = scmp.lt.s32.totalorder %s16, 1
      %s216 = scalar_select %p215, %s16, 1
      %s217 = smul.addr %s216, 264
      %s218 = smul.addr %s217, 8
      %s219 = scalar_lea.vmem %s0, %s218
      %p220 = scmp.lt.s32.totalorder %s16, 1
      %s221 = scalar_select %p220, %s16, 1
      %s222 = smul.addr %s221, 64
      %s223 = smul.addr %s222, 8
      %s224 = scalar_lea.vmem %s5, %s223
      %v225 = vld [vmem:[%s2] sm:$0xff]
      %227 = vset.pattern.permute.xlu0 0
      %228 = vperm.xlu0 %227, %v225
      %v229 = vpop.permute.xlu0 %228
      %v231 = vld [vmem:[%s3] sm:$0xff]
      %233 = vset.pattern.permute.xlu0 0
      %234 = vperm.xlu0 %233, %v231
      %v235 = vpop.permute.xlu0 %234
      loop: start=0, step=1, limit=64
      $region41: #{meso4_forward.6} parent=39 // loop_pre_header
        _
      $region42: #{meso4_forward.6} parent=39 // loop_header
        %s238 = sphi 0, %s242
        %p239 = scmp.ge.s32.totalorder %s238, 64
      $region43: #{meso4_forward.6} parent=39 // loop_header_branch
        %241 = sbr.rel (%p239) target = $region47
      $region44: #{meso4_forward.6} parent=39 // loop_body
        %s243 = smul.u32 %s238, 2
        %s244 = smul.u32 %s243, 2
        %s245 = smul.addr %s244, 8
        %s246 = scalar_lea.vmem %s219, %s245
        %v247 = vld [vmem:[%s246] sm:$0xff]
        %v248 = vld [vmem:[%s246 + $0x8] sm:$0xff]
        %251 = vrot.lane.b32.xlu0 %v247, 127
        %v252 = vpop.permute.xlu0 %251
        %253 = vrot.lane.b32.xlu0 %v248, 127
        %v254 = vpop.permute.xlu0 %253
        %vm255 = vcmask 1039360
        %v256 = vsel %vm255, %v252, %v254
        %258 = vrot.lane.b32.xlu0 %v247, 126
        %v259 = vpop.permute.xlu0 %258
        %260 = vrot.lane.b32.xlu0 %v248, 126
        %v261 = vpop.permute.xlu0 %260
        %vm262 = vcmask 1031168
        %v263 = vsel %vm262, %v259, %v261
        %265 = vrot.lane.b32.xlu0 %v247, 125
        %v266 = vpop.permute.xlu0 %265
        %267 = vrot.lane.b32.xlu0 %v248, 125
        %v268 = vpop.permute.xlu0 %267
        %vm269 = vcmask 1022976
        %v270 = vsel %vm269, %v266, %v268
        %272 = vrot.lane.b32.xlu0 %v247, 124
        %v273 = vpop.permute.xlu0 %272
        %274 = vrot.lane.b32.xlu0 %v248, 124
        %v275 = vpop.permute.xlu0 %274
        %vm276 = vcmask 1014784
        %v277 = vsel %vm276, %v273, %v275
        %v279 = vld [vmem:[%s1] sm:$0xff]
        %s280 = sadd.s32 %s243, 1
        %s281 = smul.u32 %s280, 2
        %s282 = smul.addr %s281, 8
        %s283 = scalar_lea.vmem %s219, %s282
        %v284 = vld [vmem:[%s283] sm:$0xff]
        %v285 = vld [vmem:[%s283 + $0x8] sm:$0xff]
        %288 = vrot.lane.b32.xlu0 %v284, 127
        %v289 = vpop.permute.xlu0 %288
        %290 = vrot.lane.b32.xlu0 %v285, 127
        %v291 = vpop.permute.xlu0 %290
        %v292 = vsel %vm255, %v289, %v291
        %294 = vrot.lane.b32.xlu0 %v284, 126
        %v295 = vpop.permute.xlu0 %294
        %296 = vrot.lane.b32.xlu0 %v285, 126
        %v297 = vpop.permute.xlu0 %296
        %v298 = vsel %vm262, %v295, %v297
        %300 = vrot.lane.b32.xlu0 %v284, 125
        %v301 = vpop.permute.xlu0 %300
        %302 = vrot.lane.b32.xlu0 %v285, 125
        %v303 = vpop.permute.xlu0 %302
        %v304 = vsel %vm269, %v301, %v303
        %306 = vrot.lane.b32.xlu0 %v284, 124
        %v307 = vpop.permute.xlu0 %306
        %308 = vrot.lane.b32.xlu0 %v285, 124
        %v309 = vpop.permute.xlu0 %308
        %v310 = vsel %vm276, %v307, %v309
        %s312 = scalar_lea.vmem %s1, 8
        %v313 = vld [vmem:[%s312] sm:$0xff]
        %vm314 = vcmask 326656
        %v316 = vsel %vm314, %v313, 0
        %318 = vmatprep.subr.mxu0 0.0
        %319 = vmatpush1.msra.mxu0 %v284
        %320 = vmatprep.subr.mxu0 0.0
        %321 = vmatpush1.msra.mxu0 %v292
        %322 = vmatprep.subr.mxu0 0.0
        %323 = vmatpush1.msra.mxu0 %v298
        %324 = vmatprep.subr.mxu0 0.0
        %325 = vmatpush1.msra.mxu0 %v304
        %326 = vmatprep.subr.mxu0 0.0
        %327 = vmatpush1.msra.mxu0 %v310
        %328 = vmatprep.subr.mxu0 0.0
        %329 = vmatpush1.msra.mxu0 0.0
        %330 = vmatprep.subr.mxu0 0.0
        %331 = vmatpush1.msra.mxu0 0.0
        %332 = vmatprep.subr.mxu0 0.0
        %333 = vmatpush1.msra.mxu0 0.0
        %334 = vmatprep.subr.mxu0 0.0
        %335 = vmatpush1.msra.mxu0 0.0
        %336 = vmatprep.subr.mxu0 0.0
        %337 = vmatpush1.msra.mxu0 0.0
        %338 = vmatprep.subr.mxu0 0.0
        %339 = vmatpush1.msra.mxu0 0.0
        %340 = vmatprep.subr.mxu0 0.0
        %341 = vmatpush1.msra.mxu0 0.0
        %342 = vmatprep.subr.mxu0 0.0
        %343 = vmatpush1.msra.mxu0 0.0
        %344 = vmatprep.subr.mxu0 0.0
        %345 = vmatpush1.msra.mxu0 0.0
        %346 = vmatprep.subr.mxu0 0.0
        %347 = vmatpush1.msra.mxu0 0.0
        %348 = vmatprep.subr.mxu0 0.0
        %349 = vmatpush1.msra.mxu0 0.0
        %350 = vmatprep.subr.mxu0 0.0
        %351 = vmatpush1.msra.mxu0 0.0
        %352 = vmatprep.subr.mxu0 0.0
        %353 = vmatpush1.msra.mxu0 0.0
        %354 = vmatprep.subr.mxu0 0.0
        %355 = vmatpush1.msra.mxu0 0.0
        %356 = vmatprep.subr.mxu0 0.0
        %357 = vmatpush1.msra.mxu0 0.0
        %358 = vmatprep.subr.mxu0 0.0
        %359 = vmatpush1.msra.mxu0 0.0
        %360 = vmatprep.subr.mxu0 0.0
        %361 = vmatpush1.msra.mxu0 0.0
        %362 = vmatprep.subr.mxu0 0.0
        %363 = vmatpush1.msra.mxu0 0.0
        %364 = vmatprep.subr.mxu0 0.0
        %365 = vmatpush1.msra.mxu0 0.0
        %366 = vmatprep.subr.mxu0 0.0
        %367 = vmatpush1.msra.mxu0 0.0
        %368 = vmatprep.subr.mxu0 0.0
        %369 = vmatpush1.msra.mxu0 0.0
        %370 = vmatprep.subr.mxu0 0.0
        %371 = vmatpush1.msra.mxu0 0.0
        %372 = vmatprep.subr.mxu0 0.0
        %373 = vmatpush1.msra.mxu0 0.0
        %374 = vmatprep.subr.mxu0 0.0
        %375 = vmatpush1.msra.mxu0 0.0
        %376 = vmatprep.subr.mxu0 0.0
        %377 = vmatpush1.msra.mxu0 0.0
        %378 = vmatprep.subr.mxu0 0.0
        %379 = vmatpush1.msra.mxu0 0.0
        %380 = vmatprep.subr.mxu0 0.0
        %381 = vmatpush1.msra.mxu0 0.0
        %382 = vmatprep.mubr.f32.mxu0 0.0
        %383 = vmatmul.mubr.f32.gmra.mrb[0].mxu0 %v316
        %v384 = vpop.f32.mrb[0].mxu0
        %v385 = vadd.f32 0.0, %v384
        %v386 = vpop.f32.mrb[0].mxu0
        %387 = vdwg.mxu0
        %v389 = vsel %vm314, %v279, 0
        %391 = vmatprep.subr.mxu0 0.0
        %392 = vmatpush1.msra.mxu0 %v247
        %393 = vmatprep.subr.mxu0 0.0
        %394 = vmatpush1.msra.mxu0 %v256
        %395 = vmatprep.subr.mxu0 0.0
        %396 = vmatpush1.msra.mxu0 %v263
        %397 = vmatprep.subr.mxu0 0.0
        %398 = vmatpush1.msra.mxu0 %v270
        %399 = vmatprep.subr.mxu0 0.0
        %400 = vmatpush1.msra.mxu0 %v277
        %401 = vmatprep.subr.mxu0 0.0
        %402 = vmatpush1.msra.mxu0 0.0
        %403 = vmatprep.subr.mxu0 0.0
        %404 = vmatpush1.msra.mxu0 0.0
        %405 = vmatprep.subr.mxu0 0.0
        %406 = vmatpush1.msra.mxu0 0.0
        %407 = vmatprep.subr.mxu0 0.0
        %408 = vmatpush1.msra.mxu0 0.0
        %409 = vmatprep.subr.mxu0 0.0
        %410 = vmatpush1.msra.mxu0 0.0
        %411 = vmatprep.subr.mxu0 0.0
        %412 = vmatpush1.msra.mxu0 0.0
        %413 = vmatprep.subr.mxu0 0.0
        %414 = vmatpush1.msra.mxu0 0.0
        %415 = vmatprep.subr.mxu0 0.0
        %416 = vmatpush1.msra.mxu0 0.0
        %417 = vmatprep.subr.mxu0 0.0
        %418 = vmatpush1.msra.mxu0 0.0
        %419 = vmatprep.subr.mxu0 0.0
        %420 = vmatpush1.msra.mxu0 0.0
        %421 = vmatprep.subr.mxu0 0.0
        %422 = vmatpush1.msra.mxu0 0.0
        %423 = vmatprep.subr.mxu0 0.0
        %424 = vmatpush1.msra.mxu0 0.0
        %425 = vmatprep.subr.mxu0 0.0
        %426 = vmatpush1.msra.mxu0 0.0
        %427 = vmatprep.subr.mxu0 0.0
        %428 = vmatpush1.msra.mxu0 0.0
        %429 = vmatprep.subr.mxu0 0.0
        %430 = vmatpush1.msra.mxu0 0.0
        %431 = vmatprep.subr.mxu0 0.0
        %432 = vmatpush1.msra.mxu0 0.0
        %433 = vmatprep.subr.mxu0 0.0
        %434 = vmatpush1.msra.mxu0 0.0
        %435 = vmatprep.subr.mxu0 0.0
        %436 = vmatpush1.msra.mxu0 0.0
        %437 = vmatprep.subr.mxu0 0.0
        %438 = vmatpush1.msra.mxu0 0.0
        %439 = vmatprep.subr.mxu0 0.0
        %440 = vmatpush1.msra.mxu0 0.0
        %441 = vmatprep.subr.mxu0 0.0
        %442 = vmatpush1.msra.mxu0 0.0
        %443 = vmatprep.subr.mxu0 0.0
        %444 = vmatpush1.msra.mxu0 0.0
        %445 = vmatprep.subr.mxu0 0.0
        %446 = vmatpush1.msra.mxu0 0.0
        %447 = vmatprep.subr.mxu0 0.0
        %448 = vmatpush1.msra.mxu0 0.0
        %449 = vmatprep.subr.mxu0 0.0
        %450 = vmatpush1.msra.mxu0 0.0
        %451 = vmatprep.subr.mxu0 0.0
        %452 = vmatpush1.msra.mxu0 0.0
        %453 = vmatprep.subr.mxu0 0.0
        %454 = vmatpush1.msra.mxu0 0.0
        %455 = vmatprep.mubr.f32.mxu0 0.0
        %456 = vmatmul.mubr.f32.gmra.mrb[0].mxu0 %v389
        %v457 = vpop.f32.mrb[0].mxu0
        %v458 = vadd.f32 %v385, %v457
        %v459 = vpop.f32.mrb[0].mxu0
        %460 = vdwg.mxu0
        %s461 = sadd.s32 %s243, 2
        %s462 = smul.u32 %s461, 2
        %s463 = smul.addr %s462, 8
        %s464 = scalar_lea.vmem %s219, %s463
        %v465 = vld [vmem:[%s464] sm:$0xff]
        %v466 = vld [vmem:[%s464 + $0x8] sm:$0xff]
        %469 = vrot.lane.b32.xlu0 %v465, 127
        %v470 = vpop.permute.xlu0 %469
        %471 = vrot.lane.b32.xlu0 %v466, 127
        %v472 = vpop.permute.xlu0 %471
        %v473 = vsel %vm255, %v470, %v472
        %475 = vrot.lane.b32.xlu0 %v465, 126
        %v476 = vpop.permute.xlu0 %475
        %477 = vrot.lane.b32.xlu0 %v466, 126
        %v478 = vpop.permute.xlu0 %477
        %v479 = vsel %vm262, %v476, %v478
        %481 = vrot.lane.b32.xlu0 %v465, 125
        %v482 = vpop.permute.xlu0 %481
        %483 = vrot.lane.b32.xlu0 %v466, 125
        %v484 = vpop.permute.xlu0 %483
        %v485 = vsel %vm269, %v482, %v484
        %487 = vrot.lane.b32.xlu0 %v465, 124
        %v488 = vpop.permute.xlu0 %487
        %489 = vrot.lane.b32.xlu0 %v466, 124
        %v490 = vpop.permute.xlu0 %489
        %v491 = vsel %vm276, %v488, %v490
        %s493 = scalar_lea.vmem %s1, 16
        %v494 = vld [vmem:[%s493] sm:$0xff]
        %v496 = vsel %vm314, %v494, 0
        %498 = vmatprep.subr.mxu0 0.0
        %499 = vmatpush1.msra.mxu0 %v465
        %500 = vmatprep.subr.mxu0 0.0
        %501 = vmatpush1.msra.mxu0 %v473
        %502 = vmatprep.subr.mxu0 0.0
        %503 = vmatpush1.msra.mxu0 %v479
        %504 = vmatprep.subr.mxu0 0.0
        %505 = vmatpush1.msra.mxu0 %v485
        %506 = vmatprep.subr.mxu0 0.0
        %507 = vmatpush1.msra.mxu0 %v491
        %508 = vmatprep.subr.mxu0 0.0
        %509 = vmatpush1.msra.mxu0 0.0
        %510 = vmatprep.subr.mxu0 0.0
        %511 = vmatpush1.msra.mxu0 0.0
        %512 = vmatprep.subr.mxu0 0.0
        %513 = vmatpush1.msra.mxu0 0.0
        %514 = vmatprep.subr.mxu0 0.0
        %515 = vmatpush1.msra.mxu0 0.0
        %516 = vmatprep.subr.mxu0 0.0
        %517 = vmatpush1.msra.mxu0 0.0
        %518 = vmatprep.subr.mxu0 0.0
        %519 = vmatpush1.msra.mxu0 0.0
        %520 = vmatprep.subr.mxu0 0.0
        %521 = vmatpush1.msra.mxu0 0.0
        %522 = vmatprep.subr.mxu0 0.0
        %523 = vmatpush1.msra.mxu0 0.0
        %524 = vmatprep.subr.mxu0 0.0
        %525 = vmatpush1.msra.mxu0 0.0
        %526 = vmatprep.subr.mxu0 0.0
        %527 = vmatpush1.msra.mxu0 0.0
        %528 = vmatprep.subr.mxu0 0.0
        %529 = vmatpush1.msra.mxu0 0.0
        %530 = vmatprep.subr.mxu0 0.0
        %531 = vmatpush1.msra.mxu0 0.0
        %532 = vmatprep.subr.mxu0 0.0
        %533 = vmatpush1.msra.mxu0 0.0
        %534 = vmatprep.subr.mxu0 0.0
        %535 = vmatpush1.msra.mxu0 0.0
        %536 = vmatprep.subr.mxu0 0.0
        %537 = vmatpush1.msra.mxu0 0.0
        %538 = vmatprep.subr.mxu0 0.0
        %539 = vmatpush1.msra.mxu0 0.0
        %540 = vmatprep.subr.mxu0 0.0
        %541 = vmatpush1.msra.mxu0 0.0
        %542 = vmatprep.subr.mxu0 0.0
        %543 = vmatpush1.msra.mxu0 0.0
        %544 = vmatprep.subr.mxu0 0.0
        %545 = vmatpush1.msra.mxu0 0.0
        %546 = vmatprep.subr.mxu0 0.0
        %547 = vmatpush1.msra.mxu0 0.0
        %548 = vmatprep.subr.mxu0 0.0
        %549 = vmatpush1.msra.mxu0 0.0
        %550 = vmatprep.subr.mxu0 0.0
        %551 = vmatpush1.msra.mxu0 0.0
        %552 = vmatprep.subr.mxu0 0.0
        %553 = vmatpush1.msra.mxu0 0.0
        %554 = vmatprep.subr.mxu0 0.0
        %555 = vmatpush1.msra.mxu0 0.0
        %556 = vmatprep.subr.mxu0 0.0
        %557 = vmatpush1.msra.mxu0 0.0
        %558 = vmatprep.subr.mxu0 0.0
        %559 = vmatpush1.msra.mxu0 0.0
        %560 = vmatprep.subr.mxu0 0.0
        %561 = vmatpush1.msra.mxu0 0.0
        %562 = vmatprep.mubr.f32.mxu0 0.0
        %563 = vmatmul.mubr.f32.gmra.mrb[0].mxu0 %v496
        %v564 = vpop.f32.mrb[0].mxu0
        %v565 = vadd.f32 0.0, %v564
        %v566 = vpop.f32.mrb[0].mxu0
        %567 = vdwg.mxu0
        %v568 = vadd.f32 %v458, %v565
        %569 = vmatprep.subr.mxu0 0.0
        %570 = vmatpush1.msra.mxu0 %v465
        %571 = vmatprep.subr.mxu0 0.0
        %572 = vmatpush1.msra.mxu0 %v473
        %573 = vmatprep.subr.mxu0 0.0
        %574 = vmatpush1.msra.mxu0 %v479
        %575 = vmatprep.subr.mxu0 0.0
        %576 = vmatpush1.msra.mxu0 %v485
        %577 = vmatprep.subr.mxu0 0.0
        %578 = vmatpush1.msra.mxu0 %v491
        %579 = vmatprep.subr.mxu0 0.0
        %580 = vmatpush1.msra.mxu0 0.0
        %581 = vmatprep.subr.mxu0 0.0
        %582 = vmatpush1.msra.mxu0 0.0
        %583 = vmatprep.subr.mxu0 0.0
        %584 = vmatpush1.msra.mxu0 0.0
        %585 = vmatprep.subr.mxu0 0.0
        %586 = vmatpush1.msra.mxu0 0.0
        %587 = vmatprep.subr.mxu0 0.0
        %588 = vmatpush1.msra.mxu0 0.0
        %589 = vmatprep.subr.mxu0 0.0
        %590 = vmatpush1.msra.mxu0 0.0
        %591 = vmatprep.subr.mxu0 0.0
        %592 = vmatpush1.msra.mxu0 0.0
        %593 = vmatprep.subr.mxu0 0.0
        %594 = vmatpush1.msra.mxu0 0.0
        %595 = vmatprep.subr.mxu0 0.0
        %596 = vmatpush1.msra.mxu0 0.0
        %597 = vmatprep.subr.mxu0 0.0
        %598 = vmatpush1.msra.mxu0 0.0
        %599 = vmatprep.subr.mxu0 0.0
        %600 = vmatpush1.msra.mxu0 0.0
        %601 = vmatprep.subr.mxu0 0.0
        %602 = vmatpush1.msra.mxu0 0.0
        %603 = vmatprep.subr.mxu0 0.0
        %604 = vmatpush1.msra.mxu0 0.0
        %605 = vmatprep.subr.mxu0 0.0
        %606 = vmatpush1.msra.mxu0 0.0
        %607 = vmatprep.subr.mxu0 0.0
        %608 = vmatpush1.msra.mxu0 0.0
        %609 = vmatprep.subr.mxu0 0.0
        %610 = vmatpush1.msra.mxu0 0.0
        %611 = vmatprep.subr.mxu0 0.0
        %612 = vmatpush1.msra.mxu0 0.0
        %613 = vmatprep.subr.mxu0 0.0
        %614 = vmatpush1.msra.mxu0 0.0
        %615 = vmatprep.subr.mxu0 0.0
        %616 = vmatpush1.msra.mxu0 0.0
        %617 = vmatprep.subr.mxu0 0.0
        %618 = vmatpush1.msra.mxu0 0.0
        %619 = vmatprep.subr.mxu0 0.0
        %620 = vmatpush1.msra.mxu0 0.0
        %621 = vmatprep.subr.mxu0 0.0
        %622 = vmatpush1.msra.mxu0 0.0
        %623 = vmatprep.subr.mxu0 0.0
        %624 = vmatpush1.msra.mxu0 0.0
        %625 = vmatprep.subr.mxu0 0.0
        %626 = vmatpush1.msra.mxu0 0.0
        %627 = vmatprep.subr.mxu0 0.0
        %628 = vmatpush1.msra.mxu0 0.0
        %629 = vmatprep.subr.mxu0 0.0
        %630 = vmatpush1.msra.mxu0 0.0
        %631 = vmatprep.subr.mxu0 0.0
        %632 = vmatpush1.msra.mxu0 0.0
        %633 = vmatprep.mubr.f32.mxu0 0.0
        %634 = vmatmul.mubr.f32.gmra.mrb[0].mxu0 %v316
        %v635 = vpop.f32.mrb[0].mxu0
        %v636 = vadd.f32 0.0, %v635
        %v637 = vpop.f32.mrb[0].mxu0
        %638 = vdwg.mxu0
        %639 = vmatprep.subr.mxu0 0.0
        %640 = vmatpush1.msra.mxu0 %v284
        %641 = vmatprep.subr.mxu0 0.0
        %642 = vmatpush1.msra.mxu0 %v292
        %643 = vmatprep.subr.mxu0 0.0
        %644 = vmatpush1.msra.mxu0 %v298
        %645 = vmatprep.subr.mxu0 0.0
        %646 = vmatpush1.msra.mxu0 %v304
        %647 = vmatprep.subr.mxu0 0.0
        %648 = vmatpush1.msra.mxu0 %v310
        %649 = vmatprep.subr.mxu0 0.0
        %650 = vmatpush1.msra.mxu0 0.0
        %651 = vmatprep.subr.mxu0 0.0
        %652 = vmatpush1.msra.mxu0 0.0
        %653 = vmatprep.subr.mxu0 0.0
        %654 = vmatpush1.msra.mxu0 0.0
        %655 = vmatprep.subr.mxu0 0.0
        %656 = vmatpush1.msra.mxu0 0.0
        %657 = vmatprep.subr.mxu0 0.0
        %658 = vmatpush1.msra.mxu0 0.0
        %659 = vmatprep.subr.mxu0 0.0
        %660 = vmatpush1.msra.mxu0 0.0
        %661 = vmatprep.subr.mxu0 0.0
        %662 = vmatpush1.msra.mxu0 0.0
        %663 = vmatprep.subr.mxu0 0.0
        %664 = vmatpush1.msra.mxu0 0.0
        %665 = vmatprep.subr.mxu0 0.0
        %666 = vmatpush1.msra.mxu0 0.0
        %667 = vmatprep.subr.mxu0 0.0
        %668 = vmatpush1.msra.mxu0 0.0
        %669 = vmatprep.subr.mxu0 0.0
        %670 = vmatpush1.msra.mxu0 0.0
        %671 = vmatprep.subr.mxu0 0.0
        %672 = vmatpush1.msra.mxu0 0.0
        %673 = vmatprep.subr.mxu0 0.0
        %674 = vmatpush1.msra.mxu0 0.0
        %675 = vmatprep.subr.mxu0 0.0
        %676 = vmatpush1.msra.mxu0 0.0
        %677 = vmatprep.subr.mxu0 0.0
        %678 = vmatpush1.msra.mxu0 0.0
        %679 = vmatprep.subr.mxu0 0.0
        %680 = vmatpush1.msra.mxu0 0.0
        %681 = vmatprep.subr.mxu0 0.0
        %682 = vmatpush1.msra.mxu0 0.0
        %683 = vmatprep.subr.mxu0 0.0
        %684 = vmatpush1.msra.mxu0 0.0
        %685 = vmatprep.subr.mxu0 0.0
        %686 = vmatpush1.msra.mxu0 0.0
        %687 = vmatprep.subr.mxu0 0.0
        %688 = vmatpush1.msra.mxu0 0.0
        %689 = vmatprep.subr.mxu0 0.0
        %690 = vmatpush1.msra.mxu0 0.0
        %691 = vmatprep.subr.mxu0 0.0
        %692 = vmatpush1.msra.mxu0 0.0
        %693 = vmatprep.subr.mxu0 0.0
        %694 = vmatpush1.msra.mxu0 0.0
        %695 = vmatprep.subr.mxu0 0.0
        %696 = vmatpush1.msra.mxu0 0.0
        %697 = vmatprep.subr.mxu0 0.0
        %698 = vmatpush1.msra.mxu0 0.0
        %699 = vmatprep.subr.mxu0 0.0
        %700 = vmatpush1.msra.mxu0 0.0
        %701 = vmatprep.subr.mxu0 0.0
        %702 = vmatpush1.msra.mxu0 0.0
        %703 = vmatprep.mubr.f32.mxu0 0.0
        %704 = vmatmul.mubr.f32.gmra.mrb[0].mxu0 %v389
        %v705 = vpop.f32.mrb[0].mxu0
        %v706 = vadd.f32 %v636, %v705
        %v707 = vpop.f32.mrb[0].mxu0
        %708 = vdwg.mxu0
        %s709 = sadd.s32 %s243, 3
        %s710 = smul.u32 %s709, 2
        %s711 = smul.addr %s710, 8
        %s712 = scalar_lea.vmem %s219, %s711
        %v713 = vld [vmem:[%s712] sm:$0xff]
        %v714 = vld [vmem:[%s712 + $0x8] sm:$0xff]
        %717 = vrot.lane.b32.xlu0 %v713, 127
        %v718 = vpop.permute.xlu0 %717
        %719 = vrot.lane.b32.xlu0 %v714, 127
        %v720 = vpop.permute.xlu0 %719
        %v721 = vsel %vm255, %v718, %v720
        %723 = vrot.lane.b32.xlu0 %v713, 126
        %v724 = vpop.permute.xlu0 %723
        %725 = vrot.lane.b32.xlu0 %v714, 126
        %v726 = vpop.permute.xlu0 %725
        %v727 = vsel %vm262, %v724, %v726
        %729 = vrot.lane.b32.xlu0 %v713, 125
        %v730 = vpop.permute.xlu0 %729
        %731 = vrot.lane.b32.xlu0 %v714, 125
        %v732 = vpop.permute.xlu0 %731
        %v733 = vsel %vm269, %v730, %v732
        %735 = vrot.lane.b32.xlu0 %v713, 124
        %v736 = vpop.permute.xlu0 %735
        %737 = vrot.lane.b32.xlu0 %v714, 124
        %v738 = vpop.permute.xlu0 %737
        %v739 = vsel %vm276, %v736, %v738
        %s741 = scalar_lea.vmem %s1, 24
        %v742 = vld [vmem:[%s741] sm:$0xff]
        %v744 = vsel %vm314, %v742, 0
        %746 = vmatprep.subr.mxu0 0.0
        %747 = vmatpush1.msra.mxu0 %v713
        %748 = vmatprep.subr.mxu0 0.0
        %749 = vmatpush1.msra.mxu0 %v721
        %750 = vmatprep.subr.mxu0 0.0
        %751 = vmatpush1.msra.mxu0 %v727
        %752 = vmatprep.subr.mxu0 0.0
        %753 = vmatpush1.msra.mxu0 %v733
        %754 = vmatprep.subr.mxu0 0.0
        %755 = vmatpush1.msra.mxu0 %v739
        %756 = vmatprep.subr.mxu0 0.0
        %757 = vmatpush1.msra.mxu0 0.0
        %758 = vmatprep.subr.mxu0 0.0
        %759 = vmatpush1.msra.mxu0 0.0
        %760 = vmatprep.subr.mxu0 0.0
        %761 = vmatpush1.msra.mxu0 0.0
        %762 = vmatprep.subr.mxu0 0.0
        %763 = vmatpush1.msra.mxu0 0.0
        %764 = vmatprep.subr.mxu0 0.0
        %765 = vmatpush1.msra.mxu0 0.0
        %766 = vmatprep.subr.mxu0 0.0
        %767 = vmatpush1.msra.mxu0 0.0
        %768 = vmatprep.subr.mxu0 0.0
        %769 = vmatpush1.msra.mxu0 0.0
        %770 = vmatprep.subr.mxu0 0.0
        %771 = vmatpush1.msra.mxu0 0.0
        %772 = vmatprep.subr.mxu0 0.0
        %773 = vmatpush1.msra.mxu0 0.0
        %774 = vmatprep.subr.mxu0 0.0
        %775 = vmatpush1.msra.mxu0 0.0
        %776 = vmatprep.subr.mxu0 0.0
        %777 = vmatpush1.msra.mxu0 0.0
        %778 = vmatprep.subr.mxu0 0.0
        %779 = vmatpush1.msra.mxu0 0.0
        %780 = vmatprep.subr.mxu0 0.0
        %781 = vmatpush1.msra.mxu0 0.0
        %782 = vmatprep.subr.mxu0 0.0
        %783 = vmatpush1.msra.mxu0 0.0
        %784 = vmatprep.subr.mxu0 0.0
        %785 = vmatpush1.msra.mxu0 0.0
        %786 = vmatprep.subr.mxu0 0.0
        %787 = vmatpush1.msra.mxu0 0.0
        %788 = vmatprep.subr.mxu0 0.0
        %789 = vmatpush1.msra.mxu0 0.0
        %790 = vmatprep.subr.mxu0 0.0
        %791 = vmatpush1.msra.mxu0 0.0
        %792 = vmatprep.subr.mxu0 0.0
        %793 = vmatpush1.msra.mxu0 0.0
        %794 = vmatprep.subr.mxu0 0.0
        %795 = vmatpush1.msra.mxu0 0.0
        %796 = vmatprep.subr.mxu0 0.0
        %797 = vmatpush1.msra.mxu0 0.0
        %798 = vmatprep.subr.mxu0 0.0
        %799 = vmatpush1.msra.mxu0 0.0
        %800 = vmatprep.subr.mxu0 0.0
        %801 = vmatpush1.msra.mxu0 0.0
        %802 = vmatprep.subr.mxu0 0.0
        %803 = vmatpush1.msra.mxu0 0.0
        %804 = vmatprep.subr.mxu0 0.0
        %805 = vmatpush1.msra.mxu0 0.0
        %806 = vmatprep.subr.mxu0 0.0
        %807 = vmatpush1.msra.mxu0 0.0
        %808 = vmatprep.subr.mxu0 0.0
        %809 = vmatpush1.msra.mxu0 0.0
        %810 = vmatprep.mubr.f32.mxu0 0.0
        %811 = vmatmul.mubr.f32.gmra.mrb[0].mxu0 %v744
        %v812 = vpop.f32.mrb[0].mxu0
        %v813 = vadd.f32 0.0, %v812
        %v814 = vpop.f32.mrb[0].mxu0
        %815 = vdwg.mxu0
        %v816 = vadd.f32 %v568, %v813
        %817 = vmatprep.subr.mxu0 0.0
        %818 = vmatpush1.msra.mxu0 %v713
        %819 = vmatprep.subr.mxu0 0.0
        %820 = vmatpush1.msra.mxu0 %v721
        %821 = vmatprep.subr.mxu0 0.0
        %822 = vmatpush1.msra.mxu0 %v727
        %823 = vmatprep.subr.mxu0 0.0
        %824 = vmatpush1.msra.mxu0 %v733
        %825 = vmatprep.subr.mxu0 0.0
        %826 = vmatpush1.msra.mxu0 %v739
        %827 = vmatprep.subr.mxu0 0.0
        %828 = vmatpush1.msra.mxu0 0.0
        %829 = vmatprep.subr.mxu0 0.0
        %830 = vmatpush1.msra.mxu0 0.0
        %831 = vmatprep.subr.mxu0 0.0
        %832 = vmatpush1.msra.mxu0 0.0
        %833 = vmatprep.subr.mxu0 0.0
        %834 = vmatpush1.msra.mxu0 0.0
        %835 = vmatprep.subr.mxu0 0.0
        %836 = vmatpush1.msra.mxu0 0.0
        %837 = vmatprep.subr.mxu0 0.0
        %838 = vmatpush1.msra.mxu0 0.0
        %839 = vmatprep.subr.mxu0 0.0
        %840 = vmatpush1.msra.mxu0 0.0
        %841 = vmatprep.subr.mxu0 0.0
        %842 = vmatpush1.msra.mxu0 0.0
        %843 = vmatprep.subr.mxu0 0.0
        %844 = vmatpush1.msra.mxu0 0.0
        %845 = vmatprep.subr.mxu0 0.0
        %846 = vmatpush1.msra.mxu0 0.0
        %847 = vmatprep.subr.mxu0 0.0
        %848 = vmatpush1.msra.mxu0 0.0
        %849 = vmatprep.subr.mxu0 0.0
        %850 = vmatpush1.msra.mxu0 0.0
        %851 = vmatprep.subr.mxu0 0.0
        %852 = vmatpush1.msra.mxu0 0.0
        %853 = vmatprep.subr.mxu0 0.0
        %854 = vmatpush1.msra.mxu0 0.0
        %855 = vmatprep.subr.mxu0 0.0
        %856 = vmatpush1.msra.mxu0 0.0
        %857 = vmatprep.subr.mxu0 0.0
        %858 = vmatpush1.msra.mxu0 0.0
        %859 = vmatprep.subr.mxu0 0.0
        %860 = vmatpush1.msra.mxu0 0.0
        %861 = vmatprep.subr.mxu0 0.0
        %862 = vmatpush1.msra.mxu0 0.0
        %863 = vmatprep.subr.mxu0 0.0
        %864 = vmatpush1.msra.mxu0 0.0
        %865 = vmatprep.subr.mxu0 0.0
        %866 = vmatpush1.msra.mxu0 0.0
        %867 = vmatprep.subr.mxu0 0.0
        %868 = vmatpush1.msra.mxu0 0.0
        %869 = vmatprep.subr.mxu0 0.0
        %870 = vmatpush1.msra.mxu0 0.0
        %871 = vmatprep.subr.mxu0 0.0
        %872 = vmatpush1.msra.mxu0 0.0
        %873 = vmatprep.subr.mxu0 0.0
        %874 = vmatpush1.msra.mxu0 0.0
        %875 = vmatprep.subr.mxu0 0.0
        %876 = vmatpush1.msra.mxu0 0.0
        %877 = vmatprep.subr.mxu0 0.0
        %878 = vmatpush1.msra.mxu0 0.0
        %879 = vmatprep.subr.mxu0 0.0
        %880 = vmatpush1.msra.mxu0 0.0
        %881 = vmatprep.mubr.f32.mxu0 0.0
        %882 = vmatmul.mubr.f32.gmra.mrb[0].mxu0 %v496
        %v883 = vpop.f32.mrb[0].mxu0
        %v884 = vadd.f32 0.0, %v883
        %v885 = vpop.f32.mrb[0].mxu0
        %886 = vdwg.mxu0
        %v887 = vadd.f32 %v706, %v884
        %s888 = sadd.s32 %s243, 4
        %s889 = smul.u32 %s888, 2
        %s890 = smul.addr %s889, 8
        %s891 = scalar_lea.vmem %s219, %s890
        %v892 = vld [vmem:[%s891] sm:$0xff]
        %v893 = vld [vmem:[%s891 + $0x8] sm:$0xff]
        %896 = vrot.lane.b32.xlu0 %v892, 127
        %v897 = vpop.permute.xlu0 %896
        %898 = vrot.lane.b32.xlu0 %v893, 127
        %v899 = vpop.permute.xlu0 %898
        %v900 = vsel %vm255, %v897, %v899
        %902 = vrot.lane.b32.xlu0 %v892, 126
        %v903 = vpop.permute.xlu0 %902
        %904 = vrot.lane.b32.xlu0 %v893, 126
        %v905 = vpop.permute.xlu0 %904
        %v906 = vsel %vm262, %v903, %v905
        %908 = vrot.lane.b32.xlu0 %v892, 125
        %v909 = vpop.permute.xlu0 %908
        %910 = vrot.lane.b32.xlu0 %v893, 125
        %v911 = vpop.permute.xlu0 %910
        %v912 = vsel %vm269, %v909, %v911
        %914 = vrot.lane.b32.xlu0 %v892, 124
        %v915 = vpop.permute.xlu0 %914
        %916 = vrot.lane.b32.xlu0 %v893, 124
        %v917 = vpop.permute.xlu0 %916
        %v918 = vsel %vm276, %v915, %v917
        %s920 = scalar_lea.vmem %s1, 32
        %v921 = vld [vmem:[%s920] sm:$0xff]
        %v923 = vsel %vm314, %v921, 0
        %925 = vmatprep.subr.mxu0 0.0
        %926 = vmatpush1.msra.mxu0 %v892
        %927 = vmatprep.subr.mxu0 0.0
        %928 = vmatpush1.msra.mxu0 %v900
        %929 = vmatprep.subr.mxu0 0.0
        %930 = vmatpush1.msra.mxu0 %v906
        %931 = vmatprep.subr.mxu0 0.0
        %932 = vmatpush1.msra.mxu0 %v912
        %933 = vmatprep.subr.mxu0 0.0
        %934 = vmatpush1.msra.mxu0 %v918
        %935 = vmatprep.subr.mxu0 0.0
        %936 = vmatpush1.msra.mxu0 0.0
        %937 = vmatprep.subr.mxu0 0.0
        %938 = vmatpush1.msra.mxu0 0.0
        %939 = vmatprep.subr.mxu0 0.0
        %940 = vmatpush1.msra.mxu0 0.0
        %941 = vmatprep.subr.mxu0 0.0
        %942 = vmatpush1.msra.mxu0 0.0
        %943 = vmatprep.subr.mxu0 0.0
        %944 = vmatpush1.msra.mxu0 0.0
        %945 = vmatprep.subr.mxu0 0.0
        %946 = vmatpush1.msra.mxu0 0.0
        %947 = vmatprep.subr.mxu0 0.0
        %948 = vmatpush1.msra.mxu0 0.0
        %949 = vmatprep.subr.mxu0 0.0
        %950 = vmatpush1.msra.mxu0 0.0
        %951 = vmatprep.subr.mxu0 0.0
        %952 = vmatpush1.msra.mxu0 0.0
        %953 = vmatprep.subr.mxu0 0.0
        %954 = vmatpush1.msra.mxu0 0.0
        %955 = vmatprep.subr.mxu0 0.0
        %956 = vmatpush1.msra.mxu0 0.0
        %957 = vmatprep.subr.mxu0 0.0
        %958 = vmatpush1.msra.mxu0 0.0
        %959 = vmatprep.subr.mxu0 0.0
        %960 = vmatpush1.msra.mxu0 0.0
        %961 = vmatprep.subr.mxu0 0.0
        %962 = vmatpush1.msra.mxu0 0.0
        %963 = vmatprep.subr.mxu0 0.0
        %964 = vmatpush1.msra.mxu0 0.0
        %965 = vmatprep.subr.mxu0 0.0
        %966 = vmatpush1.msra.mxu0 0.0
        %967 = vmatprep.subr.mxu0 0.0
        %968 = vmatpush1.msra.mxu0 0.0
        %969 = vmatprep.subr.mxu0 0.0
        %970 = vmatpush1.msra.mxu0 0.0
        %971 = vmatprep.subr.mxu0 0.0
        %972 = vmatpush1.msra.mxu0 0.0
        %973 = vmatprep.subr.mxu0 0.0
        %974 = vmatpush1.msra.mxu0 0.0
        %975 = vmatprep.subr.mxu0 0.0
        %976 = vmatpush1.msra.mxu0 0.0
        %977 = vmatprep.subr.mxu0 0.0
        %978 = vmatpush1.msra.mxu0 0.0
        %979 = vmatprep.subr.mxu0 0.0
        %980 = vmatpush1.msra.mxu0 0.0
        %981 = vmatprep.subr.mxu0 0.0
        %982 = vmatpush1.msra.mxu0 0.0
        %983 = vmatprep.subr.mxu0 0.0
        %984 = vmatpush1.msra.mxu0 0.0
        %985 = vmatprep.subr.mxu0 0.0
        %986 = vmatpush1.msra.mxu0 0.0
        %987 = vmatprep.subr.mxu0 0.0
        %988 = vmatpush1.msra.mxu0 0.0
        %989 = vmatprep.mubr.f32.mxu0 0.0
        %990 = vmatmul.mubr.f32.gmra.mrb[0].mxu0 %v923
        %v991 = vpop.f32.mrb[0].mxu0
        %v992 = vadd.f32 0.0, %v991
        %v993 = vpop.f32.mrb[0].mxu0
        %994 = vdwg.mxu0
        %v995 = vadd.f32 %v816, %v992
        %996 = vmatprep.subr.mxu0 0.0
        %997 = vmatpush1.msra.mxu0 %v892
        %998 = vmatprep.subr.mxu0 0.0
        %999 = vmatpush1.msra.mxu0 %v900
        %1000 = vmatprep.subr.mxu0 0.0
        %1001 = vmatpush1.msra.mxu0 %v906
        %1002 = vmatprep.subr.mxu0 0.0
        %1003 = vmatpush1.msra.mxu0 %v912
        %1004 = vmatprep.subr.mxu0 0.0
        %1005 = vmatpush1.msra.mxu0 %v918
        %1006 = vmatprep.subr.mxu0 0.0
        %1007 = vmatpush1.msra.mxu0 0.0
        %1008 = vmatprep.subr.mxu0 0.0
        %1009 = vmatpush1.msra.mxu0 0.0
        %1010 = vmatprep.subr.mxu0 0.0
        %1011 = vmatpush1.msra.mxu0 0.0
        %1012 = vmatprep.subr.mxu0 0.0
        %1013 = vmatpush1.msra.mxu0 0.0
        %1014 = vmatprep.subr.mxu0 0.0
        %1015 = vmatpush1.msra.mxu0 0.0
        %1016 = vmatprep.subr.mxu0 0.0
        %1017 = vmatpush1.msra.mxu0 0.0
        %1018 = vmatprep.subr.mxu0 0.0
        %1019 = vmatpush1.msra.mxu0 0.0
        %1020 = vmatprep.subr.mxu0 0.0
        %1021 = vmatpush1.msra.mxu0 0.0
        %1022 = vmatprep.subr.mxu0 0.0
        %1023 = vmatpush1.msra.mxu0 0.0
        %1024 = vmatprep.subr.mxu0 0.0
        %1025 = vmatpush1.msra.mxu0 0.0
        %1026 = vmatprep.subr.mxu0 0.0
        %1027 = vmatpush1.msra.mxu0 0.0
        %1028 = vmatprep.subr.mxu0 0.0
        %1029 = vmatpush1.msra.mxu0 0.0
        %1030 = vmatprep.subr.mxu0 0.0
        %1031 = vmatpush1.msra.mxu0 0.0
        %1032 = vmatprep.subr.mxu0 0.0
        %1033 = vmatpush1.msra.mxu0 0.0
        %1034 = vmatprep.subr.mxu0 0.0
        %1035 = vmatpush1.msra.mxu0 0.0
        %1036 = vmatprep.subr.mxu0 0.0
        %1037 = vmatpush1.msra.mxu0 0.0
        %1038 = vmatprep.subr.mxu0 0.0
        %1039 = vmatpush1.msra.mxu0 0.0
        %1040 = vmatprep.subr.mxu0 0.0
        %1041 = vmatpush1.msra.mxu0 0.0
        %1042 = vmatprep.subr.mxu0 0.0
        %1043 = vmatpush1.msra.mxu0 0.0
        %1044 = vmatprep.subr.mxu0 0.0
        %1045 = vmatpush1.msra.mxu0 0.0
        %1046 = vmatprep.subr.mxu0 0.0
        %1047 = vmatpush1.msra.mxu0 0.0
        %1048 = vmatprep.subr.mxu0 0.0
        %1049 = vmatpush1.msra.mxu0 0.0
        %1050 = vmatprep.subr.mxu0 0.0
        %1051 = vmatpush1.msra.mxu0 0.0
        %1052 = vmatprep.subr.mxu0 0.0
        %1053 = vmatpush1.msra.mxu0 0.0
        %1054 = vmatprep.subr.mxu0 0.0
        %1055 = vmatpush1.msra.mxu0 0.0
        %1056 = vmatprep.subr.mxu0 0.0
        %1057 = vmatpush1.msra.mxu0 0.0
        %1058 = vmatprep.subr.mxu0 0.0
        %1059 = vmatpush1.msra.mxu0 0.0
        %1060 = vmatprep.mubr.f32.mxu0 0.0
        %1061 = vmatmul.mubr.f32.gmra.mrb[0].mxu0 %v744
        %v1062 = vpop.f32.mrb[0].mxu0
        %v1063 = vadd.f32 0.0, %v1062
        %v1064 = vpop.f32.mrb[0].mxu0
        %1065 = vdwg.mxu0
        %v1066 = vadd.f32 %v887, %v1063
        %s1067 = sadd.s32 %s243, 5
        %s1068 = smul.u32 %s1067, 2
        %s1069 = smul.addr %s1068, 8
        %s1070 = scalar_lea.vmem %s219, %s1069
        %v1071 = vld [vmem:[%s1070] sm:$0xff]
        %v1072 = vld [vmem:[%s1070 + $0x8] sm:$0xff]
        %1075 = vrot.lane.b32.xlu0 %v1071, 127
        %v1076 = vpop.permute.xlu0 %1075
        %1077 = vrot.lane.b32.xlu0 %v1072, 127
        %v1078 = vpop.permute.xlu0 %1077
        %v1079 = vsel %vm255, %v1076, %v1078
        %1081 = vrot.lane.b32.xlu0 %v1071, 126
        %v1082 = vpop.permute.xlu0 %1081
        %1083 = vrot.lane.b32.xlu0 %v1072, 126
        %v1084 = vpop.permute.xlu0 %1083
        %v1085 = vsel %vm262, %v1082, %v1084
        %1087 = vrot.lane.b32.xlu0 %v1071, 125
        %v1088 = vpop.permute.xlu0 %1087
        %1089 = vrot.lane.b32.xlu0 %v1072, 125
        %v1090 = vpop.permute.xlu0 %1089
        %v1091 = vsel %vm269, %v1088, %v1090
        %1093 = vrot.lane.b32.xlu0 %v1071, 124
        %v1094 = vpop.permute.xlu0 %1093
        %1095 = vrot.lane.b32.xlu0 %v1072, 124
        %v1096 = vpop.permute.xlu0 %1095
        %v1097 = vsel %vm276, %v1094, %v1096
        %1099 = vmatprep.subr.mxu0 0.0
        %1100 = vmatpush1.msra.mxu0 %v1071
        %1101 = vmatprep.subr.mxu0 0.0
        %1102 = vmatpush1.msra.mxu0 %v1079
        %1103 = vmatprep.subr.mxu0 0.0
        %1104 = vmatpush1.msra.mxu0 %v1085
        %1105 = vmatprep.subr.mxu0 0.0
        %1106 = vmatpush1.msra.mxu0 %v1091
        %1107 = vmatprep.subr.mxu0 0.0
        %1108 = vmatpush1.msra.mxu0 %v1097
        %1109 = vmatprep.subr.mxu0 0.0
        %1110 = vmatpush1.msra.mxu0 0.0
        %1111 = vmatprep.subr.mxu0 0.0
        %1112 = vmatpush1.msra.mxu0 0.0
        %1113 = vmatprep.subr.mxu0 0.0
        %1114 = vmatpush1.msra.mxu0 0.0
        %1115 = vmatprep.subr.mxu0 0.0
        %1116 = vmatpush1.msra.mxu0 0.0
        %1117 = vmatprep.subr.mxu0 0.0
        %1118 = vmatpush1.msra.mxu0 0.0
        %1119 = vmatprep.subr.mxu0 0.0
        %1120 = vmatpush1.msra.mxu0 0.0
        %1121 = vmatprep.subr.mxu0 0.0
        %1122 = vmatpush1.msra.mxu0 0.0
        %1123 = vmatprep.subr.mxu0 0.0
        %1124 = vmatpush1.msra.mxu0 0.0
        %1125 = vmatprep.subr.mxu0 0.0
        %1126 = vmatpush1.msra.mxu0 0.0
        %1127 = vmatprep.subr.mxu0 0.0
        %1128 = vmatpush1.msra.mxu0 0.0
        %1129 = vmatprep.subr.mxu0 0.0
        %1130 = vmatpush1.msra.mxu0 0.0
        %1131 = vmatprep.subr.mxu0 0.0
        %1132 = vmatpush1.msra.mxu0 0.0
        %1133 = vmatprep.subr.mxu0 0.0
        %1134 = vmatpush1.msra.mxu0 0.0
        %1135 = vmatprep.subr.mxu0 0.0
        %1136 = vmatpush1.msra.mxu0 0.0
        %1137 = vmatprep.subr.mxu0 0.0
        %1138 = vmatpush1.msra.mxu0 0.0
        %1139 = vmatprep.subr.mxu0 0.0
        %1140 = vmatpush1.msra.mxu0 0.0
        %1141 = vmatprep.subr.mxu0 0.0
        %1142 = vmatpush1.msra.mxu0 0.0
        %1143 = vmatprep.subr.mxu0 0.0
        %1144 = vmatpush1.msra.mxu0 0.0
        %1145 = vmatprep.subr.mxu0 0.0
        %1146 = vmatpush1.msra.mxu0 0.0
        %1147 = vmatprep.subr.mxu0 0.0
        %1148 = vmatpush1.msra.mxu0 0.0
        %1149 = vmatprep.subr.mxu0 0.0
        %1150 = vmatpush1.msra.mxu0 0.0
        %1151 = vmatprep.subr.mxu0 0.0
        %1152 = vmatpush1.msra.mxu0 0.0
        %1153 = vmatprep.subr.mxu0 0.0
        %1154 = vmatpush1.msra.mxu0 0.0
        %1155 = vmatprep.subr.mxu0 0.0
        %1156 = vmatpush1.msra.mxu0 0.0
        %1157 = vmatprep.subr.mxu0 0.0
        %1158 = vmatpush1.msra.mxu0 0.0
        %1159 = vmatprep.subr.mxu0 0.0
        %1160 = vmatpush1.msra.mxu0 0.0
        %1161 = vmatprep.subr.mxu0 0.0
        %1162 = vmatpush1.msra.mxu0 0.0
        %1163 = vmatprep.mubr.f32.mxu0 0.0
        %1164 = vmatmul.mubr.f32.gmra.mrb[0].mxu0 %v923
        %v1165 = vpop.f32.mrb[0].mxu0
        %v1166 = vadd.f32 0.0, %v1165
        %v1167 = vpop.f32.mrb[0].mxu0
        %1168 = vdwg.mxu0
        %v1169 = vadd.f32 %v1066, %v1166
        %v1170 = vmax.f32 %v995, 0.0
        %v1171 = vmul.f32 %v1170, %v229
        %v1172 = vadd.f32 %v1171, %v235
        %v1173 = vmax.f32 %v1169, 0.0
        %v1174 = vmul.f32 %v1173, %v229
        %v1175 = vadd.f32 %v1174, %v235
        %v1176 = vmax.f32 %v1172, %v1175
        %v1177 = vld [vmem:[%s4] sm:$0xff]
        %v1178 = vld [vmem:[%s4 + $0x8] sm:$0xff]
        %v1179 = vld [vmem:[%s4 + $0x10] sm:$0xff]
        %v1180 = vld [vmem:[%s4 + $0x18] sm:$0xff]
        %v1181 = vld [vmem:[%s4 + $0x20] sm:$0xff]
        %v1182 = vld [vmem:[%s4 + $0x28] sm:$0xff]
        %v1183 = vld [vmem:[%s4 + $0x30] sm:$0xff]
        %v1184 = vld [vmem:[%s4 + $0x38] sm:$0xff]
        %v1185 = vld [vmem:[%s4 + $0x40] sm:$0xff]
        %v1186 = vld [vmem:[%s4 + $0x48] sm:$0xff]
        %v1187 = vld [vmem:[%s4 + $0x50] sm:$0xff]
        %v1188 = vld [vmem:[%s4 + $0x58] sm:$0xff]
        %v1189 = vld [vmem:[%s4 + $0x60] sm:$0xff]
        %v1190 = vld [vmem:[%s4 + $0x68] sm:$0xff]
        %v1191 = vld [vmem:[%s4 + $0x70] sm:$0xff]
        %v1192 = vld [vmem:[%s4 + $0x78] sm:$0xff]
        %1193 = vmatprep.subr.mxu0 0.0
        %1194 = vmatpush1.msra.mxu0 %v1177
        %1195 = vmatprep.subr.mxu0 0.0
        %1196 = vmatpush1.msra.mxu0 %v1178
        %1197 = vmatprep.subr.mxu0 0.0
        %1198 = vmatpush1.msra.mxu0 %v1179
        %1199 = vmatprep.subr.mxu0 0.0
        %1200 = vmatpush1.msra.mxu0 %v1180
        %1201 = vmatprep.subr.mxu0 0.0
        %1202 = vmatpush1.msra.mxu0 %v1181
        %1203 = vmatprep.subr.mxu0 0.0
        %1204 = vmatpush1.msra.mxu0 %v1182
        %1205 = vmatprep.subr.mxu0 0.0
        %1206 = vmatpush1.msra.mxu0 %v1183
        %1207 = vmatprep.subr.mxu0 0.0
        %1208 = vmatpush1.msra.mxu0 %v1184
        %1209 = vmatprep.subr.mxu0 0.0
        %1210 = vmatpush1.msra.mxu0 %v1185
        %1211 = vmatprep.subr.mxu0 0.0
        %1212 = vmatpush1.msra.mxu0 %v1186
        %1213 = vmatprep.subr.mxu0 0.0
        %1214 = vmatpush1.msra.mxu0 %v1187
        %1215 = vmatprep.subr.mxu0 0.0
        %1216 = vmatpush1.msra.mxu0 %v1188
        %1217 = vmatprep.subr.mxu0 0.0
        %1218 = vmatpush1.msra.mxu0 %v1189
        %1219 = vmatprep.subr.mxu0 0.0
        %1220 = vmatpush1.msra.mxu0 %v1190
        %1221 = vmatprep.subr.mxu0 0.0
        %1222 = vmatpush1.msra.mxu0 %v1191
        %1223 = vmatprep.subr.mxu0 0.0
        %1224 = vmatpush1.msra.mxu0 %v1192
        %1225 = vmatprep.subr.mxu0 0.0
        %1226 = vmatpush1.msra.mxu0 0.0
        %1227 = vmatprep.subr.mxu0 0.0
        %1228 = vmatpush1.msra.mxu0 0.0
        %1229 = vmatprep.subr.mxu0 0.0
        %1230 = vmatpush1.msra.mxu0 0.0
        %1231 = vmatprep.subr.mxu0 0.0
        %1232 = vmatpush1.msra.mxu0 0.0
        %1233 = vmatprep.subr.mxu0 0.0
        %1234 = vmatpush1.msra.mxu0 0.0
        %1235 = vmatprep.subr.mxu0 0.0
        %1236 = vmatpush1.msra.mxu0 0.0
        %1237 = vmatprep.subr.mxu0 0.0
        %1238 = vmatpush1.msra.mxu0 0.0
        %1239 = vmatprep.subr.mxu0 0.0
        %1240 = vmatpush1.msra.mxu0 0.0
        %1241 = vmatprep.subr.mxu0 0.0
        %1242 = vmatpush1.msra.mxu0 0.0
        %1243 = vmatprep.subr.mxu0 0.0
        %1244 = vmatpush1.msra.mxu0 0.0
        %1245 = vmatprep.subr.mxu0 0.0
        %1246 = vmatpush1.msra.mxu0 0.0
        %1247 = vmatprep.subr.mxu0 0.0
        %1248 = vmatpush1.msra.mxu0 0.0
        %1249 = vmatprep.subr.mxu0 0.0
        %1250 = vmatpush1.msra.mxu0 0.0
        %1251 = vmatprep.subr.mxu0 0.0
        %1252 = vmatpush1.msra.mxu0 0.0
        %1253 = vmatprep.subr.mxu0 0.0
        %1254 = vmatpush1.msra.mxu0 0.0
        %1255 = vmatprep.subr.mxu0 0.0
        %1256 = vmatpush1.msra.mxu0 0.0
        %1257 = vmatprep.mubr.f32.mxu0 0.0
        %1258 = vmatmul.mubr.f32.gmra.mrb[0].mxu0 %v1176
        %v1259 = vpop.f32.mrb[0].mxu0
        %v1260 = vadd.f32 0.0, %v1259
        %v1261 = vpop.f32.mrb[0].mxu0
        %1262 = vdwg.mxu0
        %1264 = vrot.lane.b32.xlu0 %v1260, 64
        %v1265 = vpop.permute.xlu0 %1264
        %v1267 = vmax.f32 %v1260, %v1265
        %s1268 = smul.u32 %s238, 8
        %s1269 = scalar_lea.vmem %s224, %s1268
        %vm1270 = vcmask 523264
        %1271 = vst.msk [vmem:[%s1269] sm:$0xff] %vm1270, %v1267
      $region45: #{meso4_forward.6} parent=39 // loop_footer
        %s242 = sadd.s32 1, %s238
      $region46: #{meso4_forward.6} parent=39 // loop_footer_branch
        %237 = sbr.rel target = $region42
      $region47: #{meso4_forward.6} parent=39 // loop_exit
        _
      %p1272 = scmp.lt.s32.totalorder %s16, 1
      %s1273 = scalar_select %p1272, %s16, 1
      %s1274 = smul.addr %s1273, 64
      %s1275 = smul.addr %s1274, 8
      %s1276 = scalar_lea.vmem %s5, %s1275
      // Predicated region
      $region48: #{meso4_forward.6} parent=39 // pred_check
        %p1277 = pneg %p144
      $region49: #{meso4_forward.6} parent=39 // pred_check_branch
        %1279 = sbr.rel (%p1277) target = $region51
      $region50: #{meso4_forward.6} parent=39 // pred_region
        _
      $region51: #{meso4_forward.6} parent=39 // pred_fallthru
        _
    $region40: #{meso4_forward.6} parent=5 // pred_fallthru
      _
    %p1280 = scmp.le.s32.totalorder 2, %s11
    // Predicated region
    $region52: #{meso4_forward.6} parent=5 // pred_check
      %p1281 = pneg %p1280
    $region53: #{meso4_forward.6} parent=5 // pred_check_branch
      %1283 = sbr.rel (%p1281) target = $region55
    $region54: #{meso4_forward.6} parent=5 // pred_region
      %s1284 = ssub.s32 %s11, 2
      // Predicated region
      $region56: #{meso4_forward.6} parent=54 // pred_check
        %p1285 = pneg %p150
      $region57: #{meso4_forward.6} parent=54 // pred_check_branch
        %1287 = sbr.rel (%p1285) target = $region59
      $region58: #{meso4_forward.6} parent=54 // pred_region
        %p1288 = scmp.lt.s32.totalorder %s17, 1
        %s1289 = scalar_select %p1288, %s17, 1
        %s1290 = smul.addr %s1289, 64
        %s1291 = smul.addr %s1290, 8
        %s1292 = scalar_lea.vmem %s5, %s1291
      $region59: #{meso4_forward.6} parent=54 // pred_fallthru
        _
    $region55: #{meso4_forward.6} parent=5 // pred_fallthru
      _
  $region6: #{meso4_forward.6} parent=0 // loop_footer
    %s15 = sadd.s32 1, %s11
  $region7: #{meso4_forward.6} parent=0 // loop_footer_branch
    %10 = sbr.rel target = $region3
  $region8: #{meso4_forward.6} parent=0 // loop_exit
    _

// kernel: meso4_forward.7
$region0: #{meso4_forward.7}
  #allocation0 [shape = 'u32[]', space=smem, size = 0x4, offset = 0x4, fixed_abs, tag = 'smem constant byte address 0x4 - core index']
  #allocation1 [shape = 'u32[144,128]{1,0:T(1,128)}', space=vmem, size = 0x12000, scoped, tag = 'internal scratch']
  %s0 = inlined_call_operand.vmem [shape: f32[2,68,8,68], index: 0, kind: input, shape index: {}]
  %s1 = inlined_call_operand.vmem [shape: f32[5,16,40], index: 1, kind: input, shape index: {}]
  %s2 = inlined_call_operand.vmem [shape: f32[16,1], index: 2, kind: input, shape index: {}]
  %s3 = inlined_call_operand.vmem [shape: f32[16,1], index: 3, kind: input, shape index: {}]
  %s4 = inlined_call_operand.vmem [shape: f32[64,64], index: 4, kind: input, shape index: {}]
  %s5 = inlined_call_operand.vmem [shape: f32[2,32,16,32], index: 5, kind: output, shape index: {}]
  %s6 = sld [smem:[#allocation0]]
  $region60: #{meso4_forward.7} parent=0
    _
  %s8 = ssub.s32 1, %s6
  %s9 = scalar_select 0, %s8, %s6
  loop: start=0, step=1, limit=4
  $region2: #{meso4_forward.7} parent=0 // loop_pre_header
    _
  $region3: #{meso4_forward.7} parent=0 // loop_header
    %s11 = sphi 0, %s15
    %p12 = scmp.ge.s32.totalorder %s11, 4
    %s21 = sphi 0, %s23
    %s24 = sphi 0, %s21
    %s25 = sphi 0, %s24
    %s41 = sphi 0, %s25
    %s45 = sphi 0, %s45
    %s47 = sphi 0, %s45
    %s48 = sphi 0, %s47
    %s62 = sphi 0, %s48
    %s66 = sphi 0, %s66
    %s68 = sphi 0, %s66
    %s69 = sphi 0, %s68
    %s83 = sphi 0, %s69
    %s87 = sphi 0, %s87
    %s89 = sphi 0, %s87
    %s90 = sphi 0, %s89
    %s104 = sphi 0, %s90
    %s108 = sphi 0, %s108
    %s110 = sphi 0, %s108
    %s111 = sphi 0, %s110
    %s125 = sphi 0, %s111
    %s131 = sphi 0, %s133
    %s134 = sphi 0, %s131
    %s135 = sphi 0, %s134
    %s151 = sphi 0, %s135
  $region4: #{meso4_forward.7} parent=0 // loop_header_branch
    %14 = sbr.rel (%p12) target = $region8
  $region5: #{meso4_forward.7} parent=0 // loop_body
    %s16 = ssub.s32 %s11, 1
    %s17 = ssub.s32 %s11, 2
    %s18 = sadd.s32 %s11, 1
    %s19 = ssub.s32 %s11, %s18
    %p20 = scmp.eq.s32.totalorder %s19, 0
    %s22 = sadd.s32 %s21, 1
    %s23 = scalar_select %p20, %s21, %s22
    %p26 = pneg %p20
    %p27 = scmp.eq.s32.totalorder %s11, 1
    %p28 = por %p26, %p27
    %p29 = scmp.ne.s32.totalorder %s21, %s24
    %p30 = scmp.eq.s32.totalorder %s11, 0
    %p31 = por %p29, %p30
    %p32 = scmp.ne.s32.totalorder %s21, %s24
    %p33 = scmp.eq.s32.totalorder %s16, 1
    %p34 = por %p32, %p33
    %p35 = scmp.ne.s32.totalorder %s24, %s25
    %p36 = scmp.eq.s32.totalorder %s16, 0
    %p37 = por %p35, %p36
    %p38 = scmp.ne.s32.totalorder %s24, %s25
    %p39 = scmp.eq.s32.totalorder %s17, 1
    %p40 = por %p38, %p39
    %p42 = scmp.ne.s32.totalorder %s25, %s41
    %p43 = scmp.eq.s32.totalorder %s17, 0
    %p44 = por %p42, %p43
    %s46 = sadd.s32 %s45, 1
    %p49 = scmp.eq.s32.totalorder %s11, 1
    %p50 = scmp.ne.s32.totalorder %s45, %s47
    %p51 = scmp.eq.s32.totalorder %s11, 0
    %p52 = por %p50, %p51
    %p53 = scmp.ne.s32.totalorder %s45, %s47
    %p54 = scmp.eq.s32.totalorder %s16, 1
    %p55 = por %p53, %p54
    %p56 = scmp.ne.s32.totalorder %s47, %s48
    %p57 = scmp.eq.s32.totalorder %s16, 0
    %p58 = por %p56, %p57
    %p59 = scmp.ne.s32.totalorder %s47, %s48
    %p60 = scmp.eq.s32.totalorder %s17, 1
    %p61 = por %p59, %p60
    %p63 = scmp.ne.s32.totalorder %s48, %s62
    %p64 = scmp.eq.s32.totalorder %s17, 0
    %p65 = por %p63, %p64
    %s67 = sadd.s32 %s66, 1
    %p70 = scmp.eq.s32.totalorder %s11, 1
    %p71 = scmp.ne.s32.totalorder %s66, %s68
    %p72 = scmp.eq.s32.totalorder %s11, 0
    %p73 = por %p71, %p72
    %p74 = scmp.ne.s32.totalorder %s66, %s68
    %p75 = scmp.eq.s32.totalorder %s16, 1
    %p76 = por %p74, %p75
    %p77 = scmp.ne.s32.totalorder %s68, %s69
    %p78 = scmp.eq.s32.totalorder %s16, 0
    %p79 = por %p77, %p78
    %p80 = scmp.ne.s32.totalorder %s68, %s69
    %p81 = scmp.eq.s32.totalorder %s17, 1
    %p82 = por %p80, %p81
    %p84 = scmp.ne.s32.totalorder %s69, %s83
    %p85 = scmp.eq.s32.totalorder %s17, 0
    %p86 = por %p84, %p85
    %s88 = sadd.s32 %s87, 1
    %p91 = scmp.eq.s32.totalorder %s11, 1
    %p92 = scmp.ne.s32.totalorder %s87, %s89
    %p93 = scmp.eq.s32.totalorder %s11, 0
    %p94 = por %p92, %p93
    %p95 = scmp.ne.s32.totalorder %s87, %s89
    %p96 = scmp.eq.s32.totalorder %s16, 1
    %p97 = por %p95, %p96
    %p98 = scmp.ne.s32.totalorder %s89, %s90
    %p99 = scmp.eq.s32.totalorder %s16, 0
    %p100 = por %p98, %p99
    %p101 = scmp.ne.s32.totalorder %s89, %s90
    %p102 = scmp.eq.s32.totalorder %s17, 1
    %p103 = por %p101, %p102
    %p105 = scmp.ne.s32.totalorder %s90, %s104
    %p106 = scmp.eq.s32.totalorder %s17, 0
    %p107 = por %p105, %p106
    %s109 = sadd.s32 %s108, 1
    %p112 = scmp.eq.s32.totalorder %s11, 1
    %p113 = scmp.ne.s32.totalorder %s108, %s110
    %p114 = scmp.eq.s32.totalorder %s11, 0
    %p115 = por %p113, %p114
    %p116 = scmp.ne.s32.totalorder %s108, %s110
    %p117 = scmp.eq.s32.totalorder %s16, 1
    %p118 = por %p116, %p117
    %p119 = scmp.ne.s32.totalorder %s110, %s111
    %p120 = scmp.eq.s32.totalorder %s16, 0
    %p121 = por %p119, %p120
    %p122 = scmp.ne.s32.totalorder %s110, %s111
    %p123 = scmp.eq.s32.totalorder %s17, 1
    %p124 = por %p122, %p123
    %p126 = scmp.ne.s32.totalorder %s111, %s125
    %p127 = scmp.eq.s32.totalorder %s17, 0
    %p128 = por %p126, %p127
    %s129 = ssub.s32 %s11, %s18
    %p130 = scmp.eq.s32.totalorder %s129, 0
    %s132 = sadd.s32 %s131, 1
    %s133 = scalar_select %p130, %s131, %s132
    %p136 = pneg %p130
    %p137 = scmp.eq.s32.totalorder %s11, 1
    %p138 = por %p136, %p137
    %p139 = scmp.ne.s32.totalorder %s131, %s134
    %p140 = scmp.eq.s32.totalorder %s11, 0
    %p141 = por %p139, %p140
    %p142 = scmp.ne.s32.totalorder %s131, %s134
    %p143 = scmp.eq.s32.totalorder %s16, 1
    %p144 = por %p142, %p143
    %p145 = scmp.ne.s32.totalorder %s134, %s135
    %p146 = scmp.eq.s32.totalorder %s16, 0
    %p147 = por %p145, %p146
    %p148 = scmp.ne.s32.totalorder %s134, %s135
    %p149 = scmp.eq.s32.totalorder %s17, 1
    %p150 = por %p148, %p149
    %p152 = scmp.ne.s32.totalorder %s135, %s151
    %p153 = scmp.eq.s32.totalorder %s17, 0
    %p154 = por %p152, %p153
    %p155 = scmp.le.s32.totalorder 1, %s11
    %p156 = scmp.lt.s32.totalorder %s11, 3
    %p157 = pnand %p155, %p156
    %p158 = pneg %p157
    // Predicated region
    $region9: #{meso4_forward.7} parent=5 // pred_check
      _
    $region10: #{meso4_forward.7} parent=5 // pred_check_branch
      %160 = sbr.rel (%p157) target = $region12
    $region11: #{meso4_forward.7} parent=5 // pred_region
      %s161 = ssub.s32 %s11, 1
      // Predicated region
      $region13: #{meso4_forward.7} parent=11 // pred_check
        %p162 = pneg %p58
      $region14: #{meso4_forward.7} parent=11 // pred_check_branch
        %164 = sbr.rel (%p162) target = $region16
      $region15: #{meso4_forward.7} parent=11 // pred_region
        _
      $region16: #{meso4_forward.7} parent=11 // pred_fallthru
        _
      // Predicated region
      $region17: #{meso4_forward.7} parent=11 // pred_check
        %p165 = pneg %p79
      $region18: #{meso4_forward.7} parent=11 // pred_check_branch
        %167 = sbr.rel (%p165) target = $region20
      $region19: #{meso4_forward.7} parent=11 // pred_region
        _
      $region20: #{meso4_forward.7} parent=11 // pred_fallthru
        _
      // Predicated region
      $region21: #{meso4_forward.7} parent=11 // pred_check
        %p168 = pneg %p100
      $region22: #{meso4_forward.7} parent=11 // pred_check_branch
        %170 = sbr.rel (%p168) target = $region24
      $region23: #{meso4_forward.7} parent=11 // pred_region
        _
      $region24: #{meso4_forward.7} parent=11 // pred_fallthru
        _
      // Predicated region
      $region25: #{meso4_forward.7} parent=11 // pred_check
        %p171 = pneg %p121
      $region26: #{meso4_forward.7} parent=11 // pred_check_branch
        %173 = sbr.rel (%p171) target = $region28
      $region27: #{meso4_forward.7} parent=11 // pred_region
        _
      $region28: #{meso4_forward.7} parent=11 // pred_fallthru
        _
    $region12: #{meso4_forward.7} parent=5 // pred_fallthru
      _
    %p174 = scmp.lt.s32.totalorder %s11, 2
    // Predicated region
    $region29: #{meso4_forward.7} parent=5 // pred_check
      %p175 = pneg %p174
    $region30: #{meso4_forward.7} parent=5 // pred_check_branch
      %177 = sbr.rel (%p175) target = $region32
    $region31: #{meso4_forward.7} parent=5 // pred_region
      // Predicated region
      $region33: #{meso4_forward.7} parent=31 // pred_check
        %p178 = pneg %p31
      $region34: #{meso4_forward.7} parent=31 // pred_check_branch
        %180 = sbr.rel (%p178) target = $region36
      $region35: #{meso4_forward.7} parent=31 // pred_region
        %p181 = scmp.lt.s32.totalorder %s11, 1
        %s182 = scalar_select %p181, %s11, 1
        %s183 = smul.addr %s182, 68
        %s184 = smul.addr %s183, 8
        %s185 = scalar_lea.vmem %s0, %s184
      $region36: #{meso4_forward.7} parent=31 // pred_fallthru
        _
    $region32: #{meso4_forward.7} parent=5 // pred_fallthru
      _
    %p186 = scmp.le.s32.totalorder 1, %s11
    %p187 = scmp.lt.s32.totalorder %s11, 3
    %p188 = pnand %p186, %p187
    %p189 = pneg %p188
    // Predicated region
    $region37: #{meso4_forward.7} parent=5 // pred_check
      _
    $region38: #{meso4_forward.7} parent=5 // pred_check_branch
      %191 = sbr.rel (%p188) target = $region40
    $region39: #{meso4_forward.7} parent=5 // pred_region
      %s192 = ssub.s32 %s11, 1
      %p193 = scmp.lt.s32.totalorder %s16, 1
      %s194 = scalar_select %p193, %s16, 1
      %s195 = smul.addr %s194, 68
      %s196 = smul.addr %s195, 8
      %s197 = scalar_lea.vmem %s0, %s196
      %p198 = pneg %p37
      %p199 = pneg %p34
      %p200 = pneg %p58
      %p201 = pneg %p55
      %p202 = pneg %p79
      %p203 = pneg %p76
      %p204 = pneg %p100
      %p205 = pneg %p97
      %p206 = pneg %p121
      %p207 = pneg %p118
      %p208 = pneg %p147
      %p209 = pneg %p144
      %p210 = scmp.lt.s32.totalorder %s16, 1
      %s211 = scalar_select %p210, %s16, 1
      %s212 = smul.addr %s211, 64
      %s213 = smul.addr %s212, 8
      %s214 = scalar_lea.vmem %s5, %s213
      %p215 = scmp.lt.s32.totalorder %s16, 1
      %s216 = scalar_select %p215, %s16, 1
      %s217 = smul.addr %s216, 68
      %s218 = smul.addr %s217, 8
      %s219 = scalar_lea.vmem %s0, %s218
      %p220 = scmp.lt.s32.totalorder %s16, 1
      %s221 = scalar_select %p220, %s16, 1
      %s222 = smul.addr %s221, 64
      %s223 = smul.addr %s222, 8
      %s224 = scalar_lea.vmem %s5, %s223
      %v225 = vld [vmem:[%s2] sm:$0xff]
      %v226 = vld [vmem:[%s2 + $0x8] sm:$0xff]
      %228 = vset.pattern.permute.xlu0 0
      %229 = vperm.xlu0 %228, %v225
      %v230 = vpop.permute.xlu0 %229
      %233 = vset.pattern.permute.xlu0 0
      %234 = vperm.xlu0 %233, %v226
      %v235 = vpop.permute.xlu0 %234
      %v237 = vld [vmem:[%s3] sm:$0xff]
      %v238 = vld [vmem:[%s3 + $0x8] sm:$0xff]
      %240 = vset.pattern.permute.xlu0 0
      %241 = vperm.xlu0 %240, %v237
      %v242 = vpop.permute.xlu0 %241
      %245 = vset.pattern.permute.xlu0 0
      %246 = vperm.xlu0 %245, %v238
      %v247 = vpop.permute.xlu0 %246
      loop: start=0, step=1, limit=32
      $region41: #{meso4_forward.7} parent=39 // loop_pre_header
        _
      $region42: #{meso4_forward.7} parent=39 // loop_header
        %s250 = sphi 0, %s254
        %p251 = scmp.ge.s32.totalorder %s250, 32
      $region43: #{meso4_forward.7} parent=39 // loop_header_branch
        %253 = sbr.rel (%p251) target = $region47
      $region44: #{meso4_forward.7} parent=39 // loop_body
        %s255 = smul.u32 %s250, 2
        %s256 = smul.u32 %s255, 8
        %s257 = scalar_lea.vmem %s219, %s256
        %v258 = vld [vmem:[%s257] sm:$0xff]
        %260 = vrot.lane.b32.xlu0 %v258, 127
        %v261 = vpop.permute.xlu0 %260
        %263 = vrot.lane.b32.xlu0 %v258, 126
        %v264 = vpop.permute.xlu0 %263
        %266 = vrot.lane.b32.xlu0 %v258, 125
        %v267 = vpop.permute.xlu0 %266
        %269 = vrot.lane.b32.xlu0 %v258, 124
        %v270 = vpop.permute.xlu0 %269
        %v272 = vld [vmem:[%s1] sm:$0xff]
        %v273 = vld [vmem:[%s1 + $0x8] sm:$0xff]
        %s274 = sadd.s32 %s255, 1
        %s275 = smul.u32 %s274, 8
        %s276 = scalar_lea.vmem %s219, %s275
        %v277 = vld [vmem:[%s276] sm:$0xff]
        %279 = vrot.lane.b32.xlu0 %v277, 127
        %v280 = vpop.permute.xlu0 %279
        %282 = vrot.lane.b32.xlu0 %v277, 126
        %v283 = vpop.permute.xlu0 %282
        %285 = vrot.lane.b32.xlu0 %v277, 125
        %v286 = vpop.permute.xlu0 %285
        %288 = vrot.lane.b32.xlu0 %v277, 124
        %v289 = vpop.permute.xlu0 %288
        %s291 = scalar_lea.vmem %s1, 16
        %v292 = vld [vmem:[%s291] sm:$0xff]
        %v293 = vld [vmem:[%s291 + $0x8] sm:$0xff]
        %vm294 = vcmask 326656
        %v296 = vsel %vm294, %v292, 0
        %v299 = vsel %vm294, %v293, 0
        %301 = vmatprep.subr.mxu0 0.0
        %302 = vmatpush1.msra.mxu0 %v277
        %303 = vmatprep.subr.mxu0 0.0
        %304 = vmatpush1.msra.mxu0 %v280
        %305 = vmatprep.subr.mxu0 0.0
        %306 = vmatpush1.msra.mxu0 %v283
        %307 = vmatprep.subr.mxu0 0.0
        %308 = vmatpush1.msra.mxu0 %v286
        %309 = vmatprep.subr.mxu0 0.0
        %310 = vmatpush1.msra.mxu0 %v289
        %311 = vmatprep.subr.mxu0 0.0
        %312 = vmatpush1.msra.mxu0 0.0
        %313 = vmatprep.subr.mxu0 0.0
        %314 = vmatpush1.msra.mxu0 0.0
        %315 = vmatprep.subr.mxu0 0.0
        %316 = vmatpush1.msra.mxu0 0.0
        %317 = vmatprep.subr.mxu0 0.0
        %318 = vmatpush1.msra.mxu0 0.0
        %319 = vmatprep.subr.mxu0 0.0
        %320 = vmatpush1.msra.mxu0 0.0
        %321 = vmatprep.subr.mxu0 0.0
        %322 = vmatpush1.msra.mxu0 0.0
        %323 = vmatprep.subr.mxu0 0.0
        %324 = vmatpush1.msra.mxu0 0.0
        %325 = vmatprep.subr.mxu0 0.0
        %326 = vmatpush1.msra.mxu0 0.0
        %327 = vmatprep.subr.mxu0 0.0
        %328 = vmatpush1.msra.mxu0 0.0
        %329 = vmatprep.subr.mxu0 0.0
        %330 = vmatpush1.msra.mxu0 0.0
        %331 = vmatprep.subr.mxu0 0.0
        %332 = vmatpush1.msra.mxu0 0.0
        %333 = vmatprep.subr.mxu0 0.0
        %334 = vmatpush1.msra.mxu0 0.0
        %335 = vmatprep.subr.mxu0 0.0
        %336 = vmatpush1.msra.mxu0 0.0
        %337 = vmatprep.subr.mxu0 0.0
        %338 = vmatpush1.msra.mxu0 0.0
        %339 = vmatprep.subr.mxu0 0.0
        %340 = vmatpush1.msra.mxu0 0.0
        %341 = vmatprep.subr.mxu0 0.0
        %342 = vmatpush1.msra.mxu0 0.0
        %343 = vmatprep.subr.mxu0 0.0
        %344 = vmatpush1.msra.mxu0 0.0
        %345 = vmatprep.subr.mxu0 0.0
        %346 = vmatpush1.msra.mxu0 0.0
        %347 = vmatprep.subr.mxu0 0.0
        %348 = vmatpush1.msra.mxu0 0.0
        %349 = vmatprep.subr.mxu0 0.0
        %350 = vmatpush1.msra.mxu0 0.0
        %351 = vmatprep.subr.mxu0 0.0
        %352 = vmatpush1.msra.mxu0 0.0
        %353 = vmatprep.subr.mxu0 0.0
        %354 = vmatpush1.msra.mxu0 0.0
        %355 = vmatprep.subr.mxu0 0.0
        %356 = vmatpush1.msra.mxu0 0.0
        %357 = vmatprep.subr.mxu0 0.0
        %358 = vmatpush1.msra.mxu0 0.0
        %359 = vmatprep.subr.mxu0 0.0
        %360 = vmatpush1.msra.mxu0 0.0
        %361 = vmatprep.subr.mxu0 0.0
        %362 = vmatpush1.msra.mxu0 0.0
        %363 = vmatprep.subr.mxu0 0.0
        %364 = vmatpush1.msra.mxu0 0.0
        %365 = vmatprep.mubr.f32.mxu0 0.0
        %366 = vmatmul.mubr.f32.gmra.mrb[0].mxu0 %v296
        %v367 = vpop.f32.mrb[0].mxu0
        %v368 = vadd.f32 0.0, %v367
        %v369 = vpop.f32.mrb[0].mxu0
        %370 = vmatprep.mubr.f32.mxu0 0.0
        %371 = vmatmul.mubr.f32.gmra.mrb[0].mxu0 %v299
        %v372 = vpop.f32.mrb[0].mxu0
        %v373 = vadd.f32 0.0, %v372
        %v374 = vpop.f32.mrb[0].mxu0
        %375 = vdwg.mxu0
        %v377 = vsel %vm294, %v272, 0
        %v380 = vsel %vm294, %v273, 0
        %382 = vmatprep.subr.mxu0 0.0
        %383 = vmatpush1.msra.mxu0 %v258
        %384 = vmatprep.subr.mxu0 0.0
        %385 = vmatpush1.msra.mxu0 %v261
        %386 = vmatprep.subr.mxu0 0.0
        %387 = vmatpush1.msra.mxu0 %v264
        %388 = vmatprep.subr.mxu0 0.0
        %389 = vmatpush1.msra.mxu0 %v267
        %390 = vmatprep.subr.mxu0 0.0
        %391 = vmatpush1.msra.mxu0 %v270
        %392 = vmatprep.subr.mxu0 0.0
        %393 = vmatpush1.msra.mxu0 0.0
        %394 = vmatprep.subr.mxu0 0.0
        %395 = vmatpush1.msra.mxu0 0.0
        %396 = vmatprep.subr.mxu0 0.0
        %397 = vmatpush1.msra.mxu0 0.0
        %398 = vmatprep.subr.mxu0 0.0
        %399 = vmatpush1.msra.mxu0 0.0
        %400 = vmatprep.subr.mxu0 0.0
        %401 = vmatpush1.msra.mxu0 0.0
        %402 = vmatprep.subr.mxu0 0.0
        %403 = vmatpush1.msra.mxu0 0.0
        %404 = vmatprep.subr.mxu0 0.0
        %405 = vmatpush1.msra.mxu0 0.0
        %406 = vmatprep.subr.mxu0 0.0
        %407 = vmatpush1.msra.mxu0 0.0
        %408 = vmatprep.subr.mxu0 0.0
        %409 = vmatpush1.msra.mxu0 0.0
        %410 = vmatprep.subr.mxu0 0.0
        %411 = vmatpush1.msra.mxu0 0.0
        %412 = vmatprep.subr.mxu0 0.0
        %413 = vmatpush1.msra.mxu0 0.0
        %414 = vmatprep.subr.mxu0 0.0
        %415 = vmatpush1.msra.mxu0 0.0
        %416 = vmatprep.subr.mxu0 0.0
        %417 = vmatpush1.msra.mxu0 0.0
        %418 = vmatprep.subr.mxu0 0.0
        %419 = vmatpush1.msra.mxu0 0.0
        %420 = vmatprep.subr.mxu0 0.0
        %421 = vmatpush1.msra.mxu0 0.0
        %422 = vmatprep.subr.mxu0 0.0
        %423 = vmatpush1.msra.mxu0 0.0
        %424 = vmatprep.subr.mxu0 0.0
        %425 = vmatpush1.msra.mxu0 0.0
        %426 = vmatprep.subr.mxu0 0.0
        %427 = vmatpush1.msra.mxu0 0.0
        %428 = vmatprep.subr.mxu0 0.0
        %429 = vmatpush1.msra.mxu0 0.0
        %430 = vmatprep.subr.mxu0 0.0
        %431 = vmatpush1.msra.mxu0 0.0
        %432 = vmatprep.subr.mxu0 0.0
        %433 = vmatpush1.msra.mxu0 0.0
        %434 = vmatprep.subr.mxu0 0.0
        %435 = vmatpush1.msra.mxu0 0.0
        %436 = vmatprep.subr.mxu0 0.0
        %437 = vmatpush1.msra.mxu0 0.0
        %438 = vmatprep.subr.mxu0 0.0
        %439 = vmatpush1.msra.mxu0 0.0
        %440 = vmatprep.subr.mxu0 0.0
        %441 = vmatpush1.msra.mxu0 0.0
        %442 = vmatprep.subr.mxu0 0.0
        %443 = vmatpush1.msra.mxu0 0.0
        %444 = vmatprep.subr.mxu0 0.0
        %445 = vmatpush1.msra.mxu0 0.0
        %446 = vmatprep.mubr.f32.mxu0 0.0
        %447 = vmatmul.mubr.f32.gmra.mrb[0].mxu0 %v377
        %v448 = vpop.f32.mrb[0].mxu0
        %v449 = vadd.f32 %v368, %v448
        %v450 = vpop.f32.mrb[0].mxu0
        %451 = vmatprep.mubr.f32.mxu0 0.0
        %452 = vmatmul.mubr.f32.gmra.mrb[0].mxu0 %v380
        %v453 = vpop.f32.mrb[0].mxu0
        %v454 = vadd.f32 %v373, %v453
        %v455 = vpop.f32.mrb[0].mxu0
        %456 = vdwg.mxu0
        %s457 = sadd.s32 %s255, 2
        %s458 = smul.u32 %s457, 8
        %s459 = scalar_lea.vmem %s219, %s458
        %v460 = vld [vmem:[%s459] sm:$0xff]
        %462 = vrot.lane.b32.xlu0 %v460, 127
        %v463 = vpop.permute.xlu0 %462
        %465 = vrot.lane.b32.xlu0 %v460, 126
        %v466 = vpop.permute.xlu0 %465
        %468 = vrot.lane.b32.xlu0 %v460, 125
        %v469 = vpop.permute.xlu0 %468
        %471 = vrot.lane.b32.xlu0 %v460, 124
        %v472 = vpop.permute.xlu0 %471
        %s474 = scalar_lea.vmem %s1, 32
        %v475 = vld [vmem:[%s474] sm:$0xff]
        %v476 = vld [vmem:[%s474 + $0x8] sm:$0xff]
        %v478 = vsel %vm294, %v475, 0
        %v481 = vsel %vm294, %v476, 0
        %483 = vmatprep.subr.mxu0 0.0
        %484 = vmatpush1.msra.mxu0 %v460
        %485 = vmatprep.subr.mxu0 0.0
        %486 = vmatpush1.msra.mxu0 %v463
        %487 = vmatprep.subr.mxu0 0.0
        %488 = vmatpush1.msra.mxu0 %v466
        %489 = vmatprep.subr.mxu0 0.0
        %490 = vmatpush1.msra.mxu0 %v469
        %491 = vmatprep.subr.mxu0 0.0
        %492 = vmatpush1.msra.mxu0 %v472
        %493 = vmatprep.subr.mxu0 0.0
        %494 = vmatpush1.msra.mxu0 0.0
        %495 = vmatprep.subr.mxu0 0.0
        %496 = vmatpush1.msra.mxu0 0.0
        %497 = vmatprep.subr.mxu0 0.0
        %498 = vmatpush1.msra.mxu0 0.0
        %499 = vmatprep.subr.mxu0 0.0
        %500 = vmatpush1.msra.mxu0 0.0
        %501 = vmatprep.subr.mxu0 0.0
        %502 = vmatpush1.msra.mxu0 0.0
        %503 = vmatprep.subr.mxu0 0.0
        %504 = vmatpush1.msra.mxu0 0.0
        %505 = vmatprep.subr.mxu0 0.0
        %506 = vmatpush1.msra.mxu0 0.0
        %507 = vmatprep.subr.mxu0 0.0
        %508 = vmatpush1.msra.mxu0 0.0
        %509 = vmatprep.subr.mxu0 0.0
        %510 = vmatpush1.msra.mxu0 0.0
        %511 = vmatprep.subr.mxu0 0.0
        %512 = vmatpush1.msra.mxu0 0.0
        %513 = vmatprep.subr.mxu0 0.0
        %514 = vmatpush1.msra.mxu0 0.0
        %515 = vmatprep.subr.mxu0 0.0
        %516 = vmatpush1.msra.mxu0 0.0
        %517 = vmatprep.subr.mxu0 0.0
        %518 = vmatpush1.msra.mxu0 0.0
        %519 = vmatprep.subr.mxu0 0.0
        %520 = vmatpush1.msra.mxu0 0.0
        %521 = vmatprep.subr.mxu0 0.0
        %522 = vmatpush1.msra.mxu0 0.0
        %523 = vmatprep.subr.mxu0 0.0
        %524 = vmatpush1.msra.mxu0 0.0
        %525 = vmatprep.subr.mxu0 0.0
        %526 = vmatpush1.msra.mxu0 0.0
        %527 = vmatprep.subr.mxu0 0.0
        %528 = vmatpush1.msra.mxu0 0.0
        %529 = vmatprep.subr.mxu0 0.0
        %530 = vmatpush1.msra.mxu0 0.0
        %531 = vmatprep.subr.mxu0 0.0
        %532 = vmatpush1.msra.mxu0 0.0
        %533 = vmatprep.subr.mxu0 0.0
        %534 = vmatpush1.msra.mxu0 0.0
        %535 = vmatprep.subr.mxu0 0.0
        %536 = vmatpush1.msra.mxu0 0.0
        %537 = vmatprep.subr.mxu0 0.0
        %538 = vmatpush1.msra.mxu0 0.0
        %539 = vmatprep.subr.mxu0 0.0
        %540 = vmatpush1.msra.mxu0 0.0
        %541 = vmatprep.subr.mxu0 0.0
        %542 = vmatpush1.msra.mxu0 0.0
        %543 = vmatprep.subr.mxu0 0.0
        %544 = vmatpush1.msra.mxu0 0.0
        %545 = vmatprep.subr.mxu0 0.0
        %546 = vmatpush1.msra.mxu0 0.0
        %547 = vmatprep.mubr.f32.mxu0 0.0
        %548 = vmatmul.mubr.f32.gmra.mrb[0].mxu0 %v478
        %v549 = vpop.f32.mrb[0].mxu0
        %v550 = vadd.f32 0.0, %v549
        %v551 = vpop.f32.mrb[0].mxu0
        %552 = vmatprep.mubr.f32.mxu0 0.0
        %553 = vmatmul.mubr.f32.gmra.mrb[0].mxu0 %v481
        %v554 = vpop.f32.mrb[0].mxu0
        %v555 = vadd.f32 0.0, %v554
        %v556 = vpop.f32.mrb[0].mxu0
        %557 = vdwg.mxu0
        %v558 = vadd.f32 %v449, %v550
        %v559 = vadd.f32 %v454, %v555
        %560 = vmatprep.subr.mxu0 0.0
        %561 = vmatpush1.msra.mxu0 %v460
        %562 = vmatprep.subr.mxu0 0.0
        %563 = vmatpush1.msra.mxu0 %v463
        %564 = vmatprep.subr.mxu0 0.0
        %565 = vmatpush1.msra.mxu0 %v466
        %566 = vmatprep.subr.mxu0 0.0
        %567 = vmatpush1.msra.mxu0 %v469
        %568 = vmatprep.subr.mxu0 0.0
        %569 = vmatpush1.msra.mxu0 %v472
        %570 = vmatprep.subr.mxu0 0.0
        %571 = vmatpush1.msra.mxu0 0.0
        %572 = vmatprep.subr.mxu0 0.0
        %573 = vmatpush1.msra.mxu0 0.0
        %574 = vmatprep.subr.mxu0 0.0
        %575 = vmatpush1.msra.mxu0 0.0
        %576 = vmatprep.subr.mxu0 0.0
        %577 = vmatpush1.msra.mxu0 0.0
        %578 = vmatprep.subr.mxu0 0.0
        %579 = vmatpush1.msra.mxu0 0.0
        %580 = vmatprep.subr.mxu0 0.0
        %581 = vmatpush1.msra.mxu0 0.0
        %582 = vmatprep.subr.mxu0 0.0
        %583 = vmatpush1.msra.mxu0 0.0
        %584 = vmatprep.subr.mxu0 0.0
        %585 = vmatpush1.msra.mxu0 0.0
        %586 = vmatprep.subr.mxu0 0.0
        %587 = vmatpush1.msra.mxu0 0.0
        %588 = vmatprep.subr.mxu0 0.0
        %589 = vmatpush1.msra.mxu0 0.0
        %590 = vmatprep.subr.mxu0 0.0
        %591 = vmatpush1.msra.mxu0 0.0
        %592 = vmatprep.subr.mxu0 0.0
        %593 = vmatpush1.msra.mxu0 0.0
        %594 = vmatprep.subr.mxu0 0.0
        %595 = vmatpush1.msra.mxu0 0.0
        %596 = vmatprep.subr.mxu0 0.0
        %597 = vmatpush1.msra.mxu0 0.0
        %598 = vmatprep.subr.mxu0 0.0
        %599 = vmatpush1.msra.mxu0 0.0
        %600 = vmatprep.subr.mxu0 0.0
        %601 = vmatpush1.msra.mxu0 0.0
        %602 = vmatprep.subr.mxu0 0.0
        %603 = vmatpush1.msra.mxu0 0.0
        %604 = vmatprep.subr.mxu0 0.0
        %605 = vmatpush1.msra.mxu0 0.0
        %606 = vmatprep.subr.mxu0 0.0
        %607 = vmatpush1.msra.mxu0 0.0
        %608 = vmatprep.subr.mxu0 0.0
        %609 = vmatpush1.msra.mxu0 0.0
        %610 = vmatprep.subr.mxu0 0.0
        %611 = vmatpush1.msra.mxu0 0.0
        %612 = vmatprep.subr.mxu0 0.0
        %613 = vmatpush1.msra.mxu0 0.0
        %614 = vmatprep.subr.mxu0 0.0
        %615 = vmatpush1.msra.mxu0 0.0
        %616 = vmatprep.subr.mxu0 0.0
        %617 = vmatpush1.msra.mxu0 0.0
        %618 = vmatprep.subr.mxu0 0.0
        %619 = vmatpush1.msra.mxu0 0.0
        %620 = vmatprep.subr.mxu0 0.0
        %621 = vmatpush1.msra.mxu0 0.0
        %622 = vmatprep.subr.mxu0 0.0
        %623 = vmatpush1.msra.mxu0 0.0
        %624 = vmatprep.mubr.f32.mxu0 0.0
        %625 = vmatmul.mubr.f32.gmra.mrb[0].mxu0 %v296
        %v626 = vpop.f32.mrb[0].mxu0
        %v627 = vadd.f32 0.0, %v626
        %v628 = vpop.f32.mrb[0].mxu0
        %629 = vmatprep.mubr.f32.mxu0 0.0
        %630 = vmatmul.mubr.f32.gmra.mrb[0].mxu0 %v299
        %v631 = vpop.f32.mrb[0].mxu0
        %v632 = vadd.f32 0.0, %v631
        %v633 = vpop.f32.mrb[0].mxu0
        %634 = vdwg.mxu0
        %635 = vmatprep.subr.mxu0 0.0
        %636 = vmatpush1.msra.mxu0 %v277
        %637 = vmatprep.subr.mxu0 0.0
        %638 = vmatpush1.msra.mxu0 %v280
        %639 = vmatprep.subr.mxu0 0.0
        %640 = vmatpush1.msra.mxu0 %v283
        %641 = vmatprep.subr.mxu0 0.0
        %642 = vmatpush1.msra.mxu0 %v286
        %643 = vmatprep.subr.mxu0 0.0
        %644 = vmatpush1.msra.mxu0 %v289
        %645 = vmatprep.subr.mxu0 0.0
        %646 = vmatpush1.msra.mxu0 0.0
        %647 = vmatprep.subr.mxu0 0.0
        %648 = vmatpush1.msra.mxu0 0.0
        %649 = vmatprep.subr.mxu0 0.0
        %650 = vmatpush1.msra.mxu0 0.0
        %651 = vmatprep.subr.mxu0 0.0
        %652 = vmatpush1.msra.mxu0 0.0
        %653 = vmatprep.subr.mxu0 0.0
        %654 = vmatpush1.msra.mxu0 0.0
        %655 = vmatprep.subr.mxu0 0.0
        %656 = vmatpush1.msra.mxu0 0.0
        %657 = vmatprep.subr.mxu0 0.0
        %658 = vmatpush1.msra.mxu0 0.0
        %659 = vmatprep.subr.mxu0 0.0
        %660 = vmatpush1.msra.mxu0 0.0
        %661 = vmatprep.subr.mxu0 0.0
        %662 = vmatpush1.msra.mxu0 0.0
        %663 = vmatprep.subr.mxu0 0.0
        %664 = vmatpush1.msra.mxu0 0.0
        %665 = vmatprep.subr.mxu0 0.0
        %666 = vmatpush1.msra.mxu0 0.0
        %667 = vmatprep.subr.mxu0 0.0
        %668 = vmatpush1.msra.mxu0 0.0
        %669 = vmatprep.subr.mxu0 0.0
        %670 = vmatpush1.msra.mxu0 0.0
        %671 = vmatprep.subr.mxu0 0.0
        %672 = vmatpush1.msra.mxu0 0.0
        %673 = vmatprep.subr.mxu0 0.0
        %674 = vmatpush1.msra.mxu0 0.0
        %675 = vmatprep.subr.mxu0 0.0
        %676 = vmatpush1.msra.mxu0 0.0
        %677 = vmatprep.subr.mxu0 0.0
        %678 = vmatpush1.msra.mxu0 0.0
        %679 = vmatprep.subr.mxu0 0.0
        %680 = vmatpush1.msra.mxu0 0.0
        %681 = vmatprep.subr.mxu0 0.0
        %682 = vmatpush1.msra.mxu0 0.0
        %683 = vmatprep.subr.mxu0 0.0
        %684 = vmatpush1.msra.mxu0 0.0
        %685 = vmatprep.subr.mxu0 0.0
        %686 = vmatpush1.msra.mxu0 0.0
        %687 = vmatprep.subr.mxu0 0.0
        %688 = vmatpush1.msra.mxu0 0.0
        %689 = vmatprep.subr.mxu0 0.0
        %690 = vmatpush1.msra.mxu0 0.0
        %691 = vmatprep.subr.mxu0 0.0
        %692 = vmatpush1.msra.mxu0 0.0
        %693 = vmatprep.subr.mxu0 0.0
        %694 = vmatpush1.msra.mxu0 0.0
        %695 = vmatprep.subr.mxu0 0.0
        %696 = vmatpush1.msra.mxu0 0.0
        %697 = vmatprep.subr.mxu0 0.0
        %698 = vmatpush1.msra.mxu0 0.0
        %699 = vmatprep.mubr.f32.mxu0 0.0
        %700 = vmatmul.mubr.f32.gmra.mrb[0].mxu0 %v377
        %v701 = vpop.f32.mrb[0].mxu0
        %v702 = vadd.f32 %v627, %v701
        %v703 = vpop.f32.mrb[0].mxu0
        %704 = vmatprep.mubr.f32.mxu0 0.0
        %705 = vmatmul.mubr.f32.gmra.mrb[0].mxu0 %v380
        %v706 = vpop.f32.mrb[0].mxu0
        %v707 = vadd.f32 %v632, %v706
        %v708 = vpop.f32.mrb[0].mxu0
        %709 = vdwg.mxu0
        %s710 = sadd.s32 %s255, 3
        %s711 = smul.u32 %s710, 8
        %s712 = scalar_lea.vmem %s219, %s711
        %v713 = vld [vmem:[%s712] sm:$0xff]
        %715 = vrot.lane.b32.xlu0 %v713, 127
        %v716 = vpop.permute.xlu0 %715
        %718 = vrot.lane.b32.xlu0 %v713, 126
        %v719 = vpop.permute.xlu0 %718
        %721 = vrot.lane.b32.xlu0 %v713, 125
        %v722 = vpop.permute.xlu0 %721
        %724 = vrot.lane.b32.xlu0 %v713, 124
        %v725 = vpop.permute.xlu0 %724
        %s727 = scalar_lea.vmem %s1, 48
        %v728 = vld [vmem:[%s727] sm:$0xff]
        %v729 = vld [vmem:[%s727 + $0x8] sm:$0xff]
        %v731 = vsel %vm294, %v728, 0
        %v734 = vsel %vm294, %v729, 0
        %736 = vmatprep.subr.mxu0 0.0
        %737 = vmatpush1.msra.mxu0 %v713
        %738 = vmatprep.subr.mxu0 0.0
        %739 = vmatpush1.msra.mxu0 %v716
        %740 = vmatprep.subr.mxu0 0.0
        %741 = vmatpush1.msra.mxu0 %v719
        %742 = vmatprep.subr.mxu0 0.0
        %743 = vmatpush1.msra.mxu0 %v722
        %744 = vmatprep.subr.mxu0 0.0
        %745 = vmatpush1.msra.mxu0 %v725
        %746 = vmatprep.subr.mxu0 0.0
        %747 = vmatpush1.msra.mxu0 0.0
        %748 = vmatprep.subr.mxu0 0.0
        %749 = vmatpush1.msra.mxu0 0.0
        %750 = vmatprep.subr.mxu0 0.0
        %751 = vmatpush1.msra.mxu0 0.0
        %752 = vmatprep.subr.mxu0 0.0
        %753 = vmatpush1.msra.mxu0 0.0
        %754 = vmatprep.subr.mxu0 0.0
        %755 = vmatpush1.msra.mxu0 0.0
        %756 = vmatprep.subr.mxu0 0.0
        %757 = vmatpush1.msra.mxu0 0.0
        %758 = vmatprep.subr.mxu0 0.0
        %759 = vmatpush1.msra.mxu0 0.0
        %760 = vmatprep.subr.mxu0 0.0
        %761 = vmatpush1.msra.mxu0 0.0
        %762 = vmatprep.subr.mxu0 0.0
        %763 = vmatpush1.msra.mxu0 0.0
        %764 = vmatprep.subr.mxu0 0.0
        %765 = vmatpush1.msra.mxu0 0.0
        %766 = vmatprep.subr.mxu0 0.0
        %767 = vmatpush1.msra.mxu0 0.0
        %768 = vmatprep.subr.mxu0 0.0
        %769 = vmatpush1.msra.mxu0 0.0
        %770 = vmatprep.subr.mxu0 0.0
        %771 = vmatpush1.msra.mxu0 0.0
        %772 = vmatprep.subr.mxu0 0.0
        %773 = vmatpush1.msra.mxu0 0.0
        %774 = vmatprep.subr.mxu0 0.0
        %775 = vmatpush1.msra.mxu0 0.0
        %776 = vmatprep.subr.mxu0 0.0
        %777 = vmatpush1.msra.mxu0 0.0
        %778 = vmatprep.subr.mxu0 0.0
        %779 = vmatpush1.msra.mxu0 0.0
        %780 = vmatprep.subr.mxu0 0.0
        %781 = vmatpush1.msra.mxu0 0.0
        %782 = vmatprep.subr.mxu0 0.0
        %783 = vmatpush1.msra.mxu0 0.0
        %784 = vmatprep.subr.mxu0 0.0
        %785 = vmatpush1.msra.mxu0 0.0
        %786 = vmatprep.subr.mxu0 0.0
        %787 = vmatpush1.msra.mxu0 0.0
        %788 = vmatprep.subr.mxu0 0.0
        %789 = vmatpush1.msra.mxu0 0.0
        %790 = vmatprep.subr.mxu0 0.0
        %791 = vmatpush1.msra.mxu0 0.0
        %792 = vmatprep.subr.mxu0 0.0
        %793 = vmatpush1.msra.mxu0 0.0
        %794 = vmatprep.subr.mxu0 0.0
        %795 = vmatpush1.msra.mxu0 0.0
        %796 = vmatprep.subr.mxu0 0.0
        %797 = vmatpush1.msra.mxu0 0.0
        %798 = vmatprep.subr.mxu0 0.0
        %799 = vmatpush1.msra.mxu0 0.0
        %800 = vmatprep.mubr.f32.mxu0 0.0
        %801 = vmatmul.mubr.f32.gmra.mrb[0].mxu0 %v731
        %v802 = vpop.f32.mrb[0].mxu0
        %v803 = vadd.f32 0.0, %v802
        %v804 = vpop.f32.mrb[0].mxu0
        %805 = vmatprep.mubr.f32.mxu0 0.0
        %806 = vmatmul.mubr.f32.gmra.mrb[0].mxu0 %v734
        %v807 = vpop.f32.mrb[0].mxu0
        %v808 = vadd.f32 0.0, %v807
        %v809 = vpop.f32.mrb[0].mxu0
        %810 = vdwg.mxu0
        %v811 = vadd.f32 %v558, %v803
        %v812 = vadd.f32 %v559, %v808
        %813 = vmatprep.subr.mxu0 0.0
        %814 = vmatpush1.msra.mxu0 %v713
        %815 = vmatprep.subr.mxu0 0.0
        %816 = vmatpush1.msra.mxu0 %v716
        %817 = vmatprep.subr.mxu0 0.0
        %818 = vmatpush1.msra.mxu0 %v719
        %819 = vmatprep.subr.mxu0 0.0
        %820 = vmatpush1.msra.mxu0 %v722
        %821 = vmatprep.subr.mxu0 0.0
        %822 = vmatpush1.msra.mxu0 %v725
        %823 = vmatprep.subr.mxu0 0.0
        %824 = vmatpush1.msra.mxu0 0.0
        %825 = vmatprep.subr.mxu0 0.0
        %826 = vmatpush1.msra.mxu0 0.0
        %827 = vmatprep.subr.mxu0 0.0
        %828 = vmatpush1.msra.mxu0 0.0
        %829 = vmatprep.subr.mxu0 0.0
        %830 = vmatpush1.msra.mxu0 0.0
        %831 = vmatprep.subr.mxu0 0.0
        %832 = vmatpush1.msra.mxu0 0.0
        %833 = vmatprep.subr.mxu0 0.0
        %834 = vmatpush1.msra.mxu0 0.0
        %835 = vmatprep.subr.mxu0 0.0
        %836 = vmatpush1.msra.mxu0 0.0
        %837 = vmatprep.subr.mxu0 0.0
        %838 = vmatpush1.msra.mxu0 0.0
        %839 = vmatprep.subr.mxu0 0.0
        %840 = vmatpush1.msra.mxu0 0.0
        %841 = vmatprep.subr.mxu0 0.0
        %842 = vmatpush1.msra.mxu0 0.0
        %843 = vmatprep.subr.mxu0 0.0
        %844 = vmatpush1.msra.mxu0 0.0
        %845 = vmatprep.subr.mxu0 0.0
        %846 = vmatpush1.msra.mxu0 0.0
        %847 = vmatprep.subr.mxu0 0.0
        %848 = vmatpush1.msra.mxu0 0.0
        %849 = vmatprep.subr.mxu0 0.0
        %850 = vmatpush1.msra.mxu0 0.0
        %851 = vmatprep.subr.mxu0 0.0
        %852 = vmatpush1.msra.mxu0 0.0
        %853 = vmatprep.subr.mxu0 0.0
        %854 = vmatpush1.msra.mxu0 0.0
        %855 = vmatprep.subr.mxu0 0.0
        %856 = vmatpush1.msra.mxu0 0.0
        %857 = vmatprep.subr.mxu0 0.0
        %858 = vmatpush1.msra.mxu0 0.0
        %859 = vmatprep.subr.mxu0 0.0
        %860 = vmatpush1.msra.mxu0 0.0
        %861 = vmatprep.subr.mxu0 0.0
        %862 = vmatpush1.msra.mxu0 0.0
        %863 = vmatprep.subr.mxu0 0.0
        %864 = vmatpush1.msra.mxu0 0.0
        %865 = vmatprep.subr.mxu0 0.0
        %866 = vmatpush1.msra.mxu0 0.0
        %867 = vmatprep.subr.mxu0 0.0
        %868 = vmatpush1.msra.mxu0 0.0
        %869 = vmatprep.subr.mxu0 0.0
        %870 = vmatpush1.msra.mxu0 0.0
        %871 = vmatprep.subr.mxu0 0.0
        %872 = vmatpush1.msra.mxu0 0.0
        %873 = vmatprep.subr.mxu0 0.0
        %874 = vmatpush1.msra.mxu0 0.0
        %875 = vmatprep.subr.mxu0 0.0
        %876 = vmatpush1.msra.mxu0 0.0
        %877 = vmatprep.mubr.f32.mxu0 0.0
        %878 = vmatmul.mubr.f32.gmra.mrb[0].mxu0 %v478
        %v879 = vpop.f32.mrb[0].mxu0
        %v880 = vadd.f32 0.0, %v879
        %v881 = vpop.f32.mrb[0].mxu0
        %882 = vmatprep.mubr.f32.mxu0 0.0
        %883 = vmatmul.mubr.f32.gmra.mrb[0].mxu0 %v481
        %v884 = vpop.f32.mrb[0].mxu0
        %v885 = vadd.f32 0.0, %v884
        %v886 = vpop.f32.mrb[0].mxu0
        %887 = vdwg.mxu0
        %v888 = vadd.f32 %v702, %v880
        %v889 = vadd.f32 %v707, %v885
        %s890 = sadd.s32 %s255, 4
        %s891 = smul.u32 %s890, 8
        %s892 = scalar_lea.vmem %s219, %s891
        %v893 = vld [vmem:[%s892] sm:$0xff]
        %895 = vrot.lane.b32.xlu0 %v893, 127
        %v896 = vpop.permute.xlu0 %895
        %898 = vrot.lane.b32.xlu0 %v893, 126
        %v899 = vpop.permute.xlu0 %898
        %901 = vrot.lane.b32.xlu0 %v893, 125
        %v902 = vpop.permute.xlu0 %901
        %904 = vrot.lane.b32.xlu0 %v893, 124
        %v905 = vpop.permute.xlu0 %904
        %s907 = scalar_lea.vmem %s1, 64
        %v908 = vld [vmem:[%s907] sm:$0xff]
        %v909 = vld [vmem:[%s907 + $0x8] sm:$0xff]
        %v911 = vsel %vm294, %v908, 0
        %v914 = vsel %vm294, %v909, 0
        %916 = vmatprep.subr.mxu0 0.0
        %917 = vmatpush1.msra.mxu0 %v893
        %918 = vmatprep.subr.mxu0 0.0
        %919 = vmatpush1.msra.mxu0 %v896
        %920 = vmatprep.subr.mxu0 0.0
        %921 = vmatpush1.msra.mxu0 %v899
        %922 = vmatprep.subr.mxu0 0.0
        %923 = vmatpush1.msra.mxu0 %v902
        %924 = vmatprep.subr.mxu0 0.0
        %925 = vmatpush1.msra.mxu0 %v905
        %926 = vmatprep.subr.mxu0 0.0
        %927 = vmatpush1.msra.mxu0 0.0
        %928 = vmatprep.subr.mxu0 0.0
        %929 = vmatpush1.msra.mxu0 0.0
        %930 = vmatprep.subr.mxu0 0.0
        %931 = vmatpush1.msra.mxu0 0.0
        %932 = vmatprep.subr.mxu0 0.0
        %933 = vmatpush1.msra.mxu0 0.0
        %934 = vmatprep.subr.mxu0 0.0
        %935 = vmatpush1.msra.mxu0 0.0
        %936 = vmatprep.subr.mxu0 0.0
        %937 = vmatpush1.msra.mxu0 0.0
        %938 = vmatprep.subr.mxu0 0.0
        %939 = vmatpush1.msra.mxu0 0.0
        %940 = vmatprep.subr.mxu0 0.0
        %941 = vmatpush1.msra.mxu0 0.0
        %942 = vmatprep.subr.mxu0 0.0
        %943 = vmatpush1.msra.mxu0 0.0
        %944 = vmatprep.subr.mxu0 0.0
        %945 = vmatpush1.msra.mxu0 0.0
        %946 = vmatprep.subr.mxu0 0.0
        %947 = vmatpush1.msra.mxu0 0.0
        %948 = vmatprep.subr.mxu0 0.0
        %949 = vmatpush1.msra.mxu0 0.0
        %950 = vmatprep.subr.mxu0 0.0
        %951 = vmatpush1.msra.mxu0 0.0
        %952 = vmatprep.subr.mxu0 0.0
        %953 = vmatpush1.msra.mxu0 0.0
        %954 = vmatprep.subr.mxu0 0.0
        %955 = vmatpush1.msra.mxu0 0.0
        %956 = vmatprep.subr.mxu0 0.0
        %957 = vmatpush1.msra.mxu0 0.0
        %958 = vmatprep.subr.mxu0 0.0
        %959 = vmatpush1.msra.mxu0 0.0
        %960 = vmatprep.subr.mxu0 0.0
        %961 = vmatpush1.msra.mxu0 0.0
        %962 = vmatprep.subr.mxu0 0.0
        %963 = vmatpush1.msra.mxu0 0.0
        %964 = vmatprep.subr.mxu0 0.0
        %965 = vmatpush1.msra.mxu0 0.0
        %966 = vmatprep.subr.mxu0 0.0
        %967 = vmatpush1.msra.mxu0 0.0
        %968 = vmatprep.subr.mxu0 0.0
        %969 = vmatpush1.msra.mxu0 0.0
        %970 = vmatprep.subr.mxu0 0.0
        %971 = vmatpush1.msra.mxu0 0.0
        %972 = vmatprep.subr.mxu0 0.0
        %973 = vmatpush1.msra.mxu0 0.0
        %974 = vmatprep.subr.mxu0 0.0
        %975 = vmatpush1.msra.mxu0 0.0
        %976 = vmatprep.subr.mxu0 0.0
        %977 = vmatpush1.msra.mxu0 0.0
        %978 = vmatprep.subr.mxu0 0.0
        %979 = vmatpush1.msra.mxu0 0.0
        %980 = vmatprep.mubr.f32.mxu0 0.0
        %981 = vmatmul.mubr.f32.gmra.mrb[0].mxu0 %v911
        %v982 = vpop.f32.mrb[0].mxu0
        %v983 = vadd.f32 0.0, %v982
        %v984 = vpop.f32.mrb[0].mxu0
        %985 = vmatprep.mubr.f32.mxu0 0.0
        %986 = vmatmul.mubr.f32.gmra.mrb[0].mxu0 %v914
        %v987 = vpop.f32.mrb[0].mxu0
        %v988 = vadd.f32 0.0, %v987
        %v989 = vpop.f32.mrb[0].mxu0
        %990 = vdwg.mxu0
        %v991 = vadd.f32 %v811, %v983
        %v992 = vadd.f32 %v812, %v988
        %993 = vmatprep.subr.mxu0 0.0
        %994 = vmatpush1.msra.mxu0 %v893
        %995 = vmatprep.subr.mxu0 0.0
        %996 = vmatpush1.msra.mxu0 %v896
        %997 = vmatprep.subr.mxu0 0.0
        %998 = vmatpush1.msra.mxu0 %v899
        %999 = vmatprep.subr.mxu0 0.0
        %1000 = vmatpush1.msra.mxu0 %v902
        %1001 = vmatprep.subr.mxu0 0.0
        %1002 = vmatpush1.msra.mxu0 %v905
        %1003 = vmatprep.subr.mxu0 0.0
        %1004 = vmatpush1.msra.mxu0 0.0
        %1005 = vmatprep.subr.mxu0 0.0
        %1006 = vmatpush1.msra.mxu0 0.0
        %1007 = vmatprep.subr.mxu0 0.0
        %1008 = vmatpush1.msra.mxu0 0.0
        %1009 = vmatprep.subr.mxu0 0.0
        %1010 = vmatpush1.msra.mxu0 0.0
        %1011 = vmatprep.subr.mxu0 0.0
        %1012 = vmatpush1.msra.mxu0 0.0
        %1013 = vmatprep.subr.mxu0 0.0
        %1014 = vmatpush1.msra.mxu0 0.0
        %1015 = vmatprep.subr.mxu0 0.0
        %1016 = vmatpush1.msra.mxu0 0.0
        %1017 = vmatprep.subr.mxu0 0.0
        %1018 = vmatpush1.msra.mxu0 0.0
        %1019 = vmatprep.subr.mxu0 0.0
        %1020 = vmatpush1.msra.mxu0 0.0
        %1021 = vmatprep.subr.mxu0 0.0
        %1022 = vmatpush1.msra.mxu0 0.0
        %1023 = vmatprep.subr.mxu0 0.0
        %1024 = vmatpush1.msra.mxu0 0.0
        %1025 = vmatprep.subr.mxu0 0.0
        %1026 = vmatpush1.msra.mxu0 0.0
        %1027 = vmatprep.subr.mxu0 0.0
        %1028 = vmatpush1.msra.mxu0 0.0
        %1029 = vmatprep.subr.mxu0 0.0
        %1030 = vmatpush1.msra.mxu0 0.0
        %1031 = vmatprep.subr.mxu0 0.0
        %1032 = vmatpush1.msra.mxu0 0.0
        %1033 = vmatprep.subr.mxu0 0.0
        %1034 = vmatpush1.msra.mxu0 0.0
        %1035 = vmatprep.subr.mxu0 0.0
        %1036 = vmatpush1.msra.mxu0 0.0
        %1037 = vmatprep.subr.mxu0 0.0
        %1038 = vmatpush1.msra.mxu0 0.0
        %1039 = vmatprep.subr.mxu0 0.0
        %1040 = vmatpush1.msra.mxu0 0.0
        %1041 = vmatprep.subr.mxu0 0.0
        %1042 = vmatpush1.msra.mxu0 0.0
        %1043 = vmatprep.subr.mxu0 0.0
        %1044 = vmatpush1.msra.mxu0 0.0
        %1045 = vmatprep.subr.mxu0 0.0
        %1046 = vmatpush1.msra.mxu0 0.0
        %1047 = vmatprep.subr.mxu0 0.0
        %1048 = vmatpush1.msra.mxu0 0.0
        %1049 = vmatprep.subr.mxu0 0.0
        %1050 = vmatpush1.msra.mxu0 0.0
        %1051 = vmatprep.subr.mxu0 0.0
        %1052 = vmatpush1.msra.mxu0 0.0
        %1053 = vmatprep.subr.mxu0 0.0
        %1054 = vmatpush1.msra.mxu0 0.0
        %1055 = vmatprep.subr.mxu0 0.0
        %1056 = vmatpush1.msra.mxu0 0.0
        %1057 = vmatprep.mubr.f32.mxu0 0.0
        %1058 = vmatmul.mubr.f32.gmra.mrb[0].mxu0 %v731
        %v1059 = vpop.f32.mrb[0].mxu0
        %v1060 = vadd.f32 0.0, %v1059
        %v1061 = vpop.f32.mrb[0].mxu0
        %1062 = vmatprep.mubr.f32.mxu0 0.0
        %1063 = vmatmul.mubr.f32.gmra.mrb[0].mxu0 %v734
        %v1064 = vpop.f32.mrb[0].mxu0
        %v1065 = vadd.f32 0.0, %v1064
        %v1066 = vpop.f32.mrb[0].mxu0
        %1067 = vdwg.mxu0
        %v1068 = vadd.f32 %v888, %v1060
        %v1069 = vadd.f32 %v889, %v1065
        %s1070 = sadd.s32 %s255, 5
        %s1071 = smul.u32 %s1070, 8
        %s1072 = scalar_lea.vmem %s219, %s1071
        %v1073 = vld [vmem:[%s1072] sm:$0xff]
        %1075 = vrot.lane.b32.xlu0 %v1073, 127
        %v1076 = vpop.permute.xlu0 %1075
        %1078 = vrot.lane.b32.xlu0 %v1073, 126
        %v1079 = vpop.permute.xlu0 %1078
        %1081 = vrot.lane.b32.xlu0 %v1073, 125
        %v1082 = vpop.permute.xlu0 %1081
        %1084 = vrot.lane.b32.xlu0 %v1073, 124
        %v1085 = vpop.permute.xlu0 %1084
        %1087 = vmatprep.subr.mxu0 0.0
        %1088 = vmatpush1.msra.mxu0 %v1073
        %1089 = vmatprep.subr.mxu0 0.0
        %1090 = vmatpush1.msra.mxu0 %v1076
        %1091 = vmatprep.subr.mxu0 0.0
        %1092 = vmatpush1.msra.mxu0 %v1079
        %1093 = vmatprep.subr.mxu0 0.0
        %1094 = vmatpush1.msra.mxu0 %v1082
        %1095 = vmatprep.subr.mxu0 0.0
        %1096 = vmatpush1.msra.mxu0 %v1085
        %1097 = vmatprep.subr.mxu0 0.0
        %1098 = vmatpush1.msra.mxu0 0.0
        %1099 = vmatprep.subr.mxu0 0.0
        %1100 = vmatpush1.msra.mxu0 0.0
        %1101 = vmatprep.subr.mxu0 0.0
        %1102 = vmatpush1.msra.mxu0 0.0
        %1103 = vmatprep.subr.mxu0 0.0
        %1104 = vmatpush1.msra.mxu0 0.0
        %1105 = vmatprep.subr.mxu0 0.0
        %1106 = vmatpush1.msra.mxu0 0.0
        %1107 = vmatprep.subr.mxu0 0.0
        %1108 = vmatpush1.msra.mxu0 0.0
        %1109 = vmatprep.subr.mxu0 0.0
        %1110 = vmatpush1.msra.mxu0 0.0
        %1111 = vmatprep.subr.mxu0 0.0
        %1112 = vmatpush1.msra.mxu0 0.0
        %1113 = vmatprep.subr.mxu0 0.0
        %1114 = vmatpush1.msra.mxu0 0.0
        %1115 = vmatprep.subr.mxu0 0.0
        %1116 = vmatpush1.msra.mxu0 0.0
        %1117 = vmatprep.subr.mxu0 0.0
        %1118 = vmatpush1.msra.mxu0 0.0
        %1119 = vmatprep.subr.mxu0 0.0
        %1120 = vmatpush1.msra.mxu0 0.0
        %1121 = vmatprep.subr.mxu0 0.0
        %1122 = vmatpush1.msra.mxu0 0.0
        %1123 = vmatprep.subr.mxu0 0.0
        %1124 = vmatpush1.msra.mxu0 0.0
        %1125 = vmatprep.subr.mxu0 0.0
        %1126 = vmatpush1.msra.mxu0 0.0
        %1127 = vmatprep.subr.mxu0 0.0
        %1128 = vmatpush1.msra.mxu0 0.0
        %1129 = vmatprep.subr.mxu0 0.0
        %1130 = vmatpush1.msra.mxu0 0.0
        %1131 = vmatprep.subr.mxu0 0.0
        %1132 = vmatpush1.msra.mxu0 0.0
        %1133 = vmatprep.subr.mxu0 0.0
        %1134 = vmatpush1.msra.mxu0 0.0
        %1135 = vmatprep.subr.mxu0 0.0
        %1136 = vmatpush1.msra.mxu0 0.0
        %1137 = vmatprep.subr.mxu0 0.0
        %1138 = vmatpush1.msra.mxu0 0.0
        %1139 = vmatprep.subr.mxu0 0.0
        %1140 = vmatpush1.msra.mxu0 0.0
        %1141 = vmatprep.subr.mxu0 0.0
        %1142 = vmatpush1.msra.mxu0 0.0
        %1143 = vmatprep.subr.mxu0 0.0
        %1144 = vmatpush1.msra.mxu0 0.0
        %1145 = vmatprep.subr.mxu0 0.0
        %1146 = vmatpush1.msra.mxu0 0.0
        %1147 = vmatprep.subr.mxu0 0.0
        %1148 = vmatpush1.msra.mxu0 0.0
        %1149 = vmatprep.subr.mxu0 0.0
        %1150 = vmatpush1.msra.mxu0 0.0
        %1151 = vmatprep.mubr.f32.mxu0 0.0
        %1152 = vmatmul.mubr.f32.gmra.mrb[0].mxu0 %v911
        %v1153 = vpop.f32.mrb[0].mxu0
        %v1154 = vadd.f32 0.0, %v1153
        %v1155 = vpop.f32.mrb[0].mxu0
        %1156 = vmatprep.mubr.f32.mxu0 0.0
        %1157 = vmatmul.mubr.f32.gmra.mrb[0].mxu0 %v914
        %v1158 = vpop.f32.mrb[0].mxu0
        %v1159 = vadd.f32 0.0, %v1158
        %v1160 = vpop.f32.mrb[0].mxu0
        %1161 = vdwg.mxu0
        %v1162 = vadd.f32 %v1068, %v1154
        %v1163 = vadd.f32 %v1069, %v1159
        %v1164 = vmax.f32 %v991, 0.0
        %v1165 = vmax.f32 %v992, 0.0
        %v1166 = vmul.f32 %v1164, %v230
        %v1167 = vmul.f32 %v1165, %v235
        %v1168 = vadd.f32 %v1166, %v242
        %v1169 = vadd.f32 %v1167, %v247
        %v1170 = vmax.f32 %v1162, 0.0
        %v1171 = vmax.f32 %v1163, 0.0
        %v1172 = vmul.f32 %v1170, %v230
        %v1173 = vmul.f32 %v1171, %v235
        %v1174 = vadd.f32 %v1172, %v242
        %v1175 = vadd.f32 %v1173, %v247
        %v1176 = vmax.f32 %v1168, %v1174
        %v1177 = vmax.f32 %v1169, %v1175
        %v1178 = vld [vmem:[%s4] sm:$0xff]
        %v1179 = vld [vmem:[%s4 + $0x8] sm:$0xff]
        %v1180 = vld [vmem:[%s4 + $0x10] sm:$0xff]
        %v1181 = vld [vmem:[%s4 + $0x18] sm:$0xff]
        %v1182 = vld [vmem:[%s4 + $0x20] sm:$0xff]
        %v1183 = vld [vmem:[%s4 + $0x28] sm:$0xff]
        %v1184 = vld [vmem:[%s4 + $0x30] sm:$0xff]
        %v1185 = vld [vmem:[%s4 + $0x38] sm:$0xff]
        %vm1186 = vcmask 523264
        %v1188 = vsel %vm1186, %v1176, 0
        %v1191 = vsel %vm1186, %v1177, 0
        %1193 = vmatprep.subr.mxu0 0.0
        %1194 = vmatpush1.msra.mxu0 %v1178
        %1195 = vmatprep.subr.mxu0 0.0
        %1196 = vmatpush1.msra.mxu0 %v1179
        %1197 = vmatprep.subr.mxu0 0.0
        %1198 = vmatpush1.msra.mxu0 %v1180
        %1199 = vmatprep.subr.mxu0 0.0
        %1200 = vmatpush1.msra.mxu0 %v1181
        %1201 = vmatprep.subr.mxu0 0.0
        %1202 = vmatpush1.msra.mxu0 %v1182
        %1203 = vmatprep.subr.mxu0 0.0
        %1204 = vmatpush1.msra.mxu0 %v1183
        %1205 = vmatprep.subr.mxu0 0.0
        %1206 = vmatpush1.msra.mxu0 %v1184
        %1207 = vmatprep.subr.mxu0 0.0
        %1208 = vmatpush1.msra.mxu0 %v1185
        %1209 = vmatprep.subr.mxu0 0.0
        %1210 = vmatpush1.msra.mxu0 0.0
        %1211 = vmatprep.subr.mxu0 0.0
        %1212 = vmatpush1.msra.mxu0 0.0
        %1213 = vmatprep.subr.mxu0 0.0
        %1214 = vmatpush1.msra.mxu0 0.0
        %1215 = vmatprep.subr.mxu0 0.0
        %1216 = vmatpush1.msra.mxu0 0.0
        %1217 = vmatprep.subr.mxu0 0.0
        %1218 = vmatpush1.msra.mxu0 0.0
        %1219 = vmatprep.subr.mxu0 0.0
        %1220 = vmatpush1.msra.mxu0 0.0
        %1221 = vmatprep.subr.mxu0 0.0
        %1222 = vmatpush1.msra.mxu0 0.0
        %1223 = vmatprep.subr.mxu0 0.0
        %1224 = vmatpush1.msra.mxu0 0.0
        %1225 = vmatprep.subr.mxu0 0.0
        %1226 = vmatpush1.msra.mxu0 0.0
        %1227 = vmatprep.subr.mxu0 0.0
        %1228 = vmatpush1.msra.mxu0 0.0
        %1229 = vmatprep.subr.mxu0 0.0
        %1230 = vmatpush1.msra.mxu0 0.0
        %1231 = vmatprep.subr.mxu0 0.0
        %1232 = vmatpush1.msra.mxu0 0.0
        %1233 = vmatprep.subr.mxu0 0.0
        %1234 = vmatpush1.msra.mxu0 0.0
        %1235 = vmatprep.subr.mxu0 0.0
        %1236 = vmatpush1.msra.mxu0 0.0
        %1237 = vmatprep.subr.mxu0 0.0
        %1238 = vmatpush1.msra.mxu0 0.0
        %1239 = vmatprep.subr.mxu0 0.0
        %1240 = vmatpush1.msra.mxu0 0.0
        %1241 = vmatprep.subr.mxu0 0.0
        %1242 = vmatpush1.msra.mxu0 0.0
        %1243 = vmatprep.subr.mxu0 0.0
        %1244 = vmatpush1.msra.mxu0 0.0
        %1245 = vmatprep.subr.mxu0 0.0
        %1246 = vmatpush1.msra.mxu0 0.0
        %1247 = vmatprep.subr.mxu0 0.0
        %1248 = vmatpush1.msra.mxu0 0.0
        %1249 = vmatprep.subr.mxu0 0.0
        %1250 = vmatpush1.msra.mxu0 0.0
        %1251 = vmatprep.subr.mxu0 0.0
        %1252 = vmatpush1.msra.mxu0 0.0
        %1253 = vmatprep.subr.mxu0 0.0
        %1254 = vmatpush1.msra.mxu0 0.0
        %1255 = vmatprep.subr.mxu0 0.0
        %1256 = vmatpush1.msra.mxu0 0.0
        %1257 = vmatprep.mubr.f32.mxu0 0.0
        %1258 = vmatmul.mubr.f32.gmra.mrb[0].mxu0 %v1188
        %v1259 = vpop.f32.mrb[0].mxu0
        %v1260 = vadd.f32 0.0, %v1259
        %v1261 = vpop.f32.mrb[0].mxu0
        %1262 = vmatprep.mubr.f32.mxu0 0.0
        %1263 = vmatmul.mubr.f32.gmra.mrb[0].mxu0 %v1191
        %v1264 = vpop.f32.mrb[0].mxu0
        %v1265 = vadd.f32 0.0, %v1264
        %v1266 = vpop.f32.mrb[0].mxu0
        %1267 = vdwg.mxu0
        %1270 = vrot.lane.b32.xlu0 %v1260, 96
        %v1271 = vpop.permute.xlu0 %1270
        %1272 = vrot.lane.b32.xlu0 %v1265, 96
        %v1273 = vpop.permute.xlu0 %1272
        %v1276 = vmax.f32 %v1260, %v1271
        %v1277 = vmax.f32 %v1265, %v1273
        %s1278 = smul.u32 %s250, 16
        %s1279 = scalar_lea.vmem %s224, %s1278
        %vm1280 = vcmask 261120
        %1281 = vst.msk [vmem:[%s1279] sm:$0xff] %vm1280, %v1276
        %1282 = vst.msk [vmem:[%s1279 + $0x8] sm:$0xff] %vm1280, %v1277
      $region45: #{meso4_forward.7} parent=39 // loop_footer
        %s254 = sadd.s32 1, %s250
      $region46: #{meso4_forward.7} parent=39 // loop_footer_branch
        %249 = sbr.rel target = $region42
      $region47: #{meso4_forward.7} parent=39 // loop_exit
        _
      %p1283 = scmp.lt.s32.totalorder %s16, 1
      %s1284 = scalar_select %p1283, %s16, 1
      %s1285 = smul.addr %s1284, 64
      %s1286 = smul.addr %s1285, 8
      %s1287 = scalar_lea.vmem %s5, %s1286
      // Predicated region
      $region48: #{meso4_forward.7} parent=39 // pred_check
        %p1288 = pneg %p144
      $region49: #{meso4_forward.7} parent=39 // pred_check_branch
        %1290 = sbr.rel (%p1288) target = $region51
      $region50: #{meso4_forward.7} parent=39 // pred_region
        _
      $region51: #{meso4_forward.7} parent=39 // pred_fallthru
        _
    $region40: #{meso4_forward.7} parent=5 // pred_fallthru
      _
    %p1291 = scmp.le.s32.totalorder 2, %s11
    // Predicated region
    $region52: #{meso4_forward.7} parent=5 // pred_check
      %p1292 = pneg %p1291
    $region53: #{meso4_forward.7} parent=5 // pred_check_branch
      %1294 = sbr.rel (%p1292) target = $region55
    $region54: #{meso4_forward.7} parent=5 // pred_region
      %s1295 = ssub.s32 %s11, 2
      // Predicated region
      $region56: #{meso4_forward.7} parent=54 // pred_check
        %p1296 = pneg %p150
      $region57: #{meso4_forward.7} parent=54 // pred_check_branch
        %1298 = sbr.rel (%p1296) target = $region59
      $region58: #{meso4_forward.7} parent=54 // pred_region
        %p1299 = scmp.lt.s32.totalorder %s17, 1
        %s1300 = scalar_select %p1299, %s17, 1
        %s1301 = smul.addr %s1300, 64
        %s1302 = smul.addr %s1301, 8
        %s1303 = scalar_lea.vmem %s5, %s1302
      $region59: #{meso4_forward.7} parent=54 // pred_fallthru
        _
    $region55: #{meso4_forward.7} parent=5 // pred_fallthru
      _
  $region6: #{meso4_forward.7} parent=0 // loop_footer
    %s15 = sadd.s32 1, %s11
  $region7: #{meso4_forward.7} parent=0 // loop_footer_branch
    %10 = sbr.rel target = $region3
  $region8: #{meso4_forward.7} parent=0 // loop_exit
    _

// kernel: meso4_forward.9
$region0: #{meso4_forward.9}
  #allocation0 [shape = 'u32[]', space=smem, size = 0x4, offset = 0x4, fixed_abs, tag = 'smem constant byte address 0x4 - core index']
  #allocation1 [shape = 'u32[144,128]{1,0:T(1,128)}', space=vmem, size = 0x12000, scoped, tag = 'internal scratch']
  %s0 = inlined_call_operand.vmem [shape: f32[2,1024], index: 0, kind: input, shape index: {}]
  %s1 = inlined_call_operand.vmem [shape: f32[1024,16], index: 1, kind: input, shape index: {}]
  %s2 = inlined_call_operand.vmem [shape: f32[1,16], index: 2, kind: input, shape index: {}]
  %s3 = inlined_call_operand.vmem [shape: f32[16,2], index: 3, kind: input, shape index: {}]
  %s4 = inlined_call_operand.vmem [shape: f32[1,2], index: 4, kind: input, shape index: {}]
  %s5 = inlined_call_operand.hbm [shape: f32[2,2], index: 5, kind: output, shape index: {}]
  %s6 = sld [smem:[#allocation0]]
  $region30: #{meso4_forward.9} parent=0
    _
  %s8 = ssub.s32 1, %s6
  %s9 = scalar_select 0, %s8, %s6
  $region1: #{meso4_forward.9} parent=0
    #allocation2 [shape = 'u8[1024]{0}', space=vmem, size = 0x400, scoped, tag = 'output window, operand 0, single buffered']
    #allocation3 [shape = 's32[1]{0}', space=sflag, size = 0x4, scoped, tag = 'scoped memory for meso4_forward.9']
    %10 = vsyncpa [#allocation3], 0
    // Predicated region
    $region2: #{meso4_forward.9} parent=1 // pred_check
      _
    $region3: #{meso4_forward.9} parent=1 // pred_check_branch
      %12 = sbr.rel (0) target = $region5
    $region4: #{meso4_forward.9} parent=1 // pred_region
      _
    $region5: #{meso4_forward.9} parent=1 // pred_fallthru
      _
    // Predicated region
    $region6: #{meso4_forward.9} parent=1 // pred_check
      _
    $region7: #{meso4_forward.9} parent=1 // pred_check_branch
      %14 = sbr.rel (0) target = $region9
    $region8: #{meso4_forward.9} parent=1 // pred_region
      _
    $region9: #{meso4_forward.9} parent=1 // pred_fallthru
      _
    // Predicated region
    $region10: #{meso4_forward.9} parent=1 // pred_check
      _
    $region11: #{meso4_forward.9} parent=1 // pred_check_branch
      %16 = sbr.rel (0) target = $region13
    $region12: #{meso4_forward.9} parent=1 // pred_region
      _
    $region13: #{meso4_forward.9} parent=1 // pred_fallthru
      _
    // Predicated region
    $region14: #{meso4_forward.9} parent=1 // pred_check
      _
    $region15: #{meso4_forward.9} parent=1 // pred_check_branch
      %18 = sbr.rel (0) target = $region17
    $region16: #{meso4_forward.9} parent=1 // pred_region
      _
    $region17: #{meso4_forward.9} parent=1 // pred_fallthru
      _
    // Predicated region
    $region18: #{meso4_forward.9} parent=1 // pred_check
      _
    $region19: #{meso4_forward.9} parent=1 // pred_check_branch
      %20 = sbr.rel (0) target = $region21
    $region20: #{meso4_forward.9} parent=1 // pred_region
      _
    $region21: #{meso4_forward.9} parent=1 // pred_fallthru
      _
    %v21 = vld [vmem:[%s0] sm:$0xff]
    %v22 = vld [vmem:[%s0 + $0x8] sm:$0xff]
    %v23 = vld [vmem:[%s1] sm:$0xff]
    %v24 = vld [vmem:[%s1 + $0x8] sm:$0xff]
    %v25 = vld [vmem:[%s1 + $0x10] sm:$0xff]
    %v26 = vld [vmem:[%s1 + $0x18] sm:$0xff]
    %v27 = vld [vmem:[%s1 + $0x20] sm:$0xff]
    %v28 = vld [vmem:[%s1 + $0x28] sm:$0xff]
    %v29 = vld [vmem:[%s1 + $0x30] sm:$0xff]
    %v30 = vld [vmem:[%s1 + $0x38] sm:$0xff]
    %v31 = vld [vmem:[%s1 + $0x40] sm:$0xff]
    %v32 = vld [vmem:[%s1 + $0x48] sm:$0xff]
    %v33 = vld [vmem:[%s1 + $0x50] sm:$0xff]
    %v34 = vld [vmem:[%s1 + $0x58] sm:$0xff]
    %v35 = vld [vmem:[%s1 + $0x60] sm:$0xff]
    %v36 = vld [vmem:[%s1 + $0x68] sm:$0xff]
    %v37 = vld [vmem:[%s1 + $0x70] sm:$0xff]
    %v38 = vld [vmem:[%s1 + $0x78] sm:$0xff]
    %v39 = vld [vmem:[%s1 + $0x80] sm:$0xff]
    %v40 = vld [vmem:[%s1 + $0x88] sm:$0xff]
    %v41 = vld [vmem:[%s1 + $0x90] sm:$0xff]
    %v42 = vld [vmem:[%s1 + $0x98] sm:$0xff]
    %v43 = vld [vmem:[%s1 + $0xa0] sm:$0xff]
    %v44 = vld [vmem:[%s1 + $0xa8] sm:$0xff]
    %v45 = vld [vmem:[%s1 + $0xb0] sm:$0xff]
    %v46 = vld [vmem:[%s1 + $0xb8] sm:$0xff]
    %v47 = vld [vmem:[%s1 + $0xc0] sm:$0xff]
    %v48 = vld [vmem:[%s1 + $0xc8] sm:$0xff]
    %v49 = vld [vmem:[%s1 + $0xd0] sm:$0xff]
    %v50 = vld [vmem:[%s1 + $0xd8] sm:$0xff]
    %v51 = vld [vmem:[%s1 + $0xe0] sm:$0xff]
    %v52 = vld [vmem:[%s1 + $0xe8] sm:$0xff]
    %v53 = vld [vmem:[%s1 + $0xf0] sm:$0xff]
    %v54 = vld [vmem:[%s1 + $0xf8] sm:$0xff]
    %v55 = vld [vmem:[%s1 + $0x100] sm:$0xff]
    %v56 = vld [vmem:[%s1 + $0x108] sm:$0xff]
    %v57 = vld [vmem:[%s1 + $0x110] sm:$0xff]
    %v58 = vld [vmem:[%s1 + $0x118] sm:$0xff]
    %v59 = vld [vmem:[%s1 + $0x120] sm:$0xff]
    %v60 = vld [vmem:[%s1 + $0x128] sm:$0xff]
    %v61 = vld [vmem:[%s1 + $0x130] sm:$0xff]
    %v62 = vld [vmem:[%s1 + $0x138] sm:$0xff]
    %v63 = vld [vmem:[%s1 + $0x140] sm:$0xff]
    %v64 = vld [vmem:[%s1 + $0x148] sm:$0xff]
    %v65 = vld [vmem:[%s1 + $0x150] sm:$0xff]
    %v66 = vld [vmem:[%s1 + $0x158] sm:$0xff]
    %v67 = vld [vmem:[%s1 + $0x160] sm:$0xff]
    %v68 = vld [vmem:[%s1 + $0x168] sm:$0xff]
    %v69 = vld [vmem:[%s1 + $0x170] sm:$0xff]
    %v70 = vld [vmem:[%s1 + $0x178] sm:$0xff]
    %v71 = vld [vmem:[%s1 + $0x180] sm:$0xff]
    %v72 = vld [vmem:[%s1 + $0x188] sm:$0xff]
    %v73 = vld [vmem:[%s1 + $0x190] sm:$0xff]
    %v74 = vld [vmem:[%s1 + $0x198] sm:$0xff]
    %v75 = vld [vmem:[%s1 + $0x1a0] sm:$0xff]
    %v76 = vld [vmem:[%s1 + $0x1a8] sm:$0xff]
    %v77 = vld [vmem:[%s1 + $0x1b0] sm:$0xff]
    %v78 = vld [vmem:[%s1 + $0x1b8] sm:$0xff]
    %v79 = vld [vmem:[%s1 + $0x1c0] sm:$0xff]
    %v80 = vld [vmem:[%s1 + $0x1c8] sm:$0xff]
    %v81 = vld [vmem:[%s1 + $0x1d0] sm:$0xff]
    %v82 = vld [vmem:[%s1 + $0x1d8] sm:$0xff]
    %v83 = vld [vmem:[%s1 + $0x1e0] sm:$0xff]
    %v84 = vld [vmem:[%s1 + $0x1e8] sm:$0xff]
    %v85 = vld [vmem:[%s1 + $0x1f0] sm:$0xff]
    %v86 = vld [vmem:[%s1 + $0x1f8] sm:$0xff]
    %v87 = vld [vmem:[%s1 + $0x200] sm:$0xff]
    %v88 = vld [vmem:[%s1 + $0x208] sm:$0xff]
    %v89 = vld [vmem:[%s1 + $0x210] sm:$0xff]
    %v90 = vld [vmem:[%s1 + $0x218] sm:$0xff]
    %v91 = vld [vmem:[%s1 + $0x220] sm:$0xff]
    %v92 = vld [vmem:[%s1 + $0x228] sm:$0xff]
    %v93 = vld [vmem:[%s1 + $0x230] sm:$0xff]
    %v94 = vld [vmem:[%s1 + $0x238] sm:$0xff]
    %v95 = vld [vmem:[%s1 + $0x240] sm:$0xff]
    %v96 = vld [vmem:[%s1 + $0x248] sm:$0xff]
    %v97 = vld [vmem:[%s1 + $0x250] sm:$0xff]
    %v98 = vld [vmem:[%s1 + $0x258] sm:$0xff]
    %v99 = vld [vmem:[%s1 + $0x260] sm:$0xff]
    %v100 = vld [vmem:[%s1 + $0x268] sm:$0xff]
    %v101 = vld [vmem:[%s1 + $0x270] sm:$0xff]
    %v102 = vld [vmem:[%s1 + $0x278] sm:$0xff]
    %v103 = vld [vmem:[%s1 + $0x280] sm:$0xff]
    %v104 = vld [vmem:[%s1 + $0x288] sm:$0xff]
    %v105 = vld [vmem:[%s1 + $0x290] sm:$0xff]
    %v106 = vld [vmem:[%s1 + $0x298] sm:$0xff]
    %v107 = vld [vmem:[%s1 + $0x2a0] sm:$0xff]
    %v108 = vld [vmem:[%s1 + $0x2a8] sm:$0xff]
    %v109 = vld [vmem:[%s1 + $0x2b0] sm:$0xff]
    %v110 = vld [vmem:[%s1 + $0x2b8] sm:$0xff]
    %v111 = vld [vmem:[%s1 + $0x2c0] sm:$0xff]
    %v112 = vld [vmem:[%s1 + $0x2c8] sm:$0xff]
    %v113 = vld [vmem:[%s1 + $0x2d0] sm:$0xff]
    %v114 = vld [vmem:[%s1 + $0x2d8] sm:$0xff]
    %v115 = vld [vmem:[%s1 + $0x2e0] sm:$0xff]
    %v116 = vld [vmem:[%s1 + $0x2e8] sm:$0xff]
    %v117 = vld [vmem:[%s1 + $0x2f0] sm:$0xff]
    %v118 = vld [vmem:[%s1 + $0x2f8] sm:$0xff]
    %v119 = vld [vmem:[%s1 + $0x300] sm:$0xff]
    %v120 = vld [vmem:[%s1 + $0x308] sm:$0xff]
    %v121 = vld [vmem:[%s1 + $0x310] sm:$0xff]
    %v122 = vld [vmem:[%s1 + $0x318] sm:$0xff]
    %v123 = vld [vmem:[%s1 + $0x320] sm:$0xff]
    %v124 = vld [vmem:[%s1 + $0x328] sm:$0xff]
    %v125 = vld [vmem:[%s1 + $0x330] sm:$0xff]
    %v126 = vld [vmem:[%s1 + $0x338] sm:$0xff]
    %v127 = vld [vmem:[%s1 + $0x340] sm:$0xff]
    %v128 = vld [vmem:[%s1 + $0x348] sm:$0xff]
    %v129 = vld [vmem:[%s1 + $0x350] sm:$0xff]
    %v130 = vld [vmem:[%s1 + $0x358] sm:$0xff]
    %v131 = vld [vmem:[%s1 + $0x360] sm:$0xff]
    %v132 = vld [vmem:[%s1 + $0x368] sm:$0xff]
    %v133 = vld [vmem:[%s1 + $0x370] sm:$0xff]
    %v134 = vld [vmem:[%s1 + $0x378] sm:$0xff]
    %v135 = vld [vmem:[%s1 + $0x380] sm:$0xff]
    %v136 = vld [vmem:[%s1 + $0x388] sm:$0xff]
    %v137 = vld [vmem:[%s1 + $0x390] sm:$0xff]
    %v138 = vld [vmem:[%s1 + $0x398] sm:$0xff]
    %v139 = vld [vmem:[%s1 + $0x3a0] sm:$0xff]
    %v140 = vld [vmem:[%s1 + $0x3a8] sm:$0xff]
    %v141 = vld [vmem:[%s1 + $0x3b0] sm:$0xff]
    %v142 = vld [vmem:[%s1 + $0x3b8] sm:$0xff]
    %v143 = vld [vmem:[%s1 + $0x3c0] sm:$0xff]
    %v144 = vld [vmem:[%s1 + $0x3c8] sm:$0xff]
    %v145 = vld [vmem:[%s1 + $0x3d0] sm:$0xff]
    %v146 = vld [vmem:[%s1 + $0x3d8] sm:$0xff]
    %v147 = vld [vmem:[%s1 + $0x3e0] sm:$0xff]
    %v148 = vld [vmem:[%s1 + $0x3e8] sm:$0xff]
    %v149 = vld [vmem:[%s1 + $0x3f0] sm:$0xff]
    %v150 = vld [vmem:[%s1 + $0x3f8] sm:$0xff]
    %v151 = vld [vmem:[%s2] sm:$0x1]
    %v153 = vlaneseq
    %v154 = vshrl.u32 %v153, 7
    %v155 = vsub.s32 0, %v154
    %v156 = vrot.slane %v151, %v155
    %v160 = vcombine.high %v21, %v21
    %v162 = vunpack.c.l.s4 1983009808
    %v163 = vunpack.c.0.s8 %v162
    %v164 = vlaneseq
    %v165 = vshrl.u32 %v164, 7
    %v166 = vsub.s32 %v163, %v165
    %v167 = vrot.slane %v21, %v166
    %v169 = vunpack.c.l.s4 1983009808
    %v170 = vunpack.c.0.s8 %v169
    %v171 = vlaneseq
    %v172 = vshrl.u32 %v171, 7
    %v173 = vsub.s32 %v170, %v172
    %v174 = vrot.slane %v160, %v173
    %v175 = vcombine.high %v167, %v167
    %v176 = vcombine.high %v174, %v174
    %v177 = vcombine.high %v22, %v22
    %v179 = vunpack.c.l.s4 1983009808
    %v180 = vunpack.c.0.s8 %v179
    %v181 = vlaneseq
    %v182 = vshrl.u32 %v181, 7
    %v183 = vsub.s32 %v180, %v182
    %v184 = vrot.slane %v22, %v183
    %v186 = vunpack.c.l.s4 1983009808
    %v187 = vunpack.c.0.s8 %v186
    %v188 = vlaneseq
    %v189 = vshrl.u32 %v188, 7
    %v190 = vsub.s32 %v187, %v189
    %v191 = vrot.slane %v177, %v190
    %v192 = vcombine.high %v184, %v184
    %v193 = vcombine.high %v191, %v191
    %202 = vmatprep.subr.mxu0 0.0
    %203 = vmatpush1.msra.mxu0 %v23
    %204 = vmatprep.subr.mxu0 0.0
    %205 = vmatpush1.msra.mxu0 %v24
    %206 = vmatprep.subr.mxu0 0.0
    %207 = vmatpush1.msra.mxu0 %v25
    %208 = vmatprep.subr.mxu0 0.0
    %209 = vmatpush1.msra.mxu0 %v26
    %210 = vmatprep.subr.mxu0 0.0
    %211 = vmatpush1.msra.mxu0 %v27
    %212 = vmatprep.subr.mxu0 0.0
    %213 = vmatpush1.msra.mxu0 %v28
    %214 = vmatprep.subr.mxu0 0.0
    %215 = vmatpush1.msra.mxu0 %v29
    %216 = vmatprep.subr.mxu0 0.0
    %217 = vmatpush1.msra.mxu0 %v30
    %218 = vmatprep.subr.mxu0 0.0
    %219 = vmatpush1.msra.mxu0 %v31
    %220 = vmatprep.subr.mxu0 0.0
    %221 = vmatpush1.msra.mxu0 %v32
    %222 = vmatprep.subr.mxu0 0.0
    %223 = vmatpush1.msra.mxu0 %v33
    %224 = vmatprep.subr.mxu0 0.0
    %225 = vmatpush1.msra.mxu0 %v34
    %226 = vmatprep.subr.mxu0 0.0
    %227 = vmatpush1.msra.mxu0 %v35
    %228 = vmatprep.subr.mxu0 0.0
    %229 = vmatpush1.msra.mxu0 %v36
    %230 = vmatprep.subr.mxu0 0.0
    %231 = vmatpush1.msra.mxu0 %v37
    %232 = vmatprep.subr.mxu0 0.0
    %233 = vmatpush1.msra.mxu0 %v38
    %234 = vmatprep.subr.mxu0 0.0
    %235 = vmatpush1.msra.mxu0 %v39
    %236 = vmatprep.subr.mxu0 0.0
    %237 = vmatpush1.msra.mxu0 %v40
    %238 = vmatprep.subr.mxu0 0.0
    %239 = vmatpush1.msra.mxu0 %v41
    %240 = vmatprep.subr.mxu0 0.0
    %241 = vmatpush1.msra.mxu0 %v42
    %242 = vmatprep.subr.mxu0 0.0
    %243 = vmatpush1.msra.mxu0 %v43
    %244 = vmatprep.subr.mxu0 0.0
    %245 = vmatpush1.msra.mxu0 %v44
    %246 = vmatprep.subr.mxu0 0.0
    %247 = vmatpush1.msra.mxu0 %v45
    %248 = vmatprep.subr.mxu0 0.0
    %249 = vmatpush1.msra.mxu0 %v46
    %250 = vmatprep.subr.mxu0 0.0
    %251 = vmatpush1.msra.mxu0 %v47
    %252 = vmatprep.subr.mxu0 0.0
    %253 = vmatpush1.msra.mxu0 %v48
    %254 = vmatprep.subr.mxu0 0.0
    %255 = vmatpush1.msra.mxu0 %v49
    %256 = vmatprep.subr.mxu0 0.0
    %257 = vmatpush1.msra.mxu0 %v50
    %258 = vmatprep.subr.mxu0 0.0
    %259 = vmatpush1.msra.mxu0 %v51
    %260 = vmatprep.subr.mxu0 0.0
    %261 = vmatpush1.msra.mxu0 %v52
    %262 = vmatprep.subr.mxu0 0.0
    %263 = vmatpush1.msra.mxu0 %v53
    %264 = vmatprep.subr.mxu0 0.0
    %265 = vmatpush1.msra.mxu0 %v54
    %266 = vmatprep.mubr.f32.mxu0 %v175
    %267 = vmatmul.mubr.f32.gmra.mrb[0].mxu0 %v167
    %v268 = vpop.f32.mrb[0].mxu0
    %v269 = vadd.f32 %v156, %v268
    %v270 = vpop.f32.mrb[0].mxu0
    %271 = vdwg.mxu0
    %272 = vmatprep.subr.mxu0 0.0
    %273 = vmatpush1.msra.mxu0 %v55
    %274 = vmatprep.subr.mxu0 0.0
    %275 = vmatpush1.msra.mxu0 %v56
    %276 = vmatprep.subr.mxu0 0.0
    %277 = vmatpush1.msra.mxu0 %v57
    %278 = vmatprep.subr.mxu0 0.0
    %279 = vmatpush1.msra.mxu0 %v58
    %280 = vmatprep.subr.mxu0 0.0
    %281 = vmatpush1.msra.mxu0 %v59
    %282 = vmatprep.subr.mxu0 0.0
    %283 = vmatpush1.msra.mxu0 %v60
    %284 = vmatprep.subr.mxu0 0.0
    %285 = vmatpush1.msra.mxu0 %v61
    %286 = vmatprep.subr.mxu0 0.0
    %287 = vmatpush1.msra.mxu0 %v62
    %288 = vmatprep.subr.mxu0 0.0
    %289 = vmatpush1.msra.mxu0 %v63
    %290 = vmatprep.subr.mxu0 0.0
    %291 = vmatpush1.msra.mxu0 %v64
    %292 = vmatprep.subr.mxu0 0.0
    %293 = vmatpush1.msra.mxu0 %v65
    %294 = vmatprep.subr.mxu0 0.0
    %295 = vmatpush1.msra.mxu0 %v66
    %296 = vmatprep.subr.mxu0 0.0
    %297 = vmatpush1.msra.mxu0 %v67
    %298 = vmatprep.subr.mxu0 0.0
    %299 = vmatpush1.msra.mxu0 %v68
    %300 = vmatprep.subr.mxu0 0.0
    %301 = vmatpush1.msra.mxu0 %v69
    %302 = vmatprep.subr.mxu0 0.0
    %303 = vmatpush1.msra.mxu0 %v70
    %304 = vmatprep.subr.mxu0 0.0
    %305 = vmatpush1.msra.mxu0 %v71
    %306 = vmatprep.subr.mxu0 0.0
    %307 = vmatpush1.msra.mxu0 %v72
    %308 = vmatprep.subr.mxu0 0.0
    %309 = vmatpush1.msra.mxu0 %v73
    %310 = vmatprep.subr.mxu0 0.0
    %311 = vmatpush1.msra.mxu0 %v74
    %312 = vmatprep.subr.mxu0 0.0
    %313 = vmatpush1.msra.mxu0 %v75
    %314 = vmatprep.subr.mxu0 0.0
    %315 = vmatpush1.msra.mxu0 %v76
    %316 = vmatprep.subr.mxu0 0.0
    %317 = vmatpush1.msra.mxu0 %v77
    %318 = vmatprep.subr.mxu0 0.0
    %319 = vmatpush1.msra.mxu0 %v78
    %320 = vmatprep.subr.mxu0 0.0
    %321 = vmatpush1.msra.mxu0 %v79
    %322 = vmatprep.subr.mxu0 0.0
    %323 = vmatpush1.msra.mxu0 %v80
    %324 = vmatprep.subr.mxu0 0.0
    %325 = vmatpush1.msra.mxu0 %v81
    %326 = vmatprep.subr.mxu0 0.0
    %327 = vmatpush1.msra.mxu0 %v82
    %328 = vmatprep.subr.mxu0 0.0
    %329 = vmatpush1.msra.mxu0 %v83
    %330 = vmatprep.subr.mxu0 0.0
    %331 = vmatpush1.msra.mxu0 %v84
    %332 = vmatprep.subr.mxu0 0.0
    %333 = vmatpush1.msra.mxu0 %v85
    %334 = vmatprep.subr.mxu0 0.0
    %335 = vmatpush1.msra.mxu0 %v86
    %336 = vmatprep.mubr.f32.mxu0 %v176
    %337 = vmatmul.mubr.f32.gmra.mrb[0].mxu0 %v174
    %v338 = vpop.f32.mrb[0].mxu0
    %v339 = vadd.f32 %v269, %v338
    %v340 = vpop.f32.mrb[0].mxu0
    %341 = vdwg.mxu0
    %342 = vmatprep.subr.mxu0 0.0
    %343 = vmatpush1.msra.mxu0 %v87
    %344 = vmatprep.subr.mxu0 0.0
    %345 = vmatpush1.msra.mxu0 %v88
    %346 = vmatprep.subr.mxu0 0.0
    %347 = vmatpush1.msra.mxu0 %v89
    %348 = vmatprep.subr.mxu0 0.0
    %349 = vmatpush1.msra.mxu0 %v90
    %350 = vmatprep.subr.mxu0 0.0
    %351 = vmatpush1.msra.mxu0 %v91
    %352 = vmatprep.subr.mxu0 0.0
    %353 = vmatpush1.msra.mxu0 %v92
    %354 = vmatprep.subr.mxu0 0.0
    %355 = vmatpush1.msra.mxu0 %v93
    %356 = vmatprep.subr.mxu0 0.0
    %357 = vmatpush1.msra.mxu0 %v94
    %358 = vmatprep.subr.mxu0 0.0
    %359 = vmatpush1.msra.mxu0 %v95
    %360 = vmatprep.subr.mxu0 0.0
    %361 = vmatpush1.msra.mxu0 %v96
    %362 = vmatprep.subr.mxu0 0.0
    %363 = vmatpush1.msra.mxu0 %v97
    %364 = vmatprep.subr.mxu0 0.0
    %365 = vmatpush1.msra.mxu0 %v98
    %366 = vmatprep.subr.mxu0 0.0
    %367 = vmatpush1.msra.mxu0 %v99
    %368 = vmatprep.subr.mxu0 0.0
    %369 = vmatpush1.msra.mxu0 %v100
    %370 = vmatprep.subr.mxu0 0.0
    %371 = vmatpush1.msra.mxu0 %v101
    %372 = vmatprep.subr.mxu0 0.0
    %373 = vmatpush1.msra.mxu0 %v102
    %374 = vmatprep.subr.mxu0 0.0
    %375 = vmatpush1.msra.mxu0 %v103
    %376 = vmatprep.subr.mxu0 0.0
    %377 = vmatpush1.msra.mxu0 %v104
    %378 = vmatprep.subr.mxu0 0.0
    %379 = vmatpush1.msra.mxu0 %v105
    %380 = vmatprep.subr.mxu0 0.0
    %381 = vmatpush1.msra.mxu0 %v106
    %382 = vmatprep.subr.mxu0 0.0
    %383 = vmatpush1.msra.mxu0 %v107
    %384 = vmatprep.subr.mxu0 0.0
    %385 = vmatpush1.msra.mxu0 %v108
    %386 = vmatprep.subr.mxu0 0.0
    %387 = vmatpush1.msra.mxu0 %v109
    %388 = vmatprep.subr.mxu0 0.0
    %389 = vmatpush1.msra.mxu0 %v110
    %390 = vmatprep.subr.mxu0 0.0
    %391 = vmatpush1.msra.mxu0 %v111
    %392 = vmatprep.subr.mxu0 0.0
    %393 = vmatpush1.msra.mxu0 %v112
    %394 = vmatprep.subr.mxu0 0.0
    %395 = vmatpush1.msra.mxu0 %v113
    %396 = vmatprep.subr.mxu0 0.0
    %397 = vmatpush1.msra.mxu0 %v114
    %398 = vmatprep.subr.mxu0 0.0
    %399 = vmatpush1.msra.mxu0 %v115
    %400 = vmatprep.subr.mxu0 0.0
    %401 = vmatpush1.msra.mxu0 %v116
    %402 = vmatprep.subr.mxu0 0.0
    %403 = vmatpush1.msra.mxu0 %v117
    %404 = vmatprep.subr.mxu0 0.0
    %405 = vmatpush1.msra.mxu0 %v118
    %406 = vmatprep.mubr.f32.mxu0 %v192
    %407 = vmatmul.mubr.f32.gmra.mrb[0].mxu0 %v184
    %v408 = vpop.f32.mrb[0].mxu0
    %v409 = vadd.f32 %v339, %v408
    %v410 = vpop.f32.mrb[0].mxu0
    %411 = vdwg.mxu0
    %412 = vmatprep.subr.mxu0 0.0
    %413 = vmatpush1.msra.mxu0 %v119
    %414 = vmatprep.subr.mxu0 0.0
    %415 = vmatpush1.msra.mxu0 %v120
    %416 = vmatprep.subr.mxu0 0.0
    %417 = vmatpush1.msra.mxu0 %v121
    %418 = vmatprep.subr.mxu0 0.0
    %419 = vmatpush1.msra.mxu0 %v122
    %420 = vmatprep.subr.mxu0 0.0
    %421 = vmatpush1.msra.mxu0 %v123
    %422 = vmatprep.subr.mxu0 0.0
    %423 = vmatpush1.msra.mxu0 %v124
    %424 = vmatprep.subr.mxu0 0.0
    %425 = vmatpush1.msra.mxu0 %v125
    %426 = vmatprep.subr.mxu0 0.0
    %427 = vmatpush1.msra.mxu0 %v126
    %428 = vmatprep.subr.mxu0 0.0
    %429 = vmatpush1.msra.mxu0 %v127
    %430 = vmatprep.subr.mxu0 0.0
    %431 = vmatpush1.msra.mxu0 %v128
    %432 = vmatprep.subr.mxu0 0.0
    %433 = vmatpush1.msra.mxu0 %v129
    %434 = vmatprep.subr.mxu0 0.0
    %435 = vmatpush1.msra.mxu0 %v130
    %436 = vmatprep.subr.mxu0 0.0
    %437 = vmatpush1.msra.mxu0 %v131
    %438 = vmatprep.subr.mxu0 0.0
    %439 = vmatpush1.msra.mxu0 %v132
    %440 = vmatprep.subr.mxu0 0.0
    %441 = vmatpush1.msra.mxu0 %v133
    %442 = vmatprep.subr.mxu0 0.0
    %443 = vmatpush1.msra.mxu0 %v134
    %444 = vmatprep.subr.mxu0 0.0
    %445 = vmatpush1.msra.mxu0 %v135
    %446 = vmatprep.subr.mxu0 0.0
    %447 = vmatpush1.msra.mxu0 %v136
    %448 = vmatprep.subr.mxu0 0.0
    %449 = vmatpush1.msra.mxu0 %v137
    %450 = vmatprep.subr.mxu0 0.0
    %451 = vmatpush1.msra.mxu0 %v138
    %452 = vmatprep.subr.mxu0 0.0
    %453 = vmatpush1.msra.mxu0 %v139
    %454 = vmatprep.subr.mxu0 0.0
    %455 = vmatpush1.msra.mxu0 %v140
    %456 = vmatprep.subr.mxu0 0.0
    %457 = vmatpush1.msra.mxu0 %v141
    %458 = vmatprep.subr.mxu0 0.0
    %459 = vmatpush1.msra.mxu0 %v142
    %460 = vmatprep.subr.mxu0 0.0
    %461 = vmatpush1.msra.mxu0 %v143
    %462 = vmatprep.subr.mxu0 0.0
    %463 = vmatpush1.msra.mxu0 %v144
    %464 = vmatprep.subr.mxu0 0.0
    %465 = vmatpush1.msra.mxu0 %v145
    %466 = vmatprep.subr.mxu0 0.0
    %467 = vmatpush1.msra.mxu0 %v146
    %468 = vmatprep.subr.mxu0 0.0
    %469 = vmatpush1.msra.mxu0 %v147
    %470 = vmatprep.subr.mxu0 0.0
    %471 = vmatpush1.msra.mxu0 %v148
    %472 = vmatprep.subr.mxu0 0.0
    %473 = vmatpush1.msra.mxu0 %v149
    %474 = vmatprep.subr.mxu0 0.0
    %475 = vmatpush1.msra.mxu0 %v150
    %476 = vmatprep.mubr.f32.mxu0 %v193
    %477 = vmatmul.mubr.f32.gmra.mrb[0].mxu0 %v191
    %v478 = vpop.f32.mrb[0].mxu0
    %v479 = vadd.f32 %v409, %v478
    %v480 = vpop.f32.mrb[0].mxu0
    %481 = vdwg.mxu0
    %vm482 = vcmp.ge.f32.partialorder %v479, 0.0
    %v483 = vmul.f32 %v479, 0.1
    %v484 = vsel %vm482, %v479, %v483
    %v485 = vld [vmem:[%s3] sm:$0xff]
    %v486 = vld [vmem:[%s3 + $0x8] sm:$0xff]
    %v487 = vld [vmem:[%s4] sm:$0x1]
    %v489 = vlaneseq
    %v490 = vshrl.u32 %v489, 7
    %v491 = vsub.s32 0, %v490
    %v492 = vrot.slane %v487, %v491
    %vm494 = vcmask 130048
    %v496 = vsel %vm494, %v484, 0
    %498 = vmatprep.subr.mxu0 0.0
    %499 = vmatpush1.msra.mxu0 %v485
    %500 = vmatprep.subr.mxu0 0.0
    %501 = vmatpush1.msra.mxu0 %v486
    %502 = vmatprep.subr.mxu0 0.0
    %503 = vmatpush1.msra.mxu0 0.0
    %504 = vmatprep.subr.mxu0 0.0
    %505 = vmatpush1.msra.mxu0 0.0
    %506 = vmatprep.subr.mxu0 0.0
    %507 = vmatpush1.msra.mxu0 0.0
    %508 = vmatprep.subr.mxu0 0.0
    %509 = vmatpush1.msra.mxu0 0.0
    %510 = vmatprep.subr.mxu0 0.0
    %511 = vmatpush1.msra.mxu0 0.0
    %512 = vmatprep.subr.mxu0 0.0
    %513 = vmatpush1.msra.mxu0 0.0
    %514 = vmatprep.subr.mxu0 0.0
    %515 = vmatpush1.msra.mxu0 0.0
    %516 = vmatprep.subr.mxu0 0.0
    %517 = vmatpush1.msra.mxu0 0.0
    %518 = vmatprep.subr.mxu0 0.0
    %519 = vmatpush1.msra.mxu0 0.0
    %520 = vmatprep.subr.mxu0 0.0
    %521 = vmatpush1.msra.mxu0 0.0
    %522 = vmatprep.subr.mxu0 0.0
    %523 = vmatpush1.msra.mxu0 0.0
    %524 = vmatprep.subr.mxu0 0.0
    %525 = vmatpush1.msra.mxu0 0.0
    %526 = vmatprep.subr.mxu0 0.0
    %527 = vmatpush1.msra.mxu0 0.0
    %528 = vmatprep.subr.mxu0 0.0
    %529 = vmatpush1.msra.mxu0 0.0
    %530 = vmatprep.subr.mxu0 0.0
    %531 = vmatpush1.msra.mxu0 0.0
    %532 = vmatprep.subr.mxu0 0.0
    %533 = vmatpush1.msra.mxu0 0.0
    %534 = vmatprep.subr.mxu0 0.0
    %535 = vmatpush1.msra.mxu0 0.0
    %536 = vmatprep.subr.mxu0 0.0
    %537 = vmatpush1.msra.mxu0 0.0
    %538 = vmatprep.subr.mxu0 0.0
    %539 = vmatpush1.msra.mxu0 0.0
    %540 = vmatprep.subr.mxu0 0.0
    %541 = vmatpush1.msra.mxu0 0.0
    %542 = vmatprep.subr.mxu0 0.0
    %543 = vmatpush1.msra.mxu0 0.0
    %544 = vmatprep.subr.mxu0 0.0
    %545 = vmatpush1.msra.mxu0 0.0
    %546 = vmatprep.subr.mxu0 0.0
    %547 = vmatpush1.msra.mxu0 0.0
    %548 = vmatprep.subr.mxu0 0.0
    %549 = vmatpush1.msra.mxu0 0.0
    %550 = vmatprep.subr.mxu0 0.0
    %551 = vmatpush1.msra.mxu0 0.0
    %552 = vmatprep.subr.mxu0 0.0
    %553 = vmatpush1.msra.mxu0 0.0
    %554 = vmatprep.subr.mxu0 0.0
    %555 = vmatpush1.msra.mxu0 0.0
    %556 = vmatprep.subr.mxu0 0.0
    %557 = vmatpush1.msra.mxu0 0.0
    %558 = vmatprep.subr.mxu0 0.0
    %559 = vmatpush1.msra.mxu0 0.0
    %560 = vmatprep.subr.mxu0 0.0
    %561 = vmatpush1.msra.mxu0 0.0
    %562 = vmatprep.mubr.f32.mxu0 0.0
    %563 = vmatmul.mubr.f32.gmra.mrb[0].mxu0 %v496
    %v564 = vpop.f32.mrb[0].mxu0
    %v565 = vadd.f32 %v492, %v564
    %v566 = vpop.f32.mrb[0].mxu0
    %567 = vdwg.mxu0
    %vm568 = vcmask 9216
    %569 = vst.msk [vmem:[#allocation2] sm:$0x3] %vm568, %v565
    // Predicated region
    $region22: #{meso4_forward.9} parent=1 // pred_check
      _
    $region23: #{meso4_forward.9} parent=1 // pred_check_branch
      %571 = sbr.rel (0) target = $region25
    $region24: #{meso4_forward.9} parent=1 // pred_region
      %s573 = ssub.s32 32, 32
      %574 = vsyncadd [#allocation3], %s573
      %s576 = sshll.u32 [#allocation2], 4
      %s577 = int_to_ptr.vmem [resolvable:$true] %s576
      %579 = dma.vmem_to_hbm [thread:$0]  %s577, 32, %s5, [#allocation3]
    $region25: #{meso4_forward.9} parent=1 // pred_fallthru
      _
    // Predicated region
    $region26: #{meso4_forward.9} parent=1 // pred_check
      _
    $region27: #{meso4_forward.9} parent=1 // pred_check_branch
      %581 = sbr.rel (0) target = $region29
    $region28: #{meso4_forward.9} parent=1 // pred_region
      %582 = dma.done [#allocation3], 32
    $region29: #{meso4_forward.9} parent=1 // pred_fallthru
      _
    %583 = vsyncpa [#allocation3], 1

// kernel: meso4_forward.8
$region0: #{meso4_forward.8}
  #allocation0 [shape = 'u32[]', space=smem, size = 0x4, offset = 0x4, fixed_abs, tag = 'smem constant byte address 0x4 - core index']
  #allocation1 [shape = 'u32[144,128]{1,0:T(1,128)}', space=vmem, size = 0x12000, scoped, tag = 'internal scratch']
  %s0 = inlined_call_operand.vmem [shape: f32[2,36,16,36], index: 0, kind: input, shape index: {}]
  %s1 = inlined_call_operand.vmem [shape: f32[5,16,80], index: 1, kind: input, shape index: {}]
  %s2 = inlined_call_operand.vmem [shape: f32[16,1], index: 2, kind: input, shape index: {}]
  %s3 = inlined_call_operand.vmem [shape: f32[16,1], index: 3, kind: input, shape index: {}]
  %s4 = inlined_call_operand.vmem [shape: f32[32,32], index: 4, kind: input, shape index: {}]
  %s5 = inlined_call_operand.vmem [shape: f32[2,8,16,8], index: 5, kind: output, shape index: {}]
  %s6 = sld [smem:[#allocation0]]
  $region60: #{meso4_forward.8} parent=0
    _
  %s8 = ssub.s32 1, %s6
  %s9 = scalar_select 0, %s8, %s6
  loop: start=0, step=1, limit=4
  $region2: #{meso4_forward.8} parent=0 // loop_pre_header
    _
  $region3: #{meso4_forward.8} parent=0 // loop_header
    %s11 = sphi 0, %s15
    %p12 = scmp.ge.s32.totalorder %s11, 4
    %s21 = sphi 0, %s23
    %s24 = sphi 0, %s21
    %s25 = sphi 0, %s24
    %s41 = sphi 0, %s25
    %s45 = sphi 0, %s45
    %s47 = sphi 0, %s45
    %s48 = sphi 0, %s47
    %s62 = sphi 0, %s48
    %s66 = sphi 0, %s66
    %s68 = sphi 0, %s66
    %s69 = sphi 0, %s68
    %s83 = sphi 0, %s69
    %s87 = sphi 0, %s87
    %s89 = sphi 0, %s87
    %s90 = sphi 0, %s89
    %s104 = sphi 0, %s90
    %s108 = sphi 0, %s108
    %s110 = sphi 0, %s108
    %s111 = sphi 0, %s110
    %s125 = sphi 0, %s111
    %s131 = sphi 0, %s133
    %s134 = sphi 0, %s131
    %s135 = sphi 0, %s134
    %s151 = sphi 0, %s135
  $region4: #{meso4_forward.8} parent=0 // loop_header_branch
    %14 = sbr.rel (%p12) target = $region8
  $region5: #{meso4_forward.8} parent=0 // loop_body
    %s16 = ssub.s32 %s11, 1
    %s17 = ssub.s32 %s11, 2
    %s18 = sadd.s32 %s11, 1
    %s19 = ssub.s32 %s11, %s18
    %p20 = scmp.eq.s32.totalorder %s19, 0
    %s22 = sadd.s32 %s21, 1
    %s23 = scalar_select %p20, %s21, %s22
    %p26 = pneg %p20
    %p27 = scmp.eq.s32.totalorder %s11, 1
    %p28 = por %p26, %p27
    %p29 = scmp.ne.s32.totalorder %s21, %s24
    %p30 = scmp.eq.s32.totalorder %s11, 0
    %p31 = por %p29, %p30
    %p32 = scmp.ne.s32.totalorder %s21, %s24
    %p33 = scmp.eq.s32.totalorder %s16, 1
    %p34 = por %p32, %p33
    %p35 = scmp.ne.s32.totalorder %s24, %s25
    %p36 = scmp.eq.s32.totalorder %s16, 0
    %p37 = por %p35, %p36
    %p38 = scmp.ne.s32.totalorder %s24, %s25
    %p39 = scmp.eq.s32.totalorder %s17, 1
    %p40 = por %p38, %p39
    %p42 = scmp.ne.s32.totalorder %s25, %s41
    %p43 = scmp.eq.s32.totalorder %s17, 0
    %p44 = por %p42, %p43
    %s46 = sadd.s32 %s45, 1
    %p49 = scmp.eq.s32.totalorder %s11, 1
    %p50 = scmp.ne.s32.totalorder %s45, %s47
    %p51 = scmp.eq.s32.totalorder %s11, 0
    %p52 = por %p50, %p51
    %p53 = scmp.ne.s32.totalorder %s45, %s47
    %p54 = scmp.eq.s32.totalorder %s16, 1
    %p55 = por %p53, %p54
    %p56 = scmp.ne.s32.totalorder %s47, %s48
    %p57 = scmp.eq.s32.totalorder %s16, 0
    %p58 = por %p56, %p57
    %p59 = scmp.ne.s32.totalorder %s47, %s48
    %p60 = scmp.eq.s32.totalorder %s17, 1
    %p61 = por %p59, %p60
    %p63 = scmp.ne.s32.totalorder %s48, %s62
    %p64 = scmp.eq.s32.totalorder %s17, 0
    %p65 = por %p63, %p64
    %s67 = sadd.s32 %s66, 1
    %p70 = scmp.eq.s32.totalorder %s11, 1
    %p71 = scmp.ne.s32.totalorder %s66, %s68
    %p72 = scmp.eq.s32.totalorder %s11, 0
    %p73 = por %p71, %p72
    %p74 = scmp.ne.s32.totalorder %s66, %s68
    %p75 = scmp.eq.s32.totalorder %s16, 1
    %p76 = por %p74, %p75
    %p77 = scmp.ne.s32.totalorder %s68, %s69
    %p78 = scmp.eq.s32.totalorder %s16, 0
    %p79 = por %p77, %p78
    %p80 = scmp.ne.s32.totalorder %s68, %s69
    %p81 = scmp.eq.s32.totalorder %s17, 1
    %p82 = por %p80, %p81
    %p84 = scmp.ne.s32.totalorder %s69, %s83
    %p85 = scmp.eq.s32.totalorder %s17, 0
    %p86 = por %p84, %p85
    %s88 = sadd.s32 %s87, 1
    %p91 = scmp.eq.s32.totalorder %s11, 1
    %p92 = scmp.ne.s32.totalorder %s87, %s89
    %p93 = scmp.eq.s32.totalorder %s11, 0
    %p94 = por %p92, %p93
    %p95 = scmp.ne.s32.totalorder %s87, %s89
    %p96 = scmp.eq.s32.totalorder %s16, 1
    %p97 = por %p95, %p96
    %p98 = scmp.ne.s32.totalorder %s89, %s90
    %p99 = scmp.eq.s32.totalorder %s16, 0
    %p100 = por %p98, %p99
    %p101 = scmp.ne.s32.totalorder %s89, %s90
    %p102 = scmp.eq.s32.totalorder %s17, 1
    %p103 = por %p101, %p102
    %p105 = scmp.ne.s32.totalorder %s90, %s104
    %p106 = scmp.eq.s32.totalorder %s17, 0
    %p107 = por %p105, %p106
    %s109 = sadd.s32 %s108, 1
    %p112 = scmp.eq.s32.totalorder %s11, 1
    %p113 = scmp.ne.s32.totalorder %s108, %s110
    %p114 = scmp.eq.s32.totalorder %s11, 0
    %p115 = por %p113, %p114
    %p116 = scmp.ne.s32.totalorder %s108, %s110
    %p117 = scmp.eq.s32.totalorder %s16, 1
    %p118 = por %p116, %p117
    %p119 = scmp.ne.s32.totalorder %s110, %s111
    %p120 = scmp.eq.s32.totalorder %s16, 0
    %p121 = por %p119, %p120
    %p122 = scmp.ne.s32.totalorder %s110, %s111
    %p123 = scmp.eq.s32.totalorder %s17, 1
    %p124 = por %p122, %p123
    %p126 = scmp.ne.s32.totalorder %s111, %s125
    %p127 = scmp.eq.s32.totalorder %s17, 0
    %p128 = por %p126, %p127
    %s129 = ssub.s32 %s11, %s18
    %p130 = scmp.eq.s32.totalorder %s129, 0
    %s132 = sadd.s32 %s131, 1
    %s133 = scalar_select %p130, %s131, %s132
    %p136 = pneg %p130
    %p137 = scmp.eq.s32.totalorder %s11, 1
    %p138 = por %p136, %p137
    %p139 = scmp.ne.s32.totalorder %s131, %s134
    %p140 = scmp.eq.s32.totalorder %s11, 0
    %p141 = por %p139, %p140
    %p142 = scmp.ne.s32.totalorder %s131, %s134
    %p143 = scmp.eq.s32.totalorder %s16, 1
    %p144 = por %p142, %p143
    %p145 = scmp.ne.s32.totalorder %s134, %s135
    %p146 = scmp.eq.s32.totalorder %s16, 0
    %p147 = por %p145, %p146
    %p148 = scmp.ne.s32.totalorder %s134, %s135
    %p149 = scmp.eq.s32.totalorder %s17, 1
    %p150 = por %p148, %p149
    %p152 = scmp.ne.s32.totalorder %s135, %s151
    %p153 = scmp.eq.s32.totalorder %s17, 0
    %p154 = por %p152, %p153
    %p155 = scmp.le.s32.totalorder 1, %s11
    %p156 = scmp.lt.s32.totalorder %s11, 3
    %p157 = pnand %p155, %p156
    %p158 = pneg %p157
    // Predicated region
    $region9: #{meso4_forward.8} parent=5 // pred_check
      _
    $region10: #{meso4_forward.8} parent=5 // pred_check_branch
      %160 = sbr.rel (%p157) target = $region12
    $region11: #{meso4_forward.8} parent=5 // pred_region
      %s161 = ssub.s32 %s11, 1
      // Predicated region
      $region13: #{meso4_forward.8} parent=11 // pred_check
        %p162 = pneg %p58
      $region14: #{meso4_forward.8} parent=11 // pred_check_branch
        %164 = sbr.rel (%p162) target = $region16
      $region15: #{meso4_forward.8} parent=11 // pred_region
        _
      $region16: #{meso4_forward.8} parent=11 // pred_fallthru
        _
      // Predicated region
      $region17: #{meso4_forward.8} parent=11 // pred_check
        %p165 = pneg %p79
      $region18: #{meso4_forward.8} parent=11 // pred_check_branch
        %167 = sbr.rel (%p165) target = $region20
      $region19: #{meso4_forward.8} parent=11 // pred_region
        _
      $region20: #{meso4_forward.8} parent=11 // pred_fallthru
        _
      // Predicated region
      $region21: #{meso4_forward.8} parent=11 // pred_check
        %p168 = pneg %p100
      $region22: #{meso4_forward.8} parent=11 // pred_check_branch
        %170 = sbr.rel (%p168) target = $region24
      $region23: #{meso4_forward.8} parent=11 // pred_region
        _
      $region24: #{meso4_forward.8} parent=11 // pred_fallthru
        _
      // Predicated region
      $region25: #{meso4_forward.8} parent=11 // pred_check
        %p171 = pneg %p121
      $region26: #{meso4_forward.8} parent=11 // pred_check_branch
        %173 = sbr.rel (%p171) target = $region28
      $region27: #{meso4_forward.8} parent=11 // pred_region
        _
      $region28: #{meso4_forward.8} parent=11 // pred_fallthru
        _
    $region12: #{meso4_forward.8} parent=5 // pred_fallthru
      _
    %p174 = scmp.lt.s32.totalorder %s11, 2
    // Predicated region
    $region29: #{meso4_forward.8} parent=5 // pred_check
      %p175 = pneg %p174
    $region30: #{meso4_forward.8} parent=5 // pred_check_branch
      %177 = sbr.rel (%p175) target = $region32
    $region31: #{meso4_forward.8} parent=5 // pred_region
      // Predicated region
      $region33: #{meso4_forward.8} parent=31 // pred_check
        %p178 = pneg %p31
      $region34: #{meso4_forward.8} parent=31 // pred_check_branch
        %180 = sbr.rel (%p178) target = $region36
      $region35: #{meso4_forward.8} parent=31 // pred_region
        %p181 = scmp.lt.s32.totalorder %s11, 1
        %s182 = scalar_select %p181, %s11, 1
        %s183 = smul.addr %s182, 72
        %s184 = smul.addr %s183, 8
        %s185 = scalar_lea.vmem %s0, %s184
      $region36: #{meso4_forward.8} parent=31 // pred_fallthru
        _
    $region32: #{meso4_forward.8} parent=5 // pred_fallthru
      _
    %p186 = scmp.le.s32.totalorder 1, %s11
    %p187 = scmp.lt.s32.totalorder %s11, 3
    %p188 = pnand %p186, %p187
    %p189 = pneg %p188
    // Predicated region
    $region37: #{meso4_forward.8} parent=5 // pred_check
      _
    $region38: #{meso4_forward.8} parent=5 // pred_check_branch
      %191 = sbr.rel (%p188) target = $region40
    $region39: #{meso4_forward.8} parent=5 // pred_region
      %s192 = ssub.s32 %s11, 1
      %p193 = scmp.lt.s32.totalorder %s16, 1
      %s194 = scalar_select %p193, %s16, 1
      %s195 = smul.addr %s194, 72
      %s196 = smul.addr %s195, 8
      %s197 = scalar_lea.vmem %s0, %s196
      %p198 = pneg %p37
      %p199 = pneg %p34
      %p200 = pneg %p58
      %p201 = pneg %p55
      %p202 = pneg %p79
      %p203 = pneg %p76
      %p204 = pneg %p100
      %p205 = pneg %p97
      %p206 = pneg %p121
      %p207 = pneg %p118
      %p208 = pneg %p147
      %p209 = pneg %p144
      %p210 = scmp.lt.s32.totalorder %s16, 1
      %s211 = scalar_select %p210, %s16, 1
      %s212 = smul.addr %s211, 16
      %s213 = smul.addr %s212, 8
      %s214 = scalar_lea.vmem %s5, %s213
      %p215 = scmp.lt.s32.totalorder %s16, 1
      %s216 = scalar_select %p215, %s16, 1
      %s217 = smul.addr %s216, 72
      %s218 = smul.addr %s217, 8
      %s219 = scalar_lea.vmem %s0, %s218
      %p220 = scmp.lt.s32.totalorder %s16, 1
      %s221 = scalar_select %p220, %s16, 1
      %s222 = smul.addr %s221, 16
      %s223 = smul.addr %s222, 8
      %s224 = scalar_lea.vmem %s5, %s223
      %v225 = vld [vmem:[%s2] sm:$0xff]
      %v226 = vld [vmem:[%s2 + $0x8] sm:$0xff]
      %228 = vset.pattern.permute.xlu0 0
      %229 = vperm.xlu0 %228, %v225
      %v230 = vpop.permute.xlu0 %229
      %233 = vset.pattern.permute.xlu0 0
      %234 = vperm.xlu0 %233, %v226
      %v235 = vpop.permute.xlu0 %234
      %v237 = vld [vmem:[%s3] sm:$0xff]
      %v238 = vld [vmem:[%s3 + $0x8] sm:$0xff]
      %240 = vset.pattern.permute.xlu0 0
      %241 = vperm.xlu0 %240, %v237
      %v242 = vpop.permute.xlu0 %241
      %245 = vset.pattern.permute.xlu0 0
      %246 = vperm.xlu0 %245, %v238
      %v247 = vpop.permute.xlu0 %246
      loop: start=0, step=1, limit=8
      $region41: #{meso4_forward.8} parent=39 // loop_pre_header
        _
      $region42: #{meso4_forward.8} parent=39 // loop_header
        %s250 = sphi 0, %s254
        %p251 = scmp.ge.s32.totalorder %s250, 8
      $region43: #{meso4_forward.8} parent=39 // loop_header_branch
        %253 = sbr.rel (%p251) target = $region47
      $region44: #{meso4_forward.8} parent=39 // loop_body
        %s255 = smul.u32 %s250, 4
        %s256 = smul.u32 %s255, 16
        %s257 = scalar_lea.vmem %s219, %s256
        %v258 = vld [vmem:[%s257] sm:$0xff]
        %v259 = vld [vmem:[%s257 + $0x8] sm:$0xff]
        %262 = vrot.lane.b32.xlu0 %v258, 127
        %v263 = vpop.permute.xlu0 %262
        %264 = vrot.lane.b32.xlu0 %v259, 127
        %v265 = vpop.permute.xlu0 %264
        %268 = vrot.lane.b32.xlu0 %v258, 126
        %v269 = vpop.permute.xlu0 %268
        %270 = vrot.lane.b32.xlu0 %v259, 126
        %v271 = vpop.permute.xlu0 %270
        %274 = vrot.lane.b32.xlu0 %v258, 125
        %v275 = vpop.permute.xlu0 %274
        %276 = vrot.lane.b32.xlu0 %v259, 125
        %v277 = vpop.permute.xlu0 %276
        %280 = vrot.lane.b32.xlu0 %v258, 124
        %v281 = vpop.permute.xlu0 %280
        %282 = vrot.lane.b32.xlu0 %v259, 124
        %v283 = vpop.permute.xlu0 %282
        %v286 = vld [vmem:[%s1] sm:$0xff]
        %v287 = vld [vmem:[%s1 + $0x8] sm:$0xff]
        %s288 = sadd.s32 %s255, 1
        %s289 = smul.u32 %s288, 16
        %s290 = scalar_lea.vmem %s219, %s289
        %v291 = vld [vmem:[%s290] sm:$0xff]
        %v292 = vld [vmem:[%s290 + $0x8] sm:$0xff]
        %295 = vrot.lane.b32.xlu0 %v291, 127
        %v296 = vpop.permute.xlu0 %295
        %297 = vrot.lane.b32.xlu0 %v292, 127
        %v298 = vpop.permute.xlu0 %297
        %301 = vrot.lane.b32.xlu0 %v291, 126
        %v302 = vpop.permute.xlu0 %301
        %303 = vrot.lane.b32.xlu0 %v292, 126
        %v304 = vpop.permute.xlu0 %303
        %307 = vrot.lane.b32.xlu0 %v291, 125
        %v308 = vpop.permute.xlu0 %307
        %309 = vrot.lane.b32.xlu0 %v292, 125
        %v310 = vpop.permute.xlu0 %309
        %313 = vrot.lane.b32.xlu0 %v291, 124
        %v314 = vpop.permute.xlu0 %313
        %315 = vrot.lane.b32.xlu0 %v292, 124
        %v316 = vpop.permute.xlu0 %315
        %s319 = scalar_lea.vmem %s1, 16
        %v320 = vld [vmem:[%s319] sm:$0xff]
        %v321 = vld [vmem:[%s319 + $0x8] sm:$0xff]
        %vm322 = vcmask 654336
        %v324 = vsel %vm322, %v320, 0
        %v327 = vsel %vm322, %v321, 0
        %329 = vmatprep.subr.mxu0 0.0
        %330 = vmatpush1.msra.mxu0 %v291
        %331 = vmatprep.subr.mxu0 0.0
        %332 = vmatpush1.msra.mxu0 %v292
        %333 = vmatprep.subr.mxu0 0.0
        %334 = vmatpush1.msra.mxu0 %v296
        %335 = vmatprep.subr.mxu0 0.0
        %336 = vmatpush1.msra.mxu0 %v298
        %337 = vmatprep.subr.mxu0 0.0
        %338 = vmatpush1.msra.mxu0 %v302
        %339 = vmatprep.subr.mxu0 0.0
        %340 = vmatpush1.msra.mxu0 %v304
        %341 = vmatprep.subr.mxu0 0.0
        %342 = vmatpush1.msra.mxu0 %v308
        %343 = vmatprep.subr.mxu0 0.0
        %344 = vmatpush1.msra.mxu0 %v310
        %345 = vmatprep.subr.mxu0 0.0
        %346 = vmatpush1.msra.mxu0 %v314
        %347 = vmatprep.subr.mxu0 0.0
        %348 = vmatpush1.msra.mxu0 %v316
        %349 = vmatprep.subr.mxu0 0.0
        %350 = vmatpush1.msra.mxu0 0.0
        %351 = vmatprep.subr.mxu0 0.0
        %352 = vmatpush1.msra.mxu0 0.0
        %353 = vmatprep.subr.mxu0 0.0
        %354 = vmatpush1.msra.mxu0 0.0
        %355 = vmatprep.subr.mxu0 0.0
        %356 = vmatpush1.msra.mxu0 0.0
        %357 = vmatprep.subr.mxu0 0.0
        %358 = vmatpush1.msra.mxu0 0.0
        %359 = vmatprep.subr.mxu0 0.0
        %360 = vmatpush1.msra.mxu0 0.0
        %361 = vmatprep.subr.mxu0 0.0
        %362 = vmatpush1.msra.mxu0 0.0
        %363 = vmatprep.subr.mxu0 0.0
        %364 = vmatpush1.msra.mxu0 0.0
        %365 = vmatprep.subr.mxu0 0.0
        %366 = vmatpush1.msra.mxu0 0.0
        %367 = vmatprep.subr.mxu0 0.0
        %368 = vmatpush1.msra.mxu0 0.0
        %369 = vmatprep.subr.mxu0 0.0
        %370 = vmatpush1.msra.mxu0 0.0
        %371 = vmatprep.subr.mxu0 0.0
        %372 = vmatpush1.msra.mxu0 0.0
        %373 = vmatprep.subr.mxu0 0.0
        %374 = vmatpush1.msra.mxu0 0.0
        %375 = vmatprep.subr.mxu0 0.0
        %376 = vmatpush1.msra.mxu0 0.0
        %377 = vmatprep.subr.mxu0 0.0
        %378 = vmatpush1.msra.mxu0 0.0
        %379 = vmatprep.subr.mxu0 0.0
        %380 = vmatpush1.msra.mxu0 0.0
        %381 = vmatprep.subr.mxu0 0.0
        %382 = vmatpush1.msra.mxu0 0.0
        %383 = vmatprep.subr.mxu0 0.0
        %384 = vmatpush1.msra.mxu0 0.0
        %385 = vmatprep.subr.mxu0 0.0
        %386 = vmatpush1.msra.mxu0 0.0
        %387 = vmatprep.subr.mxu0 0.0
        %388 = vmatpush1.msra.mxu0 0.0
        %389 = vmatprep.subr.mxu0 0.0
        %390 = vmatpush1.msra.mxu0 0.0
        %391 = vmatprep.subr.mxu0 0.0
        %392 = vmatpush1.msra.mxu0 0.0
        %393 = vmatprep.mubr.f32.mxu0 0.0
        %394 = vmatmul.mubr.f32.gmra.mrb[0].mxu0 %v324
        %v395 = vpop.f32.mrb[0].mxu0
        %v396 = vadd.f32 0.0, %v395
        %v397 = vpop.f32.mrb[0].mxu0
        %398 = vmatprep.mubr.f32.mxu0 0.0
        %399 = vmatmul.mubr.f32.gmra.mrb[0].mxu0 %v327
        %v400 = vpop.f32.mrb[0].mxu0
        %v401 = vadd.f32 0.0, %v400
        %v402 = vpop.f32.mrb[0].mxu0
        %403 = vdwg.mxu0
        %v405 = vsel %vm322, %v286, 0
        %v408 = vsel %vm322, %v287, 0
        %410 = vmatprep.subr.mxu0 0.0
        %411 = vmatpush1.msra.mxu0 %v258
        %412 = vmatprep.subr.mxu0 0.0
        %413 = vmatpush1.msra.mxu0 %v259
        %414 = vmatprep.subr.mxu0 0.0
        %415 = vmatpush1.msra.mxu0 %v263
        %416 = vmatprep.subr.mxu0 0.0
        %417 = vmatpush1.msra.mxu0 %v265
        %418 = vmatprep.subr.mxu0 0.0
        %419 = vmatpush1.msra.mxu0 %v269
        %420 = vmatprep.subr.mxu0 0.0
        %421 = vmatpush1.msra.mxu0 %v271
        %422 = vmatprep.subr.mxu0 0.0
        %423 = vmatpush1.msra.mxu0 %v275
        %424 = vmatprep.subr.mxu0 0.0
        %425 = vmatpush1.msra.mxu0 %v277
        %426 = vmatprep.subr.mxu0 0.0
        %427 = vmatpush1.msra.mxu0 %v281
        %428 = vmatprep.subr.mxu0 0.0
        %429 = vmatpush1.msra.mxu0 %v283
        %430 = vmatprep.subr.mxu0 0.0
        %431 = vmatpush1.msra.mxu0 0.0
        %432 = vmatprep.subr.mxu0 0.0
        %433 = vmatpush1.msra.mxu0 0.0
        %434 = vmatprep.subr.mxu0 0.0
        %435 = vmatpush1.msra.mxu0 0.0
        %436 = vmatprep.subr.mxu0 0.0
        %437 = vmatpush1.msra.mxu0 0.0
        %438 = vmatprep.subr.mxu0 0.0
        %439 = vmatpush1.msra.mxu0 0.0
        %440 = vmatprep.subr.mxu0 0.0
        %441 = vmatpush1.msra.mxu0 0.0
        %442 = vmatprep.subr.mxu0 0.0
        %443 = vmatpush1.msra.mxu0 0.0
        %444 = vmatprep.subr.mxu0 0.0
        %445 = vmatpush1.msra.mxu0 0.0
        %446 = vmatprep.subr.mxu0 0.0
        %447 = vmatpush1.msra.mxu0 0.0
        %448 = vmatprep.subr.mxu0 0.0
        %449 = vmatpush1.msra.mxu0 0.0
        %450 = vmatprep.subr.mxu0 0.0
        %451 = vmatpush1.msra.mxu0 0.0
        %452 = vmatprep.subr.mxu0 0.0
        %453 = vmatpush1.msra.mxu0 0.0
        %454 = vmatprep.subr.mxu0 0.0
        %455 = vmatpush1.msra.mxu0 0.0
        %456 = vmatprep.subr.mxu0 0.0
        %457 = vmatpush1.msra.mxu0 0.0
        %458 = vmatprep.subr.mxu0 0.0
        %459 = vmatpush1.msra.mxu0 0.0
        %460 = vmatprep.subr.mxu0 0.0
        %461 = vmatpush1.msra.mxu0 0.0
        %462 = vmatprep.subr.mxu0 0.0
        %463 = vmatpush1.msra.mxu0 0.0
        %464 = vmatprep.subr.mxu0 0.0
        %465 = vmatpush1.msra.mxu0 0.0
        %466 = vmatprep.subr.mxu0 0.0
        %467 = vmatpush1.msra.mxu0 0.0
        %468 = vmatprep.subr.mxu0 0.0
        %469 = vmatpush1.msra.mxu0 0.0
        %470 = vmatprep.subr.mxu0 0.0
        %471 = vmatpush1.msra.mxu0 0.0
        %472 = vmatprep.subr.mxu0 0.0
        %473 = vmatpush1.msra.mxu0 0.0
        %474 = vmatprep.mubr.f32.mxu0 0.0
        %475 = vmatmul.mubr.f32.gmra.mrb[0].mxu0 %v405
        %v476 = vpop.f32.mrb[0].mxu0
        %v477 = vadd.f32 %v396, %v476
        %v478 = vpop.f32.mrb[0].mxu0
        %479 = vmatprep.mubr.f32.mxu0 0.0
        %480 = vmatmul.mubr.f32.gmra.mrb[0].mxu0 %v408
        %v481 = vpop.f32.mrb[0].mxu0
        %v482 = vadd.f32 %v401, %v481
        %v483 = vpop.f32.mrb[0].mxu0
        %484 = vdwg.mxu0
        %s485 = sadd.s32 %s255, 2
        %s486 = smul.u32 %s485, 16
        %s487 = scalar_lea.vmem %s219, %s486
        %v488 = vld [vmem:[%s487] sm:$0xff]
        %v489 = vld [vmem:[%s487 + $0x8] sm:$0xff]
        %492 = vrot.lane.b32.xlu0 %v488, 127
        %v493 = vpop.permute.xlu0 %492
        %494 = vrot.lane.b32.xlu0 %v489, 127
        %v495 = vpop.permute.xlu0 %494
        %498 = vrot.lane.b32.xlu0 %v488, 126
        %v499 = vpop.permute.xlu0 %498
        %500 = vrot.lane.b32.xlu0 %v489, 126
        %v501 = vpop.permute.xlu0 %500
        %504 = vrot.lane.b32.xlu0 %v488, 125
        %v505 = vpop.permute.xlu0 %504
        %506 = vrot.lane.b32.xlu0 %v489, 125
        %v507 = vpop.permute.xlu0 %506
        %510 = vrot.lane.b32.xlu0 %v488, 124
        %v511 = vpop.permute.xlu0 %510
        %512 = vrot.lane.b32.xlu0 %v489, 124
        %v513 = vpop.permute.xlu0 %512
        %s516 = scalar_lea.vmem %s1, 32
        %v517 = vld [vmem:[%s516] sm:$0xff]
        %v518 = vld [vmem:[%s516 + $0x8] sm:$0xff]
        %v520 = vsel %vm322, %v517, 0
        %v523 = vsel %vm322, %v518, 0
        %525 = vmatprep.subr.mxu0 0.0
        %526 = vmatpush1.msra.mxu0 %v488
        %527 = vmatprep.subr.mxu0 0.0
        %528 = vmatpush1.msra.mxu0 %v489
        %529 = vmatprep.subr.mxu0 0.0
        %530 = vmatpush1.msra.mxu0 %v493
        %531 = vmatprep.subr.mxu0 0.0
        %532 = vmatpush1.msra.mxu0 %v495
        %533 = vmatprep.subr.mxu0 0.0
        %534 = vmatpush1.msra.mxu0 %v499
        %535 = vmatprep.subr.mxu0 0.0
        %536 = vmatpush1.msra.mxu0 %v501
        %537 = vmatprep.subr.mxu0 0.0
        %538 = vmatpush1.msra.mxu0 %v505
        %539 = vmatprep.subr.mxu0 0.0
        %540 = vmatpush1.msra.mxu0 %v507
        %541 = vmatprep.subr.mxu0 0.0
        %542 = vmatpush1.msra.mxu0 %v511
        %543 = vmatprep.subr.mxu0 0.0
        %544 = vmatpush1.msra.mxu0 %v513
        %545 = vmatprep.subr.mxu0 0.0
        %546 = vmatpush1.msra.mxu0 0.0
        %547 = vmatprep.subr.mxu0 0.0
        %548 = vmatpush1.msra.mxu0 0.0
        %549 = vmatprep.subr.mxu0 0.0
        %550 = vmatpush1.msra.mxu0 0.0
        %551 = vmatprep.subr.mxu0 0.0
        %552 = vmatpush1.msra.mxu0 0.0
        %553 = vmatprep.subr.mxu0 0.0
        %554 = vmatpush1.msra.mxu0 0.0
        %555 = vmatprep.subr.mxu0 0.0
        %556 = vmatpush1.msra.mxu0 0.0
        %557 = vmatprep.subr.mxu0 0.0
        %558 = vmatpush1.msra.mxu0 0.0
        %559 = vmatprep.subr.mxu0 0.0
        %560 = vmatpush1.msra.mxu0 0.0
        %561 = vmatprep.subr.mxu0 0.0
        %562 = vmatpush1.msra.mxu0 0.0
        %563 = vmatprep.subr.mxu0 0.0
        %564 = vmatpush1.msra.mxu0 0.0
        %565 = vmatprep.subr.mxu0 0.0
        %566 = vmatpush1.msra.mxu0 0.0
        %567 = vmatprep.subr.mxu0 0.0
        %568 = vmatpush1.msra.mxu0 0.0
        %569 = vmatprep.subr.mxu0 0.0
        %570 = vmatpush1.msra.mxu0 0.0
        %571 = vmatprep.subr.mxu0 0.0
        %572 = vmatpush1.msra.mxu0 0.0
        %573 = vmatprep.subr.mxu0 0.0
        %574 = vmatpush1.msra.mxu0 0.0
        %575 = vmatprep.subr.mxu0 0.0
        %576 = vmatpush1.msra.mxu0 0.0
        %577 = vmatprep.subr.mxu0 0.0
        %578 = vmatpush1.msra.mxu0 0.0
        %579 = vmatprep.subr.mxu0 0.0
        %580 = vmatpush1.msra.mxu0 0.0
        %581 = vmatprep.subr.mxu0 0.0
        %582 = vmatpush1.msra.mxu0 0.0
        %583 = vmatprep.subr.mxu0 0.0
        %584 = vmatpush1.msra.mxu0 0.0
        %585 = vmatprep.subr.mxu0 0.0
        %586 = vmatpush1.msra.mxu0 0.0
        %587 = vmatprep.subr.mxu0 0.0
        %588 = vmatpush1.msra.mxu0 0.0
        %589 = vmatprep.mubr.f32.mxu0 0.0
        %590 = vmatmul.mubr.f32.gmra.mrb[0].mxu0 %v520
        %v591 = vpop.f32.mrb[0].mxu0
        %v592 = vadd.f32 0.0, %v591
        %v593 = vpop.f32.mrb[0].mxu0
        %594 = vmatprep.mubr.f32.mxu0 0.0
        %595 = vmatmul.mubr.f32.gmra.mrb[0].mxu0 %v523
        %v596 = vpop.f32.mrb[0].mxu0
        %v597 = vadd.f32 0.0, %v596
        %v598 = vpop.f32.mrb[0].mxu0
        %599 = vdwg.mxu0
        %v600 = vadd.f32 %v477, %v592
        %v601 = vadd.f32 %v482, %v597
        %602 = vmatprep.subr.mxu0 0.0
        %603 = vmatpush1.msra.mxu0 %v488
        %604 = vmatprep.subr.mxu0 0.0
        %605 = vmatpush1.msra.mxu0 %v489
        %606 = vmatprep.subr.mxu0 0.0
        %607 = vmatpush1.msra.mxu0 %v493
        %608 = vmatprep.subr.mxu0 0.0
        %609 = vmatpush1.msra.mxu0 %v495
        %610 = vmatprep.subr.mxu0 0.0
        %611 = vmatpush1.msra.mxu0 %v499
        %612 = vmatprep.subr.mxu0 0.0
        %613 = vmatpush1.msra.mxu0 %v501
        %614 = vmatprep.subr.mxu0 0.0
        %615 = vmatpush1.msra.mxu0 %v505
        %616 = vmatprep.subr.mxu0 0.0
        %617 = vmatpush1.msra.mxu0 %v507
        %618 = vmatprep.subr.mxu0 0.0
        %619 = vmatpush1.msra.mxu0 %v511
        %620 = vmatprep.subr.mxu0 0.0
        %621 = vmatpush1.msra.mxu0 %v513
        %622 = vmatprep.subr.mxu0 0.0
        %623 = vmatpush1.msra.mxu0 0.0
        %624 = vmatprep.subr.mxu0 0.0
        %625 = vmatpush1.msra.mxu0 0.0
        %626 = vmatprep.subr.mxu0 0.0
        %627 = vmatpush1.msra.mxu0 0.0
        %628 = vmatprep.subr.mxu0 0.0
        %629 = vmatpush1.msra.mxu0 0.0
        %630 = vmatprep.subr.mxu0 0.0
        %631 = vmatpush1.msra.mxu0 0.0
        %632 = vmatprep.subr.mxu0 0.0
        %633 = vmatpush1.msra.mxu0 0.0
        %634 = vmatprep.subr.mxu0 0.0
        %635 = vmatpush1.msra.mxu0 0.0
        %636 = vmatprep.subr.mxu0 0.0
        %637 = vmatpush1.msra.mxu0 0.0
        %638 = vmatprep.subr.mxu0 0.0
        %639 = vmatpush1.msra.mxu0 0.0
        %640 = vmatprep.subr.mxu0 0.0
        %641 = vmatpush1.msra.mxu0 0.0
        %642 = vmatprep.subr.mxu0 0.0
        %643 = vmatpush1.msra.mxu0 0.0
        %644 = vmatprep.subr.mxu0 0.0
        %645 = vmatpush1.msra.mxu0 0.0
        %646 = vmatprep.subr.mxu0 0.0
        %647 = vmatpush1.msra.mxu0 0.0
        %648 = vmatprep.subr.mxu0 0.0
        %649 = vmatpush1.msra.mxu0 0.0
        %650 = vmatprep.subr.mxu0 0.0
        %651 = vmatpush1.msra.mxu0 0.0
        %652 = vmatprep.subr.mxu0 0.0
        %653 = vmatpush1.msra.mxu0 0.0
        %654 = vmatprep.subr.mxu0 0.0
        %655 = vmatpush1.msra.mxu0 0.0
        %656 = vmatprep.subr.mxu0 0.0
        %657 = vmatpush1.msra.mxu0 0.0
        %658 = vmatprep.subr.mxu0 0.0
        %659 = vmatpush1.msra.mxu0 0.0
        %660 = vmatprep.subr.mxu0 0.0
        %661 = vmatpush1.msra.mxu0 0.0
        %662 = vmatprep.subr.mxu0 0.0
        %663 = vmatpush1.msra.mxu0 0.0
        %664 = vmatprep.subr.mxu0 0.0
        %665 = vmatpush1.msra.mxu0 0.0
        %666 = vmatprep.mubr.f32.mxu0 0.0
        %667 = vmatmul.mubr.f32.gmra.mrb[0].mxu0 %v324
        %v668 = vpop.f32.mrb[0].mxu0
        %v669 = vadd.f32 0.0, %v668
        %v670 = vpop.f32.mrb[0].mxu0
        %671 = vmatprep.mubr.f32.mxu0 0.0
        %672 = vmatmul.mubr.f32.gmra.mrb[0].mxu0 %v327
        %v673 = vpop.f32.mrb[0].mxu0
        %v674 = vadd.f32 0.0, %v673
        %v675 = vpop.f32.mrb[0].mxu0
        %676 = vdwg.mxu0
        %677 = vmatprep.subr.mxu0 0.0
        %678 = vmatpush1.msra.mxu0 %v291
        %679 = vmatprep.subr.mxu0 0.0
        %680 = vmatpush1.msra.mxu0 %v292
        %681 = vmatprep.subr.mxu0 0.0
        %682 = vmatpush1.msra.mxu0 %v296
        %683 = vmatprep.subr.mxu0 0.0
        %684 = vmatpush1.msra.mxu0 %v298
        %685 = vmatprep.subr.mxu0 0.0
        %686 = vmatpush1.msra.mxu0 %v302
        %687 = vmatprep.subr.mxu0 0.0
        %688 = vmatpush1.msra.mxu0 %v304
        %689 = vmatprep.subr.mxu0 0.0
        %690 = vmatpush1.msra.mxu0 %v308
        %691 = vmatprep.subr.mxu0 0.0
        %692 = vmatpush1.msra.mxu0 %v310
        %693 = vmatprep.subr.mxu0 0.0
        %694 = vmatpush1.msra.mxu0 %v314
        %695 = vmatprep.subr.mxu0 0.0
        %696 = vmatpush1.msra.mxu0 %v316
        %697 = vmatprep.subr.mxu0 0.0
        %698 = vmatpush1.msra.mxu0 0.0
        %699 = vmatprep.subr.mxu0 0.0
        %700 = vmatpush1.msra.mxu0 0.0
        %701 = vmatprep.subr.mxu0 0.0
        %702 = vmatpush1.msra.mxu0 0.0
        %703 = vmatprep.subr.mxu0 0.0
        %704 = vmatpush1.msra.mxu0 0.0
        %705 = vmatprep.subr.mxu0 0.0
        %706 = vmatpush1.msra.mxu0 0.0
        %707 = vmatprep.subr.mxu0 0.0
        %708 = vmatpush1.msra.mxu0 0.0
        %709 = vmatprep.subr.mxu0 0.0
        %710 = vmatpush1.msra.mxu0 0.0
        %711 = vmatprep.subr.mxu0 0.0
        %712 = vmatpush1.msra.mxu0 0.0
        %713 = vmatprep.subr.mxu0 0.0
        %714 = vmatpush1.msra.mxu0 0.0
        %715 = vmatprep.subr.mxu0 0.0
        %716 = vmatpush1.msra.mxu0 0.0
        %717 = vmatprep.subr.mxu0 0.0
        %718 = vmatpush1.msra.mxu0 0.0
        %719 = vmatprep.subr.mxu0 0.0
        %720 = vmatpush1.msra.mxu0 0.0
        %721 = vmatprep.subr.mxu0 0.0
        %722 = vmatpush1.msra.mxu0 0.0
        %723 = vmatprep.subr.mxu0 0.0
        %724 = vmatpush1.msra.mxu0 0.0
        %725 = vmatprep.subr.mxu0 0.0
        %726 = vmatpush1.msra.mxu0 0.0
        %727 = vmatprep.subr.mxu0 0.0
        %728 = vmatpush1.msra.mxu0 0.0
        %729 = vmatprep.subr.mxu0 0.0
        %730 = vmatpush1.msra.mxu0 0.0
        %731 = vmatprep.subr.mxu0 0.0
        %732 = vmatpush1.msra.mxu0 0.0
        %733 = vmatprep.subr.mxu0 0.0
        %734 = vmatpush1.msra.mxu0 0.0
        %735 = vmatprep.subr.mxu0 0.0
        %736 = vmatpush1.msra.mxu0 0.0
        %737 = vmatprep.subr.mxu0 0.0
        %738 = vmatpush1.msra.mxu0 0.0
        %739 = vmatprep.subr.mxu0 0.0
        %740 = vmatpush1.msra.mxu0 0.0
        %741 = vmatprep.mubr.f32.mxu0 0.0
        %742 = vmatmul.mubr.f32.gmra.mrb[0].mxu0 %v405
        %v743 = vpop.f32.mrb[0].mxu0
        %v744 = vadd.f32 %v669, %v743
        %v745 = vpop.f32.mrb[0].mxu0
        %746 = vmatprep.mubr.f32.mxu0 0.0
        %747 = vmatmul.mubr.f32.gmra.mrb[0].mxu0 %v408
        %v748 = vpop.f32.mrb[0].mxu0
        %v749 = vadd.f32 %v674, %v748
        %v750 = vpop.f32.mrb[0].mxu0
        %751 = vdwg.mxu0
        %s752 = sadd.s32 %s255, 3
        %s753 = smul.u32 %s752, 16
        %s754 = scalar_lea.vmem %s219, %s753
        %v755 = vld [vmem:[%s754] sm:$0xff]
        %v756 = vld [vmem:[%s754 + $0x8] sm:$0xff]
        %759 = vrot.lane.b32.xlu0 %v755, 127
        %v760 = vpop.permute.xlu0 %759
        %761 = vrot.lane.b32.xlu0 %v756, 127
        %v762 = vpop.permute.xlu0 %761
        %765 = vrot.lane.b32.xlu0 %v755, 126
        %v766 = vpop.permute.xlu0 %765
        %767 = vrot.lane.b32.xlu0 %v756, 126
        %v768 = vpop.permute.xlu0 %767
        %771 = vrot.lane.b32.xlu0 %v755, 125
        %v772 = vpop.permute.xlu0 %771
        %773 = vrot.lane.b32.xlu0 %v756, 125
        %v774 = vpop.permute.xlu0 %773
        %777 = vrot.lane.b32.xlu0 %v755, 124
        %v778 = vpop.permute.xlu0 %777
        %779 = vrot.lane.b32.xlu0 %v756, 124
        %v780 = vpop.permute.xlu0 %779
        %s783 = scalar_lea.vmem %s1, 48
        %v784 = vld [vmem:[%s783] sm:$0xff]
        %v785 = vld [vmem:[%s783 + $0x8] sm:$0xff]
        %v787 = vsel %vm322, %v784, 0
        %v790 = vsel %vm322, %v785, 0
        %792 = vmatprep.subr.mxu0 0.0
        %793 = vmatpush1.msra.mxu0 %v755
        %794 = vmatprep.subr.mxu0 0.0
        %795 = vmatpush1.msra.mxu0 %v756
        %796 = vmatprep.subr.mxu0 0.0
        %797 = vmatpush1.msra.mxu0 %v760
        %798 = vmatprep.subr.mxu0 0.0
        %799 = vmatpush1.msra.mxu0 %v762
        %800 = vmatprep.subr.mxu0 0.0
        %801 = vmatpush1.msra.mxu0 %v766
        %802 = vmatprep.subr.mxu0 0.0
        %803 = vmatpush1.msra.mxu0 %v768
        %804 = vmatprep.subr.mxu0 0.0
        %805 = vmatpush1.msra.mxu0 %v772
        %806 = vmatprep.subr.mxu0 0.0
        %807 = vmatpush1.msra.mxu0 %v774
        %808 = vmatprep.subr.mxu0 0.0
        %809 = vmatpush1.msra.mxu0 %v778
        %810 = vmatprep.subr.mxu0 0.0
        %811 = vmatpush1.msra.mxu0 %v780
        %812 = vmatprep.subr.mxu0 0.0
        %813 = vmatpush1.msra.mxu0 0.0
        %814 = vmatprep.subr.mxu0 0.0
        %815 = vmatpush1.msra.mxu0 0.0
        %816 = vmatprep.subr.mxu0 0.0
        %817 = vmatpush1.msra.mxu0 0.0
        %818 = vmatprep.subr.mxu0 0.0
        %819 = vmatpush1.msra.mxu0 0.0
        %820 = vmatprep.subr.mxu0 0.0
        %821 = vmatpush1.msra.mxu0 0.0
        %822 = vmatprep.subr.mxu0 0.0
        %823 = vmatpush1.msra.mxu0 0.0
        %824 = vmatprep.subr.mxu0 0.0
        %825 = vmatpush1.msra.mxu0 0.0
        %826 = vmatprep.subr.mxu0 0.0
        %827 = vmatpush1.msra.mxu0 0.0
        %828 = vmatprep.subr.mxu0 0.0
        %829 = vmatpush1.msra.mxu0 0.0
        %830 = vmatprep.subr.mxu0 0.0
        %831 = vmatpush1.msra.mxu0 0.0
        %832 = vmatprep.subr.mxu0 0.0
        %833 = vmatpush1.msra.mxu0 0.0
        %834 = vmatprep.subr.mxu0 0.0
        %835 = vmatpush1.msra.mxu0 0.0
        %836 = vmatprep.subr.mxu0 0.0
        %837 = vmatpush1.msra.mxu0 0.0
        %838 = vmatprep.subr.mxu0 0.0
        %839 = vmatpush1.msra.mxu0 0.0
        %840 = vmatprep.subr.mxu0 0.0
        %841 = vmatpush1.msra.mxu0 0.0
        %842 = vmatprep.subr.mxu0 0.0
        %843 = vmatpush1.msra.mxu0 0.0
        %844 = vmatprep.subr.mxu0 0.0
        %845 = vmatpush1.msra.mxu0 0.0
        %846 = vmatprep.subr.mxu0 0.0
        %847 = vmatpush1.msra.mxu0 0.0
        %848 = vmatprep.subr.mxu0 0.0
        %849 = vmatpush1.msra.mxu0 0.0
        %850 = vmatprep.subr.mxu0 0.0
        %851 = vmatpush1.msra.mxu0 0.0
        %852 = vmatprep.subr.mxu0 0.0
        %853 = vmatpush1.msra.mxu0 0.0
        %854 = vmatprep.subr.mxu0 0.0
        %855 = vmatpush1.msra.mxu0 0.0
        %856 = vmatprep.mubr.f32.mxu0 0.0
        %857 = vmatmul.mubr.f32.gmra.mrb[0].mxu0 %v787
        %v858 = vpop.f32.mrb[0].mxu0
        %v859 = vadd.f32 0.0, %v858
        %v860 = vpop.f32.mrb[0].mxu0
        %861 = vmatprep.mubr.f32.mxu0 0.0
        %862 = vmatmul.mubr.f32.gmra.mrb[0].mxu0 %v790
        %v863 = vpop.f32.mrb[0].mxu0
        %v864 = vadd.f32 0.0, %v863
        %v865 = vpop.f32.mrb[0].mxu0
        %866 = vdwg.mxu0
        %v867 = vadd.f32 %v600, %v859
        %v868 = vadd.f32 %v601, %v864
        %869 = vmatprep.subr.mxu0 0.0
        %870 = vmatpush1.msra.mxu0 %v755
        %871 = vmatprep.subr.mxu0 0.0
        %872 = vmatpush1.msra.mxu0 %v756
        %873 = vmatprep.subr.mxu0 0.0
        %874 = vmatpush1.msra.mxu0 %v760
        %875 = vmatprep.subr.mxu0 0.0
        %876 = vmatpush1.msra.mxu0 %v762
        %877 = vmatprep.subr.mxu0 0.0
        %878 = vmatpush1.msra.mxu0 %v766
        %879 = vmatprep.subr.mxu0 0.0
        %880 = vmatpush1.msra.mxu0 %v768
        %881 = vmatprep.subr.mxu0 0.0
        %882 = vmatpush1.msra.mxu0 %v772
        %883 = vmatprep.subr.mxu0 0.0
        %884 = vmatpush1.msra.mxu0 %v774
        %885 = vmatprep.subr.mxu0 0.0
        %886 = vmatpush1.msra.mxu0 %v778
        %887 = vmatprep.subr.mxu0 0.0
        %888 = vmatpush1.msra.mxu0 %v780
        %889 = vmatprep.subr.mxu0 0.0
        %890 = vmatpush1.msra.mxu0 0.0
        %891 = vmatprep.subr.mxu0 0.0
        %892 = vmatpush1.msra.mxu0 0.0
        %893 = vmatprep.subr.mxu0 0.0
        %894 = vmatpush1.msra.mxu0 0.0
        %895 = vmatprep.subr.mxu0 0.0
        %896 = vmatpush1.msra.mxu0 0.0
        %897 = vmatprep.subr.mxu0 0.0
        %898 = vmatpush1.msra.mxu0 0.0
        %899 = vmatprep.subr.mxu0 0.0
        %900 = vmatpush1.msra.mxu0 0.0
        %901 = vmatprep.subr.mxu0 0.0
        %902 = vmatpush1.msra.mxu0 0.0
        %903 = vmatprep.subr.mxu0 0.0
        %904 = vmatpush1.msra.mxu0 0.0
        %905 = vmatprep.subr.mxu0 0.0
        %906 = vmatpush1.msra.mxu0 0.0
        %907 = vmatprep.subr.mxu0 0.0
        %908 = vmatpush1.msra.mxu0 0.0
        %909 = vmatprep.subr.mxu0 0.0
        %910 = vmatpush1.msra.mxu0 0.0
        %911 = vmatprep.subr.mxu0 0.0
        %912 = vmatpush1.msra.mxu0 0.0
        %913 = vmatprep.subr.mxu0 0.0
        %914 = vmatpush1.msra.mxu0 0.0
        %915 = vmatprep.subr.mxu0 0.0
        %916 = vmatpush1.msra.mxu0 0.0
        %917 = vmatprep.subr.mxu0 0.0
        %918 = vmatpush1.msra.mxu0 0.0
        %919 = vmatprep.subr.mxu0 0.0
        %920 = vmatpush1.msra.mxu0 0.0
        %921 = vmatprep.subr.mxu0 0.0
        %922 = vmatpush1.msra.mxu0 0.0
        %923 = vmatprep.subr.mxu0 0.0
        %924 = vmatpush1.msra.mxu0 0.0
        %925 = vmatprep.subr.mxu0 0.0
        %926 = vmatpush1.msra.mxu0 0.0
        %927 = vmatprep.subr.mxu0 0.0
        %928 = vmatpush1.msra.mxu0 0.0
        %929 = vmatprep.subr.mxu0 0.0
        %930 = vmatpush1.msra.mxu0 0.0
        %931 = vmatprep.subr.mxu0 0.0
        %932 = vmatpush1.msra.mxu0 0.0
        %933 = vmatprep.mubr.f32.mxu0 0.0
        %934 = vmatmul.mubr.f32.gmra.mrb[0].mxu0 %v520
        %v935 = vpop.f32.mrb[0].mxu0
        %v936 = vadd.f32 0.0, %v935
        %v937 = vpop.f32.mrb[0].mxu0
        %938 = vmatprep.mubr.f32.mxu0 0.0
        %939 = vmatmul.mubr.f32.gmra.mrb[0].mxu0 %v523
        %v940 = vpop.f32.mrb[0].mxu0
        %v941 = vadd.f32 0.0, %v940
        %v942 = vpop.f32.mrb[0].mxu0
        %943 = vdwg.mxu0
        %v944 = vadd.f32 %v744, %v936
        %v945 = vadd.f32 %v749, %v941
        %946 = vmatprep.subr.mxu0 0.0
        %947 = vmatpush1.msra.mxu0 %v755
        %948 = vmatprep.subr.mxu0 0.0
        %949 = vmatpush1.msra.mxu0 %v756
        %950 = vmatprep.subr.mxu0 0.0
        %951 = vmatpush1.msra.mxu0 %v760
        %952 = vmatprep.subr.mxu0 0.0
        %953 = vmatpush1.msra.mxu0 %v762
        %954 = vmatprep.subr.mxu0 0.0
        %955 = vmatpush1.msra.mxu0 %v766
        %956 = vmatprep.subr.mxu0 0.0
        %957 = vmatpush1.msra.mxu0 %v768
        %958 = vmatprep.subr.mxu0 0.0
        %959 = vmatpush1.msra.mxu0 %v772
        %960 = vmatprep.subr.mxu0 0.0
        %961 = vmatpush1.msra.mxu0 %v774
        %962 = vmatprep.subr.mxu0 0.0
        %963 = vmatpush1.msra.mxu0 %v778
        %964 = vmatprep.subr.mxu0 0.0
        %965 = vmatpush1.msra.mxu0 %v780
        %966 = vmatprep.subr.mxu0 0.0
        %967 = vmatpush1.msra.mxu0 0.0
        %968 = vmatprep.subr.mxu0 0.0
        %969 = vmatpush1.msra.mxu0 0.0
        %970 = vmatprep.subr.mxu0 0.0
        %971 = vmatpush1.msra.mxu0 0.0
        %972 = vmatprep.subr.mxu0 0.0
        %973 = vmatpush1.msra.mxu0 0.0
        %974 = vmatprep.subr.mxu0 0.0
        %975 = vmatpush1.msra.mxu0 0.0
        %976 = vmatprep.subr.mxu0 0.0
        %977 = vmatpush1.msra.mxu0 0.0
        %978 = vmatprep.subr.mxu0 0.0
        %979 = vmatpush1.msra.mxu0 0.0
        %980 = vmatprep.subr.mxu0 0.0
        %981 = vmatpush1.msra.mxu0 0.0
        %982 = vmatprep.subr.mxu0 0.0
        %983 = vmatpush1.msra.mxu0 0.0
        %984 = vmatprep.subr.mxu0 0.0
        %985 = vmatpush1.msra.mxu0 0.0
        %986 = vmatprep.subr.mxu0 0.0
        %987 = vmatpush1.msra.mxu0 0.0
        %988 = vmatprep.subr.mxu0 0.0
        %989 = vmatpush1.msra.mxu0 0.0
        %990 = vmatprep.subr.mxu0 0.0
        %991 = vmatpush1.msra.mxu0 0.0
        %992 = vmatprep.subr.mxu0 0.0
        %993 = vmatpush1.msra.mxu0 0.0
        %994 = vmatprep.subr.mxu0 0.0
        %995 = vmatpush1.msra.mxu0 0.0
        %996 = vmatprep.subr.mxu0 0.0
        %997 = vmatpush1.msra.mxu0 0.0
        %998 = vmatprep.subr.mxu0 0.0
        %999 = vmatpush1.msra.mxu0 0.0
        %1000 = vmatprep.subr.mxu0 0.0
        %1001 = vmatpush1.msra.mxu0 0.0
        %1002 = vmatprep.subr.mxu0 0.0
        %1003 = vmatpush1.msra.mxu0 0.0
        %1004 = vmatprep.subr.mxu0 0.0
        %1005 = vmatpush1.msra.mxu0 0.0
        %1006 = vmatprep.subr.mxu0 0.0
        %1007 = vmatpush1.msra.mxu0 0.0
        %1008 = vmatprep.subr.mxu0 0.0
        %1009 = vmatpush1.msra.mxu0 0.0
        %1010 = vmatprep.mubr.f32.mxu0 0.0
        %1011 = vmatmul.mubr.f32.gmra.mrb[0].mxu0 %v324
        %v1012 = vpop.f32.mrb[0].mxu0
        %v1013 = vadd.f32 0.0, %v1012
        %v1014 = vpop.f32.mrb[0].mxu0
        %1015 = vmatprep.mubr.f32.mxu0 0.0
        %1016 = vmatmul.mubr.f32.gmra.mrb[0].mxu0 %v327
        %v1017 = vpop.f32.mrb[0].mxu0
        %v1018 = vadd.f32 0.0, %v1017
        %v1019 = vpop.f32.mrb[0].mxu0
        %1020 = vdwg.mxu0
        %1021 = vmatprep.subr.mxu0 0.0
        %1022 = vmatpush1.msra.mxu0 %v488
        %1023 = vmatprep.subr.mxu0 0.0
        %1024 = vmatpush1.msra.mxu0 %v489
        %1025 = vmatprep.subr.mxu0 0.0
        %1026 = vmatpush1.msra.mxu0 %v493
        %1027 = vmatprep.subr.mxu0 0.0
        %1028 = vmatpush1.msra.mxu0 %v495
        %1029 = vmatprep.subr.mxu0 0.0
        %1030 = vmatpush1.msra.mxu0 %v499
        %1031 = vmatprep.subr.mxu0 0.0
        %1032 = vmatpush1.msra.mxu0 %v501
        %1033 = vmatprep.subr.mxu0 0.0
        %1034 = vmatpush1.msra.mxu0 %v505
        %1035 = vmatprep.subr.mxu0 0.0
        %1036 = vmatpush1.msra.mxu0 %v507
        %1037 = vmatprep.subr.mxu0 0.0
        %1038 = vmatpush1.msra.mxu0 %v511
        %1039 = vmatprep.subr.mxu0 0.0
        %1040 = vmatpush1.msra.mxu0 %v513
        %1041 = vmatprep.subr.mxu0 0.0
        %1042 = vmatpush1.msra.mxu0 0.0
        %1043 = vmatprep.subr.mxu0 0.0
        %1044 = vmatpush1.msra.mxu0 0.0
        %1045 = vmatprep.subr.mxu0 0.0
        %1046 = vmatpush1.msra.mxu0 0.0
        %1047 = vmatprep.subr.mxu0 0.0
        %1048 = vmatpush1.msra.mxu0 0.0
        %1049 = vmatprep.subr.mxu0 0.0
        %1050 = vmatpush1.msra.mxu0 0.0
        %1051 = vmatprep.subr.mxu0 0.0
        %1052 = vmatpush1.msra.mxu0 0.0
        %1053 = vmatprep.subr.mxu0 0.0
        %1054 = vmatpush1.msra.mxu0 0.0
        %1055 = vmatprep.subr.mxu0 0.0
        %1056 = vmatpush1.msra.mxu0 0.0
        %1057 = vmatprep.subr.mxu0 0.0
        %1058 = vmatpush1.msra.mxu0 0.0
        %1059 = vmatprep.subr.mxu0 0.0
        %1060 = vmatpush1.msra.mxu0 0.0
        %1061 = vmatprep.subr.mxu0 0.0
        %1062 = vmatpush1.msra.mxu0 0.0
        %1063 = vmatprep.subr.mxu0 0.0
        %1064 = vmatpush1.msra.mxu0 0.0
        %1065 = vmatprep.subr.mxu0 0.0
        %1066 = vmatpush1.msra.mxu0 0.0
        %1067 = vmatprep.subr.mxu0 0.0
        %1068 = vmatpush1.msra.mxu0 0.0
        %1069 = vmatprep.subr.mxu0 0.0
        %1070 = vmatpush1.msra.mxu0 0.0
        %1071 = vmatprep.subr.mxu0 0.0
        %1072 = vmatpush1.msra.mxu0 0.0
        %1073 = vmatprep.subr.mxu0 0.0
        %1074 = vmatpush1.msra.mxu0 0.0
        %1075 = vmatprep.subr.mxu0 0.0
        %1076 = vmatpush1.msra.mxu0 0.0
        %1077 = vmatprep.subr.mxu0 0.0
        %1078 = vmatpush1.msra.mxu0 0.0
        %1079 = vmatprep.subr.mxu0 0.0
        %1080 = vmatpush1.msra.mxu0 0.0
        %1081 = vmatprep.subr.mxu0 0.0
        %1082 = vmatpush1.msra.mxu0 0.0
        %1083 = vmatprep.subr.mxu0 0.0
        %1084 = vmatpush1.msra.mxu0 0.0
        %1085 = vmatprep.mubr.f32.mxu0 0.0
        %1086 = vmatmul.mubr.f32.gmra.mrb[0].mxu0 %v405
        %v1087 = vpop.f32.mrb[0].mxu0
        %v1088 = vadd.f32 %v1013, %v1087
        %v1089 = vpop.f32.mrb[0].mxu0
        %1090 = vmatprep.mubr.f32.mxu0 0.0
        %1091 = vmatmul.mubr.f32.gmra.mrb[0].mxu0 %v408
        %v1092 = vpop.f32.mrb[0].mxu0
        %v1093 = vadd.f32 %v1018, %v1092
        %v1094 = vpop.f32.mrb[0].mxu0
        %1095 = vdwg.mxu0
        %s1096 = sadd.s32 %s255, 4
        %s1097 = smul.u32 %s1096, 16
        %s1098 = scalar_lea.vmem %s219, %s1097
        %v1099 = vld [vmem:[%s1098] sm:$0xff]
        %v1100 = vld [vmem:[%s1098 + $0x8] sm:$0xff]
        %1103 = vrot.lane.b32.xlu0 %v1099, 127
        %v1104 = vpop.permute.xlu0 %1103
        %1105 = vrot.lane.b32.xlu0 %v1100, 127
        %v1106 = vpop.permute.xlu0 %1105
        %1109 = vrot.lane.b32.xlu0 %v1099, 126
        %v1110 = vpop.permute.xlu0 %1109
        %1111 = vrot.lane.b32.xlu0 %v1100, 126
        %v1112 = vpop.permute.xlu0 %1111
        %1115 = vrot.lane.b32.xlu0 %v1099, 125
        %v1116 = vpop.permute.xlu0 %1115
        %1117 = vrot.lane.b32.xlu0 %v1100, 125
        %v1118 = vpop.permute.xlu0 %1117
        %1121 = vrot.lane.b32.xlu0 %v1099, 124
        %v1122 = vpop.permute.xlu0 %1121
        %1123 = vrot.lane.b32.xlu0 %v1100, 124
        %v1124 = vpop.permute.xlu0 %1123
        %s1127 = scalar_lea.vmem %s1, 64
        %v1128 = vld [vmem:[%s1127] sm:$0xff]
        %v1129 = vld [vmem:[%s1127 + $0x8] sm:$0xff]
        %v1131 = vsel %vm322, %v1128, 0
        %v1134 = vsel %vm322, %v1129, 0
        %1136 = vmatprep.subr.mxu0 0.0
        %1137 = vmatpush1.msra.mxu0 %v1099
        %1138 = vmatprep.subr.mxu0 0.0
        %1139 = vmatpush1.msra.mxu0 %v1100
        %1140 = vmatprep.subr.mxu0 0.0
        %1141 = vmatpush1.msra.mxu0 %v1104
        %1142 = vmatprep.subr.mxu0 0.0
        %1143 = vmatpush1.msra.mxu0 %v1106
        %1144 = vmatprep.subr.mxu0 0.0
        %1145 = vmatpush1.msra.mxu0 %v1110
        %1146 = vmatprep.subr.mxu0 0.0
        %1147 = vmatpush1.msra.mxu0 %v1112
        %1148 = vmatprep.subr.mxu0 0.0
        %1149 = vmatpush1.msra.mxu0 %v1116
        %1150 = vmatprep.subr.mxu0 0.0
        %1151 = vmatpush1.msra.mxu0 %v1118
        %1152 = vmatprep.subr.mxu0 0.0
        %1153 = vmatpush1.msra.mxu0 %v1122
        %1154 = vmatprep.subr.mxu0 0.0
        %1155 = vmatpush1.msra.mxu0 %v1124
        %1156 = vmatprep.subr.mxu0 0.0
        %1157 = vmatpush1.msra.mxu0 0.0
        %1158 = vmatprep.subr.mxu0 0.0
        %1159 = vmatpush1.msra.mxu0 0.0
        %1160 = vmatprep.subr.mxu0 0.0
        %1161 = vmatpush1.msra.mxu0 0.0
        %1162 = vmatprep.subr.mxu0 0.0
        %1163 = vmatpush1.msra.mxu0 0.0
        %1164 = vmatprep.subr.mxu0 0.0
        %1165 = vmatpush1.msra.mxu0 0.0
        %1166 = vmatprep.subr.mxu0 0.0
        %1167 = vmatpush1.msra.mxu0 0.0
        %1168 = vmatprep.subr.mxu0 0.0
        %1169 = vmatpush1.msra.mxu0 0.0
        %1170 = vmatprep.subr.mxu0 0.0
        %1171 = vmatpush1.msra.mxu0 0.0
        %1172 = vmatprep.subr.mxu0 0.0
        %1173 = vmatpush1.msra.mxu0 0.0
        %1174 = vmatprep.subr.mxu0 0.0
        %1175 = vmatpush1.msra.mxu0 0.0
        %1176 = vmatprep.subr.mxu0 0.0
        %1177 = vmatpush1.msra.mxu0 0.0
        %1178 = vmatprep.subr.mxu0 0.0
        %1179 = vmatpush1.msra.mxu0 0.0
        %1180 = vmatprep.subr.mxu0 0.0
        %1181 = vmatpush1.msra.mxu0 0.0
        %1182 = vmatprep.subr.mxu0 0.0
        %1183 = vmatpush1.msra.mxu0 0.0
        %1184 = vmatprep.subr.mxu0 0.0
        %1185 = vmatpush1.msra.mxu0 0.0
        %1186 = vmatprep.subr.mxu0 0.0
        %1187 = vmatpush1.msra.mxu0 0.0
        %1188 = vmatprep.subr.mxu0 0.0
        %1189 = vmatpush1.msra.mxu0 0.0
        %1190 = vmatprep.subr.mxu0 0.0
        %1191 = vmatpush1.msra.mxu0 0.0
        %1192 = vmatprep.subr.mxu0 0.0
        %1193 = vmatpush1.msra.mxu0 0.0
        %1194 = vmatprep.subr.mxu0 0.0
        %1195 = vmatpush1.msra.mxu0 0.0
        %1196 = vmatprep.subr.mxu0 0.0
        %1197 = vmatpush1.msra.mxu0 0.0
        %1198 = vmatprep.subr.mxu0 0.0
        %1199 = vmatpush1.msra.mxu0 0.0
        %1200 = vmatprep.mubr.f32.mxu0 0.0
        %1201 = vmatmul.mubr.f32.gmra.mrb[0].mxu0 %v1131
        %v1202 = vpop.f32.mrb[0].mxu0
        %v1203 = vadd.f32 0.0, %v1202
        %v1204 = vpop.f32.mrb[0].mxu0
        %1205 = vmatprep.mubr.f32.mxu0 0.0
        %1206 = vmatmul.mubr.f32.gmra.mrb[0].mxu0 %v1134
        %v1207 = vpop.f32.mrb[0].mxu0
        %v1208 = vadd.f32 0.0, %v1207
        %v1209 = vpop.f32.mrb[0].mxu0
        %1210 = vdwg.mxu0
        %v1211 = vadd.f32 %v867, %v1203
        %v1212 = vadd.f32 %v868, %v1208
        %1213 = vmatprep.subr.mxu0 0.0
        %1214 = vmatpush1.msra.mxu0 %v1099
        %1215 = vmatprep.subr.mxu0 0.0
        %1216 = vmatpush1.msra.mxu0 %v1100
        %1217 = vmatprep.subr.mxu0 0.0
        %1218 = vmatpush1.msra.mxu0 %v1104
        %1219 = vmatprep.subr.mxu0 0.0
        %1220 = vmatpush1.msra.mxu0 %v1106
        %1221 = vmatprep.subr.mxu0 0.0
        %1222 = vmatpush1.msra.mxu0 %v1110
        %1223 = vmatprep.subr.mxu0 0.0
        %1224 = vmatpush1.msra.mxu0 %v1112
        %1225 = vmatprep.subr.mxu0 0.0
        %1226 = vmatpush1.msra.mxu0 %v1116
        %1227 = vmatprep.subr.mxu0 0.0
        %1228 = vmatpush1.msra.mxu0 %v1118
        %1229 = vmatprep.subr.mxu0 0.0
        %1230 = vmatpush1.msra.mxu0 %v1122
        %1231 = vmatprep.subr.mxu0 0.0
        %1232 = vmatpush1.msra.mxu0 %v1124
        %1233 = vmatprep.subr.mxu0 0.0
        %1234 = vmatpush1.msra.mxu0 0.0
        %1235 = vmatprep.subr.mxu0 0.0
        %1236 = vmatpush1.msra.mxu0 0.0
        %1237 = vmatprep.subr.mxu0 0.0
        %1238 = vmatpush1.msra.mxu0 0.0
        %1239 = vmatprep.subr.mxu0 0.0
        %1240 = vmatpush1.msra.mxu0 0.0
        %1241 = vmatprep.subr.mxu0 0.0
        %1242 = vmatpush1.msra.mxu0 0.0
        %1243 = vmatprep.subr.mxu0 0.0
        %1244 = vmatpush1.msra.mxu0 0.0
        %1245 = vmatprep.subr.mxu0 0.0
        %1246 = vmatpush1.msra.mxu0 0.0
        %1247 = vmatprep.subr.mxu0 0.0
        %1248 = vmatpush1.msra.mxu0 0.0
        %1249 = vmatprep.subr.mxu0 0.0
        %1250 = vmatpush1.msra.mxu0 0.0
        %1251 = vmatprep.subr.mxu0 0.0
        %1252 = vmatpush1.msra.mxu0 0.0
        %1253 = vmatprep.subr.mxu0 0.0
        %1254 = vmatpush1.msra.mxu0 0.0
        %1255 = vmatprep.subr.mxu0 0.0
        %1256 = vmatpush1.msra.mxu0 0.0
        %1257 = vmatprep.subr.mxu0 0.0
        %1258 = vmatpush1.msra.mxu0 0.0
        %1259 = vmatprep.subr.mxu0 0.0
        %1260 = vmatpush1.msra.mxu0 0.0
        %1261 = vmatprep.subr.mxu0 0.0
        %1262 = vmatpush1.msra.mxu0 0.0
        %1263 = vmatprep.subr.mxu0 0.0
        %1264 = vmatpush1.msra.mxu0 0.0
        %1265 = vmatprep.subr.mxu0 0.0
        %1266 = vmatpush1.msra.mxu0 0.0
        %1267 = vmatprep.subr.mxu0 0.0
        %1268 = vmatpush1.msra.mxu0 0.0
        %1269 = vmatprep.subr.mxu0 0.0
        %1270 = vmatpush1.msra.mxu0 0.0
        %1271 = vmatprep.subr.mxu0 0.0
        %1272 = vmatpush1.msra.mxu0 0.0
        %1273 = vmatprep.subr.mxu0 0.0
        %1274 = vmatpush1.msra.mxu0 0.0
        %1275 = vmatprep.subr.mxu0 0.0
        %1276 = vmatpush1.msra.mxu0 0.0
        %1277 = vmatprep.mubr.f32.mxu0 0.0
        %1278 = vmatmul.mubr.f32.gmra.mrb[0].mxu0 %v787
        %v1279 = vpop.f32.mrb[0].mxu0
        %v1280 = vadd.f32 0.0, %v1279
        %v1281 = vpop.f32.mrb[0].mxu0
        %1282 = vmatprep.mubr.f32.mxu0 0.0
        %1283 = vmatmul.mubr.f32.gmra.mrb[0].mxu0 %v790
        %v1284 = vpop.f32.mrb[0].mxu0
        %v1285 = vadd.f32 0.0, %v1284
        %v1286 = vpop.f32.mrb[0].mxu0
        %1287 = vdwg.mxu0
        %v1288 = vadd.f32 %v944, %v1280
        %v1289 = vadd.f32 %v945, %v1285
        %1290 = vmatprep.subr.mxu0 0.0
        %1291 = vmatpush1.msra.mxu0 %v1099
        %1292 = vmatprep.subr.mxu0 0.0
        %1293 = vmatpush1.msra.mxu0 %v1100
        %1294 = vmatprep.subr.mxu0 0.0
        %1295 = vmatpush1.msra.mxu0 %v1104
        %1296 = vmatprep.subr.mxu0 0.0
        %1297 = vmatpush1.msra.mxu0 %v1106
        %1298 = vmatprep.subr.mxu0 0.0
        %1299 = vmatpush1.msra.mxu0 %v1110
        %1300 = vmatprep.subr.mxu0 0.0
        %1301 = vmatpush1.msra.mxu0 %v1112
        %1302 = vmatprep.subr.mxu0 0.0
        %1303 = vmatpush1.msra.mxu0 %v1116
        %1304 = vmatprep.subr.mxu0 0.0
        %1305 = vmatpush1.msra.mxu0 %v1118
        %1306 = vmatprep.subr.mxu0 0.0
        %1307 = vmatpush1.msra.mxu0 %v1122
        %1308 = vmatprep.subr.mxu0 0.0
        %1309 = vmatpush1.msra.mxu0 %v1124
        %1310 = vmatprep.subr.mxu0 0.0
        %1311 = vmatpush1.msra.mxu0 0.0
        %1312 = vmatprep.subr.mxu0 0.0
        %1313 = vmatpush1.msra.mxu0 0.0
        %1314 = vmatprep.subr.mxu0 0.0
        %1315 = vmatpush1.msra.mxu0 0.0
        %1316 = vmatprep.subr.mxu0 0.0
        %1317 = vmatpush1.msra.mxu0 0.0
        %1318 = vmatprep.subr.mxu0 0.0
        %1319 = vmatpush1.msra.mxu0 0.0
        %1320 = vmatprep.subr.mxu0 0.0
        %1321 = vmatpush1.msra.mxu0 0.0
        %1322 = vmatprep.subr.mxu0 0.0
        %1323 = vmatpush1.msra.mxu0 0.0
        %1324 = vmatprep.subr.mxu0 0.0
        %1325 = vmatpush1.msra.mxu0 0.0
        %1326 = vmatprep.subr.mxu0 0.0
        %1327 = vmatpush1.msra.mxu0 0.0
        %1328 = vmatprep.subr.mxu0 0.0
        %1329 = vmatpush1.msra.mxu0 0.0
        %1330 = vmatprep.subr.mxu0 0.0
        %1331 = vmatpush1.msra.mxu0 0.0
        %1332 = vmatprep.subr.mxu0 0.0
        %1333 = vmatpush1.msra.mxu0 0.0
        %1334 = vmatprep.subr.mxu0 0.0
        %1335 = vmatpush1.msra.mxu0 0.0
        %1336 = vmatprep.subr.mxu0 0.0
        %1337 = vmatpush1.msra.mxu0 0.0
        %1338 = vmatprep.subr.mxu0 0.0
        %1339 = vmatpush1.msra.mxu0 0.0
        %1340 = vmatprep.subr.mxu0 0.0
        %1341 = vmatpush1.msra.mxu0 0.0
        %1342 = vmatprep.subr.mxu0 0.0
        %1343 = vmatpush1.msra.mxu0 0.0
        %1344 = vmatprep.subr.mxu0 0.0
        %1345 = vmatpush1.msra.mxu0 0.0
        %1346 = vmatprep.subr.mxu0 0.0
        %1347 = vmatpush1.msra.mxu0 0.0
        %1348 = vmatprep.subr.mxu0 0.0
        %1349 = vmatpush1.msra.mxu0 0.0
        %1350 = vmatprep.subr.mxu0 0.0
        %1351 = vmatpush1.msra.mxu0 0.0
        %1352 = vmatprep.subr.mxu0 0.0
        %1353 = vmatpush1.msra.mxu0 0.0
        %1354 = vmatprep.mubr.f32.mxu0 0.0
        %1355 = vmatmul.mubr.f32.gmra.mrb[0].mxu0 %v520
        %v1356 = vpop.f32.mrb[0].mxu0
        %v1357 = vadd.f32 0.0, %v1356
        %v1358 = vpop.f32.mrb[0].mxu0
        %1359 = vmatprep.mubr.f32.mxu0 0.0
        %1360 = vmatmul.mubr.f32.gmra.mrb[0].mxu0 %v523
        %v1361 = vpop.f32.mrb[0].mxu0
        %v1362 = vadd.f32 0.0, %v1361
        %v1363 = vpop.f32.mrb[0].mxu0
        %1364 = vdwg.mxu0
        %v1365 = vadd.f32 %v1088, %v1357
        %v1366 = vadd.f32 %v1093, %v1362
        %1367 = vmatprep.subr.mxu0 0.0
        %1368 = vmatpush1.msra.mxu0 %v1099
        %1369 = vmatprep.subr.mxu0 0.0
        %1370 = vmatpush1.msra.mxu0 %v1100
        %1371 = vmatprep.subr.mxu0 0.0
        %1372 = vmatpush1.msra.mxu0 %v1104
        %1373 = vmatprep.subr.mxu0 0.0
        %1374 = vmatpush1.msra.mxu0 %v1106
        %1375 = vmatprep.subr.mxu0 0.0
        %1376 = vmatpush1.msra.mxu0 %v1110
        %1377 = vmatprep.subr.mxu0 0.0
        %1378 = vmatpush1.msra.mxu0 %v1112
        %1379 = vmatprep.subr.mxu0 0.0
        %1380 = vmatpush1.msra.mxu0 %v1116
        %1381 = vmatprep.subr.mxu0 0.0
        %1382 = vmatpush1.msra.mxu0 %v1118
        %1383 = vmatprep.subr.mxu0 0.0
        %1384 = vmatpush1.msra.mxu0 %v1122
        %1385 = vmatprep.subr.mxu0 0.0
        %1386 = vmatpush1.msra.mxu0 %v1124
        %1387 = vmatprep.subr.mxu0 0.0
        %1388 = vmatpush1.msra.mxu0 0.0
        %1389 = vmatprep.subr.mxu0 0.0
        %1390 = vmatpush1.msra.mxu0 0.0
        %1391 = vmatprep.subr.mxu0 0.0
        %1392 = vmatpush1.msra.mxu0 0.0
        %1393 = vmatprep.subr.mxu0 0.0
        %1394 = vmatpush1.msra.mxu0 0.0
        %1395 = vmatprep.subr.mxu0 0.0
        %1396 = vmatpush1.msra.mxu0 0.0
        %1397 = vmatprep.subr.mxu0 0.0
        %1398 = vmatpush1.msra.mxu0 0.0
        %1399 = vmatprep.subr.mxu0 0.0
        %1400 = vmatpush1.msra.mxu0 0.0
        %1401 = vmatprep.subr.mxu0 0.0
        %1402 = vmatpush1.msra.mxu0 0.0
        %1403 = vmatprep.subr.mxu0 0.0
        %1404 = vmatpush1.msra.mxu0 0.0
        %1405 = vmatprep.subr.mxu0 0.0
        %1406 = vmatpush1.msra.mxu0 0.0
        %1407 = vmatprep.subr.mxu0 0.0
        %1408 = vmatpush1.msra.mxu0 0.0
        %1409 = vmatprep.subr.mxu0 0.0
        %1410 = vmatpush1.msra.mxu0 0.0
        %1411 = vmatprep.subr.mxu0 0.0
        %1412 = vmatpush1.msra.mxu0 0.0
        %1413 = vmatprep.subr.mxu0 0.0
        %1414 = vmatpush1.msra.mxu0 0.0
        %1415 = vmatprep.subr.mxu0 0.0
        %1416 = vmatpush1.msra.mxu0 0.0
        %1417 = vmatprep.subr.mxu0 0.0
        %1418 = vmatpush1.msra.mxu0 0.0
        %1419 = vmatprep.subr.mxu0 0.0
        %1420 = vmatpush1.msra.mxu0 0.0
        %1421 = vmatprep.subr.mxu0 0.0
        %1422 = vmatpush1.msra.mxu0 0.0
        %1423 = vmatprep.subr.mxu0 0.0
        %1424 = vmatpush1.msra.mxu0 0.0
        %1425 = vmatprep.subr.mxu0 0.0
        %1426 = vmatpush1.msra.mxu0 0.0
        %1427 = vmatprep.subr.mxu0 0.0
        %1428 = vmatpush1.msra.mxu0 0.0
        %1429 = vmatprep.subr.mxu0 0.0
        %1430 = vmatpush1.msra.mxu0 0.0
        %1431 = vmatprep.mubr.f32.mxu0 0.0
        %1432 = vmatmul.mubr.f32.gmra.mrb[0].mxu0 %v324
        %v1433 = vpop.f32.mrb[0].mxu0
        %v1434 = vadd.f32 0.0, %v1433
        %v1435 = vpop.f32.mrb[0].mxu0
        %1436 = vmatprep.mubr.f32.mxu0 0.0
        %1437 = vmatmul.mubr.f32.gmra.mrb[0].mxu0 %v327
        %v1438 = vpop.f32.mrb[0].mxu0
        %v1439 = vadd.f32 0.0, %v1438
        %v1440 = vpop.f32.mrb[0].mxu0
        %1441 = vdwg.mxu0
        %1442 = vmatprep.subr.mxu0 0.0
        %1443 = vmatpush1.msra.mxu0 %v755
        %1444 = vmatprep.subr.mxu0 0.0
        %1445 = vmatpush1.msra.mxu0 %v756
        %1446 = vmatprep.subr.mxu0 0.0
        %1447 = vmatpush1.msra.mxu0 %v760
        %1448 = vmatprep.subr.mxu0 0.0
        %1449 = vmatpush1.msra.mxu0 %v762
        %1450 = vmatprep.subr.mxu0 0.0
        %1451 = vmatpush1.msra.mxu0 %v766
        %1452 = vmatprep.subr.mxu0 0.0
        %1453 = vmatpush1.msra.mxu0 %v768
        %1454 = vmatprep.subr.mxu0 0.0
        %1455 = vmatpush1.msra.mxu0 %v772
        %1456 = vmatprep.subr.mxu0 0.0
        %1457 = vmatpush1.msra.mxu0 %v774
        %1458 = vmatprep.subr.mxu0 0.0
        %1459 = vmatpush1.msra.mxu0 %v778
        %1460 = vmatprep.subr.mxu0 0.0
        %1461 = vmatpush1.msra.mxu0 %v780
        %1462 = vmatprep.subr.mxu0 0.0
        %1463 = vmatpush1.msra.mxu0 0.0
        %1464 = vmatprep.subr.mxu0 0.0
        %1465 = vmatpush1.msra.mxu0 0.0
        %1466 = vmatprep.subr.mxu0 0.0
        %1467 = vmatpush1.msra.mxu0 0.0
        %1468 = vmatprep.subr.mxu0 0.0
        %1469 = vmatpush1.msra.mxu0 0.0
        %1470 = vmatprep.subr.mxu0 0.0
        %1471 = vmatpush1.msra.mxu0 0.0
        %1472 = vmatprep.subr.mxu0 0.0
        %1473 = vmatpush1.msra.mxu0 0.0
        %1474 = vmatprep.subr.mxu0 0.0
        %1475 = vmatpush1.msra.mxu0 0.0
        %1476 = vmatprep.subr.mxu0 0.0
        %1477 = vmatpush1.msra.mxu0 0.0
        %1478 = vmatprep.subr.mxu0 0.0
        %1479 = vmatpush1.msra.mxu0 0.0
        %1480 = vmatprep.subr.mxu0 0.0
        %1481 = vmatpush1.msra.mxu0 0.0
        %1482 = vmatprep.subr.mxu0 0.0
        %1483 = vmatpush1.msra.mxu0 0.0
        %1484 = vmatprep.subr.mxu0 0.0
        %1485 = vmatpush1.msra.mxu0 0.0
        %1486 = vmatprep.subr.mxu0 0.0
        %1487 = vmatpush1.msra.mxu0 0.0
        %1488 = vmatprep.subr.mxu0 0.0
        %1489 = vmatpush1.msra.mxu0 0.0
        %1490 = vmatprep.subr.mxu0 0.0
        %1491 = vmatpush1.msra.mxu0 0.0
        %1492 = vmatprep.subr.mxu0 0.0
        %1493 = vmatpush1.msra.mxu0 0.0
        %1494 = vmatprep.subr.mxu0 0.0
        %1495 = vmatpush1.msra.mxu0 0.0
        %1496 = vmatprep.subr.mxu0 0.0
        %1497 = vmatpush1.msra.mxu0 0.0
        %1498 = vmatprep.subr.mxu0 0.0
        %1499 = vmatpush1.msra.mxu0 0.0
        %1500 = vmatprep.subr.mxu0 0.0
        %1501 = vmatpush1.msra.mxu0 0.0
        %1502 = vmatprep.subr.mxu0 0.0
        %1503 = vmatpush1.msra.mxu0 0.0
        %1504 = vmatprep.subr.mxu0 0.0
        %1505 = vmatpush1.msra.mxu0 0.0
        %1506 = vmatprep.mubr.f32.mxu0 0.0
        %1507 = vmatmul.mubr.f32.gmra.mrb[0].mxu0 %v405
        %v1508 = vpop.f32.mrb[0].mxu0
        %v1509 = vadd.f32 %v1434, %v1508
        %v1510 = vpop.f32.mrb[0].mxu0
        %1511 = vmatprep.mubr.f32.mxu0 0.0
        %1512 = vmatmul.mubr.f32.gmra.mrb[0].mxu0 %v408
        %v1513 = vpop.f32.mrb[0].mxu0
        %v1514 = vadd.f32 %v1439, %v1513
        %v1515 = vpop.f32.mrb[0].mxu0
        %1516 = vdwg.mxu0
        %s1517 = sadd.s32 %s255, 5
        %s1518 = smul.u32 %s1517, 16
        %s1519 = scalar_lea.vmem %s219, %s1518
        %v1520 = vld [vmem:[%s1519] sm:$0xff]
        %v1521 = vld [vmem:[%s1519 + $0x8] sm:$0xff]
        %1524 = vrot.lane.b32.xlu0 %v1520, 127
        %v1525 = vpop.permute.xlu0 %1524
        %1526 = vrot.lane.b32.xlu0 %v1521, 127
        %v1527 = vpop.permute.xlu0 %1526
        %1530 = vrot.lane.b32.xlu0 %v1520, 126
        %v1531 = vpop.permute.xlu0 %1530
        %1532 = vrot.lane.b32.xlu0 %v1521, 126
        %v1533 = vpop.permute.xlu0 %1532
        %1536 = vrot.lane.b32.xlu0 %v1520, 125
        %v1537 = vpop.permute.xlu0 %1536
        %1538 = vrot.lane.b32.xlu0 %v1521, 125
        %v1539 = vpop.permute.xlu0 %1538
        %1542 = vrot.lane.b32.xlu0 %v1520, 124
        %v1543 = vpop.permute.xlu0 %1542
        %1544 = vrot.lane.b32.xlu0 %v1521, 124
        %v1545 = vpop.permute.xlu0 %1544
        %1548 = vmatprep.subr.mxu0 0.0
        %1549 = vmatpush1.msra.mxu0 %v1520
        %1550 = vmatprep.subr.mxu0 0.0
        %1551 = vmatpush1.msra.mxu0 %v1521
        %1552 = vmatprep.subr.mxu0 0.0
        %1553 = vmatpush1.msra.mxu0 %v1525
        %1554 = vmatprep.subr.mxu0 0.0
        %1555 = vmatpush1.msra.mxu0 %v1527
        %1556 = vmatprep.subr.mxu0 0.0
        %1557 = vmatpush1.msra.mxu0 %v1531
        %1558 = vmatprep.subr.mxu0 0.0
        %1559 = vmatpush1.msra.mxu0 %v1533
        %1560 = vmatprep.subr.mxu0 0.0
        %1561 = vmatpush1.msra.mxu0 %v1537
        %1562 = vmatprep.subr.mxu0 0.0
        %1563 = vmatpush1.msra.mxu0 %v1539
        %1564 = vmatprep.subr.mxu0 0.0
        %1565 = vmatpush1.msra.mxu0 %v1543
        %1566 = vmatprep.subr.mxu0 0.0
        %1567 = vmatpush1.msra.mxu0 %v1545
        %1568 = vmatprep.subr.mxu0 0.0
        %1569 = vmatpush1.msra.mxu0 0.0
        %1570 = vmatprep.subr.mxu0 0.0
        %1571 = vmatpush1.msra.mxu0 0.0
        %1572 = vmatprep.subr.mxu0 0.0
        %1573 = vmatpush1.msra.mxu0 0.0
        %1574 = vmatprep.subr.mxu0 0.0
        %1575 = vmatpush1.msra.mxu0 0.0
        %1576 = vmatprep.subr.mxu0 0.0
        %1577 = vmatpush1.msra.mxu0 0.0
        %1578 = vmatprep.subr.mxu0 0.0
        %1579 = vmatpush1.msra.mxu0 0.0
        %1580 = vmatprep.subr.mxu0 0.0
        %1581 = vmatpush1.msra.mxu0 0.0
        %1582 = vmatprep.subr.mxu0 0.0
        %1583 = vmatpush1.msra.mxu0 0.0
        %1584 = vmatprep.subr.mxu0 0.0
        %1585 = vmatpush1.msra.mxu0 0.0
        %1586 = vmatprep.subr.mxu0 0.0
        %1587 = vmatpush1.msra.mxu0 0.0
        %1588 = vmatprep.subr.mxu0 0.0
        %1589 = vmatpush1.msra.mxu0 0.0
        %1590 = vmatprep.subr.mxu0 0.0
        %1591 = vmatpush1.msra.mxu0 0.0
        %1592 = vmatprep.subr.mxu0 0.0
        %1593 = vmatpush1.msra.mxu0 0.0
        %1594 = vmatprep.subr.mxu0 0.0
        %1595 = vmatpush1.msra.mxu0 0.0
        %1596 = vmatprep.subr.mxu0 0.0
        %1597 = vmatpush1.msra.mxu0 0.0
        %1598 = vmatprep.subr.mxu0 0.0
        %1599 = vmatpush1.msra.mxu0 0.0
        %1600 = vmatprep.subr.mxu0 0.0
        %1601 = vmatpush1.msra.mxu0 0.0
        %1602 = vmatprep.subr.mxu0 0.0
        %1603 = vmatpush1.msra.mxu0 0.0
        %1604 = vmatprep.subr.mxu0 0.0
        %1605 = vmatpush1.msra.mxu0 0.0
        %1606 = vmatprep.subr.mxu0 0.0
        %1607 = vmatpush1.msra.mxu0 0.0
        %1608 = vmatprep.subr.mxu0 0.0
        %1609 = vmatpush1.msra.mxu0 0.0
        %1610 = vmatprep.subr.mxu0 0.0
        %1611 = vmatpush1.msra.mxu0 0.0
        %1612 = vmatprep.mubr.f32.mxu0 0.0
        %1613 = vmatmul.mubr.f32.gmra.mrb[0].mxu0 %v1131
        %v1614 = vpop.f32.mrb[0].mxu0
        %v1615 = vadd.f32 0.0, %v1614
        %v1616 = vpop.f32.mrb[0].mxu0
        %1617 = vmatprep.mubr.f32.mxu0 0.0
        %1618 = vmatmul.mubr.f32.gmra.mrb[0].mxu0 %v1134
        %v1619 = vpop.f32.mrb[0].mxu0
        %v1620 = vadd.f32 0.0, %v1619
        %v1621 = vpop.f32.mrb[0].mxu0
        %1622 = vdwg.mxu0
        %v1623 = vadd.f32 %v1288, %v1615
        %v1624 = vadd.f32 %v1289, %v1620
        %1625 = vmatprep.subr.mxu0 0.0
        %1626 = vmatpush1.msra.mxu0 %v1520
        %1627 = vmatprep.subr.mxu0 0.0
        %1628 = vmatpush1.msra.mxu0 %v1521
        %1629 = vmatprep.subr.mxu0 0.0
        %1630 = vmatpush1.msra.mxu0 %v1525
        %1631 = vmatprep.subr.mxu0 0.0
        %1632 = vmatpush1.msra.mxu0 %v1527
        %1633 = vmatprep.subr.mxu0 0.0
        %1634 = vmatpush1.msra.mxu0 %v1531
        %1635 = vmatprep.subr.mxu0 0.0
        %1636 = vmatpush1.msra.mxu0 %v1533
        %1637 = vmatprep.subr.mxu0 0.0
        %1638 = vmatpush1.msra.mxu0 %v1537
        %1639 = vmatprep.subr.mxu0 0.0
        %1640 = vmatpush1.msra.mxu0 %v1539
        %1641 = vmatprep.subr.mxu0 0.0
        %1642 = vmatpush1.msra.mxu0 %v1543
        %1643 = vmatprep.subr.mxu0 0.0
        %1644 = vmatpush1.msra.mxu0 %v1545
        %1645 = vmatprep.subr.mxu0 0.0
        %1646 = vmatpush1.msra.mxu0 0.0
        %1647 = vmatprep.subr.mxu0 0.0
        %1648 = vmatpush1.msra.mxu0 0.0
        %1649 = vmatprep.subr.mxu0 0.0
        %1650 = vmatpush1.msra.mxu0 0.0
        %1651 = vmatprep.subr.mxu0 0.0
        %1652 = vmatpush1.msra.mxu0 0.0
        %1653 = vmatprep.subr.mxu0 0.0
        %1654 = vmatpush1.msra.mxu0 0.0
        %1655 = vmatprep.subr.mxu0 0.0
        %1656 = vmatpush1.msra.mxu0 0.0
        %1657 = vmatprep.subr.mxu0 0.0
        %1658 = vmatpush1.msra.mxu0 0.0
        %1659 = vmatprep.subr.mxu0 0.0
        %1660 = vmatpush1.msra.mxu0 0.0
        %1661 = vmatprep.subr.mxu0 0.0
        %1662 = vmatpush1.msra.mxu0 0.0
        %1663 = vmatprep.subr.mxu0 0.0
        %1664 = vmatpush1.msra.mxu0 0.0
        %1665 = vmatprep.subr.mxu0 0.0
        %1666 = vmatpush1.msra.mxu0 0.0
        %1667 = vmatprep.subr.mxu0 0.0
        %1668 = vmatpush1.msra.mxu0 0.0
        %1669 = vmatprep.subr.mxu0 0.0
        %1670 = vmatpush1.msra.mxu0 0.0
        %1671 = vmatprep.subr.mxu0 0.0
        %1672 = vmatpush1.msra.mxu0 0.0
        %1673 = vmatprep.subr.mxu0 0.0
        %1674 = vmatpush1.msra.mxu0 0.0
        %1675 = vmatprep.subr.mxu0 0.0
        %1676 = vmatpush1.msra.mxu0 0.0
        %1677 = vmatprep.subr.mxu0 0.0
        %1678 = vmatpush1.msra.mxu0 0.0
        %1679 = vmatprep.subr.mxu0 0.0
        %1680 = vmatpush1.msra.mxu0 0.0
        %1681 = vmatprep.subr.mxu0 0.0
        %1682 = vmatpush1.msra.mxu0 0.0
        %1683 = vmatprep.subr.mxu0 0.0
        %1684 = vmatpush1.msra.mxu0 0.0
        %1685 = vmatprep.subr.mxu0 0.0
        %1686 = vmatpush1.msra.mxu0 0.0
        %1687 = vmatprep.subr.mxu0 0.0
        %1688 = vmatpush1.msra.mxu0 0.0
        %1689 = vmatprep.mubr.f32.mxu0 0.0
        %1690 = vmatmul.mubr.f32.gmra.mrb[0].mxu0 %v787
        %v1691 = vpop.f32.mrb[0].mxu0
        %v1692 = vadd.f32 0.0, %v1691
        %v1693 = vpop.f32.mrb[0].mxu0
        %1694 = vmatprep.mubr.f32.mxu0 0.0
        %1695 = vmatmul.mubr.f32.gmra.mrb[0].mxu0 %v790
        %v1696 = vpop.f32.mrb[0].mxu0
        %v1697 = vadd.f32 0.0, %v1696
        %v1698 = vpop.f32.mrb[0].mxu0
        %1699 = vdwg.mxu0
        %v1700 = vadd.f32 %v1365, %v1692
        %v1701 = vadd.f32 %v1366, %v1697
        %1702 = vmatprep.subr.mxu0 0.0
        %1703 = vmatpush1.msra.mxu0 %v1520
        %1704 = vmatprep.subr.mxu0 0.0
        %1705 = vmatpush1.msra.mxu0 %v1521
        %1706 = vmatprep.subr.mxu0 0.0
        %1707 = vmatpush1.msra.mxu0 %v1525
        %1708 = vmatprep.subr.mxu0 0.0
        %1709 = vmatpush1.msra.mxu0 %v1527
        %1710 = vmatprep.subr.mxu0 0.0
        %1711 = vmatpush1.msra.mxu0 %v1531
        %1712 = vmatprep.subr.mxu0 0.0
        %1713 = vmatpush1.msra.mxu0 %v1533
        %1714 = vmatprep.subr.mxu0 0.0
        %1715 = vmatpush1.msra.mxu0 %v1537
        %1716 = vmatprep.subr.mxu0 0.0
        %1717 = vmatpush1.msra.mxu0 %v1539
        %1718 = vmatprep.subr.mxu0 0.0
        %1719 = vmatpush1.msra.mxu0 %v1543
        %1720 = vmatprep.subr.mxu0 0.0
        %1721 = vmatpush1.msra.mxu0 %v1545
        %1722 = vmatprep.subr.mxu0 0.0
        %1723 = vmatpush1.msra.mxu0 0.0
        %1724 = vmatprep.subr.mxu0 0.0
        %1725 = vmatpush1.msra.mxu0 0.0
        %1726 = vmatprep.subr.mxu0 0.0
        %1727 = vmatpush1.msra.mxu0 0.0
        %1728 = vmatprep.subr.mxu0 0.0
        %1729 = vmatpush1.msra.mxu0 0.0
        %1730 = vmatprep.subr.mxu0 0.0
        %1731 = vmatpush1.msra.mxu0 0.0
        %1732 = vmatprep.subr.mxu0 0.0
        %1733 = vmatpush1.msra.mxu0 0.0
        %1734 = vmatprep.subr.mxu0 0.0
        %1735 = vmatpush1.msra.mxu0 0.0
        %1736 = vmatprep.subr.mxu0 0.0
        %1737 = vmatpush1.msra.mxu0 0.0
        %1738 = vmatprep.subr.mxu0 0.0
        %1739 = vmatpush1.msra.mxu0 0.0
        %1740 = vmatprep.subr.mxu0 0.0
        %1741 = vmatpush1.msra.mxu0 0.0
        %1742 = vmatprep.subr.mxu0 0.0
        %1743 = vmatpush1.msra.mxu0 0.0
        %1744 = vmatprep.subr.mxu0 0.0
        %1745 = vmatpush1.msra.mxu0 0.0
        %1746 = vmatprep.subr.mxu0 0.0
        %1747 = vmatpush1.msra.mxu0 0.0
        %1748 = vmatprep.subr.mxu0 0.0
        %1749 = vmatpush1.msra.mxu0 0.0
        %1750 = vmatprep.subr.mxu0 0.0
        %1751 = vmatpush1.msra.mxu0 0.0
        %1752 = vmatprep.subr.mxu0 0.0
        %1753 = vmatpush1.msra.mxu0 0.0
        %1754 = vmatprep.subr.mxu0 0.0
        %1755 = vmatpush1.msra.mxu0 0.0
        %1756 = vmatprep.subr.mxu0 0.0
        %1757 = vmatpush1.msra.mxu0 0.0
        %1758 = vmatprep.subr.mxu0 0.0
        %1759 = vmatpush1.msra.mxu0 0.0
        %1760 = vmatprep.subr.mxu0 0.0
        %1761 = vmatpush1.msra.mxu0 0.0
        %1762 = vmatprep.subr.mxu0 0.0
        %1763 = vmatpush1.msra.mxu0 0.0
        %1764 = vmatprep.subr.mxu0 0.0
        %1765 = vmatpush1.msra.mxu0 0.0
        %1766 = vmatprep.mubr.f32.mxu0 0.0
        %1767 = vmatmul.mubr.f32.gmra.mrb[0].mxu0 %v520
        %v1768 = vpop.f32.mrb[0].mxu0
        %v1769 = vadd.f32 0.0, %v1768
        %v1770 = vpop.f32.mrb[0].mxu0
        %1771 = vmatprep.mubr.f32.mxu0 0.0
        %1772 = vmatmul.mubr.f32.gmra.mrb[0].mxu0 %v523
        %v1773 = vpop.f32.mrb[0].mxu0
        %v1774 = vadd.f32 0.0, %v1773
        %v1775 = vpop.f32.mrb[0].mxu0
        %1776 = vdwg.mxu0
        %v1777 = vadd.f32 %v1509, %v1769
        %v1778 = vadd.f32 %v1514, %v1774
        %s1779 = sadd.s32 %s255, 6
        %s1780 = smul.u32 %s1779, 16
        %s1781 = scalar_lea.vmem %s219, %s1780
        %v1782 = vld [vmem:[%s1781] sm:$0xff]
        %v1783 = vld [vmem:[%s1781 + $0x8] sm:$0xff]
        %1786 = vrot.lane.b32.xlu0 %v1782, 127
        %v1787 = vpop.permute.xlu0 %1786
        %1788 = vrot.lane.b32.xlu0 %v1783, 127
        %v1789 = vpop.permute.xlu0 %1788
        %1792 = vrot.lane.b32.xlu0 %v1782, 126
        %v1793 = vpop.permute.xlu0 %1792
        %1794 = vrot.lane.b32.xlu0 %v1783, 126
        %v1795 = vpop.permute.xlu0 %1794
        %1798 = vrot.lane.b32.xlu0 %v1782, 125
        %v1799 = vpop.permute.xlu0 %1798
        %1800 = vrot.lane.b32.xlu0 %v1783, 125
        %v1801 = vpop.permute.xlu0 %1800
        %1804 = vrot.lane.b32.xlu0 %v1782, 124
        %v1805 = vpop.permute.xlu0 %1804
        %1806 = vrot.lane.b32.xlu0 %v1783, 124
        %v1807 = vpop.permute.xlu0 %1806
        %1810 = vmatprep.subr.mxu0 0.0
        %1811 = vmatpush1.msra.mxu0 %v1782
        %1812 = vmatprep.subr.mxu0 0.0
        %1813 = vmatpush1.msra.mxu0 %v1783
        %1814 = vmatprep.subr.mxu0 0.0
        %1815 = vmatpush1.msra.mxu0 %v1787
        %1816 = vmatprep.subr.mxu0 0.0
        %1817 = vmatpush1.msra.mxu0 %v1789
        %1818 = vmatprep.subr.mxu0 0.0
        %1819 = vmatpush1.msra.mxu0 %v1793
        %1820 = vmatprep.subr.mxu0 0.0
        %1821 = vmatpush1.msra.mxu0 %v1795
        %1822 = vmatprep.subr.mxu0 0.0
        %1823 = vmatpush1.msra.mxu0 %v1799
        %1824 = vmatprep.subr.mxu0 0.0
        %1825 = vmatpush1.msra.mxu0 %v1801
        %1826 = vmatprep.subr.mxu0 0.0
        %1827 = vmatpush1.msra.mxu0 %v1805
        %1828 = vmatprep.subr.mxu0 0.0
        %1829 = vmatpush1.msra.mxu0 %v1807
        %1830 = vmatprep.subr.mxu0 0.0
        %1831 = vmatpush1.msra.mxu0 0.0
        %1832 = vmatprep.subr.mxu0 0.0
        %1833 = vmatpush1.msra.mxu0 0.0
        %1834 = vmatprep.subr.mxu0 0.0
        %1835 = vmatpush1.msra.mxu0 0.0
        %1836 = vmatprep.subr.mxu0 0.0
        %1837 = vmatpush1.msra.mxu0 0.0
        %1838 = vmatprep.subr.mxu0 0.0
        %1839 = vmatpush1.msra.mxu0 0.0
        %1840 = vmatprep.subr.mxu0 0.0
        %1841 = vmatpush1.msra.mxu0 0.0
        %1842 = vmatprep.subr.mxu0 0.0
        %1843 = vmatpush1.msra.mxu0 0.0
        %1844 = vmatprep.subr.mxu0 0.0
        %1845 = vmatpush1.msra.mxu0 0.0
        %1846 = vmatprep.subr.mxu0 0.0
        %1847 = vmatpush1.msra.mxu0 0.0
        %1848 = vmatprep.subr.mxu0 0.0
        %1849 = vmatpush1.msra.mxu0 0.0
        %1850 = vmatprep.subr.mxu0 0.0
        %1851 = vmatpush1.msra.mxu0 0.0
        %1852 = vmatprep.subr.mxu0 0.0
        %1853 = vmatpush1.msra.mxu0 0.0
        %1854 = vmatprep.subr.mxu0 0.0
        %1855 = vmatpush1.msra.mxu0 0.0
        %1856 = vmatprep.subr.mxu0 0.0
        %1857 = vmatpush1.msra.mxu0 0.0
        %1858 = vmatprep.subr.mxu0 0.0
        %1859 = vmatpush1.msra.mxu0 0.0
        %1860 = vmatprep.subr.mxu0 0.0
        %1861 = vmatpush1.msra.mxu0 0.0
        %1862 = vmatprep.subr.mxu0 0.0
        %1863 = vmatpush1.msra.mxu0 0.0
        %1864 = vmatprep.subr.mxu0 0.0
        %1865 = vmatpush1.msra.mxu0 0.0
        %1866 = vmatprep.subr.mxu0 0.0
        %1867 = vmatpush1.msra.mxu0 0.0
        %1868 = vmatprep.subr.mxu0 0.0
        %1869 = vmatpush1.msra.mxu0 0.0
        %1870 = vmatprep.subr.mxu0 0.0
        %1871 = vmatpush1.msra.mxu0 0.0
        %1872 = vmatprep.subr.mxu0 0.0
        %1873 = vmatpush1.msra.mxu0 0.0
        %1874 = vmatprep.mubr.f32.mxu0 0.0
        %1875 = vmatmul.mubr.f32.gmra.mrb[0].mxu0 %v1131
        %v1876 = vpop.f32.mrb[0].mxu0
        %v1877 = vadd.f32 0.0, %v1876
        %v1878 = vpop.f32.mrb[0].mxu0
        %1879 = vmatprep.mubr.f32.mxu0 0.0
        %1880 = vmatmul.mubr.f32.gmra.mrb[0].mxu0 %v1134
        %v1881 = vpop.f32.mrb[0].mxu0
        %v1882 = vadd.f32 0.0, %v1881
        %v1883 = vpop.f32.mrb[0].mxu0
        %1884 = vdwg.mxu0
        %v1885 = vadd.f32 %v1700, %v1877
        %v1886 = vadd.f32 %v1701, %v1882
        %1887 = vmatprep.subr.mxu0 0.0
        %1888 = vmatpush1.msra.mxu0 %v1782
        %1889 = vmatprep.subr.mxu0 0.0
        %1890 = vmatpush1.msra.mxu0 %v1783
        %1891 = vmatprep.subr.mxu0 0.0
        %1892 = vmatpush1.msra.mxu0 %v1787
        %1893 = vmatprep.subr.mxu0 0.0
        %1894 = vmatpush1.msra.mxu0 %v1789
        %1895 = vmatprep.subr.mxu0 0.0
        %1896 = vmatpush1.msra.mxu0 %v1793
        %1897 = vmatprep.subr.mxu0 0.0
        %1898 = vmatpush1.msra.mxu0 %v1795
        %1899 = vmatprep.subr.mxu0 0.0
        %1900 = vmatpush1.msra.mxu0 %v1799
        %1901 = vmatprep.subr.mxu0 0.0
        %1902 = vmatpush1.msra.mxu0 %v1801
        %1903 = vmatprep.subr.mxu0 0.0
        %1904 = vmatpush1.msra.mxu0 %v1805
        %1905 = vmatprep.subr.mxu0 0.0
        %1906 = vmatpush1.msra.mxu0 %v1807
        %1907 = vmatprep.subr.mxu0 0.0
        %1908 = vmatpush1.msra.mxu0 0.0
        %1909 = vmatprep.subr.mxu0 0.0
        %1910 = vmatpush1.msra.mxu0 0.0
        %1911 = vmatprep.subr.mxu0 0.0
        %1912 = vmatpush1.msra.mxu0 0.0
        %1913 = vmatprep.subr.mxu0 0.0
        %1914 = vmatpush1.msra.mxu0 0.0
        %1915 = vmatprep.subr.mxu0 0.0
        %1916 = vmatpush1.msra.mxu0 0.0
        %1917 = vmatprep.subr.mxu0 0.0
        %1918 = vmatpush1.msra.mxu0 0.0
        %1919 = vmatprep.subr.mxu0 0.0
        %1920 = vmatpush1.msra.mxu0 0.0
        %1921 = vmatprep.subr.mxu0 0.0
        %1922 = vmatpush1.msra.mxu0 0.0
        %1923 = vmatprep.subr.mxu0 0.0
        %1924 = vmatpush1.msra.mxu0 0.0
        %1925 = vmatprep.subr.mxu0 0.0
        %1926 = vmatpush1.msra.mxu0 0.0
        %1927 = vmatprep.subr.mxu0 0.0
        %1928 = vmatpush1.msra.mxu0 0.0
        %1929 = vmatprep.subr.mxu0 0.0
        %1930 = vmatpush1.msra.mxu0 0.0
        %1931 = vmatprep.subr.mxu0 0.0
        %1932 = vmatpush1.msra.mxu0 0.0
        %1933 = vmatprep.subr.mxu0 0.0
        %1934 = vmatpush1.msra.mxu0 0.0
        %1935 = vmatprep.subr.mxu0 0.0
        %1936 = vmatpush1.msra.mxu0 0.0
        %1937 = vmatprep.subr.mxu0 0.0
        %1938 = vmatpush1.msra.mxu0 0.0
        %1939 = vmatprep.subr.mxu0 0.0
        %1940 = vmatpush1.msra.mxu0 0.0
        %1941 = vmatprep.subr.mxu0 0.0
        %1942 = vmatpush1.msra.mxu0 0.0
        %1943 = vmatprep.subr.mxu0 0.0
        %1944 = vmatpush1.msra.mxu0 0.0
        %1945 = vmatprep.subr.mxu0 0.0
        %1946 = vmatpush1.msra.mxu0 0.0
        %1947 = vmatprep.subr.mxu0 0.0
        %1948 = vmatpush1.msra.mxu0 0.0
        %1949 = vmatprep.subr.mxu0 0.0
        %1950 = vmatpush1.msra.mxu0 0.0
        %1951 = vmatprep.mubr.f32.mxu0 0.0
        %1952 = vmatmul.mubr.f32.gmra.mrb[0].mxu0 %v787
        %v1953 = vpop.f32.mrb[0].mxu0
        %v1954 = vadd.f32 0.0, %v1953
        %v1955 = vpop.f32.mrb[0].mxu0
        %1956 = vmatprep.mubr.f32.mxu0 0.0
        %1957 = vmatmul.mubr.f32.gmra.mrb[0].mxu0 %v790
        %v1958 = vpop.f32.mrb[0].mxu0
        %v1959 = vadd.f32 0.0, %v1958
        %v1960 = vpop.f32.mrb[0].mxu0
        %1961 = vdwg.mxu0
        %v1962 = vadd.f32 %v1777, %v1954
        %v1963 = vadd.f32 %v1778, %v1959
        %s1964 = sadd.s32 %s255, 7
        %s1965 = smul.u32 %s1964, 16
        %s1966 = scalar_lea.vmem %s219, %s1965
        %v1967 = vld [vmem:[%s1966] sm:$0xff]
        %v1968 = vld [vmem:[%s1966 + $0x8] sm:$0xff]
        %1971 = vrot.lane.b32.xlu0 %v1967, 127
        %v1972 = vpop.permute.xlu0 %1971
        %1973 = vrot.lane.b32.xlu0 %v1968, 127
        %v1974 = vpop.permute.xlu0 %1973
        %1977 = vrot.lane.b32.xlu0 %v1967, 126
        %v1978 = vpop.permute.xlu0 %1977
        %1979 = vrot.lane.b32.xlu0 %v1968, 126
        %v1980 = vpop.permute.xlu0 %1979
        %1983 = vrot.lane.b32.xlu0 %v1967, 125
        %v1984 = vpop.permute.xlu0 %1983
        %1985 = vrot.lane.b32.xlu0 %v1968, 125
        %v1986 = vpop.permute.xlu0 %1985
        %1989 = vrot.lane.b32.xlu0 %v1967, 124
        %v1990 = vpop.permute.xlu0 %1989
        %1991 = vrot.lane.b32.xlu0 %v1968, 124
        %v1992 = vpop.permute.xlu0 %1991
        %1995 = vmatprep.subr.mxu0 0.0
        %1996 = vmatpush1.msra.mxu0 %v1967
        %1997 = vmatprep.subr.mxu0 0.0
        %1998 = vmatpush1.msra.mxu0 %v1968
        %1999 = vmatprep.subr.mxu0 0.0
        %2000 = vmatpush1.msra.mxu0 %v1972
        %2001 = vmatprep.subr.mxu0 0.0
        %2002 = vmatpush1.msra.mxu0 %v1974
        %2003 = vmatprep.subr.mxu0 0.0
        %2004 = vmatpush1.msra.mxu0 %v1978
        %2005 = vmatprep.subr.mxu0 0.0
        %2006 = vmatpush1.msra.mxu0 %v1980
        %2007 = vmatprep.subr.mxu0 0.0
        %2008 = vmatpush1.msra.mxu0 %v1984
        %2009 = vmatprep.subr.mxu0 0.0
        %2010 = vmatpush1.msra.mxu0 %v1986
        %2011 = vmatprep.subr.mxu0 0.0
        %2012 = vmatpush1.msra.mxu0 %v1990
        %2013 = vmatprep.subr.mxu0 0.0
        %2014 = vmatpush1.msra.mxu0 %v1992
        %2015 = vmatprep.subr.mxu0 0.0
        %2016 = vmatpush1.msra.mxu0 0.0
        %2017 = vmatprep.subr.mxu0 0.0
        %2018 = vmatpush1.msra.mxu0 0.0
        %2019 = vmatprep.subr.mxu0 0.0
        %2020 = vmatpush1.msra.mxu0 0.0
        %2021 = vmatprep.subr.mxu0 0.0
        %2022 = vmatpush1.msra.mxu0 0.0
        %2023 = vmatprep.subr.mxu0 0.0
        %2024 = vmatpush1.msra.mxu0 0.0
        %2025 = vmatprep.subr.mxu0 0.0
        %2026 = vmatpush1.msra.mxu0 0.0
        %2027 = vmatprep.subr.mxu0 0.0
        %2028 = vmatpush1.msra.mxu0 0.0
        %2029 = vmatprep.subr.mxu0 0.0
        %2030 = vmatpush1.msra.mxu0 0.0
        %2031 = vmatprep.subr.mxu0 0.0
        %2032 = vmatpush1.msra.mxu0 0.0
        %2033 = vmatprep.subr.mxu0 0.0
        %2034 = vmatpush1.msra.mxu0 0.0
        %2035 = vmatprep.subr.mxu0 0.0
        %2036 = vmatpush1.msra.mxu0 0.0
        %2037 = vmatprep.subr.mxu0 0.0
        %2038 = vmatpush1.msra.mxu0 0.0
        %2039 = vmatprep.subr.mxu0 0.0
        %2040 = vmatpush1.msra.mxu0 0.0
        %2041 = vmatprep.subr.mxu0 0.0
        %2042 = vmatpush1.msra.mxu0 0.0
        %2043 = vmatprep.subr.mxu0 0.0
        %2044 = vmatpush1.msra.mxu0 0.0
        %2045 = vmatprep.subr.mxu0 0.0
        %2046 = vmatpush1.msra.mxu0 0.0
        %2047 = vmatprep.subr.mxu0 0.0
        %2048 = vmatpush1.msra.mxu0 0.0
        %2049 = vmatprep.subr.mxu0 0.0
        %2050 = vmatpush1.msra.mxu0 0.0
        %2051 = vmatprep.subr.mxu0 0.0
        %2052 = vmatpush1.msra.mxu0 0.0
        %2053 = vmatprep.subr.mxu0 0.0
        %2054 = vmatpush1.msra.mxu0 0.0
        %2055 = vmatprep.subr.mxu0 0.0
        %2056 = vmatpush1.msra.mxu0 0.0
        %2057 = vmatprep.subr.mxu0 0.0
        %2058 = vmatpush1.msra.mxu0 0.0
        %2059 = vmatprep.mubr.f32.mxu0 0.0
        %2060 = vmatmul.mubr.f32.gmra.mrb[0].mxu0 %v1131
        %v2061 = vpop.f32.mrb[0].mxu0
        %v2062 = vadd.f32 0.0, %v2061
        %v2063 = vpop.f32.mrb[0].mxu0
        %2064 = vmatprep.mubr.f32.mxu0 0.0
        %2065 = vmatmul.mubr.f32.gmra.mrb[0].mxu0 %v1134
        %v2066 = vpop.f32.mrb[0].mxu0
        %v2067 = vadd.f32 0.0, %v2066
        %v2068 = vpop.f32.mrb[0].mxu0
        %2069 = vdwg.mxu0
        %v2070 = vadd.f32 %v1962, %v2062
        %v2071 = vadd.f32 %v1963, %v2067
        %v2072 = vmax.f32 %v1211, 0.0
        %v2073 = vmax.f32 %v1212, 0.0
        %v2074 = vmul.f32 %v2072, %v230
        %v2075 = vmul.f32 %v2073, %v235
        %v2076 = vadd.f32 %v2074, %v242
        %v2077 = vadd.f32 %v2075, %v247
        %v2078 = vmax.f32 %v1623, 0.0
        %v2079 = vmax.f32 %v1624, 0.0
        %v2080 = vmul.f32 %v2078, %v230
        %v2081 = vmul.f32 %v2079, %v235
        %v2082 = vadd.f32 %v2080, %v242
        %v2083 = vadd.f32 %v2081, %v247
        %v2084 = vmax.f32 %v2076, %v2082
        %v2085 = vmax.f32 %v2077, %v2083
        %v2086 = vmax.f32 %v1885, 0.0
        %v2087 = vmax.f32 %v1886, 0.0
        %v2088 = vmul.f32 %v2086, %v230
        %v2089 = vmul.f32 %v2087, %v235
        %v2090 = vadd.f32 %v2088, %v242
        %v2091 = vadd.f32 %v2089, %v247
        %v2092 = vmax.f32 %v2084, %v2090
        %v2093 = vmax.f32 %v2085, %v2091
        %v2094 = vmax.f32 %v2070, 0.0
        %v2095 = vmax.f32 %v2071, 0.0
        %v2096 = vmul.f32 %v2094, %v230
        %v2097 = vmul.f32 %v2095, %v235
        %v2098 = vadd.f32 %v2096, %v242
        %v2099 = vadd.f32 %v2097, %v247
        %v2100 = vmax.f32 %v2092, %v2098
        %v2101 = vmax.f32 %v2093, %v2099
        %v2102 = vld [vmem:[%s4] sm:$0xff]
        %v2103 = vld [vmem:[%s4 + $0x8] sm:$0xff]
        %v2104 = vld [vmem:[%s4 + $0x10] sm:$0xff]
        %v2105 = vld [vmem:[%s4 + $0x18] sm:$0xff]
        %vm2106 = vcmask 261120
        %v2108 = vsel %vm2106, %v2100, 0
        %v2111 = vsel %vm2106, %v2101, 0
        %2113 = vmatprep.subr.mxu0 0.0
        %2114 = vmatpush1.msra.mxu0 %v2102
        %2115 = vmatprep.subr.mxu0 0.0
        %2116 = vmatpush1.msra.mxu0 %v2103
        %2117 = vmatprep.subr.mxu0 0.0
        %2118 = vmatpush1.msra.mxu0 %v2104
        %2119 = vmatprep.subr.mxu0 0.0
        %2120 = vmatpush1.msra.mxu0 %v2105
        %2121 = vmatprep.subr.mxu0 0.0
        %2122 = vmatpush1.msra.mxu0 0.0
        %2123 = vmatprep.subr.mxu0 0.0
        %2124 = vmatpush1.msra.mxu0 0.0
        %2125 = vmatprep.subr.mxu0 0.0
        %2126 = vmatpush1.msra.mxu0 0.0
        %2127 = vmatprep.subr.mxu0 0.0
        %2128 = vmatpush1.msra.mxu0 0.0
        %2129 = vmatprep.subr.mxu0 0.0
        %2130 = vmatpush1.msra.mxu0 0.0
        %2131 = vmatprep.subr.mxu0 0.0
        %2132 = vmatpush1.msra.mxu0 0.0
        %2133 = vmatprep.subr.mxu0 0.0
        %2134 = vmatpush1.msra.mxu0 0.0
        %2135 = vmatprep.subr.mxu0 0.0
        %2136 = vmatpush1.msra.mxu0 0.0
        %2137 = vmatprep.subr.mxu0 0.0
        %2138 = vmatpush1.msra.mxu0 0.0
        %2139 = vmatprep.subr.mxu0 0.0
        %2140 = vmatpush1.msra.mxu0 0.0
        %2141 = vmatprep.subr.mxu0 0.0
        %2142 = vmatpush1.msra.mxu0 0.0
        %2143 = vmatprep.subr.mxu0 0.0
        %2144 = vmatpush1.msra.mxu0 0.0
        %2145 = vmatprep.subr.mxu0 0.0
        %2146 = vmatpush1.msra.mxu0 0.0
        %2147 = vmatprep.subr.mxu0 0.0
        %2148 = vmatpush1.msra.mxu0 0.0
        %2149 = vmatprep.subr.mxu0 0.0
        %2150 = vmatpush1.msra.mxu0 0.0
        %2151 = vmatprep.subr.mxu0 0.0
        %2152 = vmatpush1.msra.mxu0 0.0
        %2153 = vmatprep.subr.mxu0 0.0
        %2154 = vmatpush1.msra.mxu0 0.0
        %2155 = vmatprep.subr.mxu0 0.0
        %2156 = vmatpush1.msra.mxu0 0.0
        %2157 = vmatprep.subr.mxu0 0.0
        %2158 = vmatpush1.msra.mxu0 0.0
        %2159 = vmatprep.subr.mxu0 0.0
        %2160 = vmatpush1.msra.mxu0 0.0
        %2161 = vmatprep.subr.mxu0 0.0
        %2162 = vmatpush1.msra.mxu0 0.0
        %2163 = vmatprep.subr.mxu0 0.0
        %2164 = vmatpush1.msra.mxu0 0.0
        %2165 = vmatprep.subr.mxu0 0.0
        %2166 = vmatpush1.msra.mxu0 0.0
        %2167 = vmatprep.subr.mxu0 0.0
        %2168 = vmatpush1.msra.mxu0 0.0
        %2169 = vmatprep.subr.mxu0 0.0
        %2170 = vmatpush1.msra.mxu0 0.0
        %2171 = vmatprep.subr.mxu0 0.0
        %2172 = vmatpush1.msra.mxu0 0.0
        %2173 = vmatprep.subr.mxu0 0.0
        %2174 = vmatpush1.msra.mxu0 0.0
        %2175 = vmatprep.subr.mxu0 0.0
        %2176 = vmatpush1.msra.mxu0 0.0
        %2177 = vmatprep.mubr.f32.mxu0 0.0
        %2178 = vmatmul.mubr.f32.gmra.mrb[0].mxu0 %v2108
        %v2179 = vpop.f32.mrb[0].mxu0
        %v2180 = vadd.f32 0.0, %v2179
        %v2181 = vpop.f32.mrb[0].mxu0
        %2182 = vmatprep.mubr.f32.mxu0 0.0
        %2183 = vmatmul.mubr.f32.gmra.mrb[0].mxu0 %v2111
        %v2184 = vpop.f32.mrb[0].mxu0
        %v2185 = vadd.f32 0.0, %v2184
        %v2186 = vpop.f32.mrb[0].mxu0
        %2187 = vdwg.mxu0
        %2190 = vrot.lane.b32.xlu0 %v2180, 120
        %v2191 = vpop.permute.xlu0 %2190
        %2192 = vrot.lane.b32.xlu0 %v2185, 120
        %v2193 = vpop.permute.xlu0 %2192
        %v2196 = vmax.f32 %v2180, %v2191
        %v2197 = vmax.f32 %v2185, %v2193
        %2198 = vrot.lane.b32.xlu0 %v2180, 112
        %v2199 = vpop.permute.xlu0 %2198
        %2200 = vrot.lane.b32.xlu0 %v2185, 112
        %v2201 = vpop.permute.xlu0 %2200
        %v2204 = vmax.f32 %v2196, %v2199
        %v2205 = vmax.f32 %v2197, %v2201
        %2206 = vrot.lane.b32.xlu0 %v2180, 104
        %v2207 = vpop.permute.xlu0 %2206
        %2208 = vrot.lane.b32.xlu0 %v2185, 104
        %v2209 = vpop.permute.xlu0 %2208
        %v2212 = vmax.f32 %v2204, %v2207
        %v2213 = vmax.f32 %v2205, %v2209
        %s2214 = smul.u32 %s250, 16
        %s2215 = scalar_lea.vmem %s224, %s2214
        %vm2216 = vcmask 64512
        %2217 = vst.msk [vmem:[%s2215] sm:$0xff] %vm2216, %v2212
        %2218 = vst.msk [vmem:[%s2215 + $0x8] sm:$0xff] %vm2216, %v2213
      $region45: #{meso4_forward.8} parent=39 // loop_footer
        %s254 = sadd.s32 1, %s250
      $region46: #{meso4_forward.8} parent=39 // loop_footer_branch
        %249 = sbr.rel target = $region42
      $region47: #{meso4_forward.8} parent=39 // loop_exit
        _
      %p2219 = scmp.lt.s32.totalorder %s16, 1
      %s2220 = scalar_select %p2219, %s16, 1
      %s2221 = smul.addr %s2220, 16
      %s2222 = smul.addr %s2221, 8
      %s2223 = scalar_lea.vmem %s5, %s2222
      // Predicated region
      $region48: #{meso4_forward.8} parent=39 // pred_check
        %p2224 = pneg %p144
      $region49: #{meso4_forward.8} parent=39 // pred_check_branch
        %2226 = sbr.rel (%p2224) target = $region51
      $region50: #{meso4_forward.8} parent=39 // pred_region
        _
      $region51: #{meso4_forward.8} parent=39 // pred_fallthru
        _
    $region40: #{meso4_forward.8} parent=5 // pred_fallthru
      _
    %p2227 = scmp.le.s32.totalorder 2, %s11
    // Predicated region
    $region52: #{meso4_forward.8} parent=5 // pred_check
      %p2228 = pneg %p2227
    $region53: #{meso4_forward.8} parent=5 // pred_check_branch
      %2230 = sbr.rel (%p2228) target = $region55
    $region54: #{meso4_forward.8} parent=5 // pred_region
      %s2231 = ssub.s32 %s11, 2
      // Predicated region
      $region56: #{meso4_forward.8} parent=54 // pred_check
        %p2232 = pneg %p150
      $region57: #{meso4_forward.8} parent=54 // pred_check_branch
        %2234 = sbr.rel (%p2232) target = $region59
      $region58: #{meso4_forward.8} parent=54 // pred_region
        %p2235 = scmp.lt.s32.totalorder %s17, 1
        %s2236 = scalar_select %p2235, %s17, 1
        %s2237 = smul.addr %s2236, 16
        %s2238 = smul.addr %s2237, 8
        %s2239 = scalar_lea.vmem %s5, %s2238
      $region59: #{meso4_forward.8} parent=54 // pred_fallthru
        _
    $region55: #{meso4_forward.8} parent=5 // pred_fallthru
      _
  $region6: #{meso4_forward.8} parent=0 // loop_footer
    %s15 = sadd.s32 1, %s11
  $region7: #{meso4_forward.8} parent=0 // loop_footer_branch
    %10 = sbr.rel target = $region3
  $region8: #{meso4_forward.8} parent=0 // loop_exit
    _

</llo_original>
